<compile_context>
chip_gen: v5e
topology: v5e:2x2
jax: 0.10.0
libtpu: 0.0.40
codegen_flags: <defaults>
</compile_context>

<pallas_src>
import functools
import math

import jax
import jax.numpy as jnp
from jax import lax
from jax.experimental import pallas as pl
from jax.experimental.pallas import tpu as pltpu

NEG_SLOPE = 0.01                 # torch.nn.LeakyReLU default
IN_EPS = 1e-5                    # torch.nn.InstanceNorm2d default (affine=False)
VMEM_LIMIT = 32 * 1024 * 1024    # explicit scoped-VMEM cap (safe on v5e/v6e/v7x)
MAX_K_BLOCK = 2048               # single K step below this; 512-wide tiles above


# ----------------------------- Pallas kernels ------------------------------

def _conv_matmul_kernel(p_ref, w_ref, b_ref, o_ref, acc_ref, *, norm):
    """One sample of  Y = W(Cout,K) @ P(K, H*W)  with a fused epilogue.

    Grid = (B, K_tiles); K axis is 'arbitrary' with an f32 VMEM accumulator.
    bias + LeakyReLU (+ InstanceNorm over H*W) run on the last K step only.
    Output lanes = H*W  ->  lane-dense stores, full MXU output columns.
    """
    kk = pl.program_id(1)

    @pl.when(kk == 0)
    def _init():
        acc_ref[...] = jnp.zeros_like(acc_ref)

    acc_ref[...] += jnp.dot(w_ref[...], p_ref[0],
                            preferred_element_type=jnp.float32)

    @pl.when(kk == pl.num_programs(1) - 1)
    def _finalize():
        y = acc_ref[...] + b_ref[...]                 # (Cout, HW) f32
        y = jnp.where(y >= 0, y, NEG_SLOPE * y)       # LeakyReLU
        if norm:                                      # affine-free InstanceNorm
            mean = jnp.mean(y, axis=1, keepdims=True)
            var = jnp.mean((y - mean) ** 2, axis=1, keepdims=True)
            y = (y - mean) * lax.rsqrt(var + IN_EPS)
        o_ref[0] = y


def _upconv_phase_kernel(p_ref, w_ref, b_ref, o_ref):
    """All s*s output-parity phases of one sample's ConvTranspose2d.

    p_ref : (1, P, Kmax, HW) bf16  per-phase im2col patches (no zero dilation)
    w_ref : (P, Cout, Kmax)  bf16  per-phase sub-kernels (zero-padded in K)
    b_ref : (Cout, 1)        f32
    o_ref : (1, P, Cout, HW) f32   pre-interleave phase outputs

    bias + LeakyReLU + InstanceNorm are fused; statistics run over all
    phases x pixels (permutation invariant -> interleaving afterwards is exact).
    """
    n_ph = o_ref.shape[1]
    hw = o_ref.shape[3]
    outs = []
    tot = None
    for ph in range(n_ph):
        y = jnp.dot(w_ref[ph], p_ref[0, ph], preferred_element_type=jnp.float32)
        y = y + b_ref[...]
        y = jnp.where(y >= 0, y, NEG_SLOPE * y)
        outs.append(y)
        s = jnp.sum(y, axis=1, keepdims=True)
        tot = s if tot is None else tot + s
    count = float(n_ph * hw)
    mean = tot / count
    ssq = None
    for y in outs:
        d = y - mean
        v = jnp.sum(d * d, axis=1, keepdims=True)
        ssq = v if ssq is None else ssq + v
    inv = lax.rsqrt(ssq / count + IN_EPS)
    for ph in range(n_ph):
        o_ref[0, ph] = (outs[ph] - mean) * inv


def _final_mlp_kernel(x_ref, w1_ref, b1_ref, w2_ref, b2_ref, o_ref):
    """Per-voxel 1x1x1 conv -> ReLU -> 1x1x1 conv on an M-tile of voxels.

    x_ref: (1, cin, tm) f32, o_ref: (1, ncls, tm) f32.  cin is tiny, so the
    first layer is a VPU broadcast-FMA instead of a K=2 MXU matmul.
    """
    cin = x_ref.shape[1]
    x = x_ref[0]                                      # (cin, tm)
    h = w1_ref[:, 0:1] * x[0:1, :]                    # (mid, tm)
    for ci in range(1, cin):
        h = h + w1_ref[:, ci:ci + 1] * x[ci:ci + 1, :]
    h = jnp.maximum(h + b1_ref[...], 0.0)
    o_ref[0] = jnp.dot(w2_ref[...], h,
                       preferred_element_type=jnp.float32) + b2_ref[...]


# ------------------------------- glue / wrappers ----------------------------

def _round_up(x, m):
    return (x + m - 1) // m * m


def _im2col_nchw(x, k, stride, pad):
    """x (B,C,H,W) -> patches (B, C*k*k, Ho*Wo); K order (c, kh, kw) matches
    PyTorch weight.reshape(Cout, -1).  No transposes, pure stack/reshape."""
    xp = jnp.pad(x, ((0, 0), (0, 0), (pad, pad), (pad, pad)))
    B, C, Hp, Wp = xp.shape
    Ho = (Hp - k) // stride + 1
    Wo = (Wp - k) // stride + 1
    taps = [xp[:, :, di:di + stride * (Ho - 1) + 1:stride,
                     dj:dj + stride * (Wo - 1) + 1:stride]
            for di in range(k) for dj in range(k)]
    p = jnp.stack(taps, axis=2)                       # (B, C, k*k, Ho, Wo)
    return p.reshape(B, C * k * k, Ho * Wo), Ho, Wo


def conv2d_fused(x, w, b, *, stride, norm):
    """PyTorch Conv2d(stride, pad=k//2) + bias + LeakyReLU (+ InstanceNorm)."""
    B, Cin, H, W = x.shape
    Cout, _, k, _ = w.shape
    pad = k // 2
    patches, Ho, Wo = _im2col_nchw(x, k, stride, pad)
    K = Cin * k * k
    wm = w.reshape(Cout, K)
    if K <= MAX_K_BLOCK:
        tk = K
    else:                     # K-tiled path keeps the VMEM footprint bounded
        tk = 512              # (v7x has only 64 MiB VMEM at production widths)
        Kp = _round_up(K, tk)
        patches = jnp.pad(patches, ((0, 0), (0, Kp - K), (0, 0)))
        wm = jnp.pad(wm, ((0, 0), (0, Kp - K)))
        K = Kp
    hw = Ho * Wo
    out = pl.pallas_call(
        functools.partial(_conv_matmul_kernel, norm=norm),
        out_shape=jax.ShapeDtypeStruct((B, Cout, hw), jnp.float32),
        grid_spec=pltpu.PrefetchScalarGridSpec(
            num_scalar_prefetch=0,
            grid=(B, K // tk),
            in_specs=[
                pl.BlockSpec((1, tk, hw), lambda bb, kk: (bb, kk, 0)),
                pl.BlockSpec((Cout, tk), lambda bb, kk: (0, kk)),
                pl.BlockSpec((Cout, 1), lambda bb, kk: (0, 0)),
            ],
            out_specs=pl.BlockSpec((1, Cout, hw), lambda bb, kk: (bb, 0, 0)),
            scratch_shapes=[pltpu.VMEM((Cout, hw), jnp.float32)],
        ),
        compiler_params=pltpu.CompilerParams(
            dimension_semantics=("parallel", "arbitrary"),
            vmem_limit_bytes=VMEM_LIMIT),
    )(patches.astype(jnp.bfloat16), wm.astype(jnp.bfloat16),
      b.reshape(Cout, 1).astype(jnp.float32))
    return out.reshape(B, Cout, Ho, Wo)


def _phase_taps(k, s, p, r):
    """Taps of output-parity phase r of a stride-s transposed conv:
    list of (kernel_index, input_offset) with  y[s*m + r] += x[m + off]*w[ky]."""
    taps = []
    for ky in range(k):
        if (r + p - ky) % s == 0:
            taps.append((ky, (r + p - ky) // s))
    return taps


def conv_transpose2d_fused(x, w_t, b, *, stride, out_hw):
    """PyTorch ConvTranspose2d(stride, pad=k//2, output_size=out_hw) + bias +
    LeakyReLU + InstanceNorm, via the output-parity (sub-pixel) decomposition
    (no zero-dilated input, so no ~75% wasted MXU work)."""
    B, Cin, H, W = x.shape
    _, Cout, k, _ = w_t.shape
    pad = k // 2
    Ho, Wo = int(out_hw[0]), int(out_hw[1])
    if (Ho, Wo) != (stride * H, stride * W):
        # TODO(synk): general output_padding (output_size != stride*input_size)
        # needs per-phase output sizes; not required by this network config.
        raise NotImplementedError("only output_size == stride * input_size")
    s = stride
    n_ph = s * s
    t_max = -(-k // s)                              # ceil(k/s) taps per axis
    k_max = Cin * t_max * t_max
    patch_list, w_list = [], []
    for ry in range(s):
        for rx in range(s):
            taps_y = _phase_taps(k, s, pad, ry)
            taps_x = _phase_taps(k, s, pad, rx)
            off_y = [q for _, q in taps_y]
            off_x = [q for _, q in taps_x]
            lo_y, hi_y = max(0, -min(off_y)), max(0, max(off_y))
            lo_x, hi_x = max(0, -min(off_x)), max(0, max(off_x))
            xp = jnp.pad(x, ((0, 0), (0, 0), (lo_y, hi_y), (lo_x, hi_x)))
            taps = [xp[:, :, qy + lo_y:qy + lo_y + H, qx + lo_x:qx + lo_x + W]
                    for _, qy in taps_y for _, qx in taps_x]
            p = jnp.stack(taps, axis=2).reshape(B, Cin * len(taps), H * W)
            ky_idx = [t[0] for t in taps_y]
            kx_idx = [t[0] for t in taps_x]
            ws = w_t[:, :, ky_idx, :][:, :, :, kx_idx]      # (Cin,Cout,ny,nx)
            ws = ws.transpose(1, 0, 2, 3).reshape(Cout, -1)
            kp = p.shape[1]
            if kp < k_max:      # zero-pad ragged K so all phases share a block
                p = jnp.pad(p, ((0, 0), (0, k_max - kp), (0, 0)))
                ws = jnp.pad(ws, ((0, 0), (0, k_max - kp)))
            patch_list.append(p)
            w_list.append(ws)
    patches = jnp.stack(patch_list, axis=1)         # (B, s*s, Kmax, H*W)
    wph = jnp.stack(w_list, axis=0)                 # (s*s, Cout, Kmax)
    hw = H * W
    out = pl.pallas_call(
        _upconv_phase_kernel,
        out_shape=jax.ShapeDtypeStruct((B, n_ph, Cout, hw), jnp.float32),
        grid_spec=pltpu.PrefetchScalarGridSpec(
            num_scalar_prefetch=0,
            grid=(B,),
            in_specs=[
                pl.BlockSpec((1, n_ph, k_max, hw), lambda bb: (bb, 0, 0, 0)),
                pl.BlockSpec((n_ph, Cout, k_max), lambda bb: (0, 0, 0)),
                pl.BlockSpec((Cout, 1), lambda bb: (0, 0)),
            ],
            out_specs=pl.BlockSpec((1, n_ph, Cout, hw),
                                   lambda bb: (bb, 0, 0, 0)),
        ),
        compiler_params=pltpu.CompilerParams(
            dimension_semantics=("parallel",),
            vmem_limit_bytes=VMEM_LIMIT),
    )(patches.astype(jnp.bfloat16), wph.astype(jnp.bfloat16),
      b.reshape(Cout, 1).astype(jnp.float32))
    # interleave parity phases back onto the spatial grid (one XLA pass)
    out = out.reshape(B, s, s, Cout, H, W)
    out = out.transpose(0, 3, 4, 1, 5, 2).reshape(B, Cout, s * H, s * W)
    return out


def _pick_m_tile(m):
    for t in (4096, 2048, 1024, 512, 256, 128):
        if m % t == 0:
            return t
    return m


def final_classification(x, w1, b1, w2, b2, *, depth):
    # TODO(synk): FinalClassificationLayer source was not provided; modeled as
    # a per-voxel 1x1x1 Conv3d(C/depth -> C) -> ReLU -> Conv3d(C -> nblocks+1)
    # over the (B, C/depth, depth, H, W) channel-unfolded view.
    B, C, H, W = x.shape
    cin = C // depth
    M = depth * H * W
    xf = x.reshape(B, cin, M)     # channel c = ci*depth + d  -> pure reshape
    mid = w1.shape[0]
    ncls = w2.shape[0]
    tm = _pick_m_tile(M)
    out = pl.pallas_call(
        _final_mlp_kernel,
        out_shape=jax.ShapeDtypeStruct((B, ncls, M), jnp.float32),
        grid_spec=pltpu.PrefetchScalarGridSpec(
            num_scalar_prefetch=0,
            grid=(B, M // tm),
            in_specs=[
                pl.BlockSpec((1, cin, tm), lambda bb, mm: (bb, 0, mm)),
                pl.BlockSpec((mid, cin), lambda bb, mm: (0, 0)),
                pl.BlockSpec((mid, 1), lambda bb, mm: (0, 0)),
                pl.BlockSpec((ncls, mid), lambda bb, mm: (0, 0)),
                pl.BlockSpec((ncls, 1), lambda bb, mm: (0, 0)),
            ],
            out_specs=pl.BlockSpec((1, ncls, tm), lambda bb, mm: (bb, 0, mm)),
        ),
        compiler_params=pltpu.CompilerParams(
            dimension_semantics=("parallel", "parallel"),
            vmem_limit_bytes=VMEM_LIMIT),
    )(xf.astype(jnp.float32), w1.astype(jnp.float32),
      b1.reshape(mid, 1).astype(jnp.float32),
      w2.astype(jnp.float32), b2.reshape(ncls, 1).astype(jnp.float32))
    return out.reshape(B, ncls, depth, H, W)


# ------------------------------- BaseUNet -----------------------------------

def base_unet_forward(params, image_input, *, depth, num_layers=5, stride=2):
    down_results = []
    out = image_input

    # ---- down path: Conv2d -> LeakyReLU (-> InstanceNorm, except last) ----
    for i in range(num_layers):
        w, b = params["down"][i]
        norm = i < num_layers - 1   # downnorms[i-1] are identical affine-free INs
        out = conv2d_fused(out, w, b, stride=stride, norm=norm)
        if norm:
            down_results.append(out)
        # torch.nn.Dropout2d: identity at inference (eval mode).

    # ---- up path: ConvTranspose2d -> LeakyReLU -> InstanceNorm ----
    for i in range(num_layers):
        w_t, b = params["up"][i]
        if i > 0:
            resid = down_results.pop()
            out = jnp.concatenate([resid, out], axis=1)
        if i < num_layers - 1:
            desired_hw = down_results[-1].shape[2:]
        else:
            desired_hw = image_input.shape[2:]
        out = conv_transpose2d_fused(out, w_t, b, stride=stride,
                                     out_hw=desired_hw)

    # ---- final classification layer ----
    w1, b1, w2, b2 = params["final"]
    logits = final_classification(out, w1, b1, w2, b2, depth=depth)
    return {"next_position": logits, "pred_block_logits": None}


def init_params(key, in_ch, out_ch, hc_large, hc_small, k, depth, num_blocks):
    keys = iter(jax.random.split(key, 16))

    def w_init(shape):
        fan_in = math.prod(shape[1:])
        return (jax.random.normal(next(keys), shape, jnp.float32)
                / jnp.sqrt(float(fan_in)))

    zeros = lambda n: jnp.zeros((n,), jnp.float32)

    # Conv2d weights: (Cout, Cin, k, k)
    down = [
        (w_init((hc_large, in_ch, k, k)), zeros(hc_large)),
        (w_init((hc_large, hc_large, k, k)), zeros(hc_large)),
        (w_init((hc_large, hc_large, k, k)), zeros(hc_large)),
        (w_init((hc_large, hc_large, k, k)), zeros(hc_large)),
        (w_init((hc_large, hc_large, k, k)), zeros(hc_large)),
    ]
    # ConvTranspose2d weights: (Cin, Cout, k, k)
    up = [
        (w_init((hc_large, hc_large, k, k)), zeros(hc_large)),
        (w_init((2 * hc_large, hc_large, k, k)), zeros(hc_large)),
        (w_init((2 * hc_large, hc_large, k, k)), zeros(hc_large)),
        (w_init((2 * hc_large, hc_small, k, k)), zeros(hc_small)),
        (w_init((hc_large + hc_small, out_ch, k, k)), zeros(out_ch)),
    ]
    # FinalClassificationLayer(out_ch/depth -> out_ch -> num_blocks+1)
    final = (
        w_init((out_ch, out_ch // depth)), zeros(out_ch),          # (mid, cin)
        w_init((num_blocks + 1, out_ch)), zeros(num_blocks + 1),   # (ncls, mid)
    )
    return {"down": down, "up": up, "final": final}


if __name__ == "__main__":
    B, IN_CH, H, W = 2, 4, 32, 32
    OUT_CH, HC_LARGE, HC_SMALL = 14, 16, 8     # out_channels divisible by depth
    K, DEPTH, NUM_BLOCKS = 5, 7, 20

    key = jax.random.PRNGKey(0)
    pkey, xkey = jax.random.split(key)
    params = init_params(pkey, IN_CH, OUT_CH, HC_LARGE, HC_SMALL,
                         K, DEPTH, NUM_BLOCKS)
    x = jax.random.normal(xkey, (B, IN_CH, H, W), jnp.float32)

    fwd = jax.jit(functools.partial(base_unet_forward, depth=DEPTH))
    out = fwd(params, x)
    jax.block_until_ready(out["next_position"])
    assert out["next_position"].shape == (B, NUM_BLOCKS + 1, DEPTH, H, W)
    print("KERNEL_OK")
</pallas_src>

<mosaic_0001>
module attributes {stable_mosaic.version = 11 : i64} {
  func.func @_conv_matmul_kernel(%arg0: i32, %arg1: i32, %arg2: memref<1x100x256xbf16, #tpu.memory_space<vmem>>, %arg3: memref<16x100xbf16, #tpu.memory_space<vmem>>, %arg4: memref<16x1xf32, #tpu.memory_space<vmem>>, %arg5: memref<1x16x256xf32, #tpu.memory_space<vmem>>, %arg6: memref<16x256xf32, #tpu.memory_space<vmem>>) attributes {dimension_semantics = [#tpu.dimension_semantics<parallel>, #tpu.dimension_semantics<arbitrary>], iteration_bounds = array<i64: 2, 1>, scalar_prefetch = 0 : i64, scratch_operands = 1 : i64, tpu.core_type = #tpu.core_type<tc>, window_params = [{transform_indices = @transform_0, window_bounds = array<i64: 1, 100, 256>}, {transform_indices = @transform_1, window_bounds = array<i64: 16, 100>}, {pipeline_mode = #tpu.pipeline_mode<synchronous>, transform_indices = @transform_2, window_bounds = array<i64: 16, 1>}, {transform_indices = @transform_3, window_bounds = array<i64: 1, 16, 256>}]} {
    %c0_i32 = arith.constant 0 : i32
    %0 = arith.cmpi eq, %arg1, %c0_i32 : i32
    %1 = arith.extui %0 : i1 to i32
    %c0_i32_0 = arith.constant 0 : i32
    %2 = arith.cmpi ne, %1, %c0_i32_0 : i32
    scf.if %2 {
      %cst_11 = arith.constant 0.000000e+00 : f32
      %13 = vector.broadcast %cst_11 : f32 to vector<16x256xf32>
      %c0_12 = arith.constant 0 : index
      %c0_13 = arith.constant 0 : index
      %14 = vector.load %arg6[%c0_12, %c0_13] : memref<16x256xf32, #tpu.memory_space<vmem>>, vector<16x256xf32>
      tpu.vector_store %arg6[%c0_12, %c0_13], %13 {strides = array<i32>} : memref<16x256xf32, #tpu.memory_space<vmem>>, vector<16x256xf32>,
    } else {
    }
    %c0 = arith.constant 0 : index
    %c0_1 = arith.constant 0 : index
    %3 = vector.load %arg6[%c0, %c0_1] : memref<16x256xf32, #tpu.memory_space<vmem>>, vector<16x256xf32>
    %c0_2 = arith.constant 0 : index
    %c0_3 = arith.constant 0 : index
    %4 = vector.load %arg3[%c0_2, %c0_3] : memref<16x100xbf16, #tpu.memory_space<vmem>>, vector<16x100xbf16>
    %c0_4 = arith.constant 0 : index
    %c0_5 = arith.constant 0 : index
    %c0_6 = arith.constant 0 : index
    %5 = vector.load %arg2[%c0_4, %c0_5, %c0_6] : memref<1x100x256xbf16, #tpu.memory_space<vmem>>, vector<1x100x256xbf16>
    %6 = vector.shape_cast %5 : vector<1x100x256xbf16> to vector<100x256xbf16>
    %cst = arith.constant dense<0.000000e+00> : vector<16x256xf32>
    %7 = tpu.matmul %4, %6, %cst {dimension_numbers = #tpu.dot_dimension_numbers<[1], [0], [0], [1], [0, 0, 1, 1], [], []>} : vector<16x100xbf16>, vector<100x256xbf16>, vector<16x256xf32> -> vector<16x256xf32>
    %8 = arith.addf %3, %7 : vector<16x256xf32>
    %c0_7 = arith.constant 0 : index
    %c0_8 = arith.constant 0 : index
    %9 = vector.load %arg6[%c0_7, %c0_8] : memref<16x256xf32, #tpu.memory_space<vmem>>, vector<16x256xf32>
    tpu.vector_store %arg6[%c0_7, %c0_8], %8 {strides = array<i32>} : memref<16x256xf32, #tpu.memory_space<vmem>>, vector<16x256xf32>,
    %c0_i32_9 = arith.constant 0 : i32
    %10 = arith.cmpi eq, %arg1, %c0_i32_9 : i32
    %11 = arith.extui %10 : i1 to i32
    %c0_i32_10 = arith.constant 0 : i32
    %12 = arith.cmpi ne, %11, %c0_i32_10 : i32
    scf.if %12 {
      %c0_11 = arith.constant 0 : index
      %c0_12 = arith.constant 0 : index
      %13 = vector.load %arg6[%c0_11, %c0_12] : memref<16x256xf32, #tpu.memory_space<vmem>>, vector<16x256xf32>
      %c0_13 = arith.constant 0 : index
      %c0_14 = arith.constant 0 : index
      %14 = vector.load %arg4[%c0_13, %c0_14] : memref<16x1xf32, #tpu.memory_space<vmem>>, vector<16x1xf32>
      %15 = vector.broadcast %14 : vector<16x1xf32> to vector<16x256xf32>
      %16 = arith.addf %13, %15 : vector<16x256xf32>
      %cst_15 = arith.constant 0.000000e+00 : f32
      %17 = vector.broadcast %cst_15 : f32 to vector<16x256xf32>
      %18 = arith.cmpf oge, %16, %17 : vector<16x256xf32>
      %cst_16 = arith.constant 0.00999999977 : f32
      %19 = vector.broadcast %cst_16 : f32 to vector<16x256xf32>
      %20 = arith.mulf %19, %16 : vector<16x256xf32>
      %21 = arith.select %18, %16, %20 : vector<16x256xi1>, vector<16x256xf32>
      %cst_17 = arith.constant dense<0.000000e+00> : vector<16xf32>
      %22 = vector.multi_reduction <add>, %21, %cst_17 [1] : vector<16x256xf32> to vector<16xf32>
      %23 = vector.shape_cast %22 : vector<16xf32> to vector<16x1xf32>
      %cst_18 = arith.constant 2.560000e+02 : f32
      %24 = vector.broadcast %cst_18 : f32 to vector<16x1xf32>
      %25 = arith.divf %23, %24 : vector<16x1xf32>
      %26 = vector.broadcast %25 : vector<16x1xf32> to vector<16x256xf32>
      %27 = arith.subf %21, %26 : vector<16x256xf32>
      %28 = arith.mulf %27, %27 : vector<16x256xf32>
      %cst_19 = arith.constant dense<0.000000e+00> : vector<16xf32>
      %29 = vector.multi_reduction <add>, %28, %cst_19 [1] : vector<16x256xf32> to vector<16xf32>
      %30 = vector.shape_cast %29 : vector<16xf32> to vector<16x1xf32>
      %cst_20 = arith.constant 2.560000e+02 : f32
      %31 = vector.broadcast %cst_20 : f32 to vector<16x1xf32>
      %32 = arith.divf %30, %31 : vector<16x1xf32>
      %33 = vector.broadcast %25 : vector<16x1xf32> to vector<16x256xf32>
      %34 = arith.subf %21, %33 : vector<16x256xf32>
      %cst_21 = arith.constant 9.99999974E-6 : f32
      %35 = vector.broadcast %cst_21 : f32 to vector<16x1xf32>
      %36 = arith.addf %32, %35 : vector<16x1xf32>
      %37 = math.rsqrt %36 : vector<16x1xf32>
      %38 = vector.broadcast %37 : vector<16x1xf32> to vector<16x256xf32>
      %39 = arith.mulf %34, %38 : vector<16x256xf32>
      %c0_22 = arith.constant 0 : index
      %c0_23 = arith.constant 0 : index
      %c0_24 = arith.constant 0 : index
      %40 = vector.load %arg5[%c0_22, %c0_23, %c0_24] : memref<1x16x256xf32, #tpu.memory_space<vmem>>, vector<1x16x256xf32>
      %41 = vector.shape_cast %40 : vector<1x16x256xf32> to vector<16x256xf32>
      %42 = vector.shape_cast %39 : vector<16x256xf32> to vector<1x16x256xf32>
      tpu.vector_store %arg5[%c0_22, %c0_23, %c0_24], %42 {strides = array<i32>} : memref<1x16x256xf32, #tpu.memory_space<vmem>>, vector<1x16x256xf32>,
    } else {
    }
    return
  }
  func.func @transform_0(%arg0: i32, %arg1: i32) -> (i32, i32, i32) {
    %c0_i32 = arith.constant 0 : i32
    %c0_i32_0 = arith.constant 0 : i32
    return %arg0, %arg1, %c0_i32 : i32, i32, i32
  }
  func.func @transform_1(%arg0: i32, %arg1: i32) -> (i32, i32) {
    %c0_i32 = arith.constant 0 : i32
    %c0_i32_0 = arith.constant 0 : i32
    return %c0_i32, %arg1 : i32, i32
  }
  func.func @transform_2(%arg0: i32, %arg1: i32) -> (i32, i32) {
    %c0_i32 = arith.constant 0 : i32
    %c0_i32_0 = arith.constant 0 : i32
    %c0_i32_1 = arith.constant 0 : i32
    return %c0_i32, %c0_i32_0 : i32, i32
  }
  func.func @transform_3(%arg0: i32, %arg1: i32) -> (i32, i32, i32) {
    %c0_i32 = arith.constant 0 : i32
    %c0_i32_0 = arith.constant 0 : i32
    %c0_i32_1 = arith.constant 0 : i32
    return %arg0, %c0_i32, %c0_i32_0 : i32, i32, i32
  }
}

module attributes {stable_mosaic.version = 11 : i64} {
  func.func @_conv_matmul_kernel(%arg0: i32, %arg1: i32, %arg2: memref<1x400x64xbf16, #tpu.memory_space<vmem>>, %arg3: memref<16x400xbf16, #tpu.memory_space<vmem>>, %arg4: memref<16x1xf32, #tpu.memory_space<vmem>>, %arg5: memref<1x16x64xf32, #tpu.memory_space<vmem>>, %arg6: memref<16x64xf32, #tpu.memory_space<vmem>>) attributes {dimension_semantics = [#tpu.dimension_semantics<parallel>, #tpu.dimension_semantics<arbitrary>], iteration_bounds = array<i64: 2, 1>, scalar_prefetch = 0 : i64, scratch_operands = 1 : i64, tpu.core_type = #tpu.core_type<tc>, window_params = [{transform_indices = @transform_0, window_bounds = array<i64: 1, 400, 64>}, {transform_indices = @transform_1, window_bounds = array<i64: 16, 400>}, {pipeline_mode = #tpu.pipeline_mode<synchronous>, transform_indices = @transform_2, window_bounds = array<i64: 16, 1>}, {transform_indices = @transform_3, window_bounds = array<i64: 1, 16, 64>}]} {
    %c0_i32 = arith.constant 0 : i32
    %0 = arith.cmpi eq, %arg1, %c0_i32 : i32
    %1 = arith.extui %0 : i1 to i32
    %c0_i32_0 = arith.constant 0 : i32
    %2 = arith.cmpi ne, %1, %c0_i32_0 : i32
    scf.if %2 {
      %cst_11 = arith.constant 0.000000e+00 : f32
      %13 = vector.broadcast %cst_11 : f32 to vector<16x64xf32>
      %c0_12 = arith.constant 0 : index
      %c0_13 = arith.constant 0 : index
      %14 = vector.load %arg6[%c0_12, %c0_13] : memref<16x64xf32, #tpu.memory_space<vmem>>, vector<16x64xf32>
      tpu.vector_store %arg6[%c0_12, %c0_13], %13 {strides = array<i32>} : memref<16x64xf32, #tpu.memory_space<vmem>>, vector<16x64xf32>,
    } else {
    }
    %c0 = arith.constant 0 : index
    %c0_1 = arith.constant 0 : index
    %3 = vector.load %arg6[%c0, %c0_1] : memref<16x64xf32, #tpu.memory_space<vmem>>, vector<16x64xf32>
    %c0_2 = arith.constant 0 : index
    %c0_3 = arith.constant 0 : index
    %4 = vector.load %arg3[%c0_2, %c0_3] : memref<16x400xbf16, #tpu.memory_space<vmem>>, vector<16x400xbf16>
    %c0_4 = arith.constant 0 : index
    %c0_5 = arith.constant 0 : index
    %c0_6 = arith.constant 0 : index
    %5 = vector.load %arg2[%c0_4, %c0_5, %c0_6] : memref<1x400x64xbf16, #tpu.memory_space<vmem>>, vector<1x400x64xbf16>
    %6 = vector.shape_cast %5 : vector<1x400x64xbf16> to vector<400x64xbf16>
    %cst = arith.constant dense<0.000000e+00> : vector<16x64xf32>
    %7 = tpu.matmul %4, %6, %cst {dimension_numbers = #tpu.dot_dimension_numbers<[1], [0], [0], [1], [0, 0, 1, 1], [], []>} : vector<16x400xbf16>, vector<400x64xbf16>, vector<16x64xf32> -> vector<16x64xf32>
    %8 = arith.addf %3, %7 : vector<16x64xf32>
    %c0_7 = arith.constant 0 : index
    %c0_8 = arith.constant 0 : index
    %9 = vector.load %arg6[%c0_7, %c0_8] : memref<16x64xf32, #tpu.memory_space<vmem>>, vector<16x64xf32>
    tpu.vector_store %arg6[%c0_7, %c0_8], %8 {strides = array<i32>} : memref<16x64xf32, #tpu.memory_space<vmem>>, vector<16x64xf32>,
    %c0_i32_9 = arith.constant 0 : i32
    %10 = arith.cmpi eq, %arg1, %c0_i32_9 : i32
    %11 = arith.extui %10 : i1 to i32
    %c0_i32_10 = arith.constant 0 : i32
    %12 = arith.cmpi ne, %11, %c0_i32_10 : i32
    scf.if %12 {
      %c0_11 = arith.constant 0 : index
      %c0_12 = arith.constant 0 : index
      %13 = vector.load %arg6[%c0_11, %c0_12] : memref<16x64xf32, #tpu.memory_space<vmem>>, vector<16x64xf32>
      %c0_13 = arith.constant 0 : index
      %c0_14 = arith.constant 0 : index
      %14 = vector.load %arg4[%c0_13, %c0_14] : memref<16x1xf32, #tpu.memory_space<vmem>>, vector<16x1xf32>
      %15 = vector.broadcast %14 : vector<16x1xf32> to vector<16x64xf32>
      %16 = arith.addf %13, %15 : vector<16x64xf32>
      %cst_15 = arith.constant 0.000000e+00 : f32
      %17 = vector.broadcast %cst_15 : f32 to vector<16x64xf32>
      %18 = arith.cmpf oge, %16, %17 : vector<16x64xf32>
      %cst_16 = arith.constant 0.00999999977 : f32
      %19 = vector.broadcast %cst_16 : f32 to vector<16x64xf32>
      %20 = arith.mulf %19, %16 : vector<16x64xf32>
      %21 = arith.select %18, %16, %20 : vector<16x64xi1>, vector<16x64xf32>
      %cst_17 = arith.constant dense<0.000000e+00> : vector<16xf32>
      %22 = vector.multi_reduction <add>, %21, %cst_17 [1] : vector<16x64xf32> to vector<16xf32>
      %23 = vector.shape_cast %22 : vector<16xf32> to vector<16x1xf32>
      %cst_18 = arith.constant 6.400000e+01 : f32
      %24 = vector.broadcast %cst_18 : f32 to vector<16x1xf32>
      %25 = arith.divf %23, %24 : vector<16x1xf32>
      %26 = vector.broadcast %25 : vector<16x1xf32> to vector<16x64xf32>
      %27 = arith.subf %21, %26 : vector<16x64xf32>
      %28 = arith.mulf %27, %27 : vector<16x64xf32>
      %cst_19 = arith.constant dense<0.000000e+00> : vector<16xf32>
      %29 = vector.multi_reduction <add>, %28, %cst_19 [1] : vector<16x64xf32> to vector<16xf32>
      %30 = vector.shape_cast %29 : vector<16xf32> to vector<16x1xf32>
      %cst_20 = arith.constant 6.400000e+01 : f32
      %31 = vector.broadcast %cst_20 : f32 to vector<16x1xf32>
      %32 = arith.divf %30, %31 : vector<16x1xf32>
      %33 = vector.broadcast %25 : vector<16x1xf32> to vector<16x64xf32>
      %34 = arith.subf %21, %33 : vector<16x64xf32>
      %cst_21 = arith.constant 9.99999974E-6 : f32
      %35 = vector.broadcast %cst_21 : f32 to vector<16x1xf32>
      %36 = arith.addf %32, %35 : vector<16x1xf32>
      %37 = math.rsqrt %36 : vector<16x1xf32>
      %38 = vector.broadcast %37 : vector<16x1xf32> to vector<16x64xf32>
      %39 = arith.mulf %34, %38 : vector<16x64xf32>
      %c0_22 = arith.constant 0 : index
      %c0_23 = arith.constant 0 : index
      %c0_24 = arith.constant 0 : index
      %40 = vector.load %arg5[%c0_22, %c0_23, %c0_24] : memref<1x16x64xf32, #tpu.memory_space<vmem>>, vector<1x16x64xf32>
      %41 = vector.shape_cast %40 : vector<1x16x64xf32> to vector<16x64xf32>
      %42 = vector.shape_cast %39 : vector<16x64xf32> to vector<1x16x64xf32>
      tpu.vector_store %arg5[%c0_22, %c0_23, %c0_24], %42 {strides = array<i32>} : memref<1x16x64xf32, #tpu.memory_space<vmem>>, vector<1x16x64xf32>,
    } else {
    }
    return
  }
  func.func @transform_0(%arg0: i32, %arg1: i32) -> (i32, i32, i32) {
    %c0_i32 = arith.constant 0 : i32
    %c0_i32_0 = arith.constant 0 : i32
    return %arg0, %arg1, %c0_i32 : i32, i32, i32
  }
  func.func @transform_1(%arg0: i32, %arg1: i32) -> (i32, i32) {
    %c0_i32 = arith.constant 0 : i32
    %c0_i32_0 = arith.constant 0 : i32
    return %c0_i32, %arg1 : i32, i32
  }
  func.func @transform_2(%arg0: i32, %arg1: i32) -> (i32, i32) {
    %c0_i32 = arith.constant 0 : i32
    %c0_i32_0 = arith.constant 0 : i32
    %c0_i32_1 = arith.constant 0 : i32
    return %c0_i32, %c0_i32_0 : i32, i32
  }
  func.func @transform_3(%arg0: i32, %arg1: i32) -> (i32, i32, i32) {
    %c0_i32 = arith.constant 0 : i32
    %c0_i32_0 = arith.constant 0 : i32
    %c0_i32_1 = arith.constant 0 : i32
    return %arg0, %c0_i32, %c0_i32_0 : i32, i32, i32
  }
}

module attributes {stable_mosaic.version = 11 : i64} {
  func.func @_conv_matmul_kernel(%arg0: i32, %arg1: i32, %arg2: memref<1x400x16xbf16, #tpu.memory_space<vmem>>, %arg3: memref<16x400xbf16, #tpu.memory_space<vmem>>, %arg4: memref<16x1xf32, #tpu.memory_space<vmem>>, %arg5: memref<1x16x16xf32, #tpu.memory_space<vmem>>, %arg6: memref<16x16xf32, #tpu.memory_space<vmem>>) attributes {dimension_semantics = [#tpu.dimension_semantics<parallel>, #tpu.dimension_semantics<arbitrary>], iteration_bounds = array<i64: 2, 1>, scalar_prefetch = 0 : i64, scratch_operands = 1 : i64, tpu.core_type = #tpu.core_type<tc>, window_params = [{transform_indices = @transform_0, window_bounds = array<i64: 1, 400, 16>}, {transform_indices = @transform_1, window_bounds = array<i64: 16, 400>}, {pipeline_mode = #tpu.pipeline_mode<synchronous>, transform_indices = @transform_2, window_bounds = array<i64: 16, 1>}, {transform_indices = @transform_3, window_bounds = array<i64: 1, 16, 16>}]} {
    %c0_i32 = arith.constant 0 : i32
    %0 = arith.cmpi eq, %arg1, %c0_i32 : i32
    %1 = arith.extui %0 : i1 to i32
    %c0_i32_0 = arith.constant 0 : i32
    %2 = arith.cmpi ne, %1, %c0_i32_0 : i32
    scf.if %2 {
      %cst_11 = arith.constant 0.000000e+00 : f32
      %13 = vector.broadcast %cst_11 : f32 to vector<16x16xf32>
      %c0_12 = arith.constant 0 : index
      %c0_13 = arith.constant 0 : index
      %14 = vector.load %arg6[%c0_12, %c0_13] : memref<16x16xf32, #tpu.memory_space<vmem>>, vector<16x16xf32>
      tpu.vector_store %arg6[%c0_12, %c0_13], %13 {strides = array<i32>} : memref<16x16xf32, #tpu.memory_space<vmem>>, vector<16x16xf32>,
    } else {
    }
    %c0 = arith.constant 0 : index
    %c0_1 = arith.constant 0 : index
    %3 = vector.load %arg6[%c0, %c0_1] : memref<16x16xf32, #tpu.memory_space<vmem>>, vector<16x16xf32>
    %c0_2 = arith.constant 0 : index
    %c0_3 = arith.constant 0 : index
    %4 = vector.load %arg3[%c0_2, %c0_3] : memref<16x400xbf16, #tpu.memory_space<vmem>>, vector<16x400xbf16>
    %c0_4 = arith.constant 0 : index
    %c0_5 = arith.constant 0 : index
    %c0_6 = arith.constant 0 : index
    %5 = vector.load %arg2[%c0_4, %c0_5, %c0_6] : memref<1x400x16xbf16, #tpu.memory_space<vmem>>, vector<1x400x16xbf16>
    %6 = vector.shape_cast %5 : vector<1x400x16xbf16> to vector<400x16xbf16>
    %cst = arith.constant dense<0.000000e+00> : vector<16x16xf32>
    %7 = tpu.matmul %4, %6, %cst {dimension_numbers = #tpu.dot_dimension_numbers<[1], [0], [0], [1], [0, 0, 1, 1], [], []>} : vector<16x400xbf16>, vector<400x16xbf16>, vector<16x16xf32> -> vector<16x16xf32>
    %8 = arith.addf %3, %7 : vector<16x16xf32>
    %c0_7 = arith.constant 0 : index
    %c0_8 = arith.constant 0 : index
    %9 = vector.load %arg6[%c0_7, %c0_8] : memref<16x16xf32, #tpu.memory_space<vmem>>, vector<16x16xf32>
    tpu.vector_store %arg6[%c0_7, %c0_8], %8 {strides = array<i32>} : memref<16x16xf32, #tpu.memory_space<vmem>>, vector<16x16xf32>,
    %c0_i32_9 = arith.constant 0 : i32
    %10 = arith.cmpi eq, %arg1, %c0_i32_9 : i32
    %11 = arith.extui %10 : i1 to i32
    %c0_i32_10 = arith.constant 0 : i32
    %12 = arith.cmpi ne, %11, %c0_i32_10 : i32
    scf.if %12 {
      %c0_11 = arith.constant 0 : index
      %c0_12 = arith.constant 0 : index
      %13 = vector.load %arg6[%c0_11, %c0_12] : memref<16x16xf32, #tpu.memory_space<vmem>>, vector<16x16xf32>
      %c0_13 = arith.constant 0 : index
      %c0_14 = arith.constant 0 : index
      %14 = vector.load %arg4[%c0_13, %c0_14] : memref<16x1xf32, #tpu.memory_space<vmem>>, vector<16x1xf32>
      %15 = vector.broadcast %14 : vector<16x1xf32> to vector<16x16xf32>
      %16 = arith.addf %13, %15 : vector<16x16xf32>
      %cst_15 = arith.constant 0.000000e+00 : f32
      %17 = vector.broadcast %cst_15 : f32 to vector<16x16xf32>
      %18 = arith.cmpf oge, %16, %17 : vector<16x16xf32>
      %cst_16 = arith.constant 0.00999999977 : f32
      %19 = vector.broadcast %cst_16 : f32 to vector<16x16xf32>
      %20 = arith.mulf %19, %16 : vector<16x16xf32>
      %21 = arith.select %18, %16, %20 : vector<16x16xi1>, vector<16x16xf32>
      %cst_17 = arith.constant dense<0.000000e+00> : vector<16xf32>
      %22 = vector.multi_reduction <add>, %21, %cst_17 [1] : vector<16x16xf32> to vector<16xf32>
      %23 = vector.shape_cast %22 : vector<16xf32> to vector<16x1xf32>
      %cst_18 = arith.constant 1.600000e+01 : f32
      %24 = vector.broadcast %cst_18 : f32 to vector<16x1xf32>
      %25 = arith.divf %23, %24 : vector<16x1xf32>
      %26 = vector.broadcast %25 : vector<16x1xf32> to vector<16x16xf32>
      %27 = arith.subf %21, %26 : vector<16x16xf32>
      %28 = arith.mulf %27, %27 : vector<16x16xf32>
      %cst_19 = arith.constant dense<0.000000e+00> : vector<16xf32>
      %29 = vector.multi_reduction <add>, %28, %cst_19 [1] : vector<16x16xf32> to vector<16xf32>
      %30 = vector.shape_cast %29 : vector<16xf32> to vector<16x1xf32>
      %cst_20 = arith.constant 1.600000e+01 : f32
      %31 = vector.broadcast %cst_20 : f32 to vector<16x1xf32>
      %32 = arith.divf %30, %31 : vector<16x1xf32>
      %33 = vector.broadcast %25 : vector<16x1xf32> to vector<16x16xf32>
      %34 = arith.subf %21, %33 : vector<16x16xf32>
      %cst_21 = arith.constant 9.99999974E-6 : f32
      %35 = vector.broadcast %cst_21 : f32 to vector<16x1xf32>
      %36 = arith.addf %32, %35 : vector<16x1xf32>
      %37 = math.rsqrt %36 : vector<16x1xf32>
      %38 = vector.broadcast %37 : vector<16x1xf32> to vector<16x16xf32>
      %39 = arith.mulf %34, %38 : vector<16x16xf32>
      %c0_22 = arith.constant 0 : index
      %c0_23 = arith.constant 0 : index
      %c0_24 = arith.constant 0 : index
      %40 = vector.load %arg5[%c0_22, %c0_23, %c0_24] : memref<1x16x16xf32, #tpu.memory_space<vmem>>, vector<1x16x16xf32>
      %41 = vector.shape_cast %40 : vector<1x16x16xf32> to vector<16x16xf32>
      %42 = vector.shape_cast %39 : vector<16x16xf32> to vector<1x16x16xf32>
      tpu.vector_store %arg5[%c0_22, %c0_23, %c0_24], %42 {strides = array<i32>} : memref<1x16x16xf32, #tpu.memory_space<vmem>>, vector<1x16x16xf32>,
    } else {
    }
    return
  }
  func.func @transform_0(%arg0: i32, %arg1: i32) -> (i32, i32, i32) {
    %c0_i32 = arith.constant 0 : i32
    %c0_i32_0 = arith.constant 0 : i32
    return %arg0, %arg1, %c0_i32 : i32, i32, i32
  }
  func.func @transform_1(%arg0: i32, %arg1: i32) -> (i32, i32) {
    %c0_i32 = arith.constant 0 : i32
    %c0_i32_0 = arith.constant 0 : i32
    return %c0_i32, %arg1 : i32, i32
  }
  func.func @transform_2(%arg0: i32, %arg1: i32) -> (i32, i32) {
    %c0_i32 = arith.constant 0 : i32
    %c0_i32_0 = arith.constant 0 : i32
    %c0_i32_1 = arith.constant 0 : i32
    return %c0_i32, %c0_i32_0 : i32, i32
  }
  func.func @transform_3(%arg0: i32, %arg1: i32) -> (i32, i32, i32) {
    %c0_i32 = arith.constant 0 : i32
    %c0_i32_0 = arith.constant 0 : i32
    %c0_i32_1 = arith.constant 0 : i32
    return %arg0, %c0_i32, %c0_i32_0 : i32, i32, i32
  }
}

module attributes {stable_mosaic.version = 11 : i64} {
  func.func @_conv_matmul_kernel(%arg0: i32, %arg1: i32, %arg2: memref<1x400x4xbf16, #tpu.memory_space<vmem>>, %arg3: memref<16x400xbf16, #tpu.memory_space<vmem>>, %arg4: memref<16x1xf32, #tpu.memory_space<vmem>>, %arg5: memref<1x16x4xf32, #tpu.memory_space<vmem>>, %arg6: memref<16x4xf32, #tpu.memory_space<vmem>>) attributes {dimension_semantics = [#tpu.dimension_semantics<parallel>, #tpu.dimension_semantics<arbitrary>], iteration_bounds = array<i64: 2, 1>, scalar_prefetch = 0 : i64, scratch_operands = 1 : i64, tpu.core_type = #tpu.core_type<tc>, window_params = [{transform_indices = @transform_0, window_bounds = array<i64: 1, 400, 4>}, {transform_indices = @transform_1, window_bounds = array<i64: 16, 400>}, {pipeline_mode = #tpu.pipeline_mode<synchronous>, transform_indices = @transform_2, window_bounds = array<i64: 16, 1>}, {transform_indices = @transform_3, window_bounds = array<i64: 1, 16, 4>}]} {
    %c0_i32 = arith.constant 0 : i32
    %0 = arith.cmpi eq, %arg1, %c0_i32 : i32
    %1 = arith.extui %0 : i1 to i32
    %c0_i32_0 = arith.constant 0 : i32
    %2 = arith.cmpi ne, %1, %c0_i32_0 : i32
    scf.if %2 {
      %cst_11 = arith.constant 0.000000e+00 : f32
      %13 = vector.broadcast %cst_11 : f32 to vector<16x4xf32>
      %c0_12 = arith.constant 0 : index
      %c0_13 = arith.constant 0 : index
      %14 = vector.load %arg6[%c0_12, %c0_13] : memref<16x4xf32, #tpu.memory_space<vmem>>, vector<16x4xf32>
      tpu.vector_store %arg6[%c0_12, %c0_13], %13 {strides = array<i32>} : memref<16x4xf32, #tpu.memory_space<vmem>>, vector<16x4xf32>,
    } else {
    }
    %c0 = arith.constant 0 : index
    %c0_1 = arith.constant 0 : index
    %3 = vector.load %arg6[%c0, %c0_1] : memref<16x4xf32, #tpu.memory_space<vmem>>, vector<16x4xf32>
    %c0_2 = arith.constant 0 : index
    %c0_3 = arith.constant 0 : index
    %4 = vector.load %arg3[%c0_2, %c0_3] : memref<16x400xbf16, #tpu.memory_space<vmem>>, vector<16x400xbf16>
    %c0_4 = arith.constant 0 : index
    %c0_5 = arith.constant 0 : index
    %c0_6 = arith.constant 0 : index
    %5 = vector.load %arg2[%c0_4, %c0_5, %c0_6] : memref<1x400x4xbf16, #tpu.memory_space<vmem>>, vector<1x400x4xbf16>
    %6 = vector.shape_cast %5 : vector<1x400x4xbf16> to vector<400x4xbf16>
    %cst = arith.constant dense<0.000000e+00> : vector<16x4xf32>
    %7 = tpu.matmul %4, %6, %cst {dimension_numbers = #tpu.dot_dimension_numbers<[1], [0], [0], [1], [0, 0, 1, 1], [], []>} : vector<16x400xbf16>, vector<400x4xbf16>, vector<16x4xf32> -> vector<16x4xf32>
    %8 = arith.addf %3, %7 : vector<16x4xf32>
    %c0_7 = arith.constant 0 : index
    %c0_8 = arith.constant 0 : index
    %9 = vector.load %arg6[%c0_7, %c0_8] : memref<16x4xf32, #tpu.memory_space<vmem>>, vector<16x4xf32>
    tpu.vector_store %arg6[%c0_7, %c0_8], %8 {strides = array<i32>} : memref<16x4xf32, #tpu.memory_space<vmem>>, vector<16x4xf32>,
    %c0_i32_9 = arith.constant 0 : i32
    %10 = arith.cmpi eq, %arg1, %c0_i32_9 : i32
    %11 = arith.extui %10 : i1 to i32
    %c0_i32_10 = arith.constant 0 : i32
    %12 = arith.cmpi ne, %11, %c0_i32_10 : i32
    scf.if %12 {
      %c0_11 = arith.constant 0 : index
      %c0_12 = arith.constant 0 : index
      %13 = vector.load %arg6[%c0_11, %c0_12] : memref<16x4xf32, #tpu.memory_space<vmem>>, vector<16x4xf32>
      %c0_13 = arith.constant 0 : index
      %c0_14 = arith.constant 0 : index
      %14 = vector.load %arg4[%c0_13, %c0_14] : memref<16x1xf32, #tpu.memory_space<vmem>>, vector<16x1xf32>
      %15 = vector.broadcast %14 : vector<16x1xf32> to vector<16x4xf32>
      %16 = arith.addf %13, %15 : vector<16x4xf32>
      %cst_15 = arith.constant 0.000000e+00 : f32
      %17 = vector.broadcast %cst_15 : f32 to vector<16x4xf32>
      %18 = arith.cmpf oge, %16, %17 : vector<16x4xf32>
      %cst_16 = arith.constant 0.00999999977 : f32
      %19 = vector.broadcast %cst_16 : f32 to vector<16x4xf32>
      %20 = arith.mulf %19, %16 : vector<16x4xf32>
      %21 = arith.select %18, %16, %20 : vector<16x4xi1>, vector<16x4xf32>
      %cst_17 = arith.constant dense<0.000000e+00> : vector<16xf32>
      %22 = vector.multi_reduction <add>, %21, %cst_17 [1] : vector<16x4xf32> to vector<16xf32>
      %23 = vector.shape_cast %22 : vector<16xf32> to vector<16x1xf32>
      %cst_18 = arith.constant 4.000000e+00 : f32
      %24 = vector.broadcast %cst_18 : f32 to vector<16x1xf32>
      %25 = arith.divf %23, %24 : vector<16x1xf32>
      %26 = vector.broadcast %25 : vector<16x1xf32> to vector<16x4xf32>
      %27 = arith.subf %21, %26 : vector<16x4xf32>
      %28 = arith.mulf %27, %27 : vector<16x4xf32>
      %cst_19 = arith.constant dense<0.000000e+00> : vector<16xf32>
      %29 = vector.multi_reduction <add>, %28, %cst_19 [1] : vector<16x4xf32> to vector<16xf32>
      %30 = vector.shape_cast %29 : vector<16xf32> to vector<16x1xf32>
      %cst_20 = arith.constant 4.000000e+00 : f32
      %31 = vector.broadcast %cst_20 : f32 to vector<16x1xf32>
      %32 = arith.divf %30, %31 : vector<16x1xf32>
      %33 = vector.broadcast %25 : vector<16x1xf32> to vector<16x4xf32>
      %34 = arith.subf %21, %33 : vector<16x4xf32>
      %cst_21 = arith.constant 9.99999974E-6 : f32
      %35 = vector.broadcast %cst_21 : f32 to vector<16x1xf32>
      %36 = arith.addf %32, %35 : vector<16x1xf32>
      %37 = math.rsqrt %36 : vector<16x1xf32>
      %38 = vector.broadcast %37 : vector<16x1xf32> to vector<16x4xf32>
      %39 = arith.mulf %34, %38 : vector<16x4xf32>
      %c0_22 = arith.constant 0 : index
      %c0_23 = arith.constant 0 : index
      %c0_24 = arith.constant 0 : index
      %40 = vector.load %arg5[%c0_22, %c0_23, %c0_24] : memref<1x16x4xf32, #tpu.memory_space<vmem>>, vector<1x16x4xf32>
      %41 = vector.shape_cast %40 : vector<1x16x4xf32> to vector<16x4xf32>
      %42 = vector.shape_cast %39 : vector<16x4xf32> to vector<1x16x4xf32>
      tpu.vector_store %arg5[%c0_22, %c0_23, %c0_24], %42 {strides = array<i32>} : memref<1x16x4xf32, #tpu.memory_space<vmem>>, vector<1x16x4xf32>,
    } else {
    }
    return
  }
  func.func @transform_0(%arg0: i32, %arg1: i32) -> (i32, i32, i32) {
    %c0_i32 = arith.constant 0 : i32
    %c0_i32_0 = arith.constant 0 : i32
    return %arg0, %arg1, %c0_i32 : i32, i32, i32
  }
  func.func @transform_1(%arg0: i32, %arg1: i32) -> (i32, i32) {
    %c0_i32 = arith.constant 0 : i32
    %c0_i32_0 = arith.constant 0 : i32
    return %c0_i32, %arg1 : i32, i32
  }
  func.func @transform_2(%arg0: i32, %arg1: i32) -> (i32, i32) {
    %c0_i32 = arith.constant 0 : i32
    %c0_i32_0 = arith.constant 0 : i32
    %c0_i32_1 = arith.constant 0 : i32
    return %c0_i32, %c0_i32_0 : i32, i32
  }
  func.func @transform_3(%arg0: i32, %arg1: i32) -> (i32, i32, i32) {
    %c0_i32 = arith.constant 0 : i32
    %c0_i32_0 = arith.constant 0 : i32
    %c0_i32_1 = arith.constant 0 : i32
    return %arg0, %c0_i32, %c0_i32_0 : i32, i32, i32
  }
}

module attributes {stable_mosaic.version = 11 : i64} {
  func.func @_conv_matmul_kernel(%arg0: i32, %arg1: i32, %arg2: memref<1x400x1xbf16, #tpu.memory_space<vmem>>, %arg3: memref<16x400xbf16, #tpu.memory_space<vmem>>, %arg4: memref<16x1xf32, #tpu.memory_space<vmem>>, %arg5: memref<1x16x1xf32, #tpu.memory_space<vmem>>, %arg6: memref<16x1xf32, #tpu.memory_space<vmem>>) attributes {dimension_semantics = [#tpu.dimension_semantics<parallel>, #tpu.dimension_semantics<arbitrary>], iteration_bounds = array<i64: 2, 1>, scalar_prefetch = 0 : i64, scratch_operands = 1 : i64, tpu.core_type = #tpu.core_type<tc>, window_params = [{transform_indices = @transform_0, window_bounds = array<i64: 1, 400, 1>}, {transform_indices = @transform_1, window_bounds = array<i64: 16, 400>}, {pipeline_mode = #tpu.pipeline_mode<synchronous>, transform_indices = @transform_2, window_bounds = array<i64: 16, 1>}, {transform_indices = @transform_3, window_bounds = array<i64: 1, 16, 1>}]} {
    %c0_i32 = arith.constant 0 : i32
    %0 = arith.cmpi eq, %arg1, %c0_i32 : i32
    %1 = arith.extui %0 : i1 to i32
    %c0_i32_0 = arith.constant 0 : i32
    %2 = arith.cmpi ne, %1, %c0_i32_0 : i32
    scf.if %2 {
      %cst_11 = arith.constant 0.000000e+00 : f32
      %13 = vector.broadcast %cst_11 : f32 to vector<16x1xf32>
      %c0_12 = arith.constant 0 : index
      %c0_13 = arith.constant 0 : index
      %14 = vector.load %arg6[%c0_12, %c0_13] : memref<16x1xf32, #tpu.memory_space<vmem>>, vector<16x1xf32>
      tpu.vector_store %arg6[%c0_12, %c0_13], %13 {strides = array<i32>} : memref<16x1xf32, #tpu.memory_space<vmem>>, vector<16x1xf32>,
    } else {
    }
    %c0 = arith.constant 0 : index
    %c0_1 = arith.constant 0 : index
    %3 = vector.load %arg6[%c0, %c0_1] : memref<16x1xf32, #tpu.memory_space<vmem>>, vector<16x1xf32>
    %c0_2 = arith.constant 0 : index
    %c0_3 = arith.constant 0 : index
    %4 = vector.load %arg3[%c0_2, %c0_3] : memref<16x400xbf16, #tpu.memory_space<vmem>>, vector<16x400xbf16>
    %c0_4 = arith.constant 0 : index
    %c0_5 = arith.constant 0 : index
    %c0_6 = arith.constant 0 : index
    %5 = vector.load %arg2[%c0_4, %c0_5, %c0_6] : memref<1x400x1xbf16, #tpu.memory_space<vmem>>, vector<1x400x1xbf16>
    %6 = vector.shape_cast %5 : vector<1x400x1xbf16> to vector<400x1xbf16>
    %cst = arith.constant dense<0.000000e+00> : vector<16x1xf32>
    %7 = tpu.matmul %4, %6, %cst {dimension_numbers = #tpu.dot_dimension_numbers<[1], [0], [0], [1], [0, 0, 1, 1], [], []>} : vector<16x400xbf16>, vector<400x1xbf16>, vector<16x1xf32> -> vector<16x1xf32>
    %8 = arith.addf %3, %7 : vector<16x1xf32>
    %c0_7 = arith.constant 0 : index
    %c0_8 = arith.constant 0 : index
    %9 = vector.load %arg6[%c0_7, %c0_8] : memref<16x1xf32, #tpu.memory_space<vmem>>, vector<16x1xf32>
    tpu.vector_store %arg6[%c0_7, %c0_8], %8 {strides = array<i32>} : memref<16x1xf32, #tpu.memory_space<vmem>>, vector<16x1xf32>,
    %c0_i32_9 = arith.constant 0 : i32
    %10 = arith.cmpi eq, %arg1, %c0_i32_9 : i32
    %11 = arith.extui %10 : i1 to i32
    %c0_i32_10 = arith.constant 0 : i32
    %12 = arith.cmpi ne, %11, %c0_i32_10 : i32
    scf.if %12 {
      %c0_11 = arith.constant 0 : index
      %c0_12 = arith.constant 0 : index
      %13 = vector.load %arg6[%c0_11, %c0_12] : memref<16x1xf32, #tpu.memory_space<vmem>>, vector<16x1xf32>
      %c0_13 = arith.constant 0 : index
      %c0_14 = arith.constant 0 : index
      %14 = vector.load %arg4[%c0_13, %c0_14] : memref<16x1xf32, #tpu.memory_space<vmem>>, vector<16x1xf32>
      %15 = arith.addf %13, %14 : vector<16x1xf32>
      %cst_15 = arith.constant 0.000000e+00 : f32
      %16 = vector.broadcast %cst_15 : f32 to vector<16x1xf32>
      %17 = arith.cmpf oge, %15, %16 : vector<16x1xf32>
      %cst_16 = arith.constant 0.00999999977 : f32
      %18 = vector.broadcast %cst_16 : f32 to vector<16x1xf32>
      %19 = arith.mulf %18, %15 : vector<16x1xf32>
      %20 = arith.select %17, %15, %19 : vector<16x1xi1>, vector<16x1xf32>
      %c0_17 = arith.constant 0 : index
      %c0_18 = arith.constant 0 : index
      %c0_19 = arith.constant 0 : index
      %21 = vector.load %arg5[%c0_17, %c0_18, %c0_19] : memref<1x16x1xf32, #tpu.memory_space<vmem>>, vector<1x16x1xf32>
      %22 = vector.shape_cast %21 : vector<1x16x1xf32> to vector<16x1xf32>
      %23 = vector.shape_cast %20 : vector<16x1xf32> to vector<1x16x1xf32>
      tpu.vector_store %arg5[%c0_17, %c0_18, %c0_19], %23 {strides = array<i32>} : memref<1x16x1xf32, #tpu.memory_space<vmem>>, vector<1x16x1xf32>,
    } else {
    }
    return
  }
  func.func @transform_0(%arg0: i32, %arg1: i32) -> (i32, i32, i32) {
    %c0_i32 = arith.constant 0 : i32
    %c0_i32_0 = arith.constant 0 : i32
    return %arg0, %arg1, %c0_i32 : i32, i32, i32
  }
  func.func @transform_1(%arg0: i32, %arg1: i32) -> (i32, i32) {
    %c0_i32 = arith.constant 0 : i32
    %c0_i32_0 = arith.constant 0 : i32
    return %c0_i32, %arg1 : i32, i32
  }
  func.func @transform_2(%arg0: i32, %arg1: i32) -> (i32, i32) {
    %c0_i32 = arith.constant 0 : i32
    %c0_i32_0 = arith.constant 0 : i32
    %c0_i32_1 = arith.constant 0 : i32
    return %c0_i32, %c0_i32_0 : i32, i32
  }
  func.func @transform_3(%arg0: i32, %arg1: i32) -> (i32, i32, i32) {
    %c0_i32 = arith.constant 0 : i32
    %c0_i32_0 = arith.constant 0 : i32
    %c0_i32_1 = arith.constant 0 : i32
    return %arg0, %c0_i32, %c0_i32_0 : i32, i32, i32
  }
}

module attributes {stable_mosaic.version = 11 : i64} {
  func.func @_upconv_phase_kernel(%arg0: i32, %arg1: memref<1x4x144x1xbf16, #tpu.memory_space<vmem>>, %arg2: memref<4x16x144xbf16, #tpu.memory_space<vmem>>, %arg3: memref<16x1xf32, #tpu.memory_space<vmem>>, %arg4: memref<1x4x16x1xf32, #tpu.memory_space<vmem>>) attributes {dimension_semantics = [#tpu.dimension_semantics<parallel>], iteration_bounds = array<i64: 2>, scalar_prefetch = 0 : i64, scratch_operands = 0 : i64, tpu.core_type = #tpu.core_type<tc>, window_params = [{transform_indices = @transform_0, window_bounds = array<i64: 1, 4, 144, 1>}, {pipeline_mode = #tpu.pipeline_mode<synchronous>, transform_indices = @transform_1, window_bounds = array<i64: 4, 16, 144>}, {pipeline_mode = #tpu.pipeline_mode<synchronous>, transform_indices = @transform_2, window_bounds = array<i64: 16, 1>}, {transform_indices = @transform_3, window_bounds = array<i64: 1, 4, 16, 1>}]} {
    %c0 = arith.constant 0 : index
    %c0_0 = arith.constant 0 : index
    %c0_1 = arith.constant 0 : index
    %0 = vector.load %arg2[%c0, %c0_0, %c0_1] : memref<4x16x144xbf16, #tpu.memory_space<vmem>>, vector<1x16x144xbf16>
    %1 = vector.shape_cast %0 : vector<1x16x144xbf16> to vector<16x144xbf16>
    %c0_2 = arith.constant 0 : index
    %c0_3 = arith.constant 0 : index
    %c0_4 = arith.constant 0 : index
    %c0_5 = arith.constant 0 : index
    %2 = vector.load %arg1[%c0_2, %c0_3, %c0_4, %c0_5] : memref<1x4x144x1xbf16, #tpu.memory_space<vmem>>, vector<1x1x144x1xbf16>
    %3 = vector.shape_cast %2 : vector<1x1x144x1xbf16> to vector<144x1xbf16>
    %cst = arith.constant dense<0.000000e+00> : vector<16x1xf32>
    %4 = tpu.matmul %1, %3, %cst {dimension_numbers = #tpu.dot_dimension_numbers<[1], [0], [0], [1], [0, 0, 1, 1], [], []>} : vector<16x144xbf16>, vector<144x1xbf16>, vector<16x1xf32> -> vector<16x1xf32>
    %c0_6 = arith.constant 0 : index
    %c0_7 = arith.constant 0 : index
    %5 = vector.load %arg3[%c0_6, %c0_7] : memref<16x1xf32, #tpu.memory_space<vmem>>, vector<16x1xf32>
    %6 = arith.addf %4, %5 : vector<16x1xf32>
    %cst_8 = arith.constant 0.000000e+00 : f32
    %7 = vector.broadcast %cst_8 : f32 to vector<16x1xf32>
    %8 = arith.cmpf oge, %6, %7 : vector<16x1xf32>
    %cst_9 = arith.constant 0.00999999977 : f32
    %9 = vector.broadcast %cst_9 : f32 to vector<16x1xf32>
    %10 = arith.mulf %9, %6 : vector<16x1xf32>
    %11 = arith.select %8, %6, %10 : vector<16x1xi1>, vector<16x1xf32>
    %cst_10 = arith.constant dense<0.000000e+00> : vector<16xf32>
    %12 = vector.multi_reduction <add>, %11, %cst_10 [1] : vector<16x1xf32> to vector<16xf32>
    %13 = vector.shape_cast %12 : vector<16xf32> to vector<16x1xf32>
    %c1 = arith.constant 1 : index
    %c0_11 = arith.constant 0 : index
    %c0_12 = arith.constant 0 : index
    %14 = vector.load %arg2[%c1, %c0_11, %c0_12] : memref<4x16x144xbf16, #tpu.memory_space<vmem>>, vector<1x16x144xbf16>
    %15 = vector.shape_cast %14 : vector<1x16x144xbf16> to vector<16x144xbf16>
    %c0_13 = arith.constant 0 : index
    %c1_14 = arith.constant 1 : index
    %c0_15 = arith.constant 0 : index
    %c0_16 = arith.constant 0 : index
    %16 = vector.load %arg1[%c0_13, %c1_14, %c0_15, %c0_16] : memref<1x4x144x1xbf16, #tpu.memory_space<vmem>>, vector<1x1x144x1xbf16>
    %17 = vector.shape_cast %16 : vector<1x1x144x1xbf16> to vector<144x1xbf16>
    %cst_17 = arith.constant dense<0.000000e+00> : vector<16x1xf32>
    %18 = tpu.matmul %15, %17, %cst_17 {dimension_numbers = #tpu.dot_dimension_numbers<[1], [0], [0], [1], [0, 0, 1, 1], [], []>} : vector<16x144xbf16>, vector<144x1xbf16>, vector<16x1xf32> -> vector<16x1xf32>
    %c0_18 = arith.constant 0 : index
    %c0_19 = arith.constant 0 : index
    %19 = vector.load %arg3[%c0_18, %c0_19] : memref<16x1xf32, #tpu.memory_space<vmem>>, vector<16x1xf32>
    %20 = arith.addf %18, %19 : vector<16x1xf32>
    %cst_20 = arith.constant 0.000000e+00 : f32
    %21 = vector.broadcast %cst_20 : f32 to vector<16x1xf32>
    %22 = arith.cmpf oge, %20, %21 : vector<16x1xf32>
    %cst_21 = arith.constant 0.00999999977 : f32
    %23 = vector.broadcast %cst_21 : f32 to vector<16x1xf32>
    %24 = arith.mulf %23, %20 : vector<16x1xf32>
    %25 = arith.select %22, %20, %24 : vector<16x1xi1>, vector<16x1xf32>
    %cst_22 = arith.constant dense<0.000000e+00> : vector<16xf32>
    %26 = vector.multi_reduction <add>, %25, %cst_22 [1] : vector<16x1xf32> to vector<16xf32>
    %27 = vector.shape_cast %26 : vector<16xf32> to vector<16x1xf32>
    %28 = arith.addf %13, %27 : vector<16x1xf32>
    %c2 = arith.constant 2 : index
    %c0_23 = arith.constant 0 : index
    %c0_24 = arith.constant 0 : index
    %29 = vector.load %arg2[%c2, %c0_23, %c0_24] : memref<4x16x144xbf16, #tpu.memory_space<vmem>>, vector<1x16x144xbf16>
    %30 = vector.shape_cast %29 : vector<1x16x144xbf16> to vector<16x144xbf16>
    %c0_25 = arith.constant 0 : index
    %c2_26 = arith.constant 2 : index
    %c0_27 = arith.constant 0 : index
    %c0_28 = arith.constant 0 : index
    %31 = vector.load %arg1[%c0_25, %c2_26, %c0_27, %c0_28] : memref<1x4x144x1xbf16, #tpu.memory_space<vmem>>, vector<1x1x144x1xbf16>
    %32 = vector.shape_cast %31 : vector<1x1x144x1xbf16> to vector<144x1xbf16>
    %cst_29 = arith.constant dense<0.000000e+00> : vector<16x1xf32>
    %33 = tpu.matmul %30, %32, %cst_29 {dimension_numbers = #tpu.dot_dimension_numbers<[1], [0], [0], [1], [0, 0, 1, 1], [], []>} : vector<16x144xbf16>, vector<144x1xbf16>, vector<16x1xf32> -> vector<16x1xf32>
    %c0_30 = arith.constant 0 : index
    %c0_31 = arith.constant 0 : index
    %34 = vector.load %arg3[%c0_30, %c0_31] : memref<16x1xf32, #tpu.memory_space<vmem>>, vector<16x1xf32>
    %35 = arith.addf %33, %34 : vector<16x1xf32>
    %cst_32 = arith.constant 0.000000e+00 : f32
    %36 = vector.broadcast %cst_32 : f32 to vector<16x1xf32>
    %37 = arith.cmpf oge, %35, %36 : vector<16x1xf32>
    %cst_33 = arith.constant 0.00999999977 : f32
    %38 = vector.broadcast %cst_33 : f32 to vector<16x1xf32>
    %39 = arith.mulf %38, %35 : vector<16x1xf32>
    %40 = arith.select %37, %35, %39 : vector<16x1xi1>, vector<16x1xf32>
    %cst_34 = arith.constant dense<0.000000e+00> : vector<16xf32>
    %41 = vector.multi_reduction <add>, %40, %cst_34 [1] : vector<16x1xf32> to vector<16xf32>
    %42 = vector.shape_cast %41 : vector<16xf32> to vector<16x1xf32>
    %43 = arith.addf %28, %42 : vector<16x1xf32>
    %c3 = arith.constant 3 : index
    %c0_35 = arith.constant 0 : index
    %c0_36 = arith.constant 0 : index
    %44 = vector.load %arg2[%c3, %c0_35, %c0_36] : memref<4x16x144xbf16, #tpu.memory_space<vmem>>, vector<1x16x144xbf16>
    %45 = vector.shape_cast %44 : vector<1x16x144xbf16> to vector<16x144xbf16>
    %c0_37 = arith.constant 0 : index
    %c3_38 = arith.constant 3 : index
    %c0_39 = arith.constant 0 : index
    %c0_40 = arith.constant 0 : index
    %46 = vector.load %arg1[%c0_37, %c3_38, %c0_39, %c0_40] : memref<1x4x144x1xbf16, #tpu.memory_space<vmem>>, vector<1x1x144x1xbf16>
    %47 = vector.shape_cast %46 : vector<1x1x144x1xbf16> to vector<144x1xbf16>
    %cst_41 = arith.constant dense<0.000000e+00> : vector<16x1xf32>
    %48 = tpu.matmul %45, %47, %cst_41 {dimension_numbers = #tpu.dot_dimension_numbers<[1], [0], [0], [1], [0, 0, 1, 1], [], []>} : vector<16x144xbf16>, vector<144x1xbf16>, vector<16x1xf32> -> vector<16x1xf32>
    %c0_42 = arith.constant 0 : index
    %c0_43 = arith.constant 0 : index
    %49 = vector.load %arg3[%c0_42, %c0_43] : memref<16x1xf32, #tpu.memory_space<vmem>>, vector<16x1xf32>
    %50 = arith.addf %48, %49 : vector<16x1xf32>
    %cst_44 = arith.constant 0.000000e+00 : f32
    %51 = vector.broadcast %cst_44 : f32 to vector<16x1xf32>
    %52 = arith.cmpf oge, %50, %51 : vector<16x1xf32>
    %cst_45 = arith.constant 0.00999999977 : f32
    %53 = vector.broadcast %cst_45 : f32 to vector<16x1xf32>
    %54 = arith.mulf %53, %50 : vector<16x1xf32>
    %55 = arith.select %52, %50, %54 : vector<16x1xi1>, vector<16x1xf32>
    %cst_46 = arith.constant dense<0.000000e+00> : vector<16xf32>
    %56 = vector.multi_reduction <add>, %55, %cst_46 [1] : vector<16x1xf32> to vector<16xf32>
    %57 = vector.shape_cast %56 : vector<16xf32> to vector<16x1xf32>
    %58 = arith.addf %43, %57 : vector<16x1xf32>
    %cst_47 = arith.constant 4.000000e+00 : f32
    %59 = vector.broadcast %cst_47 : f32 to vector<16x1xf32>
    %60 = arith.divf %58, %59 : vector<16x1xf32>
    %61 = arith.subf %11, %60 : vector<16x1xf32>
    %62 = arith.mulf %61, %61 : vector<16x1xf32>
    %cst_48 = arith.constant dense<0.000000e+00> : vector<16xf32>
    %63 = vector.multi_reduction <add>, %62, %cst_48 [1] : vector<16x1xf32> to vector<16xf32>
    %64 = vector.shape_cast %63 : vector<16xf32> to vector<16x1xf32>
    %65 = arith.subf %25, %60 : vector<16x1xf32>
    %66 = arith.mulf %65, %65 : vector<16x1xf32>
    %cst_49 = arith.constant dense<0.000000e+00> : vector<16xf32>
    %67 = vector.multi_reduction <add>, %66, %cst_49 [1] : vector<16x1xf32> to vector<16xf32>
    %68 = vector.shape_cast %67 : vector<16xf32> to vector<16x1xf32>
    %69 = arith.addf %64, %68 : vector<16x1xf32>
    %70 = arith.subf %40, %60 : vector<16x1xf32>
    %71 = arith.mulf %70, %70 : vector<16x1xf32>
    %cst_50 = arith.constant dense<0.000000e+00> : vector<16xf32>
    %72 = vector.multi_reduction <add>, %71, %cst_50 [1] : vector<16x1xf32> to vector<16xf32>
    %73 = vector.shape_cast %72 : vector<16xf32> to vector<16x1xf32>
    %74 = arith.addf %69, %73 : vector<16x1xf32>
    %75 = arith.subf %55, %60 : vector<16x1xf32>
    %76 = arith.mulf %75, %75 : vector<16x1xf32>
    %cst_51 = arith.constant dense<0.000000e+00> : vector<16xf32>
    %77 = vector.multi_reduction <add>, %76, %cst_51 [1] : vector<16x1xf32> to vector<16xf32>
    %78 = vector.shape_cast %77 : vector<16xf32> to vector<16x1xf32>
    %79 = arith.addf %74, %78 : vector<16x1xf32>
    %cst_52 = arith.constant 4.000000e+00 : f32
    %80 = vector.broadcast %cst_52 : f32 to vector<16x1xf32>
    %81 = arith.divf %79, %80 : vector<16x1xf32>
    %cst_53 = arith.constant 9.99999974E-6 : f32
    %82 = vector.broadcast %cst_53 : f32 to vector<16x1xf32>
    %83 = arith.addf %81, %82 : vector<16x1xf32>
    %84 = math.rsqrt %83 : vector<16x1xf32>
    %85 = arith.subf %11, %60 : vector<16x1xf32>
    %86 = arith.mulf %85, %84 : vector<16x1xf32>
    %c0_54 = arith.constant 0 : index
    %c0_55 = arith.constant 0 : index
    %c0_56 = arith.constant 0 : index
    %c0_57 = arith.constant 0 : index
    %87 = vector.load %arg4[%c0_54, %c0_55, %c0_56, %c0_57] : memref<1x4x16x1xf32, #tpu.memory_space<vmem>>, vector<1x1x16x1xf32>
    %88 = vector.shape_cast %87 : vector<1x1x16x1xf32> to vector<16x1xf32>
    %89 = vector.shape_cast %86 : vector<16x1xf32> to vector<1x1x16x1xf32>
    tpu.vector_store %arg4[%c0_54, %c0_55, %c0_56, %c0_57], %89 {strides = array<i32>} : memref<1x4x16x1xf32, #tpu.memory_space<vmem>>, vector<1x1x16x1xf32>,
    %90 = arith.subf %25, %60 : vector<16x1xf32>
    %91 = arith.mulf %90, %84 : vector<16x1xf32>
    %c0_58 = arith.constant 0 : index
    %c1_59 = arith.constant 1 : index
    %c0_60 = arith.constant 0 : index
    %c0_61 = arith.constant 0 : index
    %92 = vector.load %arg4[%c0_58, %c1_59, %c0_60, %c0_61] : memref<1x4x16x1xf32, #tpu.memory_space<vmem>>, vector<1x1x16x1xf32>
    %93 = vector.shape_cast %92 : vector<1x1x16x1xf32> to vector<16x1xf32>
    %94 = vector.shape_cast %91 : vector<16x1xf32> to vector<1x1x16x1xf32>
    tpu.vector_store %arg4[%c0_58, %c1_59, %c0_60, %c0_61], %94 {strides = array<i32>} : memref<1x4x16x1xf32, #tpu.memory_space<vmem>>, vector<1x1x16x1xf32>,
    %95 = arith.subf %40, %60 : vector<16x1xf32>
    %96 = arith.mulf %95, %84 : vector<16x1xf32>
    %c0_62 = arith.constant 0 : index
    %c2_63 = arith.constant 2 : index
    %c0_64 = arith.constant 0 : index
    %c0_65 = arith.constant 0 : index
    %97 = vector.load %arg4[%c0_62, %c2_63, %c0_64, %c0_65] : memref<1x4x16x1xf32, #tpu.memory_space<vmem>>, vector<1x1x16x1xf32>
    %98 = vector.shape_cast %97 : vector<1x1x16x1xf32> to vector<16x1xf32>
    %99 = vector.shape_cast %96 : vector<16x1xf32> to vector<1x1x16x1xf32>
    tpu.vector_store %arg4[%c0_62, %c2_63, %c0_64, %c0_65], %99 {strides = array<i32>} : memref<1x4x16x1xf32, #tpu.memory_space<vmem>>, vector<1x1x16x1xf32>,
    %100 = arith.subf %55, %60 : vector<16x1xf32>
    %101 = arith.mulf %100, %84 : vector<16x1xf32>
    %c0_66 = arith.constant 0 : index
    %c3_67 = arith.constant 3 : index
    %c0_68 = arith.constant 0 : index
    %c0_69 = arith.constant 0 : index
    %102 = vector.load %arg4[%c0_66, %c3_67, %c0_68, %c0_69] : memref<1x4x16x1xf32, #tpu.memory_space<vmem>>, vector<1x1x16x1xf32>
    %103 = vector.shape_cast %102 : vector<1x1x16x1xf32> to vector<16x1xf32>
    %104 = vector.shape_cast %101 : vector<16x1xf32> to vector<1x1x16x1xf32>
    tpu.vector_store %arg4[%c0_66, %c3_67, %c0_68, %c0_69], %104 {strides = array<i32>} : memref<1x4x16x1xf32, #tpu.memory_space<vmem>>, vector<1x1x16x1xf32>,
    return
  }
  func.func @transform_0(%arg0: i32) -> (i32, i32, i32, i32) {
    %c0_i32 = arith.constant 0 : i32
    %c0_i32_0 = arith.constant 0 : i32
    %c0_i32_1 = arith.constant 0 : i32
    %c0_i32_2 = arith.constant 0 : i32
    return %arg0, %c0_i32, %c0_i32_0, %c0_i32_1 : i32, i32, i32, i32
  }
  func.func @transform_1(%arg0: i32) -> (i32, i32, i32) {
    %c0_i32 = arith.constant 0 : i32
    %c0_i32_0 = arith.constant 0 : i32
    %c0_i32_1 = arith.constant 0 : i32
    %c0_i32_2 = arith.constant 0 : i32
    return %c0_i32, %c0_i32_0, %c0_i32_1 : i32, i32, i32
  }
  func.func @transform_2(%arg0: i32) -> (i32, i32) {
    %c0_i32 = arith.constant 0 : i32
    %c0_i32_0 = arith.constant 0 : i32
    %c0_i32_1 = arith.constant 0 : i32
    return %c0_i32, %c0_i32_0 : i32, i32
  }
  func.func @transform_3(%arg0: i32) -> (i32, i32, i32, i32) {
    %c0_i32 = arith.constant 0 : i32
    %c0_i32_0 = arith.constant 0 : i32
    %c0_i32_1 = arith.constant 0 : i32
    %c0_i32_2 = arith.constant 0 : i32
    return %arg0, %c0_i32, %c0_i32_0, %c0_i32_1 : i32, i32, i32, i32
  }
}

module attributes {stable_mosaic.version = 11 : i64} {
  func.func @_upconv_phase_kernel(%arg0: i32, %arg1: memref<1x4x288x4xbf16, #tpu.memory_space<vmem>>, %arg2: memref<4x16x288xbf16, #tpu.memory_space<vmem>>, %arg3: memref<16x1xf32, #tpu.memory_space<vmem>>, %arg4: memref<1x4x16x4xf32, #tpu.memory_space<vmem>>) attributes {dimension_semantics = [#tpu.dimension_semantics<parallel>], iteration_bounds = array<i64: 2>, scalar_prefetch = 0 : i64, scratch_operands = 0 : i64, tpu.core_type = #tpu.core_type<tc>, window_params = [{transform_indices = @transform_0, window_bounds = array<i64: 1, 4, 288, 4>}, {pipeline_mode = #tpu.pipeline_mode<synchronous>, transform_indices = @transform_1, window_bounds = array<i64: 4, 16, 288>}, {pipeline_mode = #tpu.pipeline_mode<synchronous>, transform_indices = @transform_2, window_bounds = array<i64: 16, 1>}, {transform_indices = @transform_3, window_bounds = array<i64: 1, 4, 16, 4>}]} {
    %c0 = arith.constant 0 : index
    %c0_0 = arith.constant 0 : index
    %c0_1 = arith.constant 0 : index
    %0 = vector.load %arg2[%c0, %c0_0, %c0_1] : memref<4x16x288xbf16, #tpu.memory_space<vmem>>, vector<1x16x288xbf16>
    %1 = vector.shape_cast %0 : vector<1x16x288xbf16> to vector<16x288xbf16>
    %c0_2 = arith.constant 0 : index
    %c0_3 = arith.constant 0 : index
    %c0_4 = arith.constant 0 : index
    %c0_5 = arith.constant 0 : index
    %2 = vector.load %arg1[%c0_2, %c0_3, %c0_4, %c0_5] : memref<1x4x288x4xbf16, #tpu.memory_space<vmem>>, vector<1x1x288x4xbf16>
    %3 = vector.shape_cast %2 : vector<1x1x288x4xbf16> to vector<288x4xbf16>
    %cst = arith.constant dense<0.000000e+00> : vector<16x4xf32>
    %4 = tpu.matmul %1, %3, %cst {dimension_numbers = #tpu.dot_dimension_numbers<[1], [0], [0], [1], [0, 0, 1, 1], [], []>} : vector<16x288xbf16>, vector<288x4xbf16>, vector<16x4xf32> -> vector<16x4xf32>
    %c0_6 = arith.constant 0 : index
    %c0_7 = arith.constant 0 : index
    %5 = vector.load %arg3[%c0_6, %c0_7] : memref<16x1xf32, #tpu.memory_space<vmem>>, vector<16x1xf32>
    %6 = vector.broadcast %5 : vector<16x1xf32> to vector<16x4xf32>
    %7 = arith.addf %4, %6 : vector<16x4xf32>
    %cst_8 = arith.constant 0.000000e+00 : f32
    %8 = vector.broadcast %cst_8 : f32 to vector<16x4xf32>
    %9 = arith.cmpf oge, %7, %8 : vector<16x4xf32>
    %cst_9 = arith.constant 0.00999999977 : f32
    %10 = vector.broadcast %cst_9 : f32 to vector<16x4xf32>
    %11 = arith.mulf %10, %7 : vector<16x4xf32>
    %12 = arith.select %9, %7, %11 : vector<16x4xi1>, vector<16x4xf32>
    %cst_10 = arith.constant dense<0.000000e+00> : vector<16xf32>
    %13 = vector.multi_reduction <add>, %12, %cst_10 [1] : vector<16x4xf32> to vector<16xf32>
    %14 = vector.shape_cast %13 : vector<16xf32> to vector<16x1xf32>
    %c1 = arith.constant 1 : index
    %c0_11 = arith.constant 0 : index
    %c0_12 = arith.constant 0 : index
    %15 = vector.load %arg2[%c1, %c0_11, %c0_12] : memref<4x16x288xbf16, #tpu.memory_space<vmem>>, vector<1x16x288xbf16>
    %16 = vector.shape_cast %15 : vector<1x16x288xbf16> to vector<16x288xbf16>
    %c0_13 = arith.constant 0 : index
    %c1_14 = arith.constant 1 : index
    %c0_15 = arith.constant 0 : index
    %c0_16 = arith.constant 0 : index
    %17 = vector.load %arg1[%c0_13, %c1_14, %c0_15, %c0_16] : memref<1x4x288x4xbf16, #tpu.memory_space<vmem>>, vector<1x1x288x4xbf16>
    %18 = vector.shape_cast %17 : vector<1x1x288x4xbf16> to vector<288x4xbf16>
    %cst_17 = arith.constant dense<0.000000e+00> : vector<16x4xf32>
    %19 = tpu.matmul %16, %18, %cst_17 {dimension_numbers = #tpu.dot_dimension_numbers<[1], [0], [0], [1], [0, 0, 1, 1], [], []>} : vector<16x288xbf16>, vector<288x4xbf16>, vector<16x4xf32> -> vector<16x4xf32>
    %c0_18 = arith.constant 0 : index
    %c0_19 = arith.constant 0 : index
    %20 = vector.load %arg3[%c0_18, %c0_19] : memref<16x1xf32, #tpu.memory_space<vmem>>, vector<16x1xf32>
    %21 = vector.broadcast %20 : vector<16x1xf32> to vector<16x4xf32>
    %22 = arith.addf %19, %21 : vector<16x4xf32>
    %cst_20 = arith.constant 0.000000e+00 : f32
    %23 = vector.broadcast %cst_20 : f32 to vector<16x4xf32>
    %24 = arith.cmpf oge, %22, %23 : vector<16x4xf32>
    %cst_21 = arith.constant 0.00999999977 : f32
    %25 = vector.broadcast %cst_21 : f32 to vector<16x4xf32>
    %26 = arith.mulf %25, %22 : vector<16x4xf32>
    %27 = arith.select %24, %22, %26 : vector<16x4xi1>, vector<16x4xf32>
    %cst_22 = arith.constant dense<0.000000e+00> : vector<16xf32>
    %28 = vector.multi_reduction <add>, %27, %cst_22 [1] : vector<16x4xf32> to vector<16xf32>
    %29 = vector.shape_cast %28 : vector<16xf32> to vector<16x1xf32>
    %30 = arith.addf %14, %29 : vector<16x1xf32>
    %c2 = arith.constant 2 : index
    %c0_23 = arith.constant 0 : index
    %c0_24 = arith.constant 0 : index
    %31 = vector.load %arg2[%c2, %c0_23, %c0_24] : memref<4x16x288xbf16, #tpu.memory_space<vmem>>, vector<1x16x288xbf16>
    %32 = vector.shape_cast %31 : vector<1x16x288xbf16> to vector<16x288xbf16>
    %c0_25 = arith.constant 0 : index
    %c2_26 = arith.constant 2 : index
    %c0_27 = arith.constant 0 : index
    %c0_28 = arith.constant 0 : index
    %33 = vector.load %arg1[%c0_25, %c2_26, %c0_27, %c0_28] : memref<1x4x288x4xbf16, #tpu.memory_space<vmem>>, vector<1x1x288x4xbf16>
    %34 = vector.shape_cast %33 : vector<1x1x288x4xbf16> to vector<288x4xbf16>
    %cst_29 = arith.constant dense<0.000000e+00> : vector<16x4xf32>
    %35 = tpu.matmul %32, %34, %cst_29 {dimension_numbers = #tpu.dot_dimension_numbers<[1], [0], [0], [1], [0, 0, 1, 1], [], []>} : vector<16x288xbf16>, vector<288x4xbf16>, vector<16x4xf32> -> vector<16x4xf32>
    %c0_30 = arith.constant 0 : index
    %c0_31 = arith.constant 0 : index
    %36 = vector.load %arg3[%c0_30, %c0_31] : memref<16x1xf32, #tpu.memory_space<vmem>>, vector<16x1xf32>
    %37 = vector.broadcast %36 : vector<16x1xf32> to vector<16x4xf32>
    %38 = arith.addf %35, %37 : vector<16x4xf32>
    %cst_32 = arith.constant 0.000000e+00 : f32
    %39 = vector.broadcast %cst_32 : f32 to vector<16x4xf32>
    %40 = arith.cmpf oge, %38, %39 : vector<16x4xf32>
    %cst_33 = arith.constant 0.00999999977 : f32
    %41 = vector.broadcast %cst_33 : f32 to vector<16x4xf32>
    %42 = arith.mulf %41, %38 : vector<16x4xf32>
    %43 = arith.select %40, %38, %42 : vector<16x4xi1>, vector<16x4xf32>
    %cst_34 = arith.constant dense<0.000000e+00> : vector<16xf32>
    %44 = vector.multi_reduction <add>, %43, %cst_34 [1] : vector<16x4xf32> to vector<16xf32>
    %45 = vector.shape_cast %44 : vector<16xf32> to vector<16x1xf32>
    %46 = arith.addf %30, %45 : vector<16x1xf32>
    %c3 = arith.constant 3 : index
    %c0_35 = arith.constant 0 : index
    %c0_36 = arith.constant 0 : index
    %47 = vector.load %arg2[%c3, %c0_35, %c0_36] : memref<4x16x288xbf16, #tpu.memory_space<vmem>>, vector<1x16x288xbf16>
    %48 = vector.shape_cast %47 : vector<1x16x288xbf16> to vector<16x288xbf16>
    %c0_37 = arith.constant 0 : index
    %c3_38 = arith.constant 3 : index
    %c0_39 = arith.constant 0 : index
    %c0_40 = arith.constant 0 : index
    %49 = vector.load %arg1[%c0_37, %c3_38, %c0_39, %c0_40] : memref<1x4x288x4xbf16, #tpu.memory_space<vmem>>, vector<1x1x288x4xbf16>
    %50 = vector.shape_cast %49 : vector<1x1x288x4xbf16> to vector<288x4xbf16>
    %cst_41 = arith.constant dense<0.000000e+00> : vector<16x4xf32>
    %51 = tpu.matmul %48, %50, %cst_41 {dimension_numbers = #tpu.dot_dimension_numbers<[1], [0], [0], [1], [0, 0, 1, 1], [], []>} : vector<16x288xbf16>, vector<288x4xbf16>, vector<16x4xf32> -> vector<16x4xf32>
    %c0_42 = arith.constant 0 : index
    %c0_43 = arith.constant 0 : index
    %52 = vector.load %arg3[%c0_42, %c0_43] : memref<16x1xf32, #tpu.memory_space<vmem>>, vector<16x1xf32>
    %53 = vector.broadcast %52 : vector<16x1xf32> to vector<16x4xf32>
    %54 = arith.addf %51, %53 : vector<16x4xf32>
    %cst_44 = arith.constant 0.000000e+00 : f32
    %55 = vector.broadcast %cst_44 : f32 to vector<16x4xf32>
    %56 = arith.cmpf oge, %54, %55 : vector<16x4xf32>
    %cst_45 = arith.constant 0.00999999977 : f32
    %57 = vector.broadcast %cst_45 : f32 to vector<16x4xf32>
    %58 = arith.mulf %57, %54 : vector<16x4xf32>
    %59 = arith.select %56, %54, %58 : vector<16x4xi1>, vector<16x4xf32>
    %cst_46 = arith.constant dense<0.000000e+00> : vector<16xf32>
    %60 = vector.multi_reduction <add>, %59, %cst_46 [1] : vector<16x4xf32> to vector<16xf32>
    %61 = vector.shape_cast %60 : vector<16xf32> to vector<16x1xf32>
    %62 = arith.addf %46, %61 : vector<16x1xf32>
    %cst_47 = arith.constant 1.600000e+01 : f32
    %63 = vector.broadcast %cst_47 : f32 to vector<16x1xf32>
    %64 = arith.divf %62, %63 : vector<16x1xf32>
    %65 = vector.broadcast %64 : vector<16x1xf32> to vector<16x4xf32>
    %66 = arith.subf %12, %65 : vector<16x4xf32>
    %67 = arith.mulf %66, %66 : vector<16x4xf32>
    %cst_48 = arith.constant dense<0.000000e+00> : vector<16xf32>
    %68 = vector.multi_reduction <add>, %67, %cst_48 [1] : vector<16x4xf32> to vector<16xf32>
    %69 = vector.shape_cast %68 : vector<16xf32> to vector<16x1xf32>
    %70 = vector.broadcast %64 : vector<16x1xf32> to vector<16x4xf32>
    %71 = arith.subf %27, %70 : vector<16x4xf32>
    %72 = arith.mulf %71, %71 : vector<16x4xf32>
    %cst_49 = arith.constant dense<0.000000e+00> : vector<16xf32>
    %73 = vector.multi_reduction <add>, %72, %cst_49 [1] : vector<16x4xf32> to vector<16xf32>
    %74 = vector.shape_cast %73 : vector<16xf32> to vector<16x1xf32>
    %75 = arith.addf %69, %74 : vector<16x1xf32>
    %76 = vector.broadcast %64 : vector<16x1xf32> to vector<16x4xf32>
    %77 = arith.subf %43, %76 : vector<16x4xf32>
    %78 = arith.mulf %77, %77 : vector<16x4xf32>
    %cst_50 = arith.constant dense<0.000000e+00> : vector<16xf32>
    %79 = vector.multi_reduction <add>, %78, %cst_50 [1] : vector<16x4xf32> to vector<16xf32>
    %80 = vector.shape_cast %79 : vector<16xf32> to vector<16x1xf32>
    %81 = arith.addf %75, %80 : vector<16x1xf32>
    %82 = vector.broadcast %64 : vector<16x1xf32> to vector<16x4xf32>
    %83 = arith.subf %59, %82 : vector<16x4xf32>
    %84 = arith.mulf %83, %83 : vector<16x4xf32>
    %cst_51 = arith.constant dense<0.000000e+00> : vector<16xf32>
    %85 = vector.multi_reduction <add>, %84, %cst_51 [1] : vector<16x4xf32> to vector<16xf32>
    %86 = vector.shape_cast %85 : vector<16xf32> to vector<16x1xf32>
    %87 = arith.addf %81, %86 : vector<16x1xf32>
    %cst_52 = arith.constant 1.600000e+01 : f32
    %88 = vector.broadcast %cst_52 : f32 to vector<16x1xf32>
    %89 = arith.divf %87, %88 : vector<16x1xf32>
    %cst_53 = arith.constant 9.99999974E-6 : f32
    %90 = vector.broadcast %cst_53 : f32 to vector<16x1xf32>
    %91 = arith.addf %89, %90 : vector<16x1xf32>
    %92 = math.rsqrt %91 : vector<16x1xf32>
    %93 = vector.broadcast %64 : vector<16x1xf32> to vector<16x4xf32>
    %94 = arith.subf %12, %93 : vector<16x4xf32>
    %95 = vector.broadcast %92 : vector<16x1xf32> to vector<16x4xf32>
    %96 = arith.mulf %94, %95 : vector<16x4xf32>
    %c0_54 = arith.constant 0 : index
    %c0_55 = arith.constant 0 : index
    %c0_56 = arith.constant 0 : index
    %c0_57 = arith.constant 0 : index
    %97 = vector.load %arg4[%c0_54, %c0_55, %c0_56, %c0_57] : memref<1x4x16x4xf32, #tpu.memory_space<vmem>>, vector<1x1x16x4xf32>
    %98 = vector.shape_cast %97 : vector<1x1x16x4xf32> to vector<16x4xf32>
    %99 = vector.shape_cast %96 : vector<16x4xf32> to vector<1x1x16x4xf32>
    tpu.vector_store %arg4[%c0_54, %c0_55, %c0_56, %c0_57], %99 {strides = array<i32>} : memref<1x4x16x4xf32, #tpu.memory_space<vmem>>, vector<1x1x16x4xf32>,
    %100 = vector.broadcast %64 : vector<16x1xf32> to vector<16x4xf32>
    %101 = arith.subf %27, %100 : vector<16x4xf32>
    %102 = vector.broadcast %92 : vector<16x1xf32> to vector<16x4xf32>
    %103 = arith.mulf %101, %102 : vector<16x4xf32>
    %c0_58 = arith.constant 0 : index
    %c1_59 = arith.constant 1 : index
    %c0_60 = arith.constant 0 : index
    %c0_61 = arith.constant 0 : index
    %104 = vector.load %arg4[%c0_58, %c1_59, %c0_60, %c0_61] : memref<1x4x16x4xf32, #tpu.memory_space<vmem>>, vector<1x1x16x4xf32>
    %105 = vector.shape_cast %104 : vector<1x1x16x4xf32> to vector<16x4xf32>
    %106 = vector.shape_cast %103 : vector<16x4xf32> to vector<1x1x16x4xf32>
    tpu.vector_store %arg4[%c0_58, %c1_59, %c0_60, %c0_61], %106 {strides = array<i32>} : memref<1x4x16x4xf32, #tpu.memory_space<vmem>>, vector<1x1x16x4xf32>,
    %107 = vector.broadcast %64 : vector<16x1xf32> to vector<16x4xf32>
    %108 = arith.subf %43, %107 : vector<16x4xf32>
    %109 = vector.broadcast %92 : vector<16x1xf32> to vector<16x4xf32>
    %110 = arith.mulf %108, %109 : vector<16x4xf32>
    %c0_62 = arith.constant 0 : index
    %c2_63 = arith.constant 2 : index
    %c0_64 = arith.constant 0 : index
    %c0_65 = arith.constant 0 : index
    %111 = vector.load %arg4[%c0_62, %c2_63, %c0_64, %c0_65] : memref<1x4x16x4xf32, #tpu.memory_space<vmem>>, vector<1x1x16x4xf32>
    %112 = vector.shape_cast %111 : vector<1x1x16x4xf32> to vector<16x4xf32>
    %113 = vector.shape_cast %110 : vector<16x4xf32> to vector<1x1x16x4xf32>
    tpu.vector_store %arg4[%c0_62, %c2_63, %c0_64, %c0_65], %113 {strides = array<i32>} : memref<1x4x16x4xf32, #tpu.memory_space<vmem>>, vector<1x1x16x4xf32>,
    %114 = vector.broadcast %64 : vector<16x1xf32> to vector<16x4xf32>
    %115 = arith.subf %59, %114 : vector<16x4xf32>
    %116 = vector.broadcast %92 : vector<16x1xf32> to vector<16x4xf32>
    %117 = arith.mulf %115, %116 : vector<16x4xf32>
    %c0_66 = arith.constant 0 : index
    %c3_67 = arith.constant 3 : index
    %c0_68 = arith.constant 0 : index
    %c0_69 = arith.constant 0 : index
    %118 = vector.load %arg4[%c0_66, %c3_67, %c0_68, %c0_69] : memref<1x4x16x4xf32, #tpu.memory_space<vmem>>, vector<1x1x16x4xf32>
    %119 = vector.shape_cast %118 : vector<1x1x16x4xf32> to vector<16x4xf32>
    %120 = vector.shape_cast %117 : vector<16x4xf32> to vector<1x1x16x4xf32>
    tpu.vector_store %arg4[%c0_66, %c3_67, %c0_68, %c0_69], %120 {strides = array<i32>} : memref<1x4x16x4xf32, #tpu.memory_space<vmem>>, vector<1x1x16x4xf32>,
    return
  }
  func.func @transform_0(%arg0: i32) -> (i32, i32, i32, i32) {
    %c0_i32 = arith.constant 0 : i32
    %c0_i32_0 = arith.constant 0 : i32
    %c0_i32_1 = arith.constant 0 : i32
    %c0_i32_2 = arith.constant 0 : i32
    return %arg0, %c0_i32, %c0_i32_0, %c0_i32_1 : i32, i32, i32, i32
  }
  func.func @transform_1(%arg0: i32) -> (i32, i32, i32) {
    %c0_i32 = arith.constant 0 : i32
    %c0_i32_0 = arith.constant 0 : i32
    %c0_i32_1 = arith.constant 0 : i32
    %c0_i32_2 = arith.constant 0 : i32
    return %c0_i32, %c0_i32_0, %c0_i32_1 : i32, i32, i32
  }
  func.func @transform_2(%arg0: i32) -> (i32, i32) {
    %c0_i32 = arith.constant 0 : i32
    %c0_i32_0 = arith.constant 0 : i32
    %c0_i32_1 = arith.constant 0 : i32
    return %c0_i32, %c0_i32_0 : i32, i32
  }
  func.func @transform_3(%arg0: i32) -> (i32, i32, i32, i32) {
    %c0_i32 = arith.constant 0 : i32
    %c0_i32_0 = arith.constant 0 : i32
    %c0_i32_1 = arith.constant 0 : i32
    %c0_i32_2 = arith.constant 0 : i32
    return %arg0, %c0_i32, %c0_i32_0, %c0_i32_1 : i32, i32, i32, i32
  }
}

module attributes {stable_mosaic.version = 11 : i64} {
  func.func @_upconv_phase_kernel(%arg0: i32, %arg1: memref<1x4x288x16xbf16, #tpu.memory_space<vmem>>, %arg2: memref<4x16x288xbf16, #tpu.memory_space<vmem>>, %arg3: memref<16x1xf32, #tpu.memory_space<vmem>>, %arg4: memref<1x4x16x16xf32, #tpu.memory_space<vmem>>) attributes {dimension_semantics = [#tpu.dimension_semantics<parallel>], iteration_bounds = array<i64: 2>, scalar_prefetch = 0 : i64, scratch_operands = 0 : i64, tpu.core_type = #tpu.core_type<tc>, window_params = [{transform_indices = @transform_0, window_bounds = array<i64: 1, 4, 288, 16>}, {pipeline_mode = #tpu.pipeline_mode<synchronous>, transform_indices = @transform_1, window_bounds = array<i64: 4, 16, 288>}, {pipeline_mode = #tpu.pipeline_mode<synchronous>, transform_indices = @transform_2, window_bounds = array<i64: 16, 1>}, {transform_indices = @transform_3, window_bounds = array<i64: 1, 4, 16, 16>}]} {
    %c0 = arith.constant 0 : index
    %c0_0 = arith.constant 0 : index
    %c0_1 = arith.constant 0 : index
    %0 = vector.load %arg2[%c0, %c0_0, %c0_1] : memref<4x16x288xbf16, #tpu.memory_space<vmem>>, vector<1x16x288xbf16>
    %1 = vector.shape_cast %0 : vector<1x16x288xbf16> to vector<16x288xbf16>
    %c0_2 = arith.constant 0 : index
    %c0_3 = arith.constant 0 : index
    %c0_4 = arith.constant 0 : index
    %c0_5 = arith.constant 0 : index
    %2 = vector.load %arg1[%c0_2, %c0_3, %c0_4, %c0_5] : memref<1x4x288x16xbf16, #tpu.memory_space<vmem>>, vector<1x1x288x16xbf16>
    %3 = vector.shape_cast %2 : vector<1x1x288x16xbf16> to vector<288x16xbf16>
    %cst = arith.constant dense<0.000000e+00> : vector<16x16xf32>
    %4 = tpu.matmul %1, %3, %cst {dimension_numbers = #tpu.dot_dimension_numbers<[1], [0], [0], [1], [0, 0, 1, 1], [], []>} : vector<16x288xbf16>, vector<288x16xbf16>, vector<16x16xf32> -> vector<16x16xf32>
    %c0_6 = arith.constant 0 : index
    %c0_7 = arith.constant 0 : index
    %5 = vector.load %arg3[%c0_6, %c0_7] : memref<16x1xf32, #tpu.memory_space<vmem>>, vector<16x1xf32>
    %6 = vector.broadcast %5 : vector<16x1xf32> to vector<16x16xf32>
    %7 = arith.addf %4, %6 : vector<16x16xf32>
    %cst_8 = arith.constant 0.000000e+00 : f32
    %8 = vector.broadcast %cst_8 : f32 to vector<16x16xf32>
    %9 = arith.cmpf oge, %7, %8 : vector<16x16xf32>
    %cst_9 = arith.constant 0.00999999977 : f32
    %10 = vector.broadcast %cst_9 : f32 to vector<16x16xf32>
    %11 = arith.mulf %10, %7 : vector<16x16xf32>
    %12 = arith.select %9, %7, %11 : vector<16x16xi1>, vector<16x16xf32>
    %cst_10 = arith.constant dense<0.000000e+00> : vector<16xf32>
    %13 = vector.multi_reduction <add>, %12, %cst_10 [1] : vector<16x16xf32> to vector<16xf32>
    %14 = vector.shape_cast %13 : vector<16xf32> to vector<16x1xf32>
    %c1 = arith.constant 1 : index
    %c0_11 = arith.constant 0 : index
    %c0_12 = arith.constant 0 : index
    %15 = vector.load %arg2[%c1, %c0_11, %c0_12] : memref<4x16x288xbf16, #tpu.memory_space<vmem>>, vector<1x16x288xbf16>
    %16 = vector.shape_cast %15 : vector<1x16x288xbf16> to vector<16x288xbf16>
    %c0_13 = arith.constant 0 : index
    %c1_14 = arith.constant 1 : index
    %c0_15 = arith.constant 0 : index
    %c0_16 = arith.constant 0 : index
    %17 = vector.load %arg1[%c0_13, %c1_14, %c0_15, %c0_16] : memref<1x4x288x16xbf16, #tpu.memory_space<vmem>>, vector<1x1x288x16xbf16>
    %18 = vector.shape_cast %17 : vector<1x1x288x16xbf16> to vector<288x16xbf16>
    %cst_17 = arith.constant dense<0.000000e+00> : vector<16x16xf32>
    %19 = tpu.matmul %16, %18, %cst_17 {dimension_numbers = #tpu.dot_dimension_numbers<[1], [0], [0], [1], [0, 0, 1, 1], [], []>} : vector<16x288xbf16>, vector<288x16xbf16>, vector<16x16xf32> -> vector<16x16xf32>
    %c0_18 = arith.constant 0 : index
    %c0_19 = arith.constant 0 : index
    %20 = vector.load %arg3[%c0_18, %c0_19] : memref<16x1xf32, #tpu.memory_space<vmem>>, vector<16x1xf32>
    %21 = vector.broadcast %20 : vector<16x1xf32> to vector<16x16xf32>
    %22 = arith.addf %19, %21 : vector<16x16xf32>
    %cst_20 = arith.constant 0.000000e+00 : f32
    %23 = vector.broadcast %cst_20 : f32 to vector<16x16xf32>
    %24 = arith.cmpf oge, %22, %23 : vector<16x16xf32>
    %cst_21 = arith.constant 0.00999999977 : f32
    %25 = vector.broadcast %cst_21 : f32 to vector<16x16xf32>
    %26 = arith.mulf %25, %22 : vector<16x16xf32>
    %27 = arith.select %24, %22, %26 : vector<16x16xi1>, vector<16x16xf32>
    %cst_22 = arith.constant dense<0.000000e+00> : vector<16xf32>
    %28 = vector.multi_reduction <add>, %27, %cst_22 [1] : vector<16x16xf32> to vector<16xf32>
    %29 = vector.shape_cast %28 : vector<16xf32> to vector<16x1xf32>
    %30 = arith.addf %14, %29 : vector<16x1xf32>
    %c2 = arith.constant 2 : index
    %c0_23 = arith.constant 0 : index
    %c0_24 = arith.constant 0 : index
    %31 = vector.load %arg2[%c2, %c0_23, %c0_24] : memref<4x16x288xbf16, #tpu.memory_space<vmem>>, vector<1x16x288xbf16>
    %32 = vector.shape_cast %31 : vector<1x16x288xbf16> to vector<16x288xbf16>
    %c0_25 = arith.constant 0 : index
    %c2_26 = arith.constant 2 : index
    %c0_27 = arith.constant 0 : index
    %c0_28 = arith.constant 0 : index
    %33 = vector.load %arg1[%c0_25, %c2_26, %c0_27, %c0_28] : memref<1x4x288x16xbf16, #tpu.memory_space<vmem>>, vector<1x1x288x16xbf16>
    %34 = vector.shape_cast %33 : vector<1x1x288x16xbf16> to vector<288x16xbf16>
    %cst_29 = arith.constant dense<0.000000e+00> : vector<16x16xf32>
    %35 = tpu.matmul %32, %34, %cst_29 {dimension_numbers = #tpu.dot_dimension_numbers<[1], [0], [0], [1], [0, 0, 1, 1], [], []>} : vector<16x288xbf16>, vector<288x16xbf16>, vector<16x16xf32> -> vector<16x16xf32>
    %c0_30 = arith.constant 0 : index
    %c0_31 = arith.constant 0 : index
    %36 = vector.load %arg3[%c0_30, %c0_31] : memref<16x1xf32, #tpu.memory_space<vmem>>, vector<16x1xf32>
    %37 = vector.broadcast %36 : vector<16x1xf32> to vector<16x16xf32>
    %38 = arith.addf %35, %37 : vector<16x16xf32>
    %cst_32 = arith.constant 0.000000e+00 : f32
    %39 = vector.broadcast %cst_32 : f32 to vector<16x16xf32>
    %40 = arith.cmpf oge, %38, %39 : vector<16x16xf32>
    %cst_33 = arith.constant 0.00999999977 : f32
    %41 = vector.broadcast %cst_33 : f32 to vector<16x16xf32>
    %42 = arith.mulf %41, %38 : vector<16x16xf32>
    %43 = arith.select %40, %38, %42 : vector<16x16xi1>, vector<16x16xf32>
    %cst_34 = arith.constant dense<0.000000e+00> : vector<16xf32>
    %44 = vector.multi_reduction <add>, %43, %cst_34 [1] : vector<16x16xf32> to vector<16xf32>
    %45 = vector.shape_cast %44 : vector<16xf32> to vector<16x1xf32>
    %46 = arith.addf %30, %45 : vector<16x1xf32>
    %c3 = arith.constant 3 : index
    %c0_35 = arith.constant 0 : index
    %c0_36 = arith.constant 0 : index
    %47 = vector.load %arg2[%c3, %c0_35, %c0_36] : memref<4x16x288xbf16, #tpu.memory_space<vmem>>, vector<1x16x288xbf16>
    %48 = vector.shape_cast %47 : vector<1x16x288xbf16> to vector<16x288xbf16>
    %c0_37 = arith.constant 0 : index
    %c3_38 = arith.constant 3 : index
    %c0_39 = arith.constant 0 : index
    %c0_40 = arith.constant 0 : index
    %49 = vector.load %arg1[%c0_37, %c3_38, %c0_39, %c0_40] : memref<1x4x288x16xbf16, #tpu.memory_space<vmem>>, vector<1x1x288x16xbf16>
    %50 = vector.shape_cast %49 : vector<1x1x288x16xbf16> to vector<288x16xbf16>
    %cst_41 = arith.constant dense<0.000000e+00> : vector<16x16xf32>
    %51 = tpu.matmul %48, %50, %cst_41 {dimension_numbers = #tpu.dot_dimension_numbers<[1], [0], [0], [1], [0, 0, 1, 1], [], []>} : vector<16x288xbf16>, vector<288x16xbf16>, vector<16x16xf32> -> vector<16x16xf32>
    %c0_42 = arith.constant 0 : index
    %c0_43 = arith.constant 0 : index
    %52 = vector.load %arg3[%c0_42, %c0_43] : memref<16x1xf32, #tpu.memory_space<vmem>>, vector<16x1xf32>
    %53 = vector.broadcast %52 : vector<16x1xf32> to vector<16x16xf32>
    %54 = arith.addf %51, %53 : vector<16x16xf32>
    %cst_44 = arith.constant 0.000000e+00 : f32
    %55 = vector.broadcast %cst_44 : f32 to vector<16x16xf32>
    %56 = arith.cmpf oge, %54, %55 : vector<16x16xf32>
    %cst_45 = arith.constant 0.00999999977 : f32
    %57 = vector.broadcast %cst_45 : f32 to vector<16x16xf32>
    %58 = arith.mulf %57, %54 : vector<16x16xf32>
    %59 = arith.select %56, %54, %58 : vector<16x16xi1>, vector<16x16xf32>
    %cst_46 = arith.constant dense<0.000000e+00> : vector<16xf32>
    %60 = vector.multi_reduction <add>, %59, %cst_46 [1] : vector<16x16xf32> to vector<16xf32>
    %61 = vector.shape_cast %60 : vector<16xf32> to vector<16x1xf32>
    %62 = arith.addf %46, %61 : vector<16x1xf32>
    %cst_47 = arith.constant 6.400000e+01 : f32
    %63 = vector.broadcast %cst_47 : f32 to vector<16x1xf32>
    %64 = arith.divf %62, %63 : vector<16x1xf32>
    %65 = vector.broadcast %64 : vector<16x1xf32> to vector<16x16xf32>
    %66 = arith.subf %12, %65 : vector<16x16xf32>
    %67 = arith.mulf %66, %66 : vector<16x16xf32>
    %cst_48 = arith.constant dense<0.000000e+00> : vector<16xf32>
    %68 = vector.multi_reduction <add>, %67, %cst_48 [1] : vector<16x16xf32> to vector<16xf32>
    %69 = vector.shape_cast %68 : vector<16xf32> to vector<16x1xf32>
    %70 = vector.broadcast %64 : vector<16x1xf32> to vector<16x16xf32>
    %71 = arith.subf %27, %70 : vector<16x16xf32>
    %72 = arith.mulf %71, %71 : vector<16x16xf32>
    %cst_49 = arith.constant dense<0.000000e+00> : vector<16xf32>
    %73 = vector.multi_reduction <add>, %72, %cst_49 [1] : vector<16x16xf32> to vector<16xf32>
    %74 = vector.shape_cast %73 : vector<16xf32> to vector<16x1xf32>
    %75 = arith.addf %69, %74 : vector<16x1xf32>
    %76 = vector.broadcast %64 : vector<16x1xf32> to vector<16x16xf32>
    %77 = arith.subf %43, %76 : vector<16x16xf32>
    %78 = arith.mulf %77, %77 : vector<16x16xf32>
    %cst_50 = arith.constant dense<0.000000e+00> : vector<16xf32>
    %79 = vector.multi_reduction <add>, %78, %cst_50 [1] : vector<16x16xf32> to vector<16xf32>
    %80 = vector.shape_cast %79 : vector<16xf32> to vector<16x1xf32>
    %81 = arith.addf %75, %80 : vector<16x1xf32>
    %82 = vector.broadcast %64 : vector<16x1xf32> to vector<16x16xf32>
    %83 = arith.subf %59, %82 : vector<16x16xf32>
    %84 = arith.mulf %83, %83 : vector<16x16xf32>
    %cst_51 = arith.constant dense<0.000000e+00> : vector<16xf32>
    %85 = vector.multi_reduction <add>, %84, %cst_51 [1] : vector<16x16xf32> to vector<16xf32>
    %86 = vector.shape_cast %85 : vector<16xf32> to vector<16x1xf32>
    %87 = arith.addf %81, %86 : vector<16x1xf32>
    %cst_52 = arith.constant 6.400000e+01 : f32
    %88 = vector.broadcast %cst_52 : f32 to vector<16x1xf32>
    %89 = arith.divf %87, %88 : vector<16x1xf32>
    %cst_53 = arith.constant 9.99999974E-6 : f32
    %90 = vector.broadcast %cst_53 : f32 to vector<16x1xf32>
    %91 = arith.addf %89, %90 : vector<16x1xf32>
    %92 = math.rsqrt %91 : vector<16x1xf32>
    %93 = vector.broadcast %64 : vector<16x1xf32> to vector<16x16xf32>
    %94 = arith.subf %12, %93 : vector<16x16xf32>
    %95 = vector.broadcast %92 : vector<16x1xf32> to vector<16x16xf32>
    %96 = arith.mulf %94, %95 : vector<16x16xf32>
    %c0_54 = arith.constant 0 : index
    %c0_55 = arith.constant 0 : index
    %c0_56 = arith.constant 0 : index
    %c0_57 = arith.constant 0 : index
    %97 = vector.load %arg4[%c0_54, %c0_55, %c0_56, %c0_57] : memref<1x4x16x16xf32, #tpu.memory_space<vmem>>, vector<1x1x16x16xf32>
    %98 = vector.shape_cast %97 : vector<1x1x16x16xf32> to vector<16x16xf32>
    %99 = vector.shape_cast %96 : vector<16x16xf32> to vector<1x1x16x16xf32>
    tpu.vector_store %arg4[%c0_54, %c0_55, %c0_56, %c0_57], %99 {strides = array<i32>} : memref<1x4x16x16xf32, #tpu.memory_space<vmem>>, vector<1x1x16x16xf32>,
    %100 = vector.broadcast %64 : vector<16x1xf32> to vector<16x16xf32>
    %101 = arith.subf %27, %100 : vector<16x16xf32>
    %102 = vector.broadcast %92 : vector<16x1xf32> to vector<16x16xf32>
    %103 = arith.mulf %101, %102 : vector<16x16xf32>
    %c0_58 = arith.constant 0 : index
    %c1_59 = arith.constant 1 : index
    %c0_60 = arith.constant 0 : index
    %c0_61 = arith.constant 0 : index
    %104 = vector.load %arg4[%c0_58, %c1_59, %c0_60, %c0_61] : memref<1x4x16x16xf32, #tpu.memory_space<vmem>>, vector<1x1x16x16xf32>
    %105 = vector.shape_cast %104 : vector<1x1x16x16xf32> to vector<16x16xf32>
    %106 = vector.shape_cast %103 : vector<16x16xf32> to vector<1x1x16x16xf32>
    tpu.vector_store %arg4[%c0_58, %c1_59, %c0_60, %c0_61], %106 {strides = array<i32>} : memref<1x4x16x16xf32, #tpu.memory_space<vmem>>, vector<1x1x16x16xf32>,
    %107 = vector.broadcast %64 : vector<16x1xf32> to vector<16x16xf32>
    %108 = arith.subf %43, %107 : vector<16x16xf32>
    %109 = vector.broadcast %92 : vector<16x1xf32> to vector<16x16xf32>
    %110 = arith.mulf %108, %109 : vector<16x16xf32>
    %c0_62 = arith.constant 0 : index
    %c2_63 = arith.constant 2 : index
    %c0_64 = arith.constant 0 : index
    %c0_65 = arith.constant 0 : index
    %111 = vector.load %arg4[%c0_62, %c2_63, %c0_64, %c0_65] : memref<1x4x16x16xf32, #tpu.memory_space<vmem>>, vector<1x1x16x16xf32>
    %112 = vector.shape_cast %111 : vector<1x1x16x16xf32> to vector<16x16xf32>
    %113 = vector.shape_cast %110 : vector<16x16xf32> to vector<1x1x16x16xf32>
    tpu.vector_store %arg4[%c0_62, %c2_63, %c0_64, %c0_65], %113 {strides = array<i32>} : memref<1x4x16x16xf32, #tpu.memory_space<vmem>>, vector<1x1x16x16xf32>,
    %114 = vector.broadcast %64 : vector<16x1xf32> to vector<16x16xf32>
    %115 = arith.subf %59, %114 : vector<16x16xf32>
    %116 = vector.broadcast %92 : vector<16x1xf32> to vector<16x16xf32>
    %117 = arith.mulf %115, %116 : vector<16x16xf32>
    %c0_66 = arith.constant 0 : index
    %c3_67 = arith.constant 3 : index
    %c0_68 = arith.constant 0 : index
    %c0_69 = arith.constant 0 : index
    %118 = vector.load %arg4[%c0_66, %c3_67, %c0_68, %c0_69] : memref<1x4x16x16xf32, #tpu.memory_space<vmem>>, vector<1x1x16x16xf32>
    %119 = vector.shape_cast %118 : vector<1x1x16x16xf32> to vector<16x16xf32>
    %120 = vector.shape_cast %117 : vector<16x16xf32> to vector<1x1x16x16xf32>
    tpu.vector_store %arg4[%c0_66, %c3_67, %c0_68, %c0_69], %120 {strides = array<i32>} : memref<1x4x16x16xf32, #tpu.memory_space<vmem>>, vector<1x1x16x16xf32>,
    return
  }
  func.func @transform_0(%arg0: i32) -> (i32, i32, i32, i32) {
    %c0_i32 = arith.constant 0 : i32
    %c0_i32_0 = arith.constant 0 : i32
    %c0_i32_1 = arith.constant 0 : i32
    %c0_i32_2 = arith.constant 0 : i32
    return %arg0, %c0_i32, %c0_i32_0, %c0_i32_1 : i32, i32, i32, i32
  }
  func.func @transform_1(%arg0: i32) -> (i32, i32, i32) {
    %c0_i32 = arith.constant 0 : i32
    %c0_i32_0 = arith.constant 0 : i32
    %c0_i32_1 = arith.constant 0 : i32
    %c0_i32_2 = arith.constant 0 : i32
    return %c0_i32, %c0_i32_0, %c0_i32_1 : i32, i32, i32
  }
  func.func @transform_2(%arg0: i32) -> (i32, i32) {
    %c0_i32 = arith.constant 0 : i32
    %c0_i32_0 = arith.constant 0 : i32
    %c0_i32_1 = arith.constant 0 : i32
    return %c0_i32, %c0_i32_0 : i32, i32
  }
  func.func @transform_3(%arg0: i32) -> (i32, i32, i32, i32) {
    %c0_i32 = arith.constant 0 : i32
    %c0_i32_0 = arith.constant 0 : i32
    %c0_i32_1 = arith.constant 0 : i32
    %c0_i32_2 = arith.constant 0 : i32
    return %arg0, %c0_i32, %c0_i32_0, %c0_i32_1 : i32, i32, i32, i32
  }
}

module attributes {stable_mosaic.version = 11 : i64} {
  func.func @_upconv_phase_kernel(%arg0: i32, %arg1: memref<1x4x288x64xbf16, #tpu.memory_space<vmem>>, %arg2: memref<4x8x288xbf16, #tpu.memory_space<vmem>>, %arg3: memref<8x1xf32, #tpu.memory_space<vmem>>, %arg4: memref<1x4x8x64xf32, #tpu.memory_space<vmem>>) attributes {dimension_semantics = [#tpu.dimension_semantics<parallel>], iteration_bounds = array<i64: 2>, scalar_prefetch = 0 : i64, scratch_operands = 0 : i64, tpu.core_type = #tpu.core_type<tc>, window_params = [{transform_indices = @transform_0, window_bounds = array<i64: 1, 4, 288, 64>}, {pipeline_mode = #tpu.pipeline_mode<synchronous>, transform_indices = @transform_1, window_bounds = array<i64: 4, 8, 288>}, {pipeline_mode = #tpu.pipeline_mode<synchronous>, transform_indices = @transform_2, window_bounds = array<i64: 8, 1>}, {transform_indices = @transform_3, window_bounds = array<i64: 1, 4, 8, 64>}]} {
    %c0 = arith.constant 0 : index
    %c0_0 = arith.constant 0 : index
    %c0_1 = arith.constant 0 : index
    %0 = vector.load %arg2[%c0, %c0_0, %c0_1] : memref<4x8x288xbf16, #tpu.memory_space<vmem>>, vector<1x8x288xbf16>
    %1 = vector.shape_cast %0 : vector<1x8x288xbf16> to vector<8x288xbf16>
    %c0_2 = arith.constant 0 : index
    %c0_3 = arith.constant 0 : index
    %c0_4 = arith.constant 0 : index
    %c0_5 = arith.constant 0 : index
    %2 = vector.load %arg1[%c0_2, %c0_3, %c0_4, %c0_5] : memref<1x4x288x64xbf16, #tpu.memory_space<vmem>>, vector<1x1x288x64xbf16>
    %3 = vector.shape_cast %2 : vector<1x1x288x64xbf16> to vector<288x64xbf16>
    %cst = arith.constant dense<0.000000e+00> : vector<8x64xf32>
    %4 = tpu.matmul %1, %3, %cst {dimension_numbers = #tpu.dot_dimension_numbers<[1], [0], [0], [1], [0, 0, 1, 1], [], []>} : vector<8x288xbf16>, vector<288x64xbf16>, vector<8x64xf32> -> vector<8x64xf32>
    %c0_6 = arith.constant 0 : index
    %c0_7 = arith.constant 0 : index
    %5 = vector.load %arg3[%c0_6, %c0_7] : memref<8x1xf32, #tpu.memory_space<vmem>>, vector<8x1xf32>
    %6 = vector.broadcast %5 : vector<8x1xf32> to vector<8x64xf32>
    %7 = arith.addf %4, %6 : vector<8x64xf32>
    %cst_8 = arith.constant 0.000000e+00 : f32
    %8 = vector.broadcast %cst_8 : f32 to vector<8x64xf32>
    %9 = arith.cmpf oge, %7, %8 : vector<8x64xf32>
    %cst_9 = arith.constant 0.00999999977 : f32
    %10 = vector.broadcast %cst_9 : f32 to vector<8x64xf32>
    %11 = arith.mulf %10, %7 : vector<8x64xf32>
    %12 = arith.select %9, %7, %11 : vector<8x64xi1>, vector<8x64xf32>
    %cst_10 = arith.constant dense<0.000000e+00> : vector<8xf32>
    %13 = vector.multi_reduction <add>, %12, %cst_10 [1] : vector<8x64xf32> to vector<8xf32>
    %14 = vector.shape_cast %13 : vector<8xf32> to vector<8x1xf32>
    %c1 = arith.constant 1 : index
    %c0_11 = arith.constant 0 : index
    %c0_12 = arith.constant 0 : index
    %15 = vector.load %arg2[%c1, %c0_11, %c0_12] : memref<4x8x288xbf16, #tpu.memory_space<vmem>>, vector<1x8x288xbf16>
    %16 = vector.shape_cast %15 : vector<1x8x288xbf16> to vector<8x288xbf16>
    %c0_13 = arith.constant 0 : index
    %c1_14 = arith.constant 1 : index
    %c0_15 = arith.constant 0 : index
    %c0_16 = arith.constant 0 : index
    %17 = vector.load %arg1[%c0_13, %c1_14, %c0_15, %c0_16] : memref<1x4x288x64xbf16, #tpu.memory_space<vmem>>, vector<1x1x288x64xbf16>
    %18 = vector.shape_cast %17 : vector<1x1x288x64xbf16> to vector<288x64xbf16>
    %cst_17 = arith.constant dense<0.000000e+00> : vector<8x64xf32>
    %19 = tpu.matmul %16, %18, %cst_17 {dimension_numbers = #tpu.dot_dimension_numbers<[1], [0], [0], [1], [0, 0, 1, 1], [], []>} : vector<8x288xbf16>, vector<288x64xbf16>, vector<8x64xf32> -> vector<8x64xf32>
    %c0_18 = arith.constant 0 : index
    %c0_19 = arith.constant 0 : index
    %20 = vector.load %arg3[%c0_18, %c0_19] : memref<8x1xf32, #tpu.memory_space<vmem>>, vector<8x1xf32>
    %21 = vector.broadcast %20 : vector<8x1xf32> to vector<8x64xf32>
    %22 = arith.addf %19, %21 : vector<8x64xf32>
    %cst_20 = arith.constant 0.000000e+00 : f32
    %23 = vector.broadcast %cst_20 : f32 to vector<8x64xf32>
    %24 = arith.cmpf oge, %22, %23 : vector<8x64xf32>
    %cst_21 = arith.constant 0.00999999977 : f32
    %25 = vector.broadcast %cst_21 : f32 to vector<8x64xf32>
    %26 = arith.mulf %25, %22 : vector<8x64xf32>
    %27 = arith.select %24, %22, %26 : vector<8x64xi1>, vector<8x64xf32>
    %cst_22 = arith.constant dense<0.000000e+00> : vector<8xf32>
    %28 = vector.multi_reduction <add>, %27, %cst_22 [1] : vector<8x64xf32> to vector<8xf32>
    %29 = vector.shape_cast %28 : vector<8xf32> to vector<8x1xf32>
    %30 = arith.addf %14, %29 : vector<8x1xf32>
    %c2 = arith.constant 2 : index
    %c0_23 = arith.constant 0 : index
    %c0_24 = arith.constant 0 : index
    %31 = vector.load %arg2[%c2, %c0_23, %c0_24] : memref<4x8x288xbf16, #tpu.memory_space<vmem>>, vector<1x8x288xbf16>
    %32 = vector.shape_cast %31 : vector<1x8x288xbf16> to vector<8x288xbf16>
    %c0_25 = arith.constant 0 : index
    %c2_26 = arith.constant 2 : index
    %c0_27 = arith.constant 0 : index
    %c0_28 = arith.constant 0 : index
    %33 = vector.load %arg1[%c0_25, %c2_26, %c0_27, %c0_28] : memref<1x4x288x64xbf16, #tpu.memory_space<vmem>>, vector<1x1x288x64xbf16>
    %34 = vector.shape_cast %33 : vector<1x1x288x64xbf16> to vector<288x64xbf16>
    %cst_29 = arith.constant dense<0.000000e+00> : vector<8x64xf32>
    %35 = tpu.matmul %32, %34, %cst_29 {dimension_numbers = #tpu.dot_dimension_numbers<[1], [0], [0], [1], [0, 0, 1, 1], [], []>} : vector<8x288xbf16>, vector<288x64xbf16>, vector<8x64xf32> -> vector<8x64xf32>
    %c0_30 = arith.constant 0 : index
    %c0_31 = arith.constant 0 : index
    %36 = vector.load %arg3[%c0_30, %c0_31] : memref<8x1xf32, #tpu.memory_space<vmem>>, vector<8x1xf32>
    %37 = vector.broadcast %36 : vector<8x1xf32> to vector<8x64xf32>
    %38 = arith.addf %35, %37 : vector<8x64xf32>
    %cst_32 = arith.constant 0.000000e+00 : f32
    %39 = vector.broadcast %cst_32 : f32 to vector<8x64xf32>
    %40 = arith.cmpf oge, %38, %39 : vector<8x64xf32>
    %cst_33 = arith.constant 0.00999999977 : f32
    %41 = vector.broadcast %cst_33 : f32 to vector<8x64xf32>
    %42 = arith.mulf %41, %38 : vector<8x64xf32>
    %43 = arith.select %40, %38, %42 : vector<8x64xi1>, vector<8x64xf32>
    %cst_34 = arith.constant dense<0.000000e+00> : vector<8xf32>
    %44 = vector.multi_reduction <add>, %43, %cst_34 [1] : vector<8x64xf32> to vector<8xf32>
    %45 = vector.shape_cast %44 : vector<8xf32> to vector<8x1xf32>
    %46 = arith.addf %30, %45 : vector<8x1xf32>
    %c3 = arith.constant 3 : index
    %c0_35 = arith.constant 0 : index
    %c0_36 = arith.constant 0 : index
    %47 = vector.load %arg2[%c3, %c0_35, %c0_36] : memref<4x8x288xbf16, #tpu.memory_space<vmem>>, vector<1x8x288xbf16>
    %48 = vector.shape_cast %47 : vector<1x8x288xbf16> to vector<8x288xbf16>
    %c0_37 = arith.constant 0 : index
    %c3_38 = arith.constant 3 : index
    %c0_39 = arith.constant 0 : index
    %c0_40 = arith.constant 0 : index
    %49 = vector.load %arg1[%c0_37, %c3_38, %c0_39, %c0_40] : memref<1x4x288x64xbf16, #tpu.memory_space<vmem>>, vector<1x1x288x64xbf16>
    %50 = vector.shape_cast %49 : vector<1x1x288x64xbf16> to vector<288x64xbf16>
    %cst_41 = arith.constant dense<0.000000e+00> : vector<8x64xf32>
    %51 = tpu.matmul %48, %50, %cst_41 {dimension_numbers = #tpu.dot_dimension_numbers<[1], [0], [0], [1], [0, 0, 1, 1], [], []>} : vector<8x288xbf16>, vector<288x64xbf16>, vector<8x64xf32> -> vector<8x64xf32>
    %c0_42 = arith.constant 0 : index
    %c0_43 = arith.constant 0 : index
    %52 = vector.load %arg3[%c0_42, %c0_43] : memref<8x1xf32, #tpu.memory_space<vmem>>, vector<8x1xf32>
    %53 = vector.broadcast %52 : vector<8x1xf32> to vector<8x64xf32>
    %54 = arith.addf %51, %53 : vector<8x64xf32>
    %cst_44 = arith.constant 0.000000e+00 : f32
    %55 = vector.broadcast %cst_44 : f32 to vector<8x64xf32>
    %56 = arith.cmpf oge, %54, %55 : vector<8x64xf32>
    %cst_45 = arith.constant 0.00999999977 : f32
    %57 = vector.broadcast %cst_45 : f32 to vector<8x64xf32>
    %58 = arith.mulf %57, %54 : vector<8x64xf32>
    %59 = arith.select %56, %54, %58 : vector<8x64xi1>, vector<8x64xf32>
    %cst_46 = arith.constant dense<0.000000e+00> : vector<8xf32>
    %60 = vector.multi_reduction <add>, %59, %cst_46 [1] : vector<8x64xf32> to vector<8xf32>
    %61 = vector.shape_cast %60 : vector<8xf32> to vector<8x1xf32>
    %62 = arith.addf %46, %61 : vector<8x1xf32>
    %cst_47 = arith.constant 2.560000e+02 : f32
    %63 = vector.broadcast %cst_47 : f32 to vector<8x1xf32>
    %64 = arith.divf %62, %63 : vector<8x1xf32>
    %65 = vector.broadcast %64 : vector<8x1xf32> to vector<8x64xf32>
    %66 = arith.subf %12, %65 : vector<8x64xf32>
    %67 = arith.mulf %66, %66 : vector<8x64xf32>
    %cst_48 = arith.constant dense<0.000000e+00> : vector<8xf32>
    %68 = vector.multi_reduction <add>, %67, %cst_48 [1] : vector<8x64xf32> to vector<8xf32>
    %69 = vector.shape_cast %68 : vector<8xf32> to vector<8x1xf32>
    %70 = vector.broadcast %64 : vector<8x1xf32> to vector<8x64xf32>
    %71 = arith.subf %27, %70 : vector<8x64xf32>
    %72 = arith.mulf %71, %71 : vector<8x64xf32>
    %cst_49 = arith.constant dense<0.000000e+00> : vector<8xf32>
    %73 = vector.multi_reduction <add>, %72, %cst_49 [1] : vector<8x64xf32> to vector<8xf32>
    %74 = vector.shape_cast %73 : vector<8xf32> to vector<8x1xf32>
    %75 = arith.addf %69, %74 : vector<8x1xf32>
    %76 = vector.broadcast %64 : vector<8x1xf32> to vector<8x64xf32>
    %77 = arith.subf %43, %76 : vector<8x64xf32>
    %78 = arith.mulf %77, %77 : vector<8x64xf32>
    %cst_50 = arith.constant dense<0.000000e+00> : vector<8xf32>
    %79 = vector.multi_reduction <add>, %78, %cst_50 [1] : vector<8x64xf32> to vector<8xf32>
    %80 = vector.shape_cast %79 : vector<8xf32> to vector<8x1xf32>
    %81 = arith.addf %75, %80 : vector<8x1xf32>
    %82 = vector.broadcast %64 : vector<8x1xf32> to vector<8x64xf32>
    %83 = arith.subf %59, %82 : vector<8x64xf32>
    %84 = arith.mulf %83, %83 : vector<8x64xf32>
    %cst_51 = arith.constant dense<0.000000e+00> : vector<8xf32>
    %85 = vector.multi_reduction <add>, %84, %cst_51 [1] : vector<8x64xf32> to vector<8xf32>
    %86 = vector.shape_cast %85 : vector<8xf32> to vector<8x1xf32>
    %87 = arith.addf %81, %86 : vector<8x1xf32>
    %cst_52 = arith.constant 2.560000e+02 : f32
    %88 = vector.broadcast %cst_52 : f32 to vector<8x1xf32>
    %89 = arith.divf %87, %88 : vector<8x1xf32>
    %cst_53 = arith.constant 9.99999974E-6 : f32
    %90 = vector.broadcast %cst_53 : f32 to vector<8x1xf32>
    %91 = arith.addf %89, %90 : vector<8x1xf32>
    %92 = math.rsqrt %91 : vector<8x1xf32>
    %93 = vector.broadcast %64 : vector<8x1xf32> to vector<8x64xf32>
    %94 = arith.subf %12, %93 : vector<8x64xf32>
    %95 = vector.broadcast %92 : vector<8x1xf32> to vector<8x64xf32>
    %96 = arith.mulf %94, %95 : vector<8x64xf32>
    %c0_54 = arith.constant 0 : index
    %c0_55 = arith.constant 0 : index
    %c0_56 = arith.constant 0 : index
    %c0_57 = arith.constant 0 : index
    %97 = vector.load %arg4[%c0_54, %c0_55, %c0_56, %c0_57] : memref<1x4x8x64xf32, #tpu.memory_space<vmem>>, vector<1x1x8x64xf32>
    %98 = vector.shape_cast %97 : vector<1x1x8x64xf32> to vector<8x64xf32>
    %99 = vector.shape_cast %96 : vector<8x64xf32> to vector<1x1x8x64xf32>
    tpu.vector_store %arg4[%c0_54, %c0_55, %c0_56, %c0_57], %99 {strides = array<i32>} : memref<1x4x8x64xf32, #tpu.memory_space<vmem>>, vector<1x1x8x64xf32>,
    %100 = vector.broadcast %64 : vector<8x1xf32> to vector<8x64xf32>
    %101 = arith.subf %27, %100 : vector<8x64xf32>
    %102 = vector.broadcast %92 : vector<8x1xf32> to vector<8x64xf32>
    %103 = arith.mulf %101, %102 : vector<8x64xf32>
    %c0_58 = arith.constant 0 : index
    %c1_59 = arith.constant 1 : index
    %c0_60 = arith.constant 0 : index
    %c0_61 = arith.constant 0 : index
    %104 = vector.load %arg4[%c0_58, %c1_59, %c0_60, %c0_61] : memref<1x4x8x64xf32, #tpu.memory_space<vmem>>, vector<1x1x8x64xf32>
    %105 = vector.shape_cast %104 : vector<1x1x8x64xf32> to vector<8x64xf32>
    %106 = vector.shape_cast %103 : vector<8x64xf32> to vector<1x1x8x64xf32>
    tpu.vector_store %arg4[%c0_58, %c1_59, %c0_60, %c0_61], %106 {strides = array<i32>} : memref<1x4x8x64xf32, #tpu.memory_space<vmem>>, vector<1x1x8x64xf32>,
    %107 = vector.broadcast %64 : vector<8x1xf32> to vector<8x64xf32>
    %108 = arith.subf %43, %107 : vector<8x64xf32>
    %109 = vector.broadcast %92 : vector<8x1xf32> to vector<8x64xf32>
    %110 = arith.mulf %108, %109 : vector<8x64xf32>
    %c0_62 = arith.constant 0 : index
    %c2_63 = arith.constant 2 : index
    %c0_64 = arith.constant 0 : index
    %c0_65 = arith.constant 0 : index
    %111 = vector.load %arg4[%c0_62, %c2_63, %c0_64, %c0_65] : memref<1x4x8x64xf32, #tpu.memory_space<vmem>>, vector<1x1x8x64xf32>
    %112 = vector.shape_cast %111 : vector<1x1x8x64xf32> to vector<8x64xf32>
    %113 = vector.shape_cast %110 : vector<8x64xf32> to vector<1x1x8x64xf32>
    tpu.vector_store %arg4[%c0_62, %c2_63, %c0_64, %c0_65], %113 {strides = array<i32>} : memref<1x4x8x64xf32, #tpu.memory_space<vmem>>, vector<1x1x8x64xf32>,
    %114 = vector.broadcast %64 : vector<8x1xf32> to vector<8x64xf32>
    %115 = arith.subf %59, %114 : vector<8x64xf32>
    %116 = vector.broadcast %92 : vector<8x1xf32> to vector<8x64xf32>
    %117 = arith.mulf %115, %116 : vector<8x64xf32>
    %c0_66 = arith.constant 0 : index
    %c3_67 = arith.constant 3 : index
    %c0_68 = arith.constant 0 : index
    %c0_69 = arith.constant 0 : index
    %118 = vector.load %arg4[%c0_66, %c3_67, %c0_68, %c0_69] : memref<1x4x8x64xf32, #tpu.memory_space<vmem>>, vector<1x1x8x64xf32>
    %119 = vector.shape_cast %118 : vector<1x1x8x64xf32> to vector<8x64xf32>
    %120 = vector.shape_cast %117 : vector<8x64xf32> to vector<1x1x8x64xf32>
    tpu.vector_store %arg4[%c0_66, %c3_67, %c0_68, %c0_69], %120 {strides = array<i32>} : memref<1x4x8x64xf32, #tpu.memory_space<vmem>>, vector<1x1x8x64xf32>,
    return
  }
  func.func @transform_0(%arg0: i32) -> (i32, i32, i32, i32) {
    %c0_i32 = arith.constant 0 : i32
    %c0_i32_0 = arith.constant 0 : i32
    %c0_i32_1 = arith.constant 0 : i32
    %c0_i32_2 = arith.constant 0 : i32
    return %arg0, %c0_i32, %c0_i32_0, %c0_i32_1 : i32, i32, i32, i32
  }
  func.func @transform_1(%arg0: i32) -> (i32, i32, i32) {
    %c0_i32 = arith.constant 0 : i32
    %c0_i32_0 = arith.constant 0 : i32
    %c0_i32_1 = arith.constant 0 : i32
    %c0_i32_2 = arith.constant 0 : i32
    return %c0_i32, %c0_i32_0, %c0_i32_1 : i32, i32, i32
  }
  func.func @transform_2(%arg0: i32) -> (i32, i32) {
    %c0_i32 = arith.constant 0 : i32
    %c0_i32_0 = arith.constant 0 : i32
    %c0_i32_1 = arith.constant 0 : i32
    return %c0_i32, %c0_i32_0 : i32, i32
  }
  func.func @transform_3(%arg0: i32) -> (i32, i32, i32, i32) {
    %c0_i32 = arith.constant 0 : i32
    %c0_i32_0 = arith.constant 0 : i32
    %c0_i32_1 = arith.constant 0 : i32
    %c0_i32_2 = arith.constant 0 : i32
    return %arg0, %c0_i32, %c0_i32_0, %c0_i32_1 : i32, i32, i32, i32
  }
}

module attributes {stable_mosaic.version = 11 : i64} {
  func.func @_upconv_phase_kernel(%arg0: i32, %arg1: memref<1x4x216x256xbf16, #tpu.memory_space<vmem>>, %arg2: memref<4x14x216xbf16, #tpu.memory_space<vmem>>, %arg3: memref<14x1xf32, #tpu.memory_space<vmem>>, %arg4: memref<1x4x14x256xf32, #tpu.memory_space<vmem>>) attributes {dimension_semantics = [#tpu.dimension_semantics<parallel>], iteration_bounds = array<i64: 2>, scalar_prefetch = 0 : i64, scratch_operands = 0 : i64, tpu.core_type = #tpu.core_type<tc>, window_params = [{transform_indices = @transform_0, window_bounds = array<i64: 1, 4, 216, 256>}, {pipeline_mode = #tpu.pipeline_mode<synchronous>, transform_indices = @transform_1, window_bounds = array<i64: 4, 14, 216>}, {pipeline_mode = #tpu.pipeline_mode<synchronous>, transform_indices = @transform_2, window_bounds = array<i64: 14, 1>}, {transform_indices = @transform_3, window_bounds = array<i64: 1, 4, 14, 256>}]} {
    %c0 = arith.constant 0 : index
    %c0_0 = arith.constant 0 : index
    %c0_1 = arith.constant 0 : index
    %0 = vector.load %arg2[%c0, %c0_0, %c0_1] : memref<4x14x216xbf16, #tpu.memory_space<vmem>>, vector<1x14x216xbf16>
    %1 = vector.shape_cast %0 : vector<1x14x216xbf16> to vector<14x216xbf16>
    %c0_2 = arith.constant 0 : index
    %c0_3 = arith.constant 0 : index
    %c0_4 = arith.constant 0 : index
    %c0_5 = arith.constant 0 : index
    %2 = vector.load %arg1[%c0_2, %c0_3, %c0_4, %c0_5] : memref<1x4x216x256xbf16, #tpu.memory_space<vmem>>, vector<1x1x216x256xbf16>
    %3 = vector.shape_cast %2 : vector<1x1x216x256xbf16> to vector<216x256xbf16>
    %cst = arith.constant dense<0.000000e+00> : vector<14x256xf32>
    %4 = tpu.matmul %1, %3, %cst {dimension_numbers = #tpu.dot_dimension_numbers<[1], [0], [0], [1], [0, 0, 1, 1], [], []>} : vector<14x216xbf16>, vector<216x256xbf16>, vector<14x256xf32> -> vector<14x256xf32>
    %c0_6 = arith.constant 0 : index
    %c0_7 = arith.constant 0 : index
    %5 = vector.load %arg3[%c0_6, %c0_7] : memref<14x1xf32, #tpu.memory_space<vmem>>, vector<14x1xf32>
    %6 = vector.broadcast %5 : vector<14x1xf32> to vector<14x256xf32>
    %7 = arith.addf %4, %6 : vector<14x256xf32>
    %cst_8 = arith.constant 0.000000e+00 : f32
    %8 = vector.broadcast %cst_8 : f32 to vector<14x256xf32>
    %9 = arith.cmpf oge, %7, %8 : vector<14x256xf32>
    %cst_9 = arith.constant 0.00999999977 : f32
    %10 = vector.broadcast %cst_9 : f32 to vector<14x256xf32>
    %11 = arith.mulf %10, %7 : vector<14x256xf32>
    %12 = arith.select %9, %7, %11 : vector<14x256xi1>, vector<14x256xf32>
    %cst_10 = arith.constant dense<0.000000e+00> : vector<14xf32>
    %13 = vector.multi_reduction <add>, %12, %cst_10 [1] : vector<14x256xf32> to vector<14xf32>
    %14 = vector.shape_cast %13 : vector<14xf32> to vector<14x1xf32>
    %c1 = arith.constant 1 : index
    %c0_11 = arith.constant 0 : index
    %c0_12 = arith.constant 0 : index
    %15 = vector.load %arg2[%c1, %c0_11, %c0_12] : memref<4x14x216xbf16, #tpu.memory_space<vmem>>, vector<1x14x216xbf16>
    %16 = vector.shape_cast %15 : vector<1x14x216xbf16> to vector<14x216xbf16>
    %c0_13 = arith.constant 0 : index
    %c1_14 = arith.constant 1 : index
    %c0_15 = arith.constant 0 : index
    %c0_16 = arith.constant 0 : index
    %17 = vector.load %arg1[%c0_13, %c1_14, %c0_15, %c0_16] : memref<1x4x216x256xbf16, #tpu.memory_space<vmem>>, vector<1x1x216x256xbf16>
    %18 = vector.shape_cast %17 : vector<1x1x216x256xbf16> to vector<216x256xbf16>
    %cst_17 = arith.constant dense<0.000000e+00> : vector<14x256xf32>
    %19 = tpu.matmul %16, %18, %cst_17 {dimension_numbers = #tpu.dot_dimension_numbers<[1], [0], [0], [1], [0, 0, 1, 1], [], []>} : vector<14x216xbf16>, vector<216x256xbf16>, vector<14x256xf32> -> vector<14x256xf32>
    %c0_18 = arith.constant 0 : index
    %c0_19 = arith.constant 0 : index
    %20 = vector.load %arg3[%c0_18, %c0_19] : memref<14x1xf32, #tpu.memory_space<vmem>>, vector<14x1xf32>
    %21 = vector.broadcast %20 : vector<14x1xf32> to vector<14x256xf32>
    %22 = arith.addf %19, %21 : vector<14x256xf32>
    %cst_20 = arith.constant 0.000000e+00 : f32
    %23 = vector.broadcast %cst_20 : f32 to vector<14x256xf32>
    %24 = arith.cmpf oge, %22, %23 : vector<14x256xf32>
    %cst_21 = arith.constant 0.00999999977 : f32
    %25 = vector.broadcast %cst_21 : f32 to vector<14x256xf32>
    %26 = arith.mulf %25, %22 : vector<14x256xf32>
    %27 = arith.select %24, %22, %26 : vector<14x256xi1>, vector<14x256xf32>
    %cst_22 = arith.constant dense<0.000000e+00> : vector<14xf32>
    %28 = vector.multi_reduction <add>, %27, %cst_22 [1] : vector<14x256xf32> to vector<14xf32>
    %29 = vector.shape_cast %28 : vector<14xf32> to vector<14x1xf32>
    %30 = arith.addf %14, %29 : vector<14x1xf32>
    %c2 = arith.constant 2 : index
    %c0_23 = arith.constant 0 : index
    %c0_24 = arith.constant 0 : index
    %31 = vector.load %arg2[%c2, %c0_23, %c0_24] : memref<4x14x216xbf16, #tpu.memory_space<vmem>>, vector<1x14x216xbf16>
    %32 = vector.shape_cast %31 : vector<1x14x216xbf16> to vector<14x216xbf16>
    %c0_25 = arith.constant 0 : index
    %c2_26 = arith.constant 2 : index
    %c0_27 = arith.constant 0 : index
    %c0_28 = arith.constant 0 : index
    %33 = vector.load %arg1[%c0_25, %c2_26, %c0_27, %c0_28] : memref<1x4x216x256xbf16, #tpu.memory_space<vmem>>, vector<1x1x216x256xbf16>
    %34 = vector.shape_cast %33 : vector<1x1x216x256xbf16> to vector<216x256xbf16>
    %cst_29 = arith.constant dense<0.000000e+00> : vector<14x256xf32>
    %35 = tpu.matmul %32, %34, %cst_29 {dimension_numbers = #tpu.dot_dimension_numbers<[1], [0], [0], [1], [0, 0, 1, 1], [], []>} : vector<14x216xbf16>, vector<216x256xbf16>, vector<14x256xf32> -> vector<14x256xf32>
    %c0_30 = arith.constant 0 : index
    %c0_31 = arith.constant 0 : index
    %36 = vector.load %arg3[%c0_30, %c0_31] : memref<14x1xf32, #tpu.memory_space<vmem>>, vector<14x1xf32>
    %37 = vector.broadcast %36 : vector<14x1xf32> to vector<14x256xf32>
    %38 = arith.addf %35, %37 : vector<14x256xf32>
    %cst_32 = arith.constant 0.000000e+00 : f32
    %39 = vector.broadcast %cst_32 : f32 to vector<14x256xf32>
    %40 = arith.cmpf oge, %38, %39 : vector<14x256xf32>
    %cst_33 = arith.constant 0.00999999977 : f32
    %41 = vector.broadcast %cst_33 : f32 to vector<14x256xf32>
    %42 = arith.mulf %41, %38 : vector<14x256xf32>
    %43 = arith.select %40, %38, %42 : vector<14x256xi1>, vector<14x256xf32>
    %cst_34 = arith.constant dense<0.000000e+00> : vector<14xf32>
    %44 = vector.multi_reduction <add>, %43, %cst_34 [1] : vector<14x256xf32> to vector<14xf32>
    %45 = vector.shape_cast %44 : vector<14xf32> to vector<14x1xf32>
    %46 = arith.addf %30, %45 : vector<14x1xf32>
    %c3 = arith.constant 3 : index
    %c0_35 = arith.constant 0 : index
    %c0_36 = arith.constant 0 : index
    %47 = vector.load %arg2[%c3, %c0_35, %c0_36] : memref<4x14x216xbf16, #tpu.memory_space<vmem>>, vector<1x14x216xbf16>
    %48 = vector.shape_cast %47 : vector<1x14x216xbf16> to vector<14x216xbf16>
    %c0_37 = arith.constant 0 : index
    %c3_38 = arith.constant 3 : index
    %c0_39 = arith.constant 0 : index
    %c0_40 = arith.constant 0 : index
    %49 = vector.load %arg1[%c0_37, %c3_38, %c0_39, %c0_40] : memref<1x4x216x256xbf16, #tpu.memory_space<vmem>>, vector<1x1x216x256xbf16>
    %50 = vector.shape_cast %49 : vector<1x1x216x256xbf16> to vector<216x256xbf16>
    %cst_41 = arith.constant dense<0.000000e+00> : vector<14x256xf32>
    %51 = tpu.matmul %48, %50, %cst_41 {dimension_numbers = #tpu.dot_dimension_numbers<[1], [0], [0], [1], [0, 0, 1, 1], [], []>} : vector<14x216xbf16>, vector<216x256xbf16>, vector<14x256xf32> -> vector<14x256xf32>
    %c0_42 = arith.constant 0 : index
    %c0_43 = arith.constant 0 : index
    %52 = vector.load %arg3[%c0_42, %c0_43] : memref<14x1xf32, #tpu.memory_space<vmem>>, vector<14x1xf32>
    %53 = vector.broadcast %52 : vector<14x1xf32> to vector<14x256xf32>
    %54 = arith.addf %51, %53 : vector<14x256xf32>
    %cst_44 = arith.constant 0.000000e+00 : f32
    %55 = vector.broadcast %cst_44 : f32 to vector<14x256xf32>
    %56 = arith.cmpf oge, %54, %55 : vector<14x256xf32>
    %cst_45 = arith.constant 0.00999999977 : f32
    %57 = vector.broadcast %cst_45 : f32 to vector<14x256xf32>
    %58 = arith.mulf %57, %54 : vector<14x256xf32>
    %59 = arith.select %56, %54, %58 : vector<14x256xi1>, vector<14x256xf32>
    %cst_46 = arith.constant dense<0.000000e+00> : vector<14xf32>
    %60 = vector.multi_reduction <add>, %59, %cst_46 [1] : vector<14x256xf32> to vector<14xf32>
    %61 = vector.shape_cast %60 : vector<14xf32> to vector<14x1xf32>
    %62 = arith.addf %46, %61 : vector<14x1xf32>
    %cst_47 = arith.constant 1.024000e+03 : f32
    %63 = vector.broadcast %cst_47 : f32 to vector<14x1xf32>
    %64 = arith.divf %62, %63 : vector<14x1xf32>
    %65 = vector.broadcast %64 : vector<14x1xf32> to vector<14x256xf32>
    %66 = arith.subf %12, %65 : vector<14x256xf32>
    %67 = arith.mulf %66, %66 : vector<14x256xf32>
    %cst_48 = arith.constant dense<0.000000e+00> : vector<14xf32>
    %68 = vector.multi_reduction <add>, %67, %cst_48 [1] : vector<14x256xf32> to vector<14xf32>
    %69 = vector.shape_cast %68 : vector<14xf32> to vector<14x1xf32>
    %70 = vector.broadcast %64 : vector<14x1xf32> to vector<14x256xf32>
    %71 = arith.subf %27, %70 : vector<14x256xf32>
    %72 = arith.mulf %71, %71 : vector<14x256xf32>
    %cst_49 = arith.constant dense<0.000000e+00> : vector<14xf32>
    %73 = vector.multi_reduction <add>, %72, %cst_49 [1] : vector<14x256xf32> to vector<14xf32>
    %74 = vector.shape_cast %73 : vector<14xf32> to vector<14x1xf32>
    %75 = arith.addf %69, %74 : vector<14x1xf32>
    %76 = vector.broadcast %64 : vector<14x1xf32> to vector<14x256xf32>
    %77 = arith.subf %43, %76 : vector<14x256xf32>
    %78 = arith.mulf %77, %77 : vector<14x256xf32>
    %cst_50 = arith.constant dense<0.000000e+00> : vector<14xf32>
    %79 = vector.multi_reduction <add>, %78, %cst_50 [1] : vector<14x256xf32> to vector<14xf32>
    %80 = vector.shape_cast %79 : vector<14xf32> to vector<14x1xf32>
    %81 = arith.addf %75, %80 : vector<14x1xf32>
    %82 = vector.broadcast %64 : vector<14x1xf32> to vector<14x256xf32>
    %83 = arith.subf %59, %82 : vector<14x256xf32>
    %84 = arith.mulf %83, %83 : vector<14x256xf32>
    %cst_51 = arith.constant dense<0.000000e+00> : vector<14xf32>
    %85 = vector.multi_reduction <add>, %84, %cst_51 [1] : vector<14x256xf32> to vector<14xf32>
    %86 = vector.shape_cast %85 : vector<14xf32> to vector<14x1xf32>
    %87 = arith.addf %81, %86 : vector<14x1xf32>
    %cst_52 = arith.constant 1.024000e+03 : f32
    %88 = vector.broadcast %cst_52 : f32 to vector<14x1xf32>
    %89 = arith.divf %87, %88 : vector<14x1xf32>
    %cst_53 = arith.constant 9.99999974E-6 : f32
    %90 = vector.broadcast %cst_53 : f32 to vector<14x1xf32>
    %91 = arith.addf %89, %90 : vector<14x1xf32>
    %92 = math.rsqrt %91 : vector<14x1xf32>
    %93 = vector.broadcast %64 : vector<14x1xf32> to vector<14x256xf32>
    %94 = arith.subf %12, %93 : vector<14x256xf32>
    %95 = vector.broadcast %92 : vector<14x1xf32> to vector<14x256xf32>
    %96 = arith.mulf %94, %95 : vector<14x256xf32>
    %c0_54 = arith.constant 0 : index
    %c0_55 = arith.constant 0 : index
    %c0_56 = arith.constant 0 : index
    %c0_57 = arith.constant 0 : index
    %97 = vector.load %arg4[%c0_54, %c0_55, %c0_56, %c0_57] : memref<1x4x14x256xf32, #tpu.memory_space<vmem>>, vector<1x1x14x256xf32>
    %98 = vector.shape_cast %97 : vector<1x1x14x256xf32> to vector<14x256xf32>
    %99 = vector.shape_cast %96 : vector<14x256xf32> to vector<1x1x14x256xf32>
    tpu.vector_store %arg4[%c0_54, %c0_55, %c0_56, %c0_57], %99 {strides = array<i32>} : memref<1x4x14x256xf32, #tpu.memory_space<vmem>>, vector<1x1x14x256xf32>,
    %100 = vector.broadcast %64 : vector<14x1xf32> to vector<14x256xf32>
    %101 = arith.subf %27, %100 : vector<14x256xf32>
    %102 = vector.broadcast %92 : vector<14x1xf32> to vector<14x256xf32>
    %103 = arith.mulf %101, %102 : vector<14x256xf32>
    %c0_58 = arith.constant 0 : index
    %c1_59 = arith.constant 1 : index
    %c0_60 = arith.constant 0 : index
    %c0_61 = arith.constant 0 : index
    %104 = vector.load %arg4[%c0_58, %c1_59, %c0_60, %c0_61] : memref<1x4x14x256xf32, #tpu.memory_space<vmem>>, vector<1x1x14x256xf32>
    %105 = vector.shape_cast %104 : vector<1x1x14x256xf32> to vector<14x256xf32>
    %106 = vector.shape_cast %103 : vector<14x256xf32> to vector<1x1x14x256xf32>
    tpu.vector_store %arg4[%c0_58, %c1_59, %c0_60, %c0_61], %106 {strides = array<i32>} : memref<1x4x14x256xf32, #tpu.memory_space<vmem>>, vector<1x1x14x256xf32>,
    %107 = vector.broadcast %64 : vector<14x1xf32> to vector<14x256xf32>
    %108 = arith.subf %43, %107 : vector<14x256xf32>
    %109 = vector.broadcast %92 : vector<14x1xf32> to vector<14x256xf32>
    %110 = arith.mulf %108, %109 : vector<14x256xf32>
    %c0_62 = arith.constant 0 : index
    %c2_63 = arith.constant 2 : index
    %c0_64 = arith.constant 0 : index
    %c0_65 = arith.constant 0 : index
    %111 = vector.load %arg4[%c0_62, %c2_63, %c0_64, %c0_65] : memref<1x4x14x256xf32, #tpu.memory_space<vmem>>, vector<1x1x14x256xf32>
    %112 = vector.shape_cast %111 : vector<1x1x14x256xf32> to vector<14x256xf32>
    %113 = vector.shape_cast %110 : vector<14x256xf32> to vector<1x1x14x256xf32>
    tpu.vector_store %arg4[%c0_62, %c2_63, %c0_64, %c0_65], %113 {strides = array<i32>} : memref<1x4x14x256xf32, #tpu.memory_space<vmem>>, vector<1x1x14x256xf32>,
    %114 = vector.broadcast %64 : vector<14x1xf32> to vector<14x256xf32>
    %115 = arith.subf %59, %114 : vector<14x256xf32>
    %116 = vector.broadcast %92 : vector<14x1xf32> to vector<14x256xf32>
    %117 = arith.mulf %115, %116 : vector<14x256xf32>
    %c0_66 = arith.constant 0 : index
    %c3_67 = arith.constant 3 : index
    %c0_68 = arith.constant 0 : index
    %c0_69 = arith.constant 0 : index
    %118 = vector.load %arg4[%c0_66, %c3_67, %c0_68, %c0_69] : memref<1x4x14x256xf32, #tpu.memory_space<vmem>>, vector<1x1x14x256xf32>
    %119 = vector.shape_cast %118 : vector<1x1x14x256xf32> to vector<14x256xf32>
    %120 = vector.shape_cast %117 : vector<14x256xf32> to vector<1x1x14x256xf32>
    tpu.vector_store %arg4[%c0_66, %c3_67, %c0_68, %c0_69], %120 {strides = array<i32>} : memref<1x4x14x256xf32, #tpu.memory_space<vmem>>, vector<1x1x14x256xf32>,
    return
  }
  func.func @transform_0(%arg0: i32) -> (i32, i32, i32, i32) {
    %c0_i32 = arith.constant 0 : i32
    %c0_i32_0 = arith.constant 0 : i32
    %c0_i32_1 = arith.constant 0 : i32
    %c0_i32_2 = arith.constant 0 : i32
    return %arg0, %c0_i32, %c0_i32_0, %c0_i32_1 : i32, i32, i32, i32
  }
  func.func @transform_1(%arg0: i32) -> (i32, i32, i32) {
    %c0_i32 = arith.constant 0 : i32
    %c0_i32_0 = arith.constant 0 : i32
    %c0_i32_1 = arith.constant 0 : i32
    %c0_i32_2 = arith.constant 0 : i32
    return %c0_i32, %c0_i32_0, %c0_i32_1 : i32, i32, i32
  }
  func.func @transform_2(%arg0: i32) -> (i32, i32) {
    %c0_i32 = arith.constant 0 : i32
    %c0_i32_0 = arith.constant 0 : i32
    %c0_i32_1 = arith.constant 0 : i32
    return %c0_i32, %c0_i32_0 : i32, i32
  }
  func.func @transform_3(%arg0: i32) -> (i32, i32, i32, i32) {
    %c0_i32 = arith.constant 0 : i32
    %c0_i32_0 = arith.constant 0 : i32
    %c0_i32_1 = arith.constant 0 : i32
    %c0_i32_2 = arith.constant 0 : i32
    return %arg0, %c0_i32, %c0_i32_0, %c0_i32_1 : i32, i32, i32, i32
  }
}

module attributes {stable_mosaic.version = 11 : i64} {
  func.func @_final_mlp_kernel(%arg0: i32, %arg1: i32, %arg2: memref<1x2x1024xf32, #tpu.memory_space<vmem>>, %arg3: memref<14x2xf32, #tpu.memory_space<vmem>>, %arg4: memref<14x1xf32, #tpu.memory_space<vmem>>, %arg5: memref<21x14xf32, #tpu.memory_space<vmem>>, %arg6: memref<21x1xf32, #tpu.memory_space<vmem>>, %arg7: memref<1x21x1024xf32, #tpu.memory_space<vmem>>) attributes {dimension_semantics = [#tpu.dimension_semantics<parallel>, #tpu.dimension_semantics<parallel>], iteration_bounds = array<i64: 2, 7>, scalar_prefetch = 0 : i64, scratch_operands = 0 : i64, tpu.core_type = #tpu.core_type<tc>, window_params = [{transform_indices = @transform_0, window_bounds = array<i64: 1, 2, 1024>}, {pipeline_mode = #tpu.pipeline_mode<synchronous>, transform_indices = @transform_1, window_bounds = array<i64: 14, 2>}, {pipeline_mode = #tpu.pipeline_mode<synchronous>, transform_indices = @transform_2, window_bounds = array<i64: 14, 1>}, {pipeline_mode = #tpu.pipeline_mode<synchronous>, transform_indices = @transform_3, window_bounds = array<i64: 21, 14>}, {pipeline_mode = #tpu.pipeline_mode<synchronous>, transform_indices = @transform_4, window_bounds = array<i64: 21, 1>}, {transform_indices = @transform_5, window_bounds = array<i64: 1, 21, 1024>}]} {
    %c0 = arith.constant 0 : index
    %c0_0 = arith.constant 0 : index
    %c0_1 = arith.constant 0 : index
    %0 = vector.load %arg2[%c0, %c0_0, %c0_1] : memref<1x2x1024xf32, #tpu.memory_space<vmem>>, vector<1x2x1024xf32>
    %1 = vector.shape_cast %0 : vector<1x2x1024xf32> to vector<2x1024xf32>
    %c0_2 = arith.constant 0 : index
    %c0_3 = arith.constant 0 : index
    %2 = vector.load %arg3[%c0_2, %c0_3] : memref<14x2xf32, #tpu.memory_space<vmem>>, vector<14x1xf32>
    %3 = vector.extract_strided_slice %1 {offsets = [0, 0], sizes = [1, 1024], strides = [1, 1]} : vector<2x1024xf32> to vector<1x1024xf32>
    %4 = vector.broadcast %2 : vector<14x1xf32> to vector<14x1024xf32>
    %5 = vector.broadcast %3 : vector<1x1024xf32> to vector<14x1024xf32>
    %6 = arith.mulf %4, %5 : vector<14x1024xf32>
    %c0_4 = arith.constant 0 : index
    %c1 = arith.constant 1 : index
    %7 = vector.load %arg3[%c0_4, %c1] : memref<14x2xf32, #tpu.memory_space<vmem>>, vector<14x1xf32>
    %8 = vector.extract_strided_slice %1 {offsets = [1, 0], sizes = [1, 1024], strides = [1, 1]} : vector<2x1024xf32> to vector<1x1024xf32>
    %9 = vector.broadcast %7 : vector<14x1xf32> to vector<14x1024xf32>
    %10 = vector.broadcast %8 : vector<1x1024xf32> to vector<14x1024xf32>
    %11 = arith.mulf %9, %10 : vector<14x1024xf32>
    %12 = arith.addf %6, %11 : vector<14x1024xf32>
    %c0_5 = arith.constant 0 : index
    %c0_6 = arith.constant 0 : index
    %13 = vector.load %arg4[%c0_5, %c0_6] : memref<14x1xf32, #tpu.memory_space<vmem>>, vector<14x1xf32>
    %14 = vector.broadcast %13 : vector<14x1xf32> to vector<14x1024xf32>
    %15 = arith.addf %12, %14 : vector<14x1024xf32>
    %cst = arith.constant 0.000000e+00 : f32
    %16 = vector.broadcast %cst : f32 to vector<14x1024xf32>
    %17 = arith.maximumf %15, %16 : vector<14x1024xf32>
    %c0_7 = arith.constant 0 : index
    %c0_8 = arith.constant 0 : index
    %18 = vector.load %arg5[%c0_7, %c0_8] : memref<21x14xf32, #tpu.memory_space<vmem>>, vector<21x14xf32>
    %cst_9 = arith.constant dense<0.000000e+00> : vector<21x1024xf32>
    %19 = tpu.matmul %18, %17, %cst_9 {dimension_numbers = #tpu.dot_dimension_numbers<[1], [0], [0], [1], [0, 0, 1, 1], [], []>} : vector<21x14xf32>, vector<14x1024xf32>, vector<21x1024xf32> -> vector<21x1024xf32>
    %c0_10 = arith.constant 0 : index
    %c0_11 = arith.constant 0 : index
    %20 = vector.load %arg6[%c0_10, %c0_11] : memref<21x1xf32, #tpu.memory_space<vmem>>, vector<21x1xf32>
    %21 = vector.broadcast %20 : vector<21x1xf32> to vector<21x1024xf32>
    %22 = arith.addf %19, %21 : vector<21x1024xf32>
    %c0_12 = arith.constant 0 : index
    %c0_13 = arith.constant 0 : index
    %c0_14 = arith.constant 0 : index
    %23 = vector.load %arg7[%c0_12, %c0_13, %c0_14] : memref<1x21x1024xf32, #tpu.memory_space<vmem>>, vector<1x21x1024xf32>
    %24 = vector.shape_cast %23 : vector<1x21x1024xf32> to vector<21x1024xf32>
    %25 = vector.shape_cast %22 : vector<21x1024xf32> to vector<1x21x1024xf32>
    tpu.vector_store %arg7[%c0_12, %c0_13, %c0_14], %25 {strides = array<i32>} : memref<1x21x1024xf32, #tpu.memory_space<vmem>>, vector<1x21x1024xf32>,
    return
  }
  func.func @transform_0(%arg0: i32, %arg1: i32) -> (i32, i32, i32) {
    %c0_i32 = arith.constant 0 : i32
    %c0_i32_0 = arith.constant 0 : i32
    return %arg0, %c0_i32, %arg1 : i32, i32, i32
  }
  func.func @transform_1(%arg0: i32, %arg1: i32) -> (i32, i32) {
    %c0_i32 = arith.constant 0 : i32
    %c0_i32_0 = arith.constant 0 : i32
    %c0_i32_1 = arith.constant 0 : i32
    return %c0_i32, %c0_i32_0 : i32, i32
  }
  func.func @transform_2(%arg0: i32, %arg1: i32) -> (i32, i32) {
    %c0_i32 = arith.constant 0 : i32
    %c0_i32_0 = arith.constant 0 : i32
    %c0_i32_1 = arith.constant 0 : i32
    return %c0_i32, %c0_i32_0 : i32, i32
  }
  func.func @transform_3(%arg0: i32, %arg1: i32) -> (i32, i32) {
    %c0_i32 = arith.constant 0 : i32
    %c0_i32_0 = arith.constant 0 : i32
    %c0_i32_1 = arith.constant 0 : i32
    return %c0_i32, %c0_i32_0 : i32, i32
  }
  func.func @transform_4(%arg0: i32, %arg1: i32) -> (i32, i32) {
    %c0_i32 = arith.constant 0 : i32
    %c0_i32_0 = arith.constant 0 : i32
    %c0_i32_1 = arith.constant 0 : i32
    return %c0_i32, %c0_i32_0 : i32, i32
  }
  func.func @transform_5(%arg0: i32, %arg1: i32) -> (i32, i32, i32) {
    %c0_i32 = arith.constant 0 : i32
    %c0_i32_0 = arith.constant 0 : i32
    return %arg0, %c0_i32, %arg1 : i32, i32, i32
  }
}

</mosaic_0001>

<llo_original>
// kernel: base_unet_forward.11
$region0: #{base_unet_forward.11}
  #allocation0 [shape = 'u32[]', space=smem, size = 0x4, offset = 0x4, fixed_abs, tag = 'smem constant byte address 0x4 - core index']
  #allocation1 [shape = 'u32[72,128]{1,0:T(1,128)}', space=vmem, size = 0x9000, scoped, tag = 'internal scratch']
  #allocation2 [shape = 'f32[16,256]{1,0:T(8,128)}', space=vmem, size = 0x4000, scoped, tag = 'scratch operand']
  %s0 = inlined_call_operand.vmem [shape: bf16[2,100,256], index: 0, kind: input, shape index: {}]
  %s1 = inlined_call_operand.vmem [shape: bf16[16,100], index: 1, kind: input, shape index: {}]
  %s2 = inlined_call_operand.vmem [shape: f32[16,1], index: 2, kind: input, shape index: {}]
  %s3 = inlined_call_operand.vmem [shape: f32[2,16,256], index: 3, kind: output, shape index: {}]
  %s4 = sld [smem:[#allocation0]]
  $region53: #{base_unet_forward.11} parent=0
    _
  %s6 = ssub.s32 1, %s4
  %s7 = scalar_select 0, %s6, %s4
  loop: start=0, step=1, limit=4
  $region2: #{base_unet_forward.11} parent=0 // loop_pre_header
    _
  $region3: #{base_unet_forward.11} parent=0 // loop_header
    %s9 = sphi 0, %s13
    %p10 = scmp.ge.s32.totalorder %s9, 4
    %s16 = sphi 0, %s28
    %s17 = sphi 0, %s24
    %s18 = sphi 0, %s16
    %s19 = sphi 0, %s17
    %s20 = sphi 0, %s18
    %s21 = sphi 0, %s19
    %s33 = sphi 0, %s35
    %s36 = sphi 0, %s33
    %s37 = sphi 0, %s36
    %s53 = sphi 0, %s37
    %s59 = sphi 0, %s61
    %s62 = sphi 0, %s59
    %s63 = sphi 0, %s62
    %s79 = sphi 0, %s63
    %s83 = sphi 0, %s83
    %s85 = sphi 0, %s83
    %s86 = sphi 0, %s85
    %s100 = sphi 0, %s86
    %s106 = sphi 0, %s108
    %s109 = sphi 0, %s106
    %s110 = sphi 0, %s109
    %s126 = sphi 0, %s110
  $region4: #{base_unet_forward.11} parent=0 // loop_header_branch
    %12 = sbr.rel (%p10) target = $region8
  $region5: #{base_unet_forward.11} parent=0 // loop_body
    %s14 = ssub.s32 %s9, 1
    %s15 = ssub.s32 %s9, 2
    %s22 = sadd.s32 1, %s17
    %p23 = scmp.ge.s32.totalorder %s22, 1
    %s24 = scalar_select %p23, 0, %s22
    %s25 = sadd.s32 1, %s16
    %s26 = scalar_select %p23, %s25, %s16
    %p27 = scmp.ge.s32.totalorder %s26, 2
    %s28 = scalar_select %p27, 0, %s26
    %s29 = ssub.s32 %s16, %s28
    %s30 = ssub.s32 %s17, %s24
    %s31 = sor.u32 %s29, %s30
    %p32 = scmp.eq.s32.totalorder %s31, 0
    %s34 = sadd.s32 %s33, 1
    %s35 = scalar_select %p32, %s33, %s34
    %p38 = pneg %p32
    %p39 = scmp.eq.s32.totalorder %s9, 1
    %p40 = por %p38, %p39
    %p41 = scmp.ne.s32.totalorder %s33, %s36
    %p42 = scmp.eq.s32.totalorder %s9, 0
    %p43 = por %p41, %p42
    %p44 = scmp.ne.s32.totalorder %s33, %s36
    %p45 = scmp.eq.s32.totalorder %s14, 1
    %p46 = por %p44, %p45
    %p47 = scmp.ne.s32.totalorder %s36, %s37
    %p48 = scmp.eq.s32.totalorder %s14, 0
    %p49 = por %p47, %p48
    %p50 = scmp.ne.s32.totalorder %s36, %s37
    %p51 = scmp.eq.s32.totalorder %s15, 1
    %p52 = por %p50, %p51
    %p54 = scmp.ne.s32.totalorder %s37, %s53
    %p55 = scmp.eq.s32.totalorder %s15, 0
    %p56 = por %p54, %p55
    %s57 = ssub.s32 %s17, %s24
    %p58 = scmp.eq.s32.totalorder %s57, 0
    %s60 = sadd.s32 %s59, 1
    %s61 = scalar_select %p58, %s59, %s60
    %p64 = pneg %p58
    %p65 = scmp.eq.s32.totalorder %s9, 1
    %p66 = por %p64, %p65
    %p67 = scmp.ne.s32.totalorder %s59, %s62
    %p68 = scmp.eq.s32.totalorder %s9, 0
    %p69 = por %p67, %p68
    %p70 = scmp.ne.s32.totalorder %s59, %s62
    %p71 = scmp.eq.s32.totalorder %s14, 1
    %p72 = por %p70, %p71
    %p73 = scmp.ne.s32.totalorder %s62, %s63
    %p74 = scmp.eq.s32.totalorder %s14, 0
    %p75 = por %p73, %p74
    %p76 = scmp.ne.s32.totalorder %s62, %s63
    %p77 = scmp.eq.s32.totalorder %s15, 1
    %p78 = por %p76, %p77
    %p80 = scmp.ne.s32.totalorder %s63, %s79
    %p81 = scmp.eq.s32.totalorder %s15, 0
    %p82 = por %p80, %p81
    %s84 = sadd.s32 %s83, 1
    %p87 = scmp.eq.s32.totalorder %s9, 1
    %p88 = scmp.ne.s32.totalorder %s83, %s85
    %p89 = scmp.eq.s32.totalorder %s9, 0
    %p90 = por %p88, %p89
    %p91 = scmp.ne.s32.totalorder %s83, %s85
    %p92 = scmp.eq.s32.totalorder %s14, 1
    %p93 = por %p91, %p92
    %p94 = scmp.ne.s32.totalorder %s85, %s86
    %p95 = scmp.eq.s32.totalorder %s14, 0
    %p96 = por %p94, %p95
    %p97 = scmp.ne.s32.totalorder %s85, %s86
    %p98 = scmp.eq.s32.totalorder %s15, 1
    %p99 = por %p97, %p98
    %p101 = scmp.ne.s32.totalorder %s86, %s100
    %p102 = scmp.eq.s32.totalorder %s15, 0
    %p103 = por %p101, %p102
    %s104 = ssub.s32 %s16, %s28
    %p105 = scmp.eq.s32.totalorder %s104, 0
    %s107 = sadd.s32 %s106, 1
    %s108 = scalar_select %p105, %s106, %s107
    %p111 = pneg %p105
    %p112 = scmp.eq.s32.totalorder %s9, 1
    %p113 = por %p111, %p112
    %p114 = scmp.ne.s32.totalorder %s106, %s109
    %p115 = scmp.eq.s32.totalorder %s9, 0
    %p116 = por %p114, %p115
    %p117 = scmp.ne.s32.totalorder %s106, %s109
    %p118 = scmp.eq.s32.totalorder %s14, 1
    %p119 = por %p117, %p118
    %p120 = scmp.ne.s32.totalorder %s109, %s110
    %p121 = scmp.eq.s32.totalorder %s14, 0
    %p122 = por %p120, %p121
    %p123 = scmp.ne.s32.totalorder %s109, %s110
    %p124 = scmp.eq.s32.totalorder %s15, 1
    %p125 = por %p123, %p124
    %p127 = scmp.ne.s32.totalorder %s110, %s126
    %p128 = scmp.eq.s32.totalorder %s15, 0
    %p129 = por %p127, %p128
    %p130 = scmp.le.s32.totalorder 1, %s9
    %p131 = scmp.lt.s32.totalorder %s9, 3
    %p132 = pnand %p130, %p131
    %p133 = pneg %p132
    // Predicated region
    $region9: #{base_unet_forward.11} parent=5 // pred_check
      _
    $region10: #{base_unet_forward.11} parent=5 // pred_check_branch
      %135 = sbr.rel (%p132) target = $region12
    $region11: #{base_unet_forward.11} parent=5 // pred_region
      %s136 = ssub.s32 %s9, 1
      // Predicated region
      $region13: #{base_unet_forward.11} parent=11 // pred_check
        %p137 = pneg %p75
      $region14: #{base_unet_forward.11} parent=11 // pred_check_branch
        %139 = sbr.rel (%p137) target = $region16
      $region15: #{base_unet_forward.11} parent=11 // pred_region
        %p140 = scmp.lt.s32.totalorder %s19, 0
        %s141 = scalar_select %p140, %s19, 0
        %s142 = smul.addr %s141, 4
        %s143 = scalar_lea.vmem %s1, %s142
      $region16: #{base_unet_forward.11} parent=11 // pred_fallthru
        _
      // Predicated region
      $region17: #{base_unet_forward.11} parent=11 // pred_check
        %p144 = pneg %p96
      $region18: #{base_unet_forward.11} parent=11 // pred_check_branch
        %146 = sbr.rel (%p144) target = $region20
      $region19: #{base_unet_forward.11} parent=11 // pred_region
        _
      $region20: #{base_unet_forward.11} parent=11 // pred_fallthru
        _
    $region12: #{base_unet_forward.11} parent=5 // pred_fallthru
      _
    %p147 = scmp.lt.s32.totalorder %s9, 2
    // Predicated region
    $region21: #{base_unet_forward.11} parent=5 // pred_check
      %p148 = pneg %p147
    $region22: #{base_unet_forward.11} parent=5 // pred_check_branch
      %150 = sbr.rel (%p148) target = $region24
    $region23: #{base_unet_forward.11} parent=5 // pred_region
      // Predicated region
      $region25: #{base_unet_forward.11} parent=23 // pred_check
        %p151 = pneg %p43
      $region26: #{base_unet_forward.11} parent=23 // pred_check_branch
        %153 = sbr.rel (%p151) target = $region28
      $region27: #{base_unet_forward.11} parent=23 // pred_region
        %s154 = smul.u32 13, %s17
        %p155 = scmp.lt.s32.totalorder %s16, 1
        %s156 = scalar_select %p155, %s16, 1
        %p157 = scmp.lt.s32.totalorder %s154, 12
        %s158 = scalar_select %p157, %s154, 12
        %s159 = smul.addr %s158, 2
        %s160 = smul.addr %s156, 26
        %s161 = sadd.s32 %s159, %s160
        %s162 = smul.addr %s161, 4
        %s163 = scalar_lea.vmem %s0, %s162
        %s164 = smul.u32 13, %s17
      $region28: #{base_unet_forward.11} parent=23 // pred_fallthru
        _
    $region24: #{base_unet_forward.11} parent=5 // pred_fallthru
      _
    %p165 = scmp.le.s32.totalorder 1, %s9
    %p166 = scmp.lt.s32.totalorder %s9, 3
    %p167 = pnand %p165, %p166
    %p168 = pneg %p167
    // Predicated region
    $region29: #{base_unet_forward.11} parent=5 // pred_check
      _
    $region30: #{base_unet_forward.11} parent=5 // pred_check_branch
      %170 = sbr.rel (%p167) target = $region32
    $region31: #{base_unet_forward.11} parent=5 // pred_region
      %s171 = ssub.s32 %s9, 1
      %s172 = smul.u32 13, %s19
      %p173 = scmp.lt.s32.totalorder %s18, 1
      %s174 = scalar_select %p173, %s18, 1
      %p175 = scmp.lt.s32.totalorder %s172, 12
      %s176 = scalar_select %p175, %s172, 12
      %s177 = smul.addr %s176, 2
      %s178 = smul.addr %s174, 26
      %s179 = sadd.s32 %s177, %s178
      %s180 = smul.addr %s179, 4
      %s181 = scalar_lea.vmem %s0, %s180
      %p182 = pneg %p49
      %p183 = pneg %p46
      %p184 = scmp.lt.s32.totalorder %s19, 0
      %s185 = scalar_select %p184, %s19, 0
      %s186 = smul.addr %s185, 4
      %s187 = scalar_lea.vmem %s1, %s186
      %p188 = pneg %p75
      %p189 = pneg %p72
      %p190 = pneg %p96
      %p191 = pneg %p93
      %p192 = pneg %p122
      %p193 = pneg %p119
      %p194 = scmp.lt.s32.totalorder %s18, 1
      %s195 = scalar_select %p194, %s18, 1
      %s196 = smul.addr %s195, 4
      %s197 = smul.addr %s196, 8
      %s198 = scalar_lea.vmem %s3, %s197
      %s199 = smul.u32 13, %s19
      %p200 = scmp.lt.s32.totalorder %s18, 1
      %s201 = scalar_select %p200, %s18, 1
      %p202 = scmp.lt.s32.totalorder %s199, 12
      %s203 = scalar_select %p202, %s199, 12
      %s204 = smul.addr %s203, 2
      %s205 = smul.addr %s201, 26
      %s206 = sadd.s32 %s204, %s205
      %s207 = smul.addr %s206, 4
      %s208 = scalar_lea.vmem %s0, %s207
      %s209 = smul.u32 13, %s19
      %p210 = scmp.lt.s32.totalorder %s19, 0
      %s211 = scalar_select %p210, %s19, 0
      %s212 = smul.addr %s211, 4
      %s213 = scalar_lea.vmem %s1, %s212
      %p214 = scmp.lt.s32.totalorder %s18, 1
      %s215 = scalar_select %p214, %s18, 1
      %s216 = smul.addr %s215, 4
      %s217 = smul.addr %s216, 8
      %s218 = scalar_lea.vmem %s3, %s217
      %p220 = scmp.eq.s32.totalorder %s19, 0
      // Predicated region
      $region33: #{base_unet_forward.11} parent=31 // pred_check
        %p221 = pneg %p220
      $region34: #{base_unet_forward.11} parent=31 // pred_check_branch
        %223 = sbr.rel (%p221) target = $region36
      $region35: #{base_unet_forward.11} parent=31 // pred_region
        %224 = vst [vmem:[#allocation2] sm:$0xff] 0.0
        %225 = vst [vmem:[#allocation2 + $0x8] sm:$0xff] 0.0
        %226 = vst [vmem:[#allocation2 + $0x10] sm:$0xff] 0.0
        %227 = vst [vmem:[#allocation2 + $0x18] sm:$0xff] 0.0
      $region36: #{base_unet_forward.11} parent=31 // pred_fallthru
        _
      %v228 = vld [vmem:[#allocation2] sm:$0xff]
      %v229 = vld [vmem:[#allocation2 + $0x8] sm:$0xff]
      %v230 = vld [vmem:[#allocation2 + $0x10] sm:$0xff]
      %v231 = vld [vmem:[#allocation2 + $0x18] sm:$0xff]
      %v232 = vld [vmem:[%s213] sm:$0xf]
      %v233 = vld [vmem:[%s213 + $0x4] sm:$0xf]
      %v234 = vld [vmem:[%s208] sm:$0xff]
      %v235 = vld [vmem:[%s208 + $0x8] sm:$0xff]
      %v236 = vld [vmem:[%s208 + $0x10] sm:$0xff]
      %v237 = vld [vmem:[%s208 + $0x18] sm:$0xff]
      %v238 = vld [vmem:[%s208 + $0x20] sm:$0xff]
      %v239 = vld [vmem:[%s208 + $0x28] sm:$0xff]
      %v240 = vld [vmem:[%s208 + $0x30] sm:$0xff]
      %v241 = vld [vmem:[%s208 + $0x38] sm:$0xff]
      %v242 = vld [vmem:[%s208 + $0x40] sm:$0xff]
      %v243 = vld [vmem:[%s208 + $0x48] sm:$0xff]
      %v244 = vld [vmem:[%s208 + $0x50] sm:$0xff]
      %v245 = vld [vmem:[%s208 + $0x58] sm:$0xff]
      %v246 = vld [vmem:[%s208 + $0x60] sm:$0x33]
      %v249 = vunpack.c.l.b16 %v232
      %v250 = vunpack.c.l.b16 %v233
      %v251 = vpack.c.b16 %v250, %v249
      %v265 = vunpack.c.l.b16 %v234
      %v266 = vunpack.c.h.b16 %v234
      %v267 = vunpack.c.l.b16 %v235
      %v268 = vunpack.c.h.b16 %v235
      %v269 = vunpack.c.l.b16 %v236
      %v270 = vunpack.c.h.b16 %v236
      %v271 = vunpack.c.l.b16 %v237
      %v272 = vunpack.c.h.b16 %v237
      %v273 = vunpack.c.l.b16 %v238
      %v274 = vunpack.c.h.b16 %v238
      %v275 = vunpack.c.l.b16 %v239
      %v276 = vunpack.c.h.b16 %v239
      %v277 = vunpack.c.l.b16 %v240
      %v278 = vunpack.c.h.b16 %v240
      %v279 = vunpack.c.l.b16 %v241
      %v280 = vunpack.c.h.b16 %v241
      %v281 = vunpack.c.l.b16 %v242
      %v282 = vunpack.c.h.b16 %v242
      %v283 = vunpack.c.l.b16 %v243
      %v284 = vunpack.c.h.b16 %v243
      %v285 = vunpack.c.l.b16 %v244
      %v286 = vunpack.c.h.b16 %v244
      %v287 = vunpack.c.l.b16 %v245
      %v288 = vunpack.c.h.b16 %v245
      %v289 = vunpack.c.l.b16 %v246
      %v290 = vunpack.c.h.b16 %v246
      %v291 = vpack.c.b16 %v267, %v265
      %v292 = vpack.c.b16 %v268, %v266
      %v293 = vpack.c.b16 %v271, %v269
      %v294 = vpack.c.b16 %v272, %v270
      %v295 = vpack.c.b16 %v275, %v273
      %v296 = vpack.c.b16 %v276, %v274
      %v297 = vpack.c.b16 %v279, %v277
      %v298 = vpack.c.b16 %v280, %v278
      %v299 = vpack.c.b16 %v283, %v281
      %v300 = vpack.c.b16 %v284, %v282
      %v301 = vpack.c.b16 %v287, %v285
      %v302 = vpack.c.b16 %v288, %v286
      %v303 = vpack.c.b16 %v289, %v289
      %v304 = vpack.c.b16 %v290, %v290
      %vm317 = vcmask 818176
      %v319 = vsel %vm317, %v251, 0
      %vm321 = vcmask 1041408
      %v323 = vsel %vm321, %v303, 0
      %v326 = vsel %vm321, %v304, 0
      %328 = vmatpush.bf16.msra.mxu0 0
      %329 = vmatpush.bf16.msra.mxu0 %v323
      %330 = vmatpush.bf16.msra.mxu0 %v301
      %331 = vmatpush.bf16.msra.mxu0 %v299
      %332 = vmatpush.bf16.msra.mxu0 %v297
      %333 = vmatpush.bf16.msra.mxu0 %v295
      %334 = vmatpush.bf16.msra.mxu0 %v293
      %335 = vmatpush.bf16.msra.mxu0 %v291
      %336 = vmatmul.bf16.gmra.mxu0 %v319
      %v337 = vpop.f32.mrf.mxu0
      %v338 = vadd.f32 0.0, %v337
      %v339 = vpop.f32.mrf.mxu0
      %v340 = vadd.f32 0.0, %v339
      %341 = vdwg.mxu0
      %342 = vmatpush.bf16.msra.mxu0 0
      %343 = vmatpush.bf16.msra.mxu0 %v326
      %344 = vmatpush.bf16.msra.mxu0 %v302
      %345 = vmatpush.bf16.msra.mxu0 %v300
      %346 = vmatpush.bf16.msra.mxu0 %v298
      %347 = vmatpush.bf16.msra.mxu0 %v296
      %348 = vmatpush.bf16.msra.mxu0 %v294
      %349 = vmatpush.bf16.msra.mxu0 %v292
      %350 = vmatmul.bf16.gmra.mxu0 %v319
      %v351 = vpop.f32.mrf.mxu0
      %v352 = vadd.f32 0.0, %v351
      %v353 = vpop.f32.mrf.mxu0
      %v354 = vadd.f32 0.0, %v353
      %355 = vdwg.mxu0
      %v356 = vadd.f32 %v228, %v338
      %v357 = vadd.f32 %v229, %v352
      %v358 = vadd.f32 %v230, %v340
      %v359 = vadd.f32 %v231, %v354
      %360 = vst [vmem:[#allocation2] sm:$0xff] %v356
      %361 = vst [vmem:[#allocation2 + $0x8] sm:$0xff] %v357
      %362 = vst [vmem:[#allocation2 + $0x10] sm:$0xff] %v358
      %363 = vst [vmem:[#allocation2 + $0x18] sm:$0xff] %v359
      // Predicated region
      $region37: #{base_unet_forward.11} parent=31 // pred_check
        %p364 = pneg %p220
      $region38: #{base_unet_forward.11} parent=31 // pred_check_branch
        %366 = sbr.rel (%p364) target = $region40
      $region39: #{base_unet_forward.11} parent=31 // pred_region
        %v367 = vld [vmem:[#allocation2] sm:$0xff]
        %v368 = vld [vmem:[#allocation2 + $0x8] sm:$0xff]
        %v369 = vld [vmem:[#allocation2 + $0x10] sm:$0xff]
        %v370 = vld [vmem:[#allocation2 + $0x18] sm:$0xff]
        %v371 = vld [vmem:[%s2] sm:$0xff]
        %v372 = vld [vmem:[%s2 + $0x8] sm:$0xff]
        %374 = vset.pattern.permute.xlu0 0
        %375 = vperm.xlu0 %374, %v371
        %v376 = vpop.permute.xlu0 %375
        %379 = vset.pattern.permute.xlu0 0
        %380 = vperm.xlu0 %379, %v372
        %v381 = vpop.permute.xlu0 %380
        %v383 = vadd.f32 %v367, %v376
        %v384 = vadd.f32 %v368, %v376
        %v385 = vadd.f32 %v369, %v381
        %v386 = vadd.f32 %v370, %v381
        %vm387 = vcmp.ge.f32.partialorder %v383, 0.0
        %vm388 = vcmp.ge.f32.partialorder %v384, 0.0
        %vm389 = vcmp.ge.f32.partialorder %v385, 0.0
        %vm390 = vcmp.ge.f32.partialorder %v386, 0.0
        %v391 = vmul.f32 %v383, 0.01
        %v392 = vmul.f32 %v384, 0.01
        %v393 = vmul.f32 %v385, 0.01
        %v394 = vmul.f32 %v386, 0.01
        %v395 = vsel %vm387, %v383, %v391
        %v396 = vsel %vm388, %v384, %v392
        %v397 = vsel %vm389, %v385, %v393
        %v398 = vsel %vm390, %v386, %v394
        %v399 = vadd.f32 %v395, %v396
        %400 = vadd.xlane.f32.xlu0 %v399
        %v401 = vpop.xlane.xlu0 %400
        %v402 = vadd.f32 %v397, %v398
        %403 = vadd.xlane.f32.xlu0 %v402
        %v404 = vpop.xlane.xlu0 %403
        %v405 = vrcp.pop 256.0
        %v406 = vmul.f32 256.0, %v405
        %v407 = vsub.f32 1.0, %v406
        %v408 = vmul.f32 %v405, %v407
        %v409 = vadd.f32 %v405, %v408
        %vm410 = vweird.f32 %v405
        %v411 = vsel %vm410, %v405, %v409
        %v412 = vmul.f32 %v401, %v411
        %v413 = vmul.f32 %v404, %v411
        %v414 = vsub.f32 %v395, %v412
        %v415 = vsub.f32 %v396, %v412
        %v416 = vsub.f32 %v397, %v413
        %v417 = vsub.f32 %v398, %v413
        %v418 = vmul.f32 %v414, %v414
        %v419 = vmul.f32 %v415, %v415
        %v420 = vmul.f32 %v416, %v416
        %v421 = vmul.f32 %v417, %v417
        %v422 = vadd.f32 %v418, %v419
        %423 = vadd.xlane.f32.xlu0 %v422
        %v424 = vpop.xlane.xlu0 %423
        %v425 = vadd.f32 %v420, %v421
        %426 = vadd.xlane.f32.xlu0 %v425
        %v427 = vpop.xlane.xlu0 %426
        %v428 = vmul.f32 %v424, %v411
        %v429 = vmul.f32 %v427, %v411
        %v430 = vadd.f32 %v428, 1e-05
        %v431 = vadd.f32 %v429, 1e-05
        %v432 = vrsqrt.pop %v430
        %v433 = vmul.f32 %v432, %v430
        %v434 = vmul.f32 %v433, %v432
        %v435 = vmul.f32 0.5, %v434
        %v436 = vsub.f32 1.5, %v435
        %v437 = vmul.f32 %v432, %v436
        %vm438 = vweird.f32 %v430
        %vm439 = vweird.f32 %v432
        %vm440 = vmor %vm438, %vm439
        %v441 = vsel %vm440, %v432, %v437
        %v442 = vrsqrt.pop %v431
        %v443 = vmul.f32 %v442, %v431
        %v444 = vmul.f32 %v443, %v442
        %v445 = vmul.f32 0.5, %v444
        %v446 = vsub.f32 1.5, %v445
        %v447 = vmul.f32 %v442, %v446
        %vm448 = vweird.f32 %v431
        %vm449 = vweird.f32 %v442
        %vm450 = vmor %vm448, %vm449
        %v451 = vsel %vm450, %v442, %v447
        %v452 = vmul.f32 %v414, %v441
        %v453 = vmul.f32 %v415, %v441
        %v454 = vmul.f32 %v416, %v451
        %v455 = vmul.f32 %v417, %v451
        %456 = vst [vmem:[%s218] sm:$0xff] %v452
        %457 = vst [vmem:[%s218 + $0x8] sm:$0xff] %v453
        %458 = vst [vmem:[%s218 + $0x10] sm:$0xff] %v454
        %459 = vst [vmem:[%s218 + $0x18] sm:$0xff] %v455
      $region40: #{base_unet_forward.11} parent=31 // pred_fallthru
        _
      %p460 = scmp.lt.s32.totalorder %s18, 1
      %s461 = scalar_select %p460, %s18, 1
      %s462 = smul.addr %s461, 4
      %s463 = smul.addr %s462, 8
      %s464 = scalar_lea.vmem %s3, %s463
      // Predicated region
      $region41: #{base_unet_forward.11} parent=31 // pred_check
        %p465 = pneg %p119
      $region42: #{base_unet_forward.11} parent=31 // pred_check_branch
        %467 = sbr.rel (%p465) target = $region44
      $region43: #{base_unet_forward.11} parent=31 // pred_region
        _
      $region44: #{base_unet_forward.11} parent=31 // pred_fallthru
        _
    $region32: #{base_unet_forward.11} parent=5 // pred_fallthru
      _
    %p468 = scmp.le.s32.totalorder 2, %s9
    // Predicated region
    $region45: #{base_unet_forward.11} parent=5 // pred_check
      %p469 = pneg %p468
    $region46: #{base_unet_forward.11} parent=5 // pred_check_branch
      %471 = sbr.rel (%p469) target = $region48
    $region47: #{base_unet_forward.11} parent=5 // pred_region
      %s472 = ssub.s32 %s9, 2
      // Predicated region
      $region49: #{base_unet_forward.11} parent=47 // pred_check
        %p473 = pneg %p125
      $region50: #{base_unet_forward.11} parent=47 // pred_check_branch
        %475 = sbr.rel (%p473) target = $region52
      $region51: #{base_unet_forward.11} parent=47 // pred_region
        %p476 = scmp.lt.s32.totalorder %s20, 1
        %s477 = scalar_select %p476, %s20, 1
        %s478 = smul.addr %s477, 4
        %s479 = smul.addr %s478, 8
        %s480 = scalar_lea.vmem %s3, %s479
      $region52: #{base_unet_forward.11} parent=47 // pred_fallthru
        _
    $region48: #{base_unet_forward.11} parent=5 // pred_fallthru
      _
  $region6: #{base_unet_forward.11} parent=0 // loop_footer
    %s13 = sadd.s32 1, %s9
  $region7: #{base_unet_forward.11} parent=0 // loop_footer_branch
    %8 = sbr.rel target = $region3
  $region8: #{base_unet_forward.11} parent=0 // loop_exit
    _

// kernel: base_unet_forward.12
$region0: #{base_unet_forward.12}
  #allocation0 [shape = 'u32[]', space=smem, size = 0x4, offset = 0x4, fixed_abs, tag = 'smem constant byte address 0x4 - core index']
  #allocation1 [shape = 'u32[72,128]{1,0:T(1,128)}', space=vmem, size = 0x9000, scoped, tag = 'internal scratch']
  #allocation2 [shape = 'f32[16,64]{1,0:T(8,128)}', space=vmem, size = 0x2000, scoped, tag = 'scratch operand']
  %s0 = inlined_call_operand.vmem [shape: bf16[2,400,64], index: 0, kind: input, shape index: {}]
  %s1 = inlined_call_operand.vmem [shape: bf16[16,400], index: 1, kind: input, shape index: {}]
  %s2 = inlined_call_operand.vmem [shape: f32[16,1], index: 2, kind: input, shape index: {}]
  %s3 = inlined_call_operand.vmem [shape: f32[2,16,64], index: 3, kind: output, shape index: {}]
  %s4 = sld [smem:[#allocation0]]
  $region53: #{base_unet_forward.12} parent=0
    _
  %s6 = ssub.s32 1, %s4
  %s7 = scalar_select 0, %s6, %s4
  loop: start=0, step=1, limit=4
  $region2: #{base_unet_forward.12} parent=0 // loop_pre_header
    _
  $region3: #{base_unet_forward.12} parent=0 // loop_header
    %s9 = sphi 0, %s13
    %p10 = scmp.ge.s32.totalorder %s9, 4
    %s16 = sphi 0, %s28
    %s17 = sphi 0, %s24
    %s18 = sphi 0, %s16
    %s19 = sphi 0, %s17
    %s20 = sphi 0, %s18
    %s21 = sphi 0, %s19
    %s33 = sphi 0, %s35
    %s36 = sphi 0, %s33
    %s37 = sphi 0, %s36
    %s53 = sphi 0, %s37
    %s59 = sphi 0, %s61
    %s62 = sphi 0, %s59
    %s63 = sphi 0, %s62
    %s79 = sphi 0, %s63
    %s83 = sphi 0, %s83
    %s85 = sphi 0, %s83
    %s86 = sphi 0, %s85
    %s100 = sphi 0, %s86
    %s106 = sphi 0, %s108
    %s109 = sphi 0, %s106
    %s110 = sphi 0, %s109
    %s126 = sphi 0, %s110
  $region4: #{base_unet_forward.12} parent=0 // loop_header_branch
    %12 = sbr.rel (%p10) target = $region8
  $region5: #{base_unet_forward.12} parent=0 // loop_body
    %s14 = ssub.s32 %s9, 1
    %s15 = ssub.s32 %s9, 2
    %s22 = sadd.s32 1, %s17
    %p23 = scmp.ge.s32.totalorder %s22, 1
    %s24 = scalar_select %p23, 0, %s22
    %s25 = sadd.s32 1, %s16
    %s26 = scalar_select %p23, %s25, %s16
    %p27 = scmp.ge.s32.totalorder %s26, 2
    %s28 = scalar_select %p27, 0, %s26
    %s29 = ssub.s32 %s16, %s28
    %s30 = ssub.s32 %s17, %s24
    %s31 = sor.u32 %s29, %s30
    %p32 = scmp.eq.s32.totalorder %s31, 0
    %s34 = sadd.s32 %s33, 1
    %s35 = scalar_select %p32, %s33, %s34
    %p38 = pneg %p32
    %p39 = scmp.eq.s32.totalorder %s9, 1
    %p40 = por %p38, %p39
    %p41 = scmp.ne.s32.totalorder %s33, %s36
    %p42 = scmp.eq.s32.totalorder %s9, 0
    %p43 = por %p41, %p42
    %p44 = scmp.ne.s32.totalorder %s33, %s36
    %p45 = scmp.eq.s32.totalorder %s14, 1
    %p46 = por %p44, %p45
    %p47 = scmp.ne.s32.totalorder %s36, %s37
    %p48 = scmp.eq.s32.totalorder %s14, 0
    %p49 = por %p47, %p48
    %p50 = scmp.ne.s32.totalorder %s36, %s37
    %p51 = scmp.eq.s32.totalorder %s15, 1
    %p52 = por %p50, %p51
    %p54 = scmp.ne.s32.totalorder %s37, %s53
    %p55 = scmp.eq.s32.totalorder %s15, 0
    %p56 = por %p54, %p55
    %s57 = ssub.s32 %s17, %s24
    %p58 = scmp.eq.s32.totalorder %s57, 0
    %s60 = sadd.s32 %s59, 1
    %s61 = scalar_select %p58, %s59, %s60
    %p64 = pneg %p58
    %p65 = scmp.eq.s32.totalorder %s9, 1
    %p66 = por %p64, %p65
    %p67 = scmp.ne.s32.totalorder %s59, %s62
    %p68 = scmp.eq.s32.totalorder %s9, 0
    %p69 = por %p67, %p68
    %p70 = scmp.ne.s32.totalorder %s59, %s62
    %p71 = scmp.eq.s32.totalorder %s14, 1
    %p72 = por %p70, %p71
    %p73 = scmp.ne.s32.totalorder %s62, %s63
    %p74 = scmp.eq.s32.totalorder %s14, 0
    %p75 = por %p73, %p74
    %p76 = scmp.ne.s32.totalorder %s62, %s63
    %p77 = scmp.eq.s32.totalorder %s15, 1
    %p78 = por %p76, %p77
    %p80 = scmp.ne.s32.totalorder %s63, %s79
    %p81 = scmp.eq.s32.totalorder %s15, 0
    %p82 = por %p80, %p81
    %s84 = sadd.s32 %s83, 1
    %p87 = scmp.eq.s32.totalorder %s9, 1
    %p88 = scmp.ne.s32.totalorder %s83, %s85
    %p89 = scmp.eq.s32.totalorder %s9, 0
    %p90 = por %p88, %p89
    %p91 = scmp.ne.s32.totalorder %s83, %s85
    %p92 = scmp.eq.s32.totalorder %s14, 1
    %p93 = por %p91, %p92
    %p94 = scmp.ne.s32.totalorder %s85, %s86
    %p95 = scmp.eq.s32.totalorder %s14, 0
    %p96 = por %p94, %p95
    %p97 = scmp.ne.s32.totalorder %s85, %s86
    %p98 = scmp.eq.s32.totalorder %s15, 1
    %p99 = por %p97, %p98
    %p101 = scmp.ne.s32.totalorder %s86, %s100
    %p102 = scmp.eq.s32.totalorder %s15, 0
    %p103 = por %p101, %p102
    %s104 = ssub.s32 %s16, %s28
    %p105 = scmp.eq.s32.totalorder %s104, 0
    %s107 = sadd.s32 %s106, 1
    %s108 = scalar_select %p105, %s106, %s107
    %p111 = pneg %p105
    %p112 = scmp.eq.s32.totalorder %s9, 1
    %p113 = por %p111, %p112
    %p114 = scmp.ne.s32.totalorder %s106, %s109
    %p115 = scmp.eq.s32.totalorder %s9, 0
    %p116 = por %p114, %p115
    %p117 = scmp.ne.s32.totalorder %s106, %s109
    %p118 = scmp.eq.s32.totalorder %s14, 1
    %p119 = por %p117, %p118
    %p120 = scmp.ne.s32.totalorder %s109, %s110
    %p121 = scmp.eq.s32.totalorder %s14, 0
    %p122 = por %p120, %p121
    %p123 = scmp.ne.s32.totalorder %s109, %s110
    %p124 = scmp.eq.s32.totalorder %s15, 1
    %p125 = por %p123, %p124
    %p127 = scmp.ne.s32.totalorder %s110, %s126
    %p128 = scmp.eq.s32.totalorder %s15, 0
    %p129 = por %p127, %p128
    %p130 = scmp.le.s32.totalorder 1, %s9
    %p131 = scmp.lt.s32.totalorder %s9, 3
    %p132 = pnand %p130, %p131
    %p133 = pneg %p132
    // Predicated region
    $region9: #{base_unet_forward.12} parent=5 // pred_check
      _
    $region10: #{base_unet_forward.12} parent=5 // pred_check_branch
      %135 = sbr.rel (%p132) target = $region12
    $region11: #{base_unet_forward.12} parent=5 // pred_region
      %s136 = ssub.s32 %s9, 1
      // Predicated region
      $region13: #{base_unet_forward.12} parent=11 // pred_check
        %p137 = pneg %p75
      $region14: #{base_unet_forward.12} parent=11 // pred_check_branch
        %139 = sbr.rel (%p137) target = $region16
      $region15: #{base_unet_forward.12} parent=11 // pred_region
        %s140 = smul.u32 4, %s19
        %p141 = scmp.lt.s32.totalorder %s140, 3
        %s142 = scalar_select %p141, %s140, 3
        %s143 = smul.addr %s142, 4
        %s144 = scalar_lea.vmem %s1, %s143
        %s145 = smul.u32 4, %s19
      $region16: #{base_unet_forward.12} parent=11 // pred_fallthru
        _
      // Predicated region
      $region17: #{base_unet_forward.12} parent=11 // pred_check
        %p146 = pneg %p96
      $region18: #{base_unet_forward.12} parent=11 // pred_check_branch
        %148 = sbr.rel (%p146) target = $region20
      $region19: #{base_unet_forward.12} parent=11 // pred_region
        _
      $region20: #{base_unet_forward.12} parent=11 // pred_fallthru
        _
    $region12: #{base_unet_forward.12} parent=5 // pred_fallthru
      _
    %p149 = scmp.lt.s32.totalorder %s9, 2
    // Predicated region
    $region21: #{base_unet_forward.12} parent=5 // pred_check
      %p150 = pneg %p149
    $region22: #{base_unet_forward.12} parent=5 // pred_check_branch
      %152 = sbr.rel (%p150) target = $region24
    $region23: #{base_unet_forward.12} parent=5 // pred_region
      // Predicated region
      $region25: #{base_unet_forward.12} parent=23 // pred_check
        %p153 = pneg %p43
      $region26: #{base_unet_forward.12} parent=23 // pred_check_branch
        %155 = sbr.rel (%p153) target = $region28
      $region27: #{base_unet_forward.12} parent=23 // pred_region
        %s156 = smul.u32 50, %s17
        %p157 = scmp.lt.s32.totalorder %s16, 1
        %s158 = scalar_select %p157, %s16, 1
        %p159 = scmp.lt.s32.totalorder %s156, 49
        %s160 = scalar_select %p159, %s156, 49
        %s161 = smul.addr %s158, 50
        %s162 = sadd.s32 %s160, %s161
        %s163 = smul.addr %s162, 4
        %s164 = scalar_lea.vmem %s0, %s163
        %s165 = smul.u32 50, %s17
      $region28: #{base_unet_forward.12} parent=23 // pred_fallthru
        _
    $region24: #{base_unet_forward.12} parent=5 // pred_fallthru
      _
    %p166 = scmp.le.s32.totalorder 1, %s9
    %p167 = scmp.lt.s32.totalorder %s9, 3
    %p168 = pnand %p166, %p167
    %p169 = pneg %p168
    // Predicated region
    $region29: #{base_unet_forward.12} parent=5 // pred_check
      _
    $region30: #{base_unet_forward.12} parent=5 // pred_check_branch
      %171 = sbr.rel (%p168) target = $region32
    $region31: #{base_unet_forward.12} parent=5 // pred_region
      %s172 = ssub.s32 %s9, 1
      %s173 = smul.u32 50, %s19
      %p174 = scmp.lt.s32.totalorder %s18, 1
      %s175 = scalar_select %p174, %s18, 1
      %p176 = scmp.lt.s32.totalorder %s173, 49
      %s177 = scalar_select %p176, %s173, 49
      %s178 = smul.addr %s175, 50
      %s179 = sadd.s32 %s177, %s178
      %s180 = smul.addr %s179, 4
      %s181 = scalar_lea.vmem %s0, %s180
      %p182 = pneg %p49
      %p183 = pneg %p46
      %s184 = smul.u32 4, %s19
      %p185 = scmp.lt.s32.totalorder %s184, 3
      %s186 = scalar_select %p185, %s184, 3
      %s187 = smul.addr %s186, 4
      %s188 = scalar_lea.vmem %s1, %s187
      %p189 = pneg %p75
      %p190 = pneg %p72
      %p191 = pneg %p96
      %p192 = pneg %p93
      %p193 = pneg %p122
      %p194 = pneg %p119
      %p195 = scmp.lt.s32.totalorder %s18, 1
      %s196 = scalar_select %p195, %s18, 1
      %s197 = smul.addr %s196, 2
      %s198 = smul.addr %s197, 8
      %s199 = scalar_lea.vmem %s3, %s198
      %s200 = smul.u32 50, %s19
      %p201 = scmp.lt.s32.totalorder %s18, 1
      %s202 = scalar_select %p201, %s18, 1
      %p203 = scmp.lt.s32.totalorder %s200, 49
      %s204 = scalar_select %p203, %s200, 49
      %s205 = smul.addr %s202, 50
      %s206 = sadd.s32 %s204, %s205
      %s207 = smul.addr %s206, 4
      %s208 = scalar_lea.vmem %s0, %s207
      %s209 = smul.u32 50, %s19
      %s210 = smul.u32 4, %s19
      %p211 = scmp.lt.s32.totalorder %s210, 3
      %s212 = scalar_select %p211, %s210, 3
      %s213 = smul.addr %s212, 4
      %s214 = scalar_lea.vmem %s1, %s213
      %s215 = smul.u32 4, %s19
      %p216 = scmp.lt.s32.totalorder %s18, 1
      %s217 = scalar_select %p216, %s18, 1
      %s218 = smul.addr %s217, 2
      %s219 = smul.addr %s218, 8
      %s220 = scalar_lea.vmem %s3, %s219
      %p222 = scmp.eq.s32.totalorder %s19, 0
      // Predicated region
      $region33: #{base_unet_forward.12} parent=31 // pred_check
        %p223 = pneg %p222
      $region34: #{base_unet_forward.12} parent=31 // pred_check_branch
        %225 = sbr.rel (%p223) target = $region36
      $region35: #{base_unet_forward.12} parent=31 // pred_region
        %vm226 = vcmask 523264
        %227 = vst.msk [vmem:[#allocation2] sm:$0xff] %vm226, 0.0
        %228 = vst.msk [vmem:[#allocation2 + $0x8] sm:$0xff] %vm226, 0.0
      $region36: #{base_unet_forward.12} parent=31 // pred_fallthru
        _
      %v229 = vld [vmem:[#allocation2] sm:$0xff]
      %v230 = vld [vmem:[#allocation2 + $0x8] sm:$0xff]
      %v231 = vld [vmem:[%s214] sm:$0xff]
      %v232 = vld [vmem:[%s214 + $0x8] sm:$0xff]
      %v233 = vld [vmem:[%s214 + $0x10] sm:$0xff]
      %v234 = vld [vmem:[%s214 + $0x18] sm:$0xff]
      %v235 = vld [vmem:[%s208] sm:$0xf]
      %v236 = vld [vmem:[%s208 + $0x4] sm:$0xf]
      %v237 = vld [vmem:[%s208 + $0x8] sm:$0xf]
      %v238 = vld [vmem:[%s208 + $0xc] sm:$0xf]
      %v239 = vld [vmem:[%s208 + $0x10] sm:$0xf]
      %v240 = vld [vmem:[%s208 + $0x14] sm:$0xf]
      %v241 = vld [vmem:[%s208 + $0x18] sm:$0xf]
      %v242 = vld [vmem:[%s208 + $0x1c] sm:$0xf]
      %v243 = vld [vmem:[%s208 + $0x20] sm:$0xf]
      %v244 = vld [vmem:[%s208 + $0x24] sm:$0xf]
      %v245 = vld [vmem:[%s208 + $0x28] sm:$0xf]
      %v246 = vld [vmem:[%s208 + $0x2c] sm:$0xf]
      %v247 = vld [vmem:[%s208 + $0x30] sm:$0xf]
      %v248 = vld [vmem:[%s208 + $0x34] sm:$0xf]
      %v249 = vld [vmem:[%s208 + $0x38] sm:$0xf]
      %v250 = vld [vmem:[%s208 + $0x3c] sm:$0xf]
      %v251 = vld [vmem:[%s208 + $0x40] sm:$0xf]
      %v252 = vld [vmem:[%s208 + $0x44] sm:$0xf]
      %v253 = vld [vmem:[%s208 + $0x48] sm:$0xf]
      %v254 = vld [vmem:[%s208 + $0x4c] sm:$0xf]
      %v255 = vld [vmem:[%s208 + $0x50] sm:$0xf]
      %v256 = vld [vmem:[%s208 + $0x54] sm:$0xf]
      %v257 = vld [vmem:[%s208 + $0x58] sm:$0xf]
      %v258 = vld [vmem:[%s208 + $0x5c] sm:$0xf]
      %v259 = vld [vmem:[%s208 + $0x60] sm:$0xf]
      %v260 = vld [vmem:[%s208 + $0x64] sm:$0xf]
      %v261 = vld [vmem:[%s208 + $0x68] sm:$0xf]
      %v262 = vld [vmem:[%s208 + $0x6c] sm:$0xf]
      %v263 = vld [vmem:[%s208 + $0x70] sm:$0xf]
      %v264 = vld [vmem:[%s208 + $0x74] sm:$0xf]
      %v265 = vld [vmem:[%s208 + $0x78] sm:$0xf]
      %v266 = vld [vmem:[%s208 + $0x7c] sm:$0xf]
      %v267 = vld [vmem:[%s208 + $0x80] sm:$0xf]
      %v268 = vld [vmem:[%s208 + $0x84] sm:$0xf]
      %v269 = vld [vmem:[%s208 + $0x88] sm:$0xf]
      %v270 = vld [vmem:[%s208 + $0x8c] sm:$0xf]
      %v271 = vld [vmem:[%s208 + $0x90] sm:$0xf]
      %v272 = vld [vmem:[%s208 + $0x94] sm:$0xf]
      %v273 = vld [vmem:[%s208 + $0x98] sm:$0xf]
      %v274 = vld [vmem:[%s208 + $0x9c] sm:$0xf]
      %v275 = vld [vmem:[%s208 + $0xa0] sm:$0xf]
      %v276 = vld [vmem:[%s208 + $0xa4] sm:$0xf]
      %v277 = vld [vmem:[%s208 + $0xa8] sm:$0xf]
      %v278 = vld [vmem:[%s208 + $0xac] sm:$0xf]
      %v279 = vld [vmem:[%s208 + $0xb0] sm:$0xf]
      %v280 = vld [vmem:[%s208 + $0xb4] sm:$0xf]
      %v281 = vld [vmem:[%s208 + $0xb8] sm:$0xf]
      %v282 = vld [vmem:[%s208 + $0xbc] sm:$0xf]
      %v283 = vld [vmem:[%s208 + $0xc0] sm:$0xf]
      %v284 = vld [vmem:[%s208 + $0xc4] sm:$0xf]
      %v289 = vunpack.c.l.b16 %v231
      %v290 = vunpack.c.h.b16 %v231
      %v291 = vunpack.c.l.b16 %v232
      %v292 = vunpack.c.h.b16 %v232
      %v293 = vunpack.c.l.b16 %v233
      %v294 = vunpack.c.h.b16 %v233
      %v295 = vunpack.c.l.b16 %v234
      %v296 = vunpack.c.h.b16 %v234
      %v297 = vpack.c.b16 %v293, %v289
      %v298 = vpack.c.b16 %v294, %v290
      %v299 = vpack.c.b16 %v295, %v291
      %v300 = vpack.c.b16 %v296, %v292
      %v354 = vunpack.c.l.b16 %v235
      %v355 = vunpack.c.l.b16 %v236
      %v356 = vunpack.c.l.b16 %v237
      %v357 = vunpack.c.l.b16 %v238
      %v358 = vunpack.c.l.b16 %v239
      %v359 = vunpack.c.l.b16 %v240
      %v360 = vunpack.c.l.b16 %v241
      %v361 = vunpack.c.l.b16 %v242
      %v362 = vunpack.c.l.b16 %v243
      %v363 = vunpack.c.l.b16 %v244
      %v364 = vunpack.c.l.b16 %v245
      %v365 = vunpack.c.l.b16 %v246
      %v366 = vunpack.c.l.b16 %v247
      %v367 = vunpack.c.l.b16 %v248
      %v368 = vunpack.c.l.b16 %v249
      %v369 = vunpack.c.l.b16 %v250
      %v370 = vunpack.c.l.b16 %v251
      %v371 = vunpack.c.l.b16 %v252
      %v372 = vunpack.c.l.b16 %v253
      %v373 = vunpack.c.l.b16 %v254
      %v374 = vunpack.c.l.b16 %v255
      %v375 = vunpack.c.l.b16 %v256
      %v376 = vunpack.c.l.b16 %v257
      %v377 = vunpack.c.l.b16 %v258
      %v378 = vunpack.c.l.b16 %v259
      %v379 = vunpack.c.l.b16 %v260
      %v380 = vunpack.c.l.b16 %v261
      %v381 = vunpack.c.l.b16 %v262
      %v382 = vunpack.c.l.b16 %v263
      %v383 = vunpack.c.l.b16 %v264
      %v384 = vunpack.c.l.b16 %v265
      %v385 = vunpack.c.l.b16 %v266
      %v386 = vunpack.c.l.b16 %v267
      %v387 = vunpack.c.l.b16 %v268
      %v388 = vunpack.c.l.b16 %v269
      %v389 = vunpack.c.l.b16 %v270
      %v390 = vunpack.c.l.b16 %v271
      %v391 = vunpack.c.l.b16 %v272
      %v392 = vunpack.c.l.b16 %v273
      %v393 = vunpack.c.l.b16 %v274
      %v394 = vunpack.c.l.b16 %v275
      %v395 = vunpack.c.l.b16 %v276
      %v396 = vunpack.c.l.b16 %v277
      %v397 = vunpack.c.l.b16 %v278
      %v398 = vunpack.c.l.b16 %v279
      %v399 = vunpack.c.l.b16 %v280
      %v400 = vunpack.c.l.b16 %v281
      %v401 = vunpack.c.l.b16 %v282
      %v402 = vunpack.c.l.b16 %v283
      %v403 = vunpack.c.l.b16 %v284
      %v404 = vpack.c.b16 %v355, %v354
      %v405 = vpack.c.b16 %v357, %v356
      %v406 = vpack.c.b16 %v359, %v358
      %v407 = vpack.c.b16 %v361, %v360
      %v408 = vpack.c.b16 %v363, %v362
      %v409 = vpack.c.b16 %v365, %v364
      %v410 = vpack.c.b16 %v367, %v366
      %v411 = vpack.c.b16 %v369, %v368
      %v412 = vpack.c.b16 %v371, %v370
      %v413 = vpack.c.b16 %v373, %v372
      %v414 = vpack.c.b16 %v375, %v374
      %v415 = vpack.c.b16 %v377, %v376
      %v416 = vpack.c.b16 %v379, %v378
      %v417 = vpack.c.b16 %v381, %v380
      %v418 = vpack.c.b16 %v383, %v382
      %v419 = vpack.c.b16 %v385, %v384
      %v420 = vpack.c.b16 %v387, %v386
      %v421 = vpack.c.b16 %v389, %v388
      %v422 = vpack.c.b16 %v391, %v390
      %v423 = vpack.c.b16 %v393, %v392
      %v424 = vpack.c.b16 %v395, %v394
      %v425 = vpack.c.b16 %v397, %v396
      %v426 = vpack.c.b16 %v399, %v398
      %v427 = vpack.c.b16 %v401, %v400
      %v428 = vpack.c.b16 %v403, %v402
      %vm454 = vcmask 130048
      %v456 = vsel %vm454, %v300, 0
      %458 = vmatpush.bf16.msra.mxu0 %v411
      %459 = vmatpush.bf16.msra.mxu0 %v410
      %460 = vmatpush.bf16.msra.mxu0 %v409
      %461 = vmatpush.bf16.msra.mxu0 %v408
      %462 = vmatpush.bf16.msra.mxu0 %v407
      %463 = vmatpush.bf16.msra.mxu0 %v406
      %464 = vmatpush.bf16.msra.mxu0 %v405
      %465 = vmatpush.bf16.msra.mxu0 %v404
      %466 = vmatmul.bf16.gmra.mxu0 %v297
      %v467 = vpop.f32.mrf.mxu0
      %v468 = vadd.f32 0.0, %v467
      %v469 = vpop.f32.mrf.mxu0
      %v470 = vadd.f32 0.0, %v469
      %471 = vdwg.mxu0
      %472 = vmatpush.bf16.msra.mxu0 %v419
      %473 = vmatpush.bf16.msra.mxu0 %v418
      %474 = vmatpush.bf16.msra.mxu0 %v417
      %475 = vmatpush.bf16.msra.mxu0 %v416
      %476 = vmatpush.bf16.msra.mxu0 %v415
      %477 = vmatpush.bf16.msra.mxu0 %v414
      %478 = vmatpush.bf16.msra.mxu0 %v413
      %479 = vmatpush.bf16.msra.mxu0 %v412
      %480 = vmatmul.bf16.gmra.mxu0 %v298
      %v481 = vpop.f32.mrf.mxu0
      %v482 = vadd.f32 %v468, %v481
      %v483 = vpop.f32.mrf.mxu0
      %v484 = vadd.f32 %v470, %v483
      %485 = vdwg.mxu0
      %486 = vmatpush.bf16.msra.mxu0 %v427
      %487 = vmatpush.bf16.msra.mxu0 %v426
      %488 = vmatpush.bf16.msra.mxu0 %v425
      %489 = vmatpush.bf16.msra.mxu0 %v424
      %490 = vmatpush.bf16.msra.mxu0 %v423
      %491 = vmatpush.bf16.msra.mxu0 %v422
      %492 = vmatpush.bf16.msra.mxu0 %v421
      %493 = vmatpush.bf16.msra.mxu0 %v420
      %494 = vmatmul.bf16.gmra.mxu0 %v299
      %v495 = vpop.f32.mrf.mxu0
      %v496 = vadd.f32 %v482, %v495
      %v497 = vpop.f32.mrf.mxu0
      %v498 = vadd.f32 %v484, %v497
      %499 = vdwg.mxu0
      %500 = vmatpush.bf16.msra.mxu0 0
      %501 = vmatpush.bf16.msra.mxu0 0
      %502 = vmatpush.bf16.msra.mxu0 0
      %503 = vmatpush.bf16.msra.mxu0 0
      %504 = vmatpush.bf16.msra.mxu0 0
      %505 = vmatpush.bf16.msra.mxu0 0
      %506 = vmatpush.bf16.msra.mxu0 0
      %507 = vmatpush.bf16.msra.mxu0 %v428
      %508 = vmatmul.bf16.gmra.mxu0 %v456
      %v509 = vpop.f32.mrf.mxu0
      %v510 = vadd.f32 %v496, %v509
      %v511 = vpop.f32.mrf.mxu0
      %v512 = vadd.f32 %v498, %v511
      %513 = vdwg.mxu0
      %v514 = vadd.f32 %v229, %v510
      %v515 = vadd.f32 %v230, %v512
      %vm516 = vcmask 523264
      %517 = vst.msk [vmem:[#allocation2] sm:$0xff] %vm516, %v514
      %518 = vst.msk [vmem:[#allocation2 + $0x8] sm:$0xff] %vm516, %v515
      // Predicated region
      $region37: #{base_unet_forward.12} parent=31 // pred_check
        %p519 = pneg %p222
      $region38: #{base_unet_forward.12} parent=31 // pred_check_branch
        %521 = sbr.rel (%p519) target = $region40
      $region39: #{base_unet_forward.12} parent=31 // pred_region
        %v522 = vld [vmem:[#allocation2] sm:$0xff]
        %v523 = vld [vmem:[#allocation2 + $0x8] sm:$0xff]
        %v524 = vld [vmem:[%s2] sm:$0xff]
        %v525 = vld [vmem:[%s2 + $0x8] sm:$0xff]
        %527 = vset.pattern.permute.xlu0 0
        %528 = vperm.xlu0 %527, %v524
        %v529 = vpop.permute.xlu0 %528
        %532 = vset.pattern.permute.xlu0 0
        %533 = vperm.xlu0 %532, %v525
        %v534 = vpop.permute.xlu0 %533
        %v536 = vadd.f32 %v522, %v529
        %v537 = vadd.f32 %v523, %v534
        %vm538 = vcmp.ge.f32.partialorder %v536, 0.0
        %vm539 = vcmp.ge.f32.partialorder %v537, 0.0
        %v540 = vmul.f32 %v536, 0.01
        %v541 = vmul.f32 %v537, 0.01
        %v542 = vsel %vm538, %v536, %v540
        %v543 = vsel %vm539, %v537, %v541
        %v544 = vsel %vm516, %v542, 0.0
        %545 = vadd.xlane.f32.xlu0 %v544
        %v546 = vpop.xlane.xlu0 %545
        %v547 = vsel %vm516, %v543, 0.0
        %548 = vadd.xlane.f32.xlu0 %v547
        %v549 = vpop.xlane.xlu0 %548
        %v550 = vrcp.pop 64.0
        %v551 = vmul.f32 64.0, %v550
        %v552 = vsub.f32 1.0, %v551
        %v553 = vmul.f32 %v550, %v552
        %v554 = vadd.f32 %v550, %v553
        %vm555 = vweird.f32 %v550
        %v556 = vsel %vm555, %v550, %v554
        %v557 = vmul.f32 %v546, %v556
        %v558 = vmul.f32 %v549, %v556
        %v559 = vsub.f32 %v542, %v557
        %v560 = vsub.f32 %v543, %v558
        %v561 = vmul.f32 %v559, %v559
        %v562 = vmul.f32 %v560, %v560
        %v563 = vsel %vm516, %v561, 0.0
        %564 = vadd.xlane.f32.xlu0 %v563
        %v565 = vpop.xlane.xlu0 %564
        %v566 = vsel %vm516, %v562, 0.0
        %567 = vadd.xlane.f32.xlu0 %v566
        %v568 = vpop.xlane.xlu0 %567
        %v569 = vmul.f32 %v565, %v556
        %v570 = vmul.f32 %v568, %v556
        %v571 = vadd.f32 %v569, 1e-05
        %v572 = vadd.f32 %v570, 1e-05
        %v573 = vrsqrt.pop %v571
        %v574 = vmul.f32 %v573, %v571
        %v575 = vmul.f32 %v574, %v573
        %v576 = vmul.f32 0.5, %v575
        %v577 = vsub.f32 1.5, %v576
        %v578 = vmul.f32 %v573, %v577
        %vm579 = vweird.f32 %v571
        %vm580 = vweird.f32 %v573
        %vm581 = vmor %vm579, %vm580
        %v582 = vsel %vm581, %v573, %v578
        %v583 = vrsqrt.pop %v572
        %v584 = vmul.f32 %v583, %v572
        %v585 = vmul.f32 %v584, %v583
        %v586 = vmul.f32 0.5, %v585
        %v587 = vsub.f32 1.5, %v586
        %v588 = vmul.f32 %v583, %v587
        %vm589 = vweird.f32 %v572
        %vm590 = vweird.f32 %v583
        %vm591 = vmor %vm589, %vm590
        %v592 = vsel %vm591, %v583, %v588
        %v593 = vmul.f32 %v559, %v582
        %v594 = vmul.f32 %v560, %v592
        %595 = vst.msk [vmem:[%s220] sm:$0xff] %vm516, %v593
        %596 = vst.msk [vmem:[%s220 + $0x8] sm:$0xff] %vm516, %v594
      $region40: #{base_unet_forward.12} parent=31 // pred_fallthru
        _
      %p597 = scmp.lt.s32.totalorder %s18, 1
      %s598 = scalar_select %p597, %s18, 1
      %s599 = smul.addr %s598, 2
      %s600 = smul.addr %s599, 8
      %s601 = scalar_lea.vmem %s3, %s600
      // Predicated region
      $region41: #{base_unet_forward.12} parent=31 // pred_check
        %p602 = pneg %p119
      $region42: #{base_unet_forward.12} parent=31 // pred_check_branch
        %604 = sbr.rel (%p602) target = $region44
      $region43: #{base_unet_forward.12} parent=31 // pred_region
        _
      $region44: #{base_unet_forward.12} parent=31 // pred_fallthru
        _
    $region32: #{base_unet_forward.12} parent=5 // pred_fallthru
      _
    %p605 = scmp.le.s32.totalorder 2, %s9
    // Predicated region
    $region45: #{base_unet_forward.12} parent=5 // pred_check
      %p606 = pneg %p605
    $region46: #{base_unet_forward.12} parent=5 // pred_check_branch
      %608 = sbr.rel (%p606) target = $region48
    $region47: #{base_unet_forward.12} parent=5 // pred_region
      %s609 = ssub.s32 %s9, 2
      // Predicated region
      $region49: #{base_unet_forward.12} parent=47 // pred_check
        %p610 = pneg %p125
      $region50: #{base_unet_forward.12} parent=47 // pred_check_branch
        %612 = sbr.rel (%p610) target = $region52
      $region51: #{base_unet_forward.12} parent=47 // pred_region
        %p613 = scmp.lt.s32.totalorder %s20, 1
        %s614 = scalar_select %p613, %s20, 1
        %s615 = smul.addr %s614, 2
        %s616 = smul.addr %s615, 8
        %s617 = scalar_lea.vmem %s3, %s616
      $region52: #{base_unet_forward.12} parent=47 // pred_fallthru
        _
    $region48: #{base_unet_forward.12} parent=5 // pred_fallthru
      _
  $region6: #{base_unet_forward.12} parent=0 // loop_footer
    %s13 = sadd.s32 1, %s9
  $region7: #{base_unet_forward.12} parent=0 // loop_footer_branch
    %8 = sbr.rel target = $region3
  $region8: #{base_unet_forward.12} parent=0 // loop_exit
    _

// kernel: base_unet_forward.13
$region0: #{base_unet_forward.13}
  #allocation0 [shape = 'u32[]', space=smem, size = 0x4, offset = 0x4, fixed_abs, tag = 'smem constant byte address 0x4 - core index']
  #allocation1 [shape = 'u32[72,128]{1,0:T(1,128)}', space=vmem, size = 0x9000, scoped, tag = 'internal scratch']
  #allocation2 [shape = 'f32[16,16]{1,0:T(8,128)}', space=vmem, size = 0x2000, scoped, tag = 'scratch operand']
  %s0 = inlined_call_operand.vmem [shape: bf16[2,400,16], index: 0, kind: input, shape index: {}]
  %s1 = inlined_call_operand.vmem [shape: bf16[16,400], index: 1, kind: input, shape index: {}]
  %s2 = inlined_call_operand.vmem [shape: f32[16,1], index: 2, kind: input, shape index: {}]
  %s3 = inlined_call_operand.vmem [shape: f32[2,16,16], index: 3, kind: output, shape index: {}]
  %s4 = sld [smem:[#allocation0]]
  $region53: #{base_unet_forward.13} parent=0
    _
  %s6 = ssub.s32 1, %s4
  %s7 = scalar_select 0, %s6, %s4
  loop: start=0, step=1, limit=4
  $region2: #{base_unet_forward.13} parent=0 // loop_pre_header
    _
  $region3: #{base_unet_forward.13} parent=0 // loop_header
    %s9 = sphi 0, %s13
    %p10 = scmp.ge.s32.totalorder %s9, 4
    %s16 = sphi 0, %s28
    %s17 = sphi 0, %s24
    %s18 = sphi 0, %s16
    %s19 = sphi 0, %s17
    %s20 = sphi 0, %s18
    %s21 = sphi 0, %s19
    %s33 = sphi 0, %s35
    %s36 = sphi 0, %s33
    %s37 = sphi 0, %s36
    %s53 = sphi 0, %s37
    %s59 = sphi 0, %s61
    %s62 = sphi 0, %s59
    %s63 = sphi 0, %s62
    %s79 = sphi 0, %s63
    %s83 = sphi 0, %s83
    %s85 = sphi 0, %s83
    %s86 = sphi 0, %s85
    %s100 = sphi 0, %s86
    %s106 = sphi 0, %s108
    %s109 = sphi 0, %s106
    %s110 = sphi 0, %s109
    %s126 = sphi 0, %s110
  $region4: #{base_unet_forward.13} parent=0 // loop_header_branch
    %12 = sbr.rel (%p10) target = $region8
  $region5: #{base_unet_forward.13} parent=0 // loop_body
    %s14 = ssub.s32 %s9, 1
    %s15 = ssub.s32 %s9, 2
    %s22 = sadd.s32 1, %s17
    %p23 = scmp.ge.s32.totalorder %s22, 1
    %s24 = scalar_select %p23, 0, %s22
    %s25 = sadd.s32 1, %s16
    %s26 = scalar_select %p23, %s25, %s16
    %p27 = scmp.ge.s32.totalorder %s26, 2
    %s28 = scalar_select %p27, 0, %s26
    %s29 = ssub.s32 %s16, %s28
    %s30 = ssub.s32 %s17, %s24
    %s31 = sor.u32 %s29, %s30
    %p32 = scmp.eq.s32.totalorder %s31, 0
    %s34 = sadd.s32 %s33, 1
    %s35 = scalar_select %p32, %s33, %s34
    %p38 = pneg %p32
    %p39 = scmp.eq.s32.totalorder %s9, 1
    %p40 = por %p38, %p39
    %p41 = scmp.ne.s32.totalorder %s33, %s36
    %p42 = scmp.eq.s32.totalorder %s9, 0
    %p43 = por %p41, %p42
    %p44 = scmp.ne.s32.totalorder %s33, %s36
    %p45 = scmp.eq.s32.totalorder %s14, 1
    %p46 = por %p44, %p45
    %p47 = scmp.ne.s32.totalorder %s36, %s37
    %p48 = scmp.eq.s32.totalorder %s14, 0
    %p49 = por %p47, %p48
    %p50 = scmp.ne.s32.totalorder %s36, %s37
    %p51 = scmp.eq.s32.totalorder %s15, 1
    %p52 = por %p50, %p51
    %p54 = scmp.ne.s32.totalorder %s37, %s53
    %p55 = scmp.eq.s32.totalorder %s15, 0
    %p56 = por %p54, %p55
    %s57 = ssub.s32 %s17, %s24
    %p58 = scmp.eq.s32.totalorder %s57, 0
    %s60 = sadd.s32 %s59, 1
    %s61 = scalar_select %p58, %s59, %s60
    %p64 = pneg %p58
    %p65 = scmp.eq.s32.totalorder %s9, 1
    %p66 = por %p64, %p65
    %p67 = scmp.ne.s32.totalorder %s59, %s62
    %p68 = scmp.eq.s32.totalorder %s9, 0
    %p69 = por %p67, %p68
    %p70 = scmp.ne.s32.totalorder %s59, %s62
    %p71 = scmp.eq.s32.totalorder %s14, 1
    %p72 = por %p70, %p71
    %p73 = scmp.ne.s32.totalorder %s62, %s63
    %p74 = scmp.eq.s32.totalorder %s14, 0
    %p75 = por %p73, %p74
    %p76 = scmp.ne.s32.totalorder %s62, %s63
    %p77 = scmp.eq.s32.totalorder %s15, 1
    %p78 = por %p76, %p77
    %p80 = scmp.ne.s32.totalorder %s63, %s79
    %p81 = scmp.eq.s32.totalorder %s15, 0
    %p82 = por %p80, %p81
    %s84 = sadd.s32 %s83, 1
    %p87 = scmp.eq.s32.totalorder %s9, 1
    %p88 = scmp.ne.s32.totalorder %s83, %s85
    %p89 = scmp.eq.s32.totalorder %s9, 0
    %p90 = por %p88, %p89
    %p91 = scmp.ne.s32.totalorder %s83, %s85
    %p92 = scmp.eq.s32.totalorder %s14, 1
    %p93 = por %p91, %p92
    %p94 = scmp.ne.s32.totalorder %s85, %s86
    %p95 = scmp.eq.s32.totalorder %s14, 0
    %p96 = por %p94, %p95
    %p97 = scmp.ne.s32.totalorder %s85, %s86
    %p98 = scmp.eq.s32.totalorder %s15, 1
    %p99 = por %p97, %p98
    %p101 = scmp.ne.s32.totalorder %s86, %s100
    %p102 = scmp.eq.s32.totalorder %s15, 0
    %p103 = por %p101, %p102
    %s104 = ssub.s32 %s16, %s28
    %p105 = scmp.eq.s32.totalorder %s104, 0
    %s107 = sadd.s32 %s106, 1
    %s108 = scalar_select %p105, %s106, %s107
    %p111 = pneg %p105
    %p112 = scmp.eq.s32.totalorder %s9, 1
    %p113 = por %p111, %p112
    %p114 = scmp.ne.s32.totalorder %s106, %s109
    %p115 = scmp.eq.s32.totalorder %s9, 0
    %p116 = por %p114, %p115
    %p117 = scmp.ne.s32.totalorder %s106, %s109
    %p118 = scmp.eq.s32.totalorder %s14, 1
    %p119 = por %p117, %p118
    %p120 = scmp.ne.s32.totalorder %s109, %s110
    %p121 = scmp.eq.s32.totalorder %s14, 0
    %p122 = por %p120, %p121
    %p123 = scmp.ne.s32.totalorder %s109, %s110
    %p124 = scmp.eq.s32.totalorder %s15, 1
    %p125 = por %p123, %p124
    %p127 = scmp.ne.s32.totalorder %s110, %s126
    %p128 = scmp.eq.s32.totalorder %s15, 0
    %p129 = por %p127, %p128
    %p130 = scmp.le.s32.totalorder 1, %s9
    %p131 = scmp.lt.s32.totalorder %s9, 3
    %p132 = pnand %p130, %p131
    %p133 = pneg %p132
    // Predicated region
    $region9: #{base_unet_forward.13} parent=5 // pred_check
      _
    $region10: #{base_unet_forward.13} parent=5 // pred_check_branch
      %135 = sbr.rel (%p132) target = $region12
    $region11: #{base_unet_forward.13} parent=5 // pred_region
      %s136 = ssub.s32 %s9, 1
      // Predicated region
      $region13: #{base_unet_forward.13} parent=11 // pred_check
        %p137 = pneg %p75
      $region14: #{base_unet_forward.13} parent=11 // pred_check_branch
        %139 = sbr.rel (%p137) target = $region16
      $region15: #{base_unet_forward.13} parent=11 // pred_region
        %s140 = smul.u32 4, %s19
        %p141 = scmp.lt.s32.totalorder %s140, 3
        %s142 = scalar_select %p141, %s140, 3
        %s143 = smul.addr %s142, 4
        %s144 = scalar_lea.vmem %s1, %s143
        %s145 = smul.u32 4, %s19
      $region16: #{base_unet_forward.13} parent=11 // pred_fallthru
        _
      // Predicated region
      $region17: #{base_unet_forward.13} parent=11 // pred_check
        %p146 = pneg %p96
      $region18: #{base_unet_forward.13} parent=11 // pred_check_branch
        %148 = sbr.rel (%p146) target = $region20
      $region19: #{base_unet_forward.13} parent=11 // pred_region
        _
      $region20: #{base_unet_forward.13} parent=11 // pred_fallthru
        _
    $region12: #{base_unet_forward.13} parent=5 // pred_fallthru
      _
    %p149 = scmp.lt.s32.totalorder %s9, 2
    // Predicated region
    $region21: #{base_unet_forward.13} parent=5 // pred_check
      %p150 = pneg %p149
    $region22: #{base_unet_forward.13} parent=5 // pred_check_branch
      %152 = sbr.rel (%p150) target = $region24
    $region23: #{base_unet_forward.13} parent=5 // pred_region
      // Predicated region
      $region25: #{base_unet_forward.13} parent=23 // pred_check
        %p153 = pneg %p43
      $region26: #{base_unet_forward.13} parent=23 // pred_check_branch
        %155 = sbr.rel (%p153) target = $region28
      $region27: #{base_unet_forward.13} parent=23 // pred_region
        %s156 = smul.u32 50, %s17
        %p157 = scmp.lt.s32.totalorder %s16, 1
        %s158 = scalar_select %p157, %s16, 1
        %p159 = scmp.lt.s32.totalorder %s156, 49
        %s160 = scalar_select %p159, %s156, 49
        %s161 = smul.addr %s158, 50
        %s162 = sadd.s32 %s160, %s161
        %s163 = smul.addr %s162, 4
        %s164 = scalar_lea.vmem %s0, %s163
        %s165 = smul.u32 50, %s17
      $region28: #{base_unet_forward.13} parent=23 // pred_fallthru
        _
    $region24: #{base_unet_forward.13} parent=5 // pred_fallthru
      _
    %p166 = scmp.le.s32.totalorder 1, %s9
    %p167 = scmp.lt.s32.totalorder %s9, 3
    %p168 = pnand %p166, %p167
    %p169 = pneg %p168
    // Predicated region
    $region29: #{base_unet_forward.13} parent=5 // pred_check
      _
    $region30: #{base_unet_forward.13} parent=5 // pred_check_branch
      %171 = sbr.rel (%p168) target = $region32
    $region31: #{base_unet_forward.13} parent=5 // pred_region
      %s172 = ssub.s32 %s9, 1
      %s173 = smul.u32 50, %s19
      %p174 = scmp.lt.s32.totalorder %s18, 1
      %s175 = scalar_select %p174, %s18, 1
      %p176 = scmp.lt.s32.totalorder %s173, 49
      %s177 = scalar_select %p176, %s173, 49
      %s178 = smul.addr %s175, 50
      %s179 = sadd.s32 %s177, %s178
      %s180 = smul.addr %s179, 4
      %s181 = scalar_lea.vmem %s0, %s180
      %p182 = pneg %p49
      %p183 = pneg %p46
      %s184 = smul.u32 4, %s19
      %p185 = scmp.lt.s32.totalorder %s184, 3
      %s186 = scalar_select %p185, %s184, 3
      %s187 = smul.addr %s186, 4
      %s188 = scalar_lea.vmem %s1, %s187
      %p189 = pneg %p75
      %p190 = pneg %p72
      %p191 = pneg %p96
      %p192 = pneg %p93
      %p193 = pneg %p122
      %p194 = pneg %p119
      %p195 = scmp.lt.s32.totalorder %s18, 1
      %s196 = scalar_select %p195, %s18, 1
      %s197 = smul.addr %s196, 2
      %s198 = smul.addr %s197, 8
      %s199 = scalar_lea.vmem %s3, %s198
      %s200 = smul.u32 50, %s19
      %p201 = scmp.lt.s32.totalorder %s18, 1
      %s202 = scalar_select %p201, %s18, 1
      %p203 = scmp.lt.s32.totalorder %s200, 49
      %s204 = scalar_select %p203, %s200, 49
      %s205 = smul.addr %s202, 50
      %s206 = sadd.s32 %s204, %s205
      %s207 = smul.addr %s206, 4
      %s208 = scalar_lea.vmem %s0, %s207
      %s209 = smul.u32 50, %s19
      %s210 = smul.u32 4, %s19
      %p211 = scmp.lt.s32.totalorder %s210, 3
      %s212 = scalar_select %p211, %s210, 3
      %s213 = smul.addr %s212, 4
      %s214 = scalar_lea.vmem %s1, %s213
      %s215 = smul.u32 4, %s19
      %p216 = scmp.lt.s32.totalorder %s18, 1
      %s217 = scalar_select %p216, %s18, 1
      %s218 = smul.addr %s217, 2
      %s219 = smul.addr %s218, 8
      %s220 = scalar_lea.vmem %s3, %s219
      %p222 = scmp.eq.s32.totalorder %s19, 0
      // Predicated region
      $region33: #{base_unet_forward.13} parent=31 // pred_check
        %p223 = pneg %p222
      $region34: #{base_unet_forward.13} parent=31 // pred_check_branch
        %225 = sbr.rel (%p223) target = $region36
      $region35: #{base_unet_forward.13} parent=31 // pred_region
        %vm226 = vcmask 130048
        %227 = vst.msk [vmem:[#allocation2] sm:$0xff] %vm226, 0.0
        %228 = vst.msk [vmem:[#allocation2 + $0x8] sm:$0xff] %vm226, 0.0
      $region36: #{base_unet_forward.13} parent=31 // pred_fallthru
        _
      %v229 = vld [vmem:[#allocation2] sm:$0xff]
      %v230 = vld [vmem:[#allocation2 + $0x8] sm:$0xff]
      %v231 = vld [vmem:[%s214] sm:$0xff]
      %v232 = vld [vmem:[%s214 + $0x8] sm:$0xff]
      %v233 = vld [vmem:[%s214 + $0x10] sm:$0xff]
      %v234 = vld [vmem:[%s214 + $0x18] sm:$0xff]
      %v235 = vld [vmem:[%s208] sm:$0xf]
      %v236 = vld [vmem:[%s208 + $0x4] sm:$0xf]
      %v237 = vld [vmem:[%s208 + $0x8] sm:$0xf]
      %v238 = vld [vmem:[%s208 + $0xc] sm:$0xf]
      %v239 = vld [vmem:[%s208 + $0x10] sm:$0xf]
      %v240 = vld [vmem:[%s208 + $0x14] sm:$0xf]
      %v241 = vld [vmem:[%s208 + $0x18] sm:$0xf]
      %v242 = vld [vmem:[%s208 + $0x1c] sm:$0xf]
      %v243 = vld [vmem:[%s208 + $0x20] sm:$0xf]
      %v244 = vld [vmem:[%s208 + $0x24] sm:$0xf]
      %v245 = vld [vmem:[%s208 + $0x28] sm:$0xf]
      %v246 = vld [vmem:[%s208 + $0x2c] sm:$0xf]
      %v247 = vld [vmem:[%s208 + $0x30] sm:$0xf]
      %v248 = vld [vmem:[%s208 + $0x34] sm:$0xf]
      %v249 = vld [vmem:[%s208 + $0x38] sm:$0xf]
      %v250 = vld [vmem:[%s208 + $0x3c] sm:$0xf]
      %v251 = vld [vmem:[%s208 + $0x40] sm:$0xf]
      %v252 = vld [vmem:[%s208 + $0x44] sm:$0xf]
      %v253 = vld [vmem:[%s208 + $0x48] sm:$0xf]
      %v254 = vld [vmem:[%s208 + $0x4c] sm:$0xf]
      %v255 = vld [vmem:[%s208 + $0x50] sm:$0xf]
      %v256 = vld [vmem:[%s208 + $0x54] sm:$0xf]
      %v257 = vld [vmem:[%s208 + $0x58] sm:$0xf]
      %v258 = vld [vmem:[%s208 + $0x5c] sm:$0xf]
      %v259 = vld [vmem:[%s208 + $0x60] sm:$0xf]
      %v260 = vld [vmem:[%s208 + $0x64] sm:$0xf]
      %v261 = vld [vmem:[%s208 + $0x68] sm:$0xf]
      %v262 = vld [vmem:[%s208 + $0x6c] sm:$0xf]
      %v263 = vld [vmem:[%s208 + $0x70] sm:$0xf]
      %v264 = vld [vmem:[%s208 + $0x74] sm:$0xf]
      %v265 = vld [vmem:[%s208 + $0x78] sm:$0xf]
      %v266 = vld [vmem:[%s208 + $0x7c] sm:$0xf]
      %v267 = vld [vmem:[%s208 + $0x80] sm:$0xf]
      %v268 = vld [vmem:[%s208 + $0x84] sm:$0xf]
      %v269 = vld [vmem:[%s208 + $0x88] sm:$0xf]
      %v270 = vld [vmem:[%s208 + $0x8c] sm:$0xf]
      %v271 = vld [vmem:[%s208 + $0x90] sm:$0xf]
      %v272 = vld [vmem:[%s208 + $0x94] sm:$0xf]
      %v273 = vld [vmem:[%s208 + $0x98] sm:$0xf]
      %v274 = vld [vmem:[%s208 + $0x9c] sm:$0xf]
      %v275 = vld [vmem:[%s208 + $0xa0] sm:$0xf]
      %v276 = vld [vmem:[%s208 + $0xa4] sm:$0xf]
      %v277 = vld [vmem:[%s208 + $0xa8] sm:$0xf]
      %v278 = vld [vmem:[%s208 + $0xac] sm:$0xf]
      %v279 = vld [vmem:[%s208 + $0xb0] sm:$0xf]
      %v280 = vld [vmem:[%s208 + $0xb4] sm:$0xf]
      %v281 = vld [vmem:[%s208 + $0xb8] sm:$0xf]
      %v282 = vld [vmem:[%s208 + $0xbc] sm:$0xf]
      %v283 = vld [vmem:[%s208 + $0xc0] sm:$0xf]
      %v284 = vld [vmem:[%s208 + $0xc4] sm:$0xf]
      %v289 = vunpack.c.l.b16 %v231
      %v290 = vunpack.c.h.b16 %v231
      %v291 = vunpack.c.l.b16 %v232
      %v292 = vunpack.c.h.b16 %v232
      %v293 = vunpack.c.l.b16 %v233
      %v294 = vunpack.c.h.b16 %v233
      %v295 = vunpack.c.l.b16 %v234
      %v296 = vunpack.c.h.b16 %v234
      %v297 = vpack.c.b16 %v293, %v289
      %v298 = vpack.c.b16 %v294, %v290
      %v299 = vpack.c.b16 %v295, %v291
      %v300 = vpack.c.b16 %v296, %v292
      %v354 = vunpack.c.l.b16 %v235
      %v355 = vunpack.c.l.b16 %v236
      %v356 = vunpack.c.l.b16 %v237
      %v357 = vunpack.c.l.b16 %v238
      %v358 = vunpack.c.l.b16 %v239
      %v359 = vunpack.c.l.b16 %v240
      %v360 = vunpack.c.l.b16 %v241
      %v361 = vunpack.c.l.b16 %v242
      %v362 = vunpack.c.l.b16 %v243
      %v363 = vunpack.c.l.b16 %v244
      %v364 = vunpack.c.l.b16 %v245
      %v365 = vunpack.c.l.b16 %v246
      %v366 = vunpack.c.l.b16 %v247
      %v367 = vunpack.c.l.b16 %v248
      %v368 = vunpack.c.l.b16 %v249
      %v369 = vunpack.c.l.b16 %v250
      %v370 = vunpack.c.l.b16 %v251
      %v371 = vunpack.c.l.b16 %v252
      %v372 = vunpack.c.l.b16 %v253
      %v373 = vunpack.c.l.b16 %v254
      %v374 = vunpack.c.l.b16 %v255
      %v375 = vunpack.c.l.b16 %v256
      %v376 = vunpack.c.l.b16 %v257
      %v377 = vunpack.c.l.b16 %v258
      %v378 = vunpack.c.l.b16 %v259
      %v379 = vunpack.c.l.b16 %v260
      %v380 = vunpack.c.l.b16 %v261
      %v381 = vunpack.c.l.b16 %v262
      %v382 = vunpack.c.l.b16 %v263
      %v383 = vunpack.c.l.b16 %v264
      %v384 = vunpack.c.l.b16 %v265
      %v385 = vunpack.c.l.b16 %v266
      %v386 = vunpack.c.l.b16 %v267
      %v387 = vunpack.c.l.b16 %v268
      %v388 = vunpack.c.l.b16 %v269
      %v389 = vunpack.c.l.b16 %v270
      %v390 = vunpack.c.l.b16 %v271
      %v391 = vunpack.c.l.b16 %v272
      %v392 = vunpack.c.l.b16 %v273
      %v393 = vunpack.c.l.b16 %v274
      %v394 = vunpack.c.l.b16 %v275
      %v395 = vunpack.c.l.b16 %v276
      %v396 = vunpack.c.l.b16 %v277
      %v397 = vunpack.c.l.b16 %v278
      %v398 = vunpack.c.l.b16 %v279
      %v399 = vunpack.c.l.b16 %v280
      %v400 = vunpack.c.l.b16 %v281
      %v401 = vunpack.c.l.b16 %v282
      %v402 = vunpack.c.l.b16 %v283
      %v403 = vunpack.c.l.b16 %v284
      %v404 = vpack.c.b16 %v355, %v354
      %v405 = vpack.c.b16 %v357, %v356
      %v406 = vpack.c.b16 %v359, %v358
      %v407 = vpack.c.b16 %v361, %v360
      %v408 = vpack.c.b16 %v363, %v362
      %v409 = vpack.c.b16 %v365, %v364
      %v410 = vpack.c.b16 %v367, %v366
      %v411 = vpack.c.b16 %v369, %v368
      %v412 = vpack.c.b16 %v371, %v370
      %v413 = vpack.c.b16 %v373, %v372
      %v414 = vpack.c.b16 %v375, %v374
      %v415 = vpack.c.b16 %v377, %v376
      %v416 = vpack.c.b16 %v379, %v378
      %v417 = vpack.c.b16 %v381, %v380
      %v418 = vpack.c.b16 %v383, %v382
      %v419 = vpack.c.b16 %v385, %v384
      %v420 = vpack.c.b16 %v387, %v386
      %v421 = vpack.c.b16 %v389, %v388
      %v422 = vpack.c.b16 %v391, %v390
      %v423 = vpack.c.b16 %v393, %v392
      %v424 = vpack.c.b16 %v395, %v394
      %v425 = vpack.c.b16 %v397, %v396
      %v426 = vpack.c.b16 %v399, %v398
      %v427 = vpack.c.b16 %v401, %v400
      %v428 = vpack.c.b16 %v403, %v402
      %vm454 = vcmask 130048
      %v456 = vsel %vm454, %v300, 0
      %458 = vmatpush.bf16.msra.mxu0 %v411
      %459 = vmatpush.bf16.msra.mxu0 %v410
      %460 = vmatpush.bf16.msra.mxu0 %v409
      %461 = vmatpush.bf16.msra.mxu0 %v408
      %462 = vmatpush.bf16.msra.mxu0 %v407
      %463 = vmatpush.bf16.msra.mxu0 %v406
      %464 = vmatpush.bf16.msra.mxu0 %v405
      %465 = vmatpush.bf16.msra.mxu0 %v404
      %466 = vmatmul.bf16.gmra.mxu0 %v297
      %v467 = vpop.f32.mrf.mxu0
      %v468 = vadd.f32 0.0, %v467
      %v469 = vpop.f32.mrf.mxu0
      %v470 = vadd.f32 0.0, %v469
      %471 = vdwg.mxu0
      %472 = vmatpush.bf16.msra.mxu0 %v419
      %473 = vmatpush.bf16.msra.mxu0 %v418
      %474 = vmatpush.bf16.msra.mxu0 %v417
      %475 = vmatpush.bf16.msra.mxu0 %v416
      %476 = vmatpush.bf16.msra.mxu0 %v415
      %477 = vmatpush.bf16.msra.mxu0 %v414
      %478 = vmatpush.bf16.msra.mxu0 %v413
      %479 = vmatpush.bf16.msra.mxu0 %v412
      %480 = vmatmul.bf16.gmra.mxu0 %v298
      %v481 = vpop.f32.mrf.mxu0
      %v482 = vadd.f32 %v468, %v481
      %v483 = vpop.f32.mrf.mxu0
      %v484 = vadd.f32 %v470, %v483
      %485 = vdwg.mxu0
      %486 = vmatpush.bf16.msra.mxu0 %v427
      %487 = vmatpush.bf16.msra.mxu0 %v426
      %488 = vmatpush.bf16.msra.mxu0 %v425
      %489 = vmatpush.bf16.msra.mxu0 %v424
      %490 = vmatpush.bf16.msra.mxu0 %v423
      %491 = vmatpush.bf16.msra.mxu0 %v422
      %492 = vmatpush.bf16.msra.mxu0 %v421
      %493 = vmatpush.bf16.msra.mxu0 %v420
      %494 = vmatmul.bf16.gmra.mxu0 %v299
      %v495 = vpop.f32.mrf.mxu0
      %v496 = vadd.f32 %v482, %v495
      %v497 = vpop.f32.mrf.mxu0
      %v498 = vadd.f32 %v484, %v497
      %499 = vdwg.mxu0
      %500 = vmatpush.bf16.msra.mxu0 0
      %501 = vmatpush.bf16.msra.mxu0 0
      %502 = vmatpush.bf16.msra.mxu0 0
      %503 = vmatpush.bf16.msra.mxu0 0
      %504 = vmatpush.bf16.msra.mxu0 0
      %505 = vmatpush.bf16.msra.mxu0 0
      %506 = vmatpush.bf16.msra.mxu0 0
      %507 = vmatpush.bf16.msra.mxu0 %v428
      %508 = vmatmul.bf16.gmra.mxu0 %v456
      %v509 = vpop.f32.mrf.mxu0
      %v510 = vadd.f32 %v496, %v509
      %v511 = vpop.f32.mrf.mxu0
      %v512 = vadd.f32 %v498, %v511
      %513 = vdwg.mxu0
      %v514 = vadd.f32 %v229, %v510
      %v515 = vadd.f32 %v230, %v512
      %516 = vst.msk [vmem:[#allocation2] sm:$0xff] %vm454, %v514
      %517 = vst.msk [vmem:[#allocation2 + $0x8] sm:$0xff] %vm454, %v515
      // Predicated region
      $region37: #{base_unet_forward.13} parent=31 // pred_check
        %p518 = pneg %p222
      $region38: #{base_unet_forward.13} parent=31 // pred_check_branch
        %520 = sbr.rel (%p518) target = $region40
      $region39: #{base_unet_forward.13} parent=31 // pred_region
        %v521 = vld [vmem:[#allocation2] sm:$0xff]
        %v522 = vld [vmem:[#allocation2 + $0x8] sm:$0xff]
        %v523 = vld [vmem:[%s2] sm:$0xff]
        %v524 = vld [vmem:[%s2 + $0x8] sm:$0xff]
        %526 = vset.pattern.permute.xlu0 0
        %527 = vperm.xlu0 %526, %v523
        %v528 = vpop.permute.xlu0 %527
        %531 = vset.pattern.permute.xlu0 0
        %532 = vperm.xlu0 %531, %v524
        %v533 = vpop.permute.xlu0 %532
        %v535 = vadd.f32 %v521, %v528
        %v536 = vadd.f32 %v522, %v533
        %vm537 = vcmp.ge.f32.partialorder %v535, 0.0
        %vm538 = vcmp.ge.f32.partialorder %v536, 0.0
        %v539 = vmul.f32 %v535, 0.01
        %v540 = vmul.f32 %v536, 0.01
        %v541 = vsel %vm537, %v535, %v539
        %v542 = vsel %vm538, %v536, %v540
        %v543 = vsel %vm454, %v541, 0.0
        %544 = vadd.xlane.f32.xlu0 %v543
        %v545 = vpop.xlane.xlu0 %544
        %v546 = vsel %vm454, %v542, 0.0
        %547 = vadd.xlane.f32.xlu0 %v546
        %v548 = vpop.xlane.xlu0 %547
        %v549 = vrcp.pop 16.0
        %v550 = vmul.f32 16.0, %v549
        %v551 = vsub.f32 1.0, %v550
        %v552 = vmul.f32 %v549, %v551
        %v553 = vadd.f32 %v549, %v552
        %vm554 = vweird.f32 %v549
        %v555 = vsel %vm554, %v549, %v553
        %v556 = vmul.f32 %v545, %v555
        %v557 = vmul.f32 %v548, %v555
        %v558 = vsub.f32 %v541, %v556
        %v559 = vsub.f32 %v542, %v557
        %v560 = vmul.f32 %v558, %v558
        %v561 = vmul.f32 %v559, %v559
        %v562 = vsel %vm454, %v560, 0.0
        %563 = vadd.xlane.f32.xlu0 %v562
        %v564 = vpop.xlane.xlu0 %563
        %v565 = vsel %vm454, %v561, 0.0
        %566 = vadd.xlane.f32.xlu0 %v565
        %v567 = vpop.xlane.xlu0 %566
        %v568 = vmul.f32 %v564, %v555
        %v569 = vmul.f32 %v567, %v555
        %v570 = vadd.f32 %v568, 1e-05
        %v571 = vadd.f32 %v569, 1e-05
        %v572 = vrsqrt.pop %v570
        %v573 = vmul.f32 %v572, %v570
        %v574 = vmul.f32 %v573, %v572
        %v575 = vmul.f32 0.5, %v574
        %v576 = vsub.f32 1.5, %v575
        %v577 = vmul.f32 %v572, %v576
        %vm578 = vweird.f32 %v570
        %vm579 = vweird.f32 %v572
        %vm580 = vmor %vm578, %vm579
        %v581 = vsel %vm580, %v572, %v577
        %v582 = vrsqrt.pop %v571
        %v583 = vmul.f32 %v582, %v571
        %v584 = vmul.f32 %v583, %v582
        %v585 = vmul.f32 0.5, %v584
        %v586 = vsub.f32 1.5, %v585
        %v587 = vmul.f32 %v582, %v586
        %vm588 = vweird.f32 %v571
        %vm589 = vweird.f32 %v582
        %vm590 = vmor %vm588, %vm589
        %v591 = vsel %vm590, %v582, %v587
        %v592 = vmul.f32 %v558, %v581
        %v593 = vmul.f32 %v559, %v591
        %594 = vst.msk [vmem:[%s220] sm:$0xff] %vm454, %v592
        %595 = vst.msk [vmem:[%s220 + $0x8] sm:$0xff] %vm454, %v593
      $region40: #{base_unet_forward.13} parent=31 // pred_fallthru
        _
      %p596 = scmp.lt.s32.totalorder %s18, 1
      %s597 = scalar_select %p596, %s18, 1
      %s598 = smul.addr %s597, 2
      %s599 = smul.addr %s598, 8
      %s600 = scalar_lea.vmem %s3, %s599
      // Predicated region
      $region41: #{base_unet_forward.13} parent=31 // pred_check
        %p601 = pneg %p119
      $region42: #{base_unet_forward.13} parent=31 // pred_check_branch
        %603 = sbr.rel (%p601) target = $region44
      $region43: #{base_unet_forward.13} parent=31 // pred_region
        _
      $region44: #{base_unet_forward.13} parent=31 // pred_fallthru
        _
    $region32: #{base_unet_forward.13} parent=5 // pred_fallthru
      _
    %p604 = scmp.le.s32.totalorder 2, %s9
    // Predicated region
    $region45: #{base_unet_forward.13} parent=5 // pred_check
      %p605 = pneg %p604
    $region46: #{base_unet_forward.13} parent=5 // pred_check_branch
      %607 = sbr.rel (%p605) target = $region48
    $region47: #{base_unet_forward.13} parent=5 // pred_region
      %s608 = ssub.s32 %s9, 2
      // Predicated region
      $region49: #{base_unet_forward.13} parent=47 // pred_check
        %p609 = pneg %p125
      $region50: #{base_unet_forward.13} parent=47 // pred_check_branch
        %611 = sbr.rel (%p609) target = $region52
      $region51: #{base_unet_forward.13} parent=47 // pred_region
        %p612 = scmp.lt.s32.totalorder %s20, 1
        %s613 = scalar_select %p612, %s20, 1
        %s614 = smul.addr %s613, 2
        %s615 = smul.addr %s614, 8
        %s616 = scalar_lea.vmem %s3, %s615
      $region52: #{base_unet_forward.13} parent=47 // pred_fallthru
        _
    $region48: #{base_unet_forward.13} parent=5 // pred_fallthru
      _
  $region6: #{base_unet_forward.13} parent=0 // loop_footer
    %s13 = sadd.s32 1, %s9
  $region7: #{base_unet_forward.13} parent=0 // loop_footer_branch
    %8 = sbr.rel target = $region3
  $region8: #{base_unet_forward.13} parent=0 // loop_exit
    _

// kernel: base_unet_forward.14
$region0: #{base_unet_forward.14}
  #allocation0 [shape = 'u32[]', space=smem, size = 0x4, offset = 0x4, fixed_abs, tag = 'smem constant byte address 0x4 - core index']
  #allocation1 [shape = 'u32[72,128]{1,0:T(1,128)}', space=vmem, size = 0x9000, scoped, tag = 'internal scratch']
  #allocation2 [shape = 'f32[16,4]{1,0:T(8,128)}', space=vmem, size = 0x2000, scoped, tag = 'scratch operand']
  %s0 = inlined_call_operand.vmem [shape: bf16[2,400,4], index: 0, kind: input, shape index: {}]
  %s1 = inlined_call_operand.vmem [shape: bf16[16,400], index: 1, kind: input, shape index: {}]
  %s2 = inlined_call_operand.vmem [shape: f32[16,1], index: 2, kind: input, shape index: {}]
  %s3 = inlined_call_operand.vmem [shape: f32[2,16,4], index: 3, kind: output, shape index: {}]
  %s4 = sld [smem:[#allocation0]]
  $region53: #{base_unet_forward.14} parent=0
    _
  %s6 = ssub.s32 1, %s4
  %s7 = scalar_select 0, %s6, %s4
  loop: start=0, step=1, limit=4
  $region2: #{base_unet_forward.14} parent=0 // loop_pre_header
    _
  $region3: #{base_unet_forward.14} parent=0 // loop_header
    %s9 = sphi 0, %s13
    %p10 = scmp.ge.s32.totalorder %s9, 4
    %s16 = sphi 0, %s28
    %s17 = sphi 0, %s24
    %s18 = sphi 0, %s16
    %s19 = sphi 0, %s17
    %s20 = sphi 0, %s18
    %s21 = sphi 0, %s19
    %s33 = sphi 0, %s35
    %s36 = sphi 0, %s33
    %s37 = sphi 0, %s36
    %s53 = sphi 0, %s37
    %s59 = sphi 0, %s61
    %s62 = sphi 0, %s59
    %s63 = sphi 0, %s62
    %s79 = sphi 0, %s63
    %s83 = sphi 0, %s83
    %s85 = sphi 0, %s83
    %s86 = sphi 0, %s85
    %s100 = sphi 0, %s86
    %s106 = sphi 0, %s108
    %s109 = sphi 0, %s106
    %s110 = sphi 0, %s109
    %s126 = sphi 0, %s110
  $region4: #{base_unet_forward.14} parent=0 // loop_header_branch
    %12 = sbr.rel (%p10) target = $region8
  $region5: #{base_unet_forward.14} parent=0 // loop_body
    %s14 = ssub.s32 %s9, 1
    %s15 = ssub.s32 %s9, 2
    %s22 = sadd.s32 1, %s17
    %p23 = scmp.ge.s32.totalorder %s22, 1
    %s24 = scalar_select %p23, 0, %s22
    %s25 = sadd.s32 1, %s16
    %s26 = scalar_select %p23, %s25, %s16
    %p27 = scmp.ge.s32.totalorder %s26, 2
    %s28 = scalar_select %p27, 0, %s26
    %s29 = ssub.s32 %s16, %s28
    %s30 = ssub.s32 %s17, %s24
    %s31 = sor.u32 %s29, %s30
    %p32 = scmp.eq.s32.totalorder %s31, 0
    %s34 = sadd.s32 %s33, 1
    %s35 = scalar_select %p32, %s33, %s34
    %p38 = pneg %p32
    %p39 = scmp.eq.s32.totalorder %s9, 1
    %p40 = por %p38, %p39
    %p41 = scmp.ne.s32.totalorder %s33, %s36
    %p42 = scmp.eq.s32.totalorder %s9, 0
    %p43 = por %p41, %p42
    %p44 = scmp.ne.s32.totalorder %s33, %s36
    %p45 = scmp.eq.s32.totalorder %s14, 1
    %p46 = por %p44, %p45
    %p47 = scmp.ne.s32.totalorder %s36, %s37
    %p48 = scmp.eq.s32.totalorder %s14, 0
    %p49 = por %p47, %p48
    %p50 = scmp.ne.s32.totalorder %s36, %s37
    %p51 = scmp.eq.s32.totalorder %s15, 1
    %p52 = por %p50, %p51
    %p54 = scmp.ne.s32.totalorder %s37, %s53
    %p55 = scmp.eq.s32.totalorder %s15, 0
    %p56 = por %p54, %p55
    %s57 = ssub.s32 %s17, %s24
    %p58 = scmp.eq.s32.totalorder %s57, 0
    %s60 = sadd.s32 %s59, 1
    %s61 = scalar_select %p58, %s59, %s60
    %p64 = pneg %p58
    %p65 = scmp.eq.s32.totalorder %s9, 1
    %p66 = por %p64, %p65
    %p67 = scmp.ne.s32.totalorder %s59, %s62
    %p68 = scmp.eq.s32.totalorder %s9, 0
    %p69 = por %p67, %p68
    %p70 = scmp.ne.s32.totalorder %s59, %s62
    %p71 = scmp.eq.s32.totalorder %s14, 1
    %p72 = por %p70, %p71
    %p73 = scmp.ne.s32.totalorder %s62, %s63
    %p74 = scmp.eq.s32.totalorder %s14, 0
    %p75 = por %p73, %p74
    %p76 = scmp.ne.s32.totalorder %s62, %s63
    %p77 = scmp.eq.s32.totalorder %s15, 1
    %p78 = por %p76, %p77
    %p80 = scmp.ne.s32.totalorder %s63, %s79
    %p81 = scmp.eq.s32.totalorder %s15, 0
    %p82 = por %p80, %p81
    %s84 = sadd.s32 %s83, 1
    %p87 = scmp.eq.s32.totalorder %s9, 1
    %p88 = scmp.ne.s32.totalorder %s83, %s85
    %p89 = scmp.eq.s32.totalorder %s9, 0
    %p90 = por %p88, %p89
    %p91 = scmp.ne.s32.totalorder %s83, %s85
    %p92 = scmp.eq.s32.totalorder %s14, 1
    %p93 = por %p91, %p92
    %p94 = scmp.ne.s32.totalorder %s85, %s86
    %p95 = scmp.eq.s32.totalorder %s14, 0
    %p96 = por %p94, %p95
    %p97 = scmp.ne.s32.totalorder %s85, %s86
    %p98 = scmp.eq.s32.totalorder %s15, 1
    %p99 = por %p97, %p98
    %p101 = scmp.ne.s32.totalorder %s86, %s100
    %p102 = scmp.eq.s32.totalorder %s15, 0
    %p103 = por %p101, %p102
    %s104 = ssub.s32 %s16, %s28
    %p105 = scmp.eq.s32.totalorder %s104, 0
    %s107 = sadd.s32 %s106, 1
    %s108 = scalar_select %p105, %s106, %s107
    %p111 = pneg %p105
    %p112 = scmp.eq.s32.totalorder %s9, 1
    %p113 = por %p111, %p112
    %p114 = scmp.ne.s32.totalorder %s106, %s109
    %p115 = scmp.eq.s32.totalorder %s9, 0
    %p116 = por %p114, %p115
    %p117 = scmp.ne.s32.totalorder %s106, %s109
    %p118 = scmp.eq.s32.totalorder %s14, 1
    %p119 = por %p117, %p118
    %p120 = scmp.ne.s32.totalorder %s109, %s110
    %p121 = scmp.eq.s32.totalorder %s14, 0
    %p122 = por %p120, %p121
    %p123 = scmp.ne.s32.totalorder %s109, %s110
    %p124 = scmp.eq.s32.totalorder %s15, 1
    %p125 = por %p123, %p124
    %p127 = scmp.ne.s32.totalorder %s110, %s126
    %p128 = scmp.eq.s32.totalorder %s15, 0
    %p129 = por %p127, %p128
    %p130 = scmp.le.s32.totalorder 1, %s9
    %p131 = scmp.lt.s32.totalorder %s9, 3
    %p132 = pnand %p130, %p131
    %p133 = pneg %p132
    // Predicated region
    $region9: #{base_unet_forward.14} parent=5 // pred_check
      _
    $region10: #{base_unet_forward.14} parent=5 // pred_check_branch
      %135 = sbr.rel (%p132) target = $region12
    $region11: #{base_unet_forward.14} parent=5 // pred_region
      %s136 = ssub.s32 %s9, 1
      // Predicated region
      $region13: #{base_unet_forward.14} parent=11 // pred_check
        %p137 = pneg %p75
      $region14: #{base_unet_forward.14} parent=11 // pred_check_branch
        %139 = sbr.rel (%p137) target = $region16
      $region15: #{base_unet_forward.14} parent=11 // pred_region
        %s140 = smul.u32 4, %s19
        %p141 = scmp.lt.s32.totalorder %s140, 3
        %s142 = scalar_select %p141, %s140, 3
        %s143 = smul.addr %s142, 4
        %s144 = scalar_lea.vmem %s1, %s143
        %s145 = smul.u32 4, %s19
      $region16: #{base_unet_forward.14} parent=11 // pred_fallthru
        _
      // Predicated region
      $region17: #{base_unet_forward.14} parent=11 // pred_check
        %p146 = pneg %p96
      $region18: #{base_unet_forward.14} parent=11 // pred_check_branch
        %148 = sbr.rel (%p146) target = $region20
      $region19: #{base_unet_forward.14} parent=11 // pred_region
        _
      $region20: #{base_unet_forward.14} parent=11 // pred_fallthru
        _
    $region12: #{base_unet_forward.14} parent=5 // pred_fallthru
      _
    %p149 = scmp.lt.s32.totalorder %s9, 2
    // Predicated region
    $region21: #{base_unet_forward.14} parent=5 // pred_check
      %p150 = pneg %p149
    $region22: #{base_unet_forward.14} parent=5 // pred_check_branch
      %152 = sbr.rel (%p150) target = $region24
    $region23: #{base_unet_forward.14} parent=5 // pred_region
      // Predicated region
      $region25: #{base_unet_forward.14} parent=23 // pred_check
        %p153 = pneg %p43
      $region26: #{base_unet_forward.14} parent=23 // pred_check_branch
        %155 = sbr.rel (%p153) target = $region28
      $region27: #{base_unet_forward.14} parent=23 // pred_region
        %s156 = smul.u32 50, %s17
        %p157 = scmp.lt.s32.totalorder %s16, 1
        %s158 = scalar_select %p157, %s16, 1
        %p159 = scmp.lt.s32.totalorder %s156, 49
        %s160 = scalar_select %p159, %s156, 49
        %s161 = smul.addr %s158, 50
        %s162 = sadd.s32 %s160, %s161
        %s163 = smul.addr %s162, 4
        %s164 = scalar_lea.vmem %s0, %s163
        %s165 = smul.u32 50, %s17
      $region28: #{base_unet_forward.14} parent=23 // pred_fallthru
        _
    $region24: #{base_unet_forward.14} parent=5 // pred_fallthru
      _
    %p166 = scmp.le.s32.totalorder 1, %s9
    %p167 = scmp.lt.s32.totalorder %s9, 3
    %p168 = pnand %p166, %p167
    %p169 = pneg %p168
    // Predicated region
    $region29: #{base_unet_forward.14} parent=5 // pred_check
      _
    $region30: #{base_unet_forward.14} parent=5 // pred_check_branch
      %171 = sbr.rel (%p168) target = $region32
    $region31: #{base_unet_forward.14} parent=5 // pred_region
      %s172 = ssub.s32 %s9, 1
      %s173 = smul.u32 50, %s19
      %p174 = scmp.lt.s32.totalorder %s18, 1
      %s175 = scalar_select %p174, %s18, 1
      %p176 = scmp.lt.s32.totalorder %s173, 49
      %s177 = scalar_select %p176, %s173, 49
      %s178 = smul.addr %s175, 50
      %s179 = sadd.s32 %s177, %s178
      %s180 = smul.addr %s179, 4
      %s181 = scalar_lea.vmem %s0, %s180
      %p182 = pneg %p49
      %p183 = pneg %p46
      %s184 = smul.u32 4, %s19
      %p185 = scmp.lt.s32.totalorder %s184, 3
      %s186 = scalar_select %p185, %s184, 3
      %s187 = smul.addr %s186, 4
      %s188 = scalar_lea.vmem %s1, %s187
      %p189 = pneg %p75
      %p190 = pneg %p72
      %p191 = pneg %p96
      %p192 = pneg %p93
      %p193 = pneg %p122
      %p194 = pneg %p119
      %p195 = scmp.lt.s32.totalorder %s18, 1
      %s196 = scalar_select %p195, %s18, 1
      %s197 = smul.addr %s196, 2
      %s198 = smul.addr %s197, 8
      %s199 = scalar_lea.vmem %s3, %s198
      %s200 = smul.u32 50, %s19
      %p201 = scmp.lt.s32.totalorder %s18, 1
      %s202 = scalar_select %p201, %s18, 1
      %p203 = scmp.lt.s32.totalorder %s200, 49
      %s204 = scalar_select %p203, %s200, 49
      %s205 = smul.addr %s202, 50
      %s206 = sadd.s32 %s204, %s205
      %s207 = smul.addr %s206, 4
      %s208 = scalar_lea.vmem %s0, %s207
      %s209 = smul.u32 50, %s19
      %s210 = smul.u32 4, %s19
      %p211 = scmp.lt.s32.totalorder %s210, 3
      %s212 = scalar_select %p211, %s210, 3
      %s213 = smul.addr %s212, 4
      %s214 = scalar_lea.vmem %s1, %s213
      %s215 = smul.u32 4, %s19
      %p216 = scmp.lt.s32.totalorder %s18, 1
      %s217 = scalar_select %p216, %s18, 1
      %s218 = smul.addr %s217, 2
      %s219 = smul.addr %s218, 8
      %s220 = scalar_lea.vmem %s3, %s219
      %p222 = scmp.eq.s32.totalorder %s19, 0
      // Predicated region
      $region33: #{base_unet_forward.14} parent=31 // pred_check
        %p223 = pneg %p222
      $region34: #{base_unet_forward.14} parent=31 // pred_check_branch
        %225 = sbr.rel (%p223) target = $region36
      $region35: #{base_unet_forward.14} parent=31 // pred_region
        %vm226 = vcmask 31744
        %227 = vst.msk [vmem:[#allocation2] sm:$0xff] %vm226, 0.0
        %228 = vst.msk [vmem:[#allocation2 + $0x8] sm:$0xff] %vm226, 0.0
      $region36: #{base_unet_forward.14} parent=31 // pred_fallthru
        _
      %v229 = vld [vmem:[#allocation2] sm:$0xff]
      %v230 = vld [vmem:[#allocation2 + $0x8] sm:$0xff]
      %v231 = vld [vmem:[%s214] sm:$0xff]
      %v232 = vld [vmem:[%s214 + $0x8] sm:$0xff]
      %v233 = vld [vmem:[%s214 + $0x10] sm:$0xff]
      %v234 = vld [vmem:[%s214 + $0x18] sm:$0xff]
      %v235 = vld [vmem:[%s208] sm:$0xf]
      %v236 = vld [vmem:[%s208 + $0x4] sm:$0xf]
      %v237 = vld [vmem:[%s208 + $0x8] sm:$0xf]
      %v238 = vld [vmem:[%s208 + $0xc] sm:$0xf]
      %v239 = vld [vmem:[%s208 + $0x10] sm:$0xf]
      %v240 = vld [vmem:[%s208 + $0x14] sm:$0xf]
      %v241 = vld [vmem:[%s208 + $0x18] sm:$0xf]
      %v242 = vld [vmem:[%s208 + $0x1c] sm:$0xf]
      %v243 = vld [vmem:[%s208 + $0x20] sm:$0xf]
      %v244 = vld [vmem:[%s208 + $0x24] sm:$0xf]
      %v245 = vld [vmem:[%s208 + $0x28] sm:$0xf]
      %v246 = vld [vmem:[%s208 + $0x2c] sm:$0xf]
      %v247 = vld [vmem:[%s208 + $0x30] sm:$0xf]
      %v248 = vld [vmem:[%s208 + $0x34] sm:$0xf]
      %v249 = vld [vmem:[%s208 + $0x38] sm:$0xf]
      %v250 = vld [vmem:[%s208 + $0x3c] sm:$0xf]
      %v251 = vld [vmem:[%s208 + $0x40] sm:$0xf]
      %v252 = vld [vmem:[%s208 + $0x44] sm:$0xf]
      %v253 = vld [vmem:[%s208 + $0x48] sm:$0xf]
      %v254 = vld [vmem:[%s208 + $0x4c] sm:$0xf]
      %v255 = vld [vmem:[%s208 + $0x50] sm:$0xf]
      %v256 = vld [vmem:[%s208 + $0x54] sm:$0xf]
      %v257 = vld [vmem:[%s208 + $0x58] sm:$0xf]
      %v258 = vld [vmem:[%s208 + $0x5c] sm:$0xf]
      %v259 = vld [vmem:[%s208 + $0x60] sm:$0xf]
      %v260 = vld [vmem:[%s208 + $0x64] sm:$0xf]
      %v261 = vld [vmem:[%s208 + $0x68] sm:$0xf]
      %v262 = vld [vmem:[%s208 + $0x6c] sm:$0xf]
      %v263 = vld [vmem:[%s208 + $0x70] sm:$0xf]
      %v264 = vld [vmem:[%s208 + $0x74] sm:$0xf]
      %v265 = vld [vmem:[%s208 + $0x78] sm:$0xf]
      %v266 = vld [vmem:[%s208 + $0x7c] sm:$0xf]
      %v267 = vld [vmem:[%s208 + $0x80] sm:$0xf]
      %v268 = vld [vmem:[%s208 + $0x84] sm:$0xf]
      %v269 = vld [vmem:[%s208 + $0x88] sm:$0xf]
      %v270 = vld [vmem:[%s208 + $0x8c] sm:$0xf]
      %v271 = vld [vmem:[%s208 + $0x90] sm:$0xf]
      %v272 = vld [vmem:[%s208 + $0x94] sm:$0xf]
      %v273 = vld [vmem:[%s208 + $0x98] sm:$0xf]
      %v274 = vld [vmem:[%s208 + $0x9c] sm:$0xf]
      %v275 = vld [vmem:[%s208 + $0xa0] sm:$0xf]
      %v276 = vld [vmem:[%s208 + $0xa4] sm:$0xf]
      %v277 = vld [vmem:[%s208 + $0xa8] sm:$0xf]
      %v278 = vld [vmem:[%s208 + $0xac] sm:$0xf]
      %v279 = vld [vmem:[%s208 + $0xb0] sm:$0xf]
      %v280 = vld [vmem:[%s208 + $0xb4] sm:$0xf]
      %v281 = vld [vmem:[%s208 + $0xb8] sm:$0xf]
      %v282 = vld [vmem:[%s208 + $0xbc] sm:$0xf]
      %v283 = vld [vmem:[%s208 + $0xc0] sm:$0xf]
      %v284 = vld [vmem:[%s208 + $0xc4] sm:$0xf]
      %v289 = vunpack.c.l.b16 %v231
      %v290 = vunpack.c.h.b16 %v231
      %v291 = vunpack.c.l.b16 %v232
      %v292 = vunpack.c.h.b16 %v232
      %v293 = vunpack.c.l.b16 %v233
      %v294 = vunpack.c.h.b16 %v233
      %v295 = vunpack.c.l.b16 %v234
      %v296 = vunpack.c.h.b16 %v234
      %v297 = vpack.c.b16 %v293, %v289
      %v298 = vpack.c.b16 %v294, %v290
      %v299 = vpack.c.b16 %v295, %v291
      %v300 = vpack.c.b16 %v296, %v292
      %v354 = vunpack.c.l.b16 %v235
      %v355 = vunpack.c.l.b16 %v236
      %v356 = vunpack.c.l.b16 %v237
      %v357 = vunpack.c.l.b16 %v238
      %v358 = vunpack.c.l.b16 %v239
      %v359 = vunpack.c.l.b16 %v240
      %v360 = vunpack.c.l.b16 %v241
      %v361 = vunpack.c.l.b16 %v242
      %v362 = vunpack.c.l.b16 %v243
      %v363 = vunpack.c.l.b16 %v244
      %v364 = vunpack.c.l.b16 %v245
      %v365 = vunpack.c.l.b16 %v246
      %v366 = vunpack.c.l.b16 %v247
      %v367 = vunpack.c.l.b16 %v248
      %v368 = vunpack.c.l.b16 %v249
      %v369 = vunpack.c.l.b16 %v250
      %v370 = vunpack.c.l.b16 %v251
      %v371 = vunpack.c.l.b16 %v252
      %v372 = vunpack.c.l.b16 %v253
      %v373 = vunpack.c.l.b16 %v254
      %v374 = vunpack.c.l.b16 %v255
      %v375 = vunpack.c.l.b16 %v256
      %v376 = vunpack.c.l.b16 %v257
      %v377 = vunpack.c.l.b16 %v258
      %v378 = vunpack.c.l.b16 %v259
      %v379 = vunpack.c.l.b16 %v260
      %v380 = vunpack.c.l.b16 %v261
      %v381 = vunpack.c.l.b16 %v262
      %v382 = vunpack.c.l.b16 %v263
      %v383 = vunpack.c.l.b16 %v264
      %v384 = vunpack.c.l.b16 %v265
      %v385 = vunpack.c.l.b16 %v266
      %v386 = vunpack.c.l.b16 %v267
      %v387 = vunpack.c.l.b16 %v268
      %v388 = vunpack.c.l.b16 %v269
      %v389 = vunpack.c.l.b16 %v270
      %v390 = vunpack.c.l.b16 %v271
      %v391 = vunpack.c.l.b16 %v272
      %v392 = vunpack.c.l.b16 %v273
      %v393 = vunpack.c.l.b16 %v274
      %v394 = vunpack.c.l.b16 %v275
      %v395 = vunpack.c.l.b16 %v276
      %v396 = vunpack.c.l.b16 %v277
      %v397 = vunpack.c.l.b16 %v278
      %v398 = vunpack.c.l.b16 %v279
      %v399 = vunpack.c.l.b16 %v280
      %v400 = vunpack.c.l.b16 %v281
      %v401 = vunpack.c.l.b16 %v282
      %v402 = vunpack.c.l.b16 %v283
      %v403 = vunpack.c.l.b16 %v284
      %v404 = vpack.c.b16 %v355, %v354
      %v405 = vpack.c.b16 %v357, %v356
      %v406 = vpack.c.b16 %v359, %v358
      %v407 = vpack.c.b16 %v361, %v360
      %v408 = vpack.c.b16 %v363, %v362
      %v409 = vpack.c.b16 %v365, %v364
      %v410 = vpack.c.b16 %v367, %v366
      %v411 = vpack.c.b16 %v369, %v368
      %v412 = vpack.c.b16 %v371, %v370
      %v413 = vpack.c.b16 %v373, %v372
      %v414 = vpack.c.b16 %v375, %v374
      %v415 = vpack.c.b16 %v377, %v376
      %v416 = vpack.c.b16 %v379, %v378
      %v417 = vpack.c.b16 %v381, %v380
      %v418 = vpack.c.b16 %v383, %v382
      %v419 = vpack.c.b16 %v385, %v384
      %v420 = vpack.c.b16 %v387, %v386
      %v421 = vpack.c.b16 %v389, %v388
      %v422 = vpack.c.b16 %v391, %v390
      %v423 = vpack.c.b16 %v393, %v392
      %v424 = vpack.c.b16 %v395, %v394
      %v425 = vpack.c.b16 %v397, %v396
      %v426 = vpack.c.b16 %v399, %v398
      %v427 = vpack.c.b16 %v401, %v400
      %v428 = vpack.c.b16 %v403, %v402
      %vm454 = vcmask 130048
      %v456 = vsel %vm454, %v300, 0
      %458 = vmatpush.bf16.msra.mxu0 %v411
      %459 = vmatpush.bf16.msra.mxu0 %v410
      %460 = vmatpush.bf16.msra.mxu0 %v409
      %461 = vmatpush.bf16.msra.mxu0 %v408
      %462 = vmatpush.bf16.msra.mxu0 %v407
      %463 = vmatpush.bf16.msra.mxu0 %v406
      %464 = vmatpush.bf16.msra.mxu0 %v405
      %465 = vmatpush.bf16.msra.mxu0 %v404
      %466 = vmatmul.bf16.gmra.mxu0 %v297
      %v467 = vpop.f32.mrf.mxu0
      %v468 = vadd.f32 0.0, %v467
      %v469 = vpop.f32.mrf.mxu0
      %v470 = vadd.f32 0.0, %v469
      %471 = vdwg.mxu0
      %472 = vmatpush.bf16.msra.mxu0 %v419
      %473 = vmatpush.bf16.msra.mxu0 %v418
      %474 = vmatpush.bf16.msra.mxu0 %v417
      %475 = vmatpush.bf16.msra.mxu0 %v416
      %476 = vmatpush.bf16.msra.mxu0 %v415
      %477 = vmatpush.bf16.msra.mxu0 %v414
      %478 = vmatpush.bf16.msra.mxu0 %v413
      %479 = vmatpush.bf16.msra.mxu0 %v412
      %480 = vmatmul.bf16.gmra.mxu0 %v298
      %v481 = vpop.f32.mrf.mxu0
      %v482 = vadd.f32 %v468, %v481
      %v483 = vpop.f32.mrf.mxu0
      %v484 = vadd.f32 %v470, %v483
      %485 = vdwg.mxu0
      %486 = vmatpush.bf16.msra.mxu0 %v427
      %487 = vmatpush.bf16.msra.mxu0 %v426
      %488 = vmatpush.bf16.msra.mxu0 %v425
      %489 = vmatpush.bf16.msra.mxu0 %v424
      %490 = vmatpush.bf16.msra.mxu0 %v423
      %491 = vmatpush.bf16.msra.mxu0 %v422
      %492 = vmatpush.bf16.msra.mxu0 %v421
      %493 = vmatpush.bf16.msra.mxu0 %v420
      %494 = vmatmul.bf16.gmra.mxu0 %v299
      %v495 = vpop.f32.mrf.mxu0
      %v496 = vadd.f32 %v482, %v495
      %v497 = vpop.f32.mrf.mxu0
      %v498 = vadd.f32 %v484, %v497
      %499 = vdwg.mxu0
      %500 = vmatpush.bf16.msra.mxu0 0
      %501 = vmatpush.bf16.msra.mxu0 0
      %502 = vmatpush.bf16.msra.mxu0 0
      %503 = vmatpush.bf16.msra.mxu0 0
      %504 = vmatpush.bf16.msra.mxu0 0
      %505 = vmatpush.bf16.msra.mxu0 0
      %506 = vmatpush.bf16.msra.mxu0 0
      %507 = vmatpush.bf16.msra.mxu0 %v428
      %508 = vmatmul.bf16.gmra.mxu0 %v456
      %v509 = vpop.f32.mrf.mxu0
      %v510 = vadd.f32 %v496, %v509
      %v511 = vpop.f32.mrf.mxu0
      %v512 = vadd.f32 %v498, %v511
      %513 = vdwg.mxu0
      %v514 = vadd.f32 %v229, %v510
      %v515 = vadd.f32 %v230, %v512
      %vm516 = vcmask 31744
      %517 = vst.msk [vmem:[#allocation2] sm:$0xff] %vm516, %v514
      %518 = vst.msk [vmem:[#allocation2 + $0x8] sm:$0xff] %vm516, %v515
      // Predicated region
      $region37: #{base_unet_forward.14} parent=31 // pred_check
        %p519 = pneg %p222
      $region38: #{base_unet_forward.14} parent=31 // pred_check_branch
        %521 = sbr.rel (%p519) target = $region40
      $region39: #{base_unet_forward.14} parent=31 // pred_region
        %v522 = vld [vmem:[#allocation2] sm:$0xff]
        %v523 = vld [vmem:[#allocation2 + $0x8] sm:$0xff]
        %v524 = vld [vmem:[%s2] sm:$0xff]
        %v525 = vld [vmem:[%s2 + $0x8] sm:$0xff]
        %527 = vset.pattern.permute.xlu0 0
        %528 = vperm.xlu0 %527, %v524
        %v529 = vpop.permute.xlu0 %528
        %532 = vset.pattern.permute.xlu0 0
        %533 = vperm.xlu0 %532, %v525
        %v534 = vpop.permute.xlu0 %533
        %v536 = vadd.f32 %v522, %v529
        %v537 = vadd.f32 %v523, %v534
        %vm538 = vcmp.ge.f32.partialorder %v536, 0.0
        %vm539 = vcmp.ge.f32.partialorder %v537, 0.0
        %v540 = vmul.f32 %v536, 0.01
        %v541 = vmul.f32 %v537, 0.01
        %v542 = vsel %vm538, %v536, %v540
        %v543 = vsel %vm539, %v537, %v541
        %v544 = vsel %vm516, %v542, 0.0
        %545 = vadd.xlane.f32.xlu0 %v544
        %v546 = vpop.xlane.xlu0 %545
        %v547 = vsel %vm516, %v543, 0.0
        %548 = vadd.xlane.f32.xlu0 %v547
        %v549 = vpop.xlane.xlu0 %548
        %v550 = vrcp.pop 4.0
        %v551 = vmul.f32 4.0, %v550
        %v552 = vsub.f32 1.0, %v551
        %v553 = vmul.f32 %v550, %v552
        %v554 = vadd.f32 %v550, %v553
        %vm555 = vweird.f32 %v550
        %v556 = vsel %vm555, %v550, %v554
        %v557 = vmul.f32 %v546, %v556
        %v558 = vmul.f32 %v549, %v556
        %v559 = vsub.f32 %v542, %v557
        %v560 = vsub.f32 %v543, %v558
        %v561 = vmul.f32 %v559, %v559
        %v562 = vmul.f32 %v560, %v560
        %v563 = vsel %vm516, %v561, 0.0
        %564 = vadd.xlane.f32.xlu0 %v563
        %v565 = vpop.xlane.xlu0 %564
        %v566 = vsel %vm516, %v562, 0.0
        %567 = vadd.xlane.f32.xlu0 %v566
        %v568 = vpop.xlane.xlu0 %567
        %v569 = vmul.f32 %v565, %v556
        %v570 = vmul.f32 %v568, %v556
        %v571 = vadd.f32 %v569, 1e-05
        %v572 = vadd.f32 %v570, 1e-05
        %v573 = vrsqrt.pop %v571
        %v574 = vmul.f32 %v573, %v571
        %v575 = vmul.f32 %v574, %v573
        %v576 = vmul.f32 0.5, %v575
        %v577 = vsub.f32 1.5, %v576
        %v578 = vmul.f32 %v573, %v577
        %vm579 = vweird.f32 %v571
        %vm580 = vweird.f32 %v573
        %vm581 = vmor %vm579, %vm580
        %v582 = vsel %vm581, %v573, %v578
        %v583 = vrsqrt.pop %v572
        %v584 = vmul.f32 %v583, %v572
        %v585 = vmul.f32 %v584, %v583
        %v586 = vmul.f32 0.5, %v585
        %v587 = vsub.f32 1.5, %v586
        %v588 = vmul.f32 %v583, %v587
        %vm589 = vweird.f32 %v572
        %vm590 = vweird.f32 %v583
        %vm591 = vmor %vm589, %vm590
        %v592 = vsel %vm591, %v583, %v588
        %v593 = vmul.f32 %v559, %v582
        %v594 = vmul.f32 %v560, %v592
        %595 = vst.msk [vmem:[%s220] sm:$0xff] %vm516, %v593
        %596 = vst.msk [vmem:[%s220 + $0x8] sm:$0xff] %vm516, %v594
      $region40: #{base_unet_forward.14} parent=31 // pred_fallthru
        _
      %p597 = scmp.lt.s32.totalorder %s18, 1
      %s598 = scalar_select %p597, %s18, 1
      %s599 = smul.addr %s598, 2
      %s600 = smul.addr %s599, 8
      %s601 = scalar_lea.vmem %s3, %s600
      // Predicated region
      $region41: #{base_unet_forward.14} parent=31 // pred_check
        %p602 = pneg %p119
      $region42: #{base_unet_forward.14} parent=31 // pred_check_branch
        %604 = sbr.rel (%p602) target = $region44
      $region43: #{base_unet_forward.14} parent=31 // pred_region
        _
      $region44: #{base_unet_forward.14} parent=31 // pred_fallthru
        _
    $region32: #{base_unet_forward.14} parent=5 // pred_fallthru
      _
    %p605 = scmp.le.s32.totalorder 2, %s9
    // Predicated region
    $region45: #{base_unet_forward.14} parent=5 // pred_check
      %p606 = pneg %p605
    $region46: #{base_unet_forward.14} parent=5 // pred_check_branch
      %608 = sbr.rel (%p606) target = $region48
    $region47: #{base_unet_forward.14} parent=5 // pred_region
      %s609 = ssub.s32 %s9, 2
      // Predicated region
      $region49: #{base_unet_forward.14} parent=47 // pred_check
        %p610 = pneg %p125
      $region50: #{base_unet_forward.14} parent=47 // pred_check_branch
        %612 = sbr.rel (%p610) target = $region52
      $region51: #{base_unet_forward.14} parent=47 // pred_region
        %p613 = scmp.lt.s32.totalorder %s20, 1
        %s614 = scalar_select %p613, %s20, 1
        %s615 = smul.addr %s614, 2
        %s616 = smul.addr %s615, 8
        %s617 = scalar_lea.vmem %s3, %s616
      $region52: #{base_unet_forward.14} parent=47 // pred_fallthru
        _
    $region48: #{base_unet_forward.14} parent=5 // pred_fallthru
      _
  $region6: #{base_unet_forward.14} parent=0 // loop_footer
    %s13 = sadd.s32 1, %s9
  $region7: #{base_unet_forward.14} parent=0 // loop_footer_branch
    %8 = sbr.rel target = $region3
  $region8: #{base_unet_forward.14} parent=0 // loop_exit
    _

// kernel: base_unet_forward.15
$region0: #{base_unet_forward.15}
  #allocation0 [shape = 'u32[]', space=smem, size = 0x4, offset = 0x4, fixed_abs, tag = 'smem constant byte address 0x4 - core index']
  #allocation1 [shape = 'u32[72,128]{1,0:T(1,128)}', space=vmem, size = 0x9000, scoped, tag = 'internal scratch']
  #allocation2 [shape = 'f32[16,1]{1,0:T(8,128)}', space=vmem, size = 0x2000, scoped, tag = 'scratch operand']
  %s0 = inlined_call_operand.vmem [shape: bf16[2,400,1], index: 0, kind: input, shape index: {}]
  %s1 = inlined_call_operand.vmem [shape: bf16[16,400], index: 1, kind: input, shape index: {}]
  %s2 = inlined_call_operand.vmem [shape: f32[16,1], index: 2, kind: input, shape index: {}]
  %s3 = inlined_call_operand.vmem [shape: f32[2,16,1], index: 3, kind: output, shape index: {}]
  %s4 = sld [smem:[#allocation0]]
  $region53: #{base_unet_forward.15} parent=0
    _
  %s6 = ssub.s32 1, %s4
  %s7 = scalar_select 0, %s6, %s4
  loop: start=0, step=1, limit=4
  $region2: #{base_unet_forward.15} parent=0 // loop_pre_header
    _
  $region3: #{base_unet_forward.15} parent=0 // loop_header
    %s9 = sphi 0, %s13
    %p10 = scmp.ge.s32.totalorder %s9, 4
    %s16 = sphi 0, %s28
    %s17 = sphi 0, %s24
    %s18 = sphi 0, %s16
    %s19 = sphi 0, %s17
    %s20 = sphi 0, %s18
    %s21 = sphi 0, %s19
    %s33 = sphi 0, %s35
    %s36 = sphi 0, %s33
    %s37 = sphi 0, %s36
    %s53 = sphi 0, %s37
    %s59 = sphi 0, %s61
    %s62 = sphi 0, %s59
    %s63 = sphi 0, %s62
    %s79 = sphi 0, %s63
    %s83 = sphi 0, %s83
    %s85 = sphi 0, %s83
    %s86 = sphi 0, %s85
    %s100 = sphi 0, %s86
    %s106 = sphi 0, %s108
    %s109 = sphi 0, %s106
    %s110 = sphi 0, %s109
    %s126 = sphi 0, %s110
  $region4: #{base_unet_forward.15} parent=0 // loop_header_branch
    %12 = sbr.rel (%p10) target = $region8
  $region5: #{base_unet_forward.15} parent=0 // loop_body
    %s14 = ssub.s32 %s9, 1
    %s15 = ssub.s32 %s9, 2
    %s22 = sadd.s32 1, %s17
    %p23 = scmp.ge.s32.totalorder %s22, 1
    %s24 = scalar_select %p23, 0, %s22
    %s25 = sadd.s32 1, %s16
    %s26 = scalar_select %p23, %s25, %s16
    %p27 = scmp.ge.s32.totalorder %s26, 2
    %s28 = scalar_select %p27, 0, %s26
    %s29 = ssub.s32 %s16, %s28
    %s30 = ssub.s32 %s17, %s24
    %s31 = sor.u32 %s29, %s30
    %p32 = scmp.eq.s32.totalorder %s31, 0
    %s34 = sadd.s32 %s33, 1
    %s35 = scalar_select %p32, %s33, %s34
    %p38 = pneg %p32
    %p39 = scmp.eq.s32.totalorder %s9, 1
    %p40 = por %p38, %p39
    %p41 = scmp.ne.s32.totalorder %s33, %s36
    %p42 = scmp.eq.s32.totalorder %s9, 0
    %p43 = por %p41, %p42
    %p44 = scmp.ne.s32.totalorder %s33, %s36
    %p45 = scmp.eq.s32.totalorder %s14, 1
    %p46 = por %p44, %p45
    %p47 = scmp.ne.s32.totalorder %s36, %s37
    %p48 = scmp.eq.s32.totalorder %s14, 0
    %p49 = por %p47, %p48
    %p50 = scmp.ne.s32.totalorder %s36, %s37
    %p51 = scmp.eq.s32.totalorder %s15, 1
    %p52 = por %p50, %p51
    %p54 = scmp.ne.s32.totalorder %s37, %s53
    %p55 = scmp.eq.s32.totalorder %s15, 0
    %p56 = por %p54, %p55
    %s57 = ssub.s32 %s17, %s24
    %p58 = scmp.eq.s32.totalorder %s57, 0
    %s60 = sadd.s32 %s59, 1
    %s61 = scalar_select %p58, %s59, %s60
    %p64 = pneg %p58
    %p65 = scmp.eq.s32.totalorder %s9, 1
    %p66 = por %p64, %p65
    %p67 = scmp.ne.s32.totalorder %s59, %s62
    %p68 = scmp.eq.s32.totalorder %s9, 0
    %p69 = por %p67, %p68
    %p70 = scmp.ne.s32.totalorder %s59, %s62
    %p71 = scmp.eq.s32.totalorder %s14, 1
    %p72 = por %p70, %p71
    %p73 = scmp.ne.s32.totalorder %s62, %s63
    %p74 = scmp.eq.s32.totalorder %s14, 0
    %p75 = por %p73, %p74
    %p76 = scmp.ne.s32.totalorder %s62, %s63
    %p77 = scmp.eq.s32.totalorder %s15, 1
    %p78 = por %p76, %p77
    %p80 = scmp.ne.s32.totalorder %s63, %s79
    %p81 = scmp.eq.s32.totalorder %s15, 0
    %p82 = por %p80, %p81
    %s84 = sadd.s32 %s83, 1
    %p87 = scmp.eq.s32.totalorder %s9, 1
    %p88 = scmp.ne.s32.totalorder %s83, %s85
    %p89 = scmp.eq.s32.totalorder %s9, 0
    %p90 = por %p88, %p89
    %p91 = scmp.ne.s32.totalorder %s83, %s85
    %p92 = scmp.eq.s32.totalorder %s14, 1
    %p93 = por %p91, %p92
    %p94 = scmp.ne.s32.totalorder %s85, %s86
    %p95 = scmp.eq.s32.totalorder %s14, 0
    %p96 = por %p94, %p95
    %p97 = scmp.ne.s32.totalorder %s85, %s86
    %p98 = scmp.eq.s32.totalorder %s15, 1
    %p99 = por %p97, %p98
    %p101 = scmp.ne.s32.totalorder %s86, %s100
    %p102 = scmp.eq.s32.totalorder %s15, 0
    %p103 = por %p101, %p102
    %s104 = ssub.s32 %s16, %s28
    %p105 = scmp.eq.s32.totalorder %s104, 0
    %s107 = sadd.s32 %s106, 1
    %s108 = scalar_select %p105, %s106, %s107
    %p111 = pneg %p105
    %p112 = scmp.eq.s32.totalorder %s9, 1
    %p113 = por %p111, %p112
    %p114 = scmp.ne.s32.totalorder %s106, %s109
    %p115 = scmp.eq.s32.totalorder %s9, 0
    %p116 = por %p114, %p115
    %p117 = scmp.ne.s32.totalorder %s106, %s109
    %p118 = scmp.eq.s32.totalorder %s14, 1
    %p119 = por %p117, %p118
    %p120 = scmp.ne.s32.totalorder %s109, %s110
    %p121 = scmp.eq.s32.totalorder %s14, 0
    %p122 = por %p120, %p121
    %p123 = scmp.ne.s32.totalorder %s109, %s110
    %p124 = scmp.eq.s32.totalorder %s15, 1
    %p125 = por %p123, %p124
    %p127 = scmp.ne.s32.totalorder %s110, %s126
    %p128 = scmp.eq.s32.totalorder %s15, 0
    %p129 = por %p127, %p128
    %p130 = scmp.le.s32.totalorder 1, %s9
    %p131 = scmp.lt.s32.totalorder %s9, 3
    %p132 = pnand %p130, %p131
    %p133 = pneg %p132
    // Predicated region
    $region9: #{base_unet_forward.15} parent=5 // pred_check
      _
    $region10: #{base_unet_forward.15} parent=5 // pred_check_branch
      %135 = sbr.rel (%p132) target = $region12
    $region11: #{base_unet_forward.15} parent=5 // pred_region
      %s136 = ssub.s32 %s9, 1
      // Predicated region
      $region13: #{base_unet_forward.15} parent=11 // pred_check
        %p137 = pneg %p75
      $region14: #{base_unet_forward.15} parent=11 // pred_check_branch
        %139 = sbr.rel (%p137) target = $region16
      $region15: #{base_unet_forward.15} parent=11 // pred_region
        %s140 = smul.u32 4, %s19
        %p141 = scmp.lt.s32.totalorder %s140, 3
        %s142 = scalar_select %p141, %s140, 3
        %s143 = smul.addr %s142, 4
        %s144 = scalar_lea.vmem %s1, %s143
        %s145 = smul.u32 4, %s19
      $region16: #{base_unet_forward.15} parent=11 // pred_fallthru
        _
      // Predicated region
      $region17: #{base_unet_forward.15} parent=11 // pred_check
        %p146 = pneg %p96
      $region18: #{base_unet_forward.15} parent=11 // pred_check_branch
        %148 = sbr.rel (%p146) target = $region20
      $region19: #{base_unet_forward.15} parent=11 // pred_region
        _
      $region20: #{base_unet_forward.15} parent=11 // pred_fallthru
        _
    $region12: #{base_unet_forward.15} parent=5 // pred_fallthru
      _
    %p149 = scmp.lt.s32.totalorder %s9, 2
    // Predicated region
    $region21: #{base_unet_forward.15} parent=5 // pred_check
      %p150 = pneg %p149
    $region22: #{base_unet_forward.15} parent=5 // pred_check_branch
      %152 = sbr.rel (%p150) target = $region24
    $region23: #{base_unet_forward.15} parent=5 // pred_region
      // Predicated region
      $region25: #{base_unet_forward.15} parent=23 // pred_check
        %p153 = pneg %p43
      $region26: #{base_unet_forward.15} parent=23 // pred_check_branch
        %155 = sbr.rel (%p153) target = $region28
      $region27: #{base_unet_forward.15} parent=23 // pred_region
        %s156 = smul.u32 50, %s17
        %p157 = scmp.lt.s32.totalorder %s16, 1
        %s158 = scalar_select %p157, %s16, 1
        %p159 = scmp.lt.s32.totalorder %s156, 49
        %s160 = scalar_select %p159, %s156, 49
        %s161 = smul.addr %s158, 50
        %s162 = sadd.s32 %s160, %s161
        %s163 = smul.addr %s162, 4
        %s164 = scalar_lea.vmem %s0, %s163
        %s165 = smul.u32 50, %s17
      $region28: #{base_unet_forward.15} parent=23 // pred_fallthru
        _
    $region24: #{base_unet_forward.15} parent=5 // pred_fallthru
      _
    %p166 = scmp.le.s32.totalorder 1, %s9
    %p167 = scmp.lt.s32.totalorder %s9, 3
    %p168 = pnand %p166, %p167
    %p169 = pneg %p168
    // Predicated region
    $region29: #{base_unet_forward.15} parent=5 // pred_check
      _
    $region30: #{base_unet_forward.15} parent=5 // pred_check_branch
      %171 = sbr.rel (%p168) target = $region32
    $region31: #{base_unet_forward.15} parent=5 // pred_region
      %s172 = ssub.s32 %s9, 1
      %s173 = smul.u32 50, %s19
      %p174 = scmp.lt.s32.totalorder %s18, 1
      %s175 = scalar_select %p174, %s18, 1
      %p176 = scmp.lt.s32.totalorder %s173, 49
      %s177 = scalar_select %p176, %s173, 49
      %s178 = smul.addr %s175, 50
      %s179 = sadd.s32 %s177, %s178
      %s180 = smul.addr %s179, 4
      %s181 = scalar_lea.vmem %s0, %s180
      %p182 = pneg %p49
      %p183 = pneg %p46
      %s184 = smul.u32 4, %s19
      %p185 = scmp.lt.s32.totalorder %s184, 3
      %s186 = scalar_select %p185, %s184, 3
      %s187 = smul.addr %s186, 4
      %s188 = scalar_lea.vmem %s1, %s187
      %p189 = pneg %p75
      %p190 = pneg %p72
      %p191 = pneg %p96
      %p192 = pneg %p93
      %p193 = pneg %p122
      %p194 = pneg %p119
      %p195 = scmp.lt.s32.totalorder %s18, 1
      %s196 = scalar_select %p195, %s18, 1
      %s197 = smul.addr %s196, 2
      %s198 = smul.addr %s197, 8
      %s199 = scalar_lea.vmem %s3, %s198
      %s200 = smul.u32 50, %s19
      %p201 = scmp.lt.s32.totalorder %s18, 1
      %s202 = scalar_select %p201, %s18, 1
      %p203 = scmp.lt.s32.totalorder %s200, 49
      %s204 = scalar_select %p203, %s200, 49
      %s205 = smul.addr %s202, 50
      %s206 = sadd.s32 %s204, %s205
      %s207 = smul.addr %s206, 4
      %s208 = scalar_lea.vmem %s0, %s207
      %s209 = smul.u32 50, %s19
      %s210 = smul.u32 4, %s19
      %p211 = scmp.lt.s32.totalorder %s210, 3
      %s212 = scalar_select %p211, %s210, 3
      %s213 = smul.addr %s212, 4
      %s214 = scalar_lea.vmem %s1, %s213
      %s215 = smul.u32 4, %s19
      %p216 = scmp.lt.s32.totalorder %s18, 1
      %s217 = scalar_select %p216, %s18, 1
      %s218 = smul.addr %s217, 2
      %s219 = smul.addr %s218, 8
      %s220 = scalar_lea.vmem %s3, %s219
      %p222 = scmp.eq.s32.totalorder %s19, 0
      // Predicated region
      $region33: #{base_unet_forward.15} parent=31 // pred_check
        %p223 = pneg %p222
      $region34: #{base_unet_forward.15} parent=31 // pred_check_branch
        %225 = sbr.rel (%p223) target = $region36
      $region35: #{base_unet_forward.15} parent=31 // pred_region
        %vm226 = vcmask 7168
        %227 = vst.msk [vmem:[#allocation2] sm:$0xff] %vm226, 0.0
        %228 = vst.msk [vmem:[#allocation2 + $0x8] sm:$0xff] %vm226, 0.0
      $region36: #{base_unet_forward.15} parent=31 // pred_fallthru
        _
      %v229 = vld [vmem:[#allocation2] sm:$0xff]
      %v230 = vld [vmem:[#allocation2 + $0x8] sm:$0xff]
      %v231 = vld [vmem:[%s214] sm:$0xff]
      %v232 = vld [vmem:[%s214 + $0x8] sm:$0xff]
      %v233 = vld [vmem:[%s214 + $0x10] sm:$0xff]
      %v234 = vld [vmem:[%s214 + $0x18] sm:$0xff]
      %v235 = vld [vmem:[%s208] sm:$0xf]
      %v236 = vld [vmem:[%s208 + $0x4] sm:$0xf]
      %v237 = vld [vmem:[%s208 + $0x8] sm:$0xf]
      %v238 = vld [vmem:[%s208 + $0xc] sm:$0xf]
      %v239 = vld [vmem:[%s208 + $0x10] sm:$0xf]
      %v240 = vld [vmem:[%s208 + $0x14] sm:$0xf]
      %v241 = vld [vmem:[%s208 + $0x18] sm:$0xf]
      %v242 = vld [vmem:[%s208 + $0x1c] sm:$0xf]
      %v243 = vld [vmem:[%s208 + $0x20] sm:$0xf]
      %v244 = vld [vmem:[%s208 + $0x24] sm:$0xf]
      %v245 = vld [vmem:[%s208 + $0x28] sm:$0xf]
      %v246 = vld [vmem:[%s208 + $0x2c] sm:$0xf]
      %v247 = vld [vmem:[%s208 + $0x30] sm:$0xf]
      %v248 = vld [vmem:[%s208 + $0x34] sm:$0xf]
      %v249 = vld [vmem:[%s208 + $0x38] sm:$0xf]
      %v250 = vld [vmem:[%s208 + $0x3c] sm:$0xf]
      %v251 = vld [vmem:[%s208 + $0x40] sm:$0xf]
      %v252 = vld [vmem:[%s208 + $0x44] sm:$0xf]
      %v253 = vld [vmem:[%s208 + $0x48] sm:$0xf]
      %v254 = vld [vmem:[%s208 + $0x4c] sm:$0xf]
      %v255 = vld [vmem:[%s208 + $0x50] sm:$0xf]
      %v256 = vld [vmem:[%s208 + $0x54] sm:$0xf]
      %v257 = vld [vmem:[%s208 + $0x58] sm:$0xf]
      %v258 = vld [vmem:[%s208 + $0x5c] sm:$0xf]
      %v259 = vld [vmem:[%s208 + $0x60] sm:$0xf]
      %v260 = vld [vmem:[%s208 + $0x64] sm:$0xf]
      %v261 = vld [vmem:[%s208 + $0x68] sm:$0xf]
      %v262 = vld [vmem:[%s208 + $0x6c] sm:$0xf]
      %v263 = vld [vmem:[%s208 + $0x70] sm:$0xf]
      %v264 = vld [vmem:[%s208 + $0x74] sm:$0xf]
      %v265 = vld [vmem:[%s208 + $0x78] sm:$0xf]
      %v266 = vld [vmem:[%s208 + $0x7c] sm:$0xf]
      %v267 = vld [vmem:[%s208 + $0x80] sm:$0xf]
      %v268 = vld [vmem:[%s208 + $0x84] sm:$0xf]
      %v269 = vld [vmem:[%s208 + $0x88] sm:$0xf]
      %v270 = vld [vmem:[%s208 + $0x8c] sm:$0xf]
      %v271 = vld [vmem:[%s208 + $0x90] sm:$0xf]
      %v272 = vld [vmem:[%s208 + $0x94] sm:$0xf]
      %v273 = vld [vmem:[%s208 + $0x98] sm:$0xf]
      %v274 = vld [vmem:[%s208 + $0x9c] sm:$0xf]
      %v275 = vld [vmem:[%s208 + $0xa0] sm:$0xf]
      %v276 = vld [vmem:[%s208 + $0xa4] sm:$0xf]
      %v277 = vld [vmem:[%s208 + $0xa8] sm:$0xf]
      %v278 = vld [vmem:[%s208 + $0xac] sm:$0xf]
      %v279 = vld [vmem:[%s208 + $0xb0] sm:$0xf]
      %v280 = vld [vmem:[%s208 + $0xb4] sm:$0xf]
      %v281 = vld [vmem:[%s208 + $0xb8] sm:$0xf]
      %v282 = vld [vmem:[%s208 + $0xbc] sm:$0xf]
      %v283 = vld [vmem:[%s208 + $0xc0] sm:$0xf]
      %v284 = vld [vmem:[%s208 + $0xc4] sm:$0xf]
      %v289 = vunpack.c.l.b16 %v231
      %v290 = vunpack.c.h.b16 %v231
      %v291 = vunpack.c.l.b16 %v232
      %v292 = vunpack.c.h.b16 %v232
      %v293 = vunpack.c.l.b16 %v233
      %v294 = vunpack.c.h.b16 %v233
      %v295 = vunpack.c.l.b16 %v234
      %v296 = vunpack.c.h.b16 %v234
      %v297 = vpack.c.b16 %v293, %v289
      %v298 = vpack.c.b16 %v294, %v290
      %v299 = vpack.c.b16 %v295, %v291
      %v300 = vpack.c.b16 %v296, %v292
      %v354 = vunpack.c.l.b16 %v235
      %v355 = vunpack.c.l.b16 %v236
      %v356 = vunpack.c.l.b16 %v237
      %v357 = vunpack.c.l.b16 %v238
      %v358 = vunpack.c.l.b16 %v239
      %v359 = vunpack.c.l.b16 %v240
      %v360 = vunpack.c.l.b16 %v241
      %v361 = vunpack.c.l.b16 %v242
      %v362 = vunpack.c.l.b16 %v243
      %v363 = vunpack.c.l.b16 %v244
      %v364 = vunpack.c.l.b16 %v245
      %v365 = vunpack.c.l.b16 %v246
      %v366 = vunpack.c.l.b16 %v247
      %v367 = vunpack.c.l.b16 %v248
      %v368 = vunpack.c.l.b16 %v249
      %v369 = vunpack.c.l.b16 %v250
      %v370 = vunpack.c.l.b16 %v251
      %v371 = vunpack.c.l.b16 %v252
      %v372 = vunpack.c.l.b16 %v253
      %v373 = vunpack.c.l.b16 %v254
      %v374 = vunpack.c.l.b16 %v255
      %v375 = vunpack.c.l.b16 %v256
      %v376 = vunpack.c.l.b16 %v257
      %v377 = vunpack.c.l.b16 %v258
      %v378 = vunpack.c.l.b16 %v259
      %v379 = vunpack.c.l.b16 %v260
      %v380 = vunpack.c.l.b16 %v261
      %v381 = vunpack.c.l.b16 %v262
      %v382 = vunpack.c.l.b16 %v263
      %v383 = vunpack.c.l.b16 %v264
      %v384 = vunpack.c.l.b16 %v265
      %v385 = vunpack.c.l.b16 %v266
      %v386 = vunpack.c.l.b16 %v267
      %v387 = vunpack.c.l.b16 %v268
      %v388 = vunpack.c.l.b16 %v269
      %v389 = vunpack.c.l.b16 %v270
      %v390 = vunpack.c.l.b16 %v271
      %v391 = vunpack.c.l.b16 %v272
      %v392 = vunpack.c.l.b16 %v273
      %v393 = vunpack.c.l.b16 %v274
      %v394 = vunpack.c.l.b16 %v275
      %v395 = vunpack.c.l.b16 %v276
      %v396 = vunpack.c.l.b16 %v277
      %v397 = vunpack.c.l.b16 %v278
      %v398 = vunpack.c.l.b16 %v279
      %v399 = vunpack.c.l.b16 %v280
      %v400 = vunpack.c.l.b16 %v281
      %v401 = vunpack.c.l.b16 %v282
      %v402 = vunpack.c.l.b16 %v283
      %v403 = vunpack.c.l.b16 %v284
      %v404 = vpack.c.b16 %v355, %v354
      %v405 = vpack.c.b16 %v357, %v356
      %v406 = vpack.c.b16 %v359, %v358
      %v407 = vpack.c.b16 %v361, %v360
      %v408 = vpack.c.b16 %v363, %v362
      %v409 = vpack.c.b16 %v365, %v364
      %v410 = vpack.c.b16 %v367, %v366
      %v411 = vpack.c.b16 %v369, %v368
      %v412 = vpack.c.b16 %v371, %v370
      %v413 = vpack.c.b16 %v373, %v372
      %v414 = vpack.c.b16 %v375, %v374
      %v415 = vpack.c.b16 %v377, %v376
      %v416 = vpack.c.b16 %v379, %v378
      %v417 = vpack.c.b16 %v381, %v380
      %v418 = vpack.c.b16 %v383, %v382
      %v419 = vpack.c.b16 %v385, %v384
      %v420 = vpack.c.b16 %v387, %v386
      %v421 = vpack.c.b16 %v389, %v388
      %v422 = vpack.c.b16 %v391, %v390
      %v423 = vpack.c.b16 %v393, %v392
      %v424 = vpack.c.b16 %v395, %v394
      %v425 = vpack.c.b16 %v397, %v396
      %v426 = vpack.c.b16 %v399, %v398
      %v427 = vpack.c.b16 %v401, %v400
      %v428 = vpack.c.b16 %v403, %v402
      %vm454 = vcmask 130048
      %v456 = vsel %vm454, %v300, 0
      %458 = vmatpush.bf16.msra.mxu0 %v411
      %459 = vmatpush.bf16.msra.mxu0 %v410
      %460 = vmatpush.bf16.msra.mxu0 %v409
      %461 = vmatpush.bf16.msra.mxu0 %v408
      %462 = vmatpush.bf16.msra.mxu0 %v407
      %463 = vmatpush.bf16.msra.mxu0 %v406
      %464 = vmatpush.bf16.msra.mxu0 %v405
      %465 = vmatpush.bf16.msra.mxu0 %v404
      %466 = vmatmul.bf16.gmra.mxu0 %v297
      %v467 = vpop.f32.mrf.mxu0
      %v468 = vadd.f32 0.0, %v467
      %v469 = vpop.f32.mrf.mxu0
      %v470 = vadd.f32 0.0, %v469
      %471 = vdwg.mxu0
      %472 = vmatpush.bf16.msra.mxu0 %v419
      %473 = vmatpush.bf16.msra.mxu0 %v418
      %474 = vmatpush.bf16.msra.mxu0 %v417
      %475 = vmatpush.bf16.msra.mxu0 %v416
      %476 = vmatpush.bf16.msra.mxu0 %v415
      %477 = vmatpush.bf16.msra.mxu0 %v414
      %478 = vmatpush.bf16.msra.mxu0 %v413
      %479 = vmatpush.bf16.msra.mxu0 %v412
      %480 = vmatmul.bf16.gmra.mxu0 %v298
      %v481 = vpop.f32.mrf.mxu0
      %v482 = vadd.f32 %v468, %v481
      %v483 = vpop.f32.mrf.mxu0
      %v484 = vadd.f32 %v470, %v483
      %485 = vdwg.mxu0
      %486 = vmatpush.bf16.msra.mxu0 %v427
      %487 = vmatpush.bf16.msra.mxu0 %v426
      %488 = vmatpush.bf16.msra.mxu0 %v425
      %489 = vmatpush.bf16.msra.mxu0 %v424
      %490 = vmatpush.bf16.msra.mxu0 %v423
      %491 = vmatpush.bf16.msra.mxu0 %v422
      %492 = vmatpush.bf16.msra.mxu0 %v421
      %493 = vmatpush.bf16.msra.mxu0 %v420
      %494 = vmatmul.bf16.gmra.mxu0 %v299
      %v495 = vpop.f32.mrf.mxu0
      %v496 = vadd.f32 %v482, %v495
      %v497 = vpop.f32.mrf.mxu0
      %v498 = vadd.f32 %v484, %v497
      %499 = vdwg.mxu0
      %500 = vmatpush.bf16.msra.mxu0 0
      %501 = vmatpush.bf16.msra.mxu0 0
      %502 = vmatpush.bf16.msra.mxu0 0
      %503 = vmatpush.bf16.msra.mxu0 0
      %504 = vmatpush.bf16.msra.mxu0 0
      %505 = vmatpush.bf16.msra.mxu0 0
      %506 = vmatpush.bf16.msra.mxu0 0
      %507 = vmatpush.bf16.msra.mxu0 %v428
      %508 = vmatmul.bf16.gmra.mxu0 %v456
      %v509 = vpop.f32.mrf.mxu0
      %v510 = vadd.f32 %v496, %v509
      %v511 = vpop.f32.mrf.mxu0
      %v512 = vadd.f32 %v498, %v511
      %513 = vdwg.mxu0
      %v514 = vadd.f32 %v229, %v510
      %v515 = vadd.f32 %v230, %v512
      %vm516 = vcmask 7168
      %517 = vst.msk [vmem:[#allocation2] sm:$0xff] %vm516, %v514
      %518 = vst.msk [vmem:[#allocation2 + $0x8] sm:$0xff] %vm516, %v515
      // Predicated region
      $region37: #{base_unet_forward.15} parent=31 // pred_check
        %p519 = pneg %p222
      $region38: #{base_unet_forward.15} parent=31 // pred_check_branch
        %521 = sbr.rel (%p519) target = $region40
      $region39: #{base_unet_forward.15} parent=31 // pred_region
        %v522 = vld [vmem:[#allocation2] sm:$0xff]
        %v523 = vld [vmem:[#allocation2 + $0x8] sm:$0xff]
        %v524 = vld [vmem:[%s2] sm:$0xff]
        %v525 = vld [vmem:[%s2 + $0x8] sm:$0xff]
        %v526 = vadd.f32 %v522, %v524
        %v527 = vadd.f32 %v523, %v525
        %vm528 = vcmp.ge.f32.partialorder %v526, 0.0
        %vm529 = vcmp.ge.f32.partialorder %v527, 0.0
        %v530 = vmul.f32 %v526, 0.01
        %v531 = vmul.f32 %v527, 0.01
        %v532 = vsel %vm528, %v526, %v530
        %v533 = vsel %vm529, %v527, %v531
        %534 = vst.msk [vmem:[%s220] sm:$0xff] %vm516, %v532
        %535 = vst.msk [vmem:[%s220 + $0x8] sm:$0xff] %vm516, %v533
      $region40: #{base_unet_forward.15} parent=31 // pred_fallthru
        _
      %p536 = scmp.lt.s32.totalorder %s18, 1
      %s537 = scalar_select %p536, %s18, 1
      %s538 = smul.addr %s537, 2
      %s539 = smul.addr %s538, 8
      %s540 = scalar_lea.vmem %s3, %s539
      // Predicated region
      $region41: #{base_unet_forward.15} parent=31 // pred_check
        %p541 = pneg %p119
      $region42: #{base_unet_forward.15} parent=31 // pred_check_branch
        %543 = sbr.rel (%p541) target = $region44
      $region43: #{base_unet_forward.15} parent=31 // pred_region
        _
      $region44: #{base_unet_forward.15} parent=31 // pred_fallthru
        _
    $region32: #{base_unet_forward.15} parent=5 // pred_fallthru
      _
    %p544 = scmp.le.s32.totalorder 2, %s9
    // Predicated region
    $region45: #{base_unet_forward.15} parent=5 // pred_check
      %p545 = pneg %p544
    $region46: #{base_unet_forward.15} parent=5 // pred_check_branch
      %547 = sbr.rel (%p545) target = $region48
    $region47: #{base_unet_forward.15} parent=5 // pred_region
      %s548 = ssub.s32 %s9, 2
      // Predicated region
      $region49: #{base_unet_forward.15} parent=47 // pred_check
        %p549 = pneg %p125
      $region50: #{base_unet_forward.15} parent=47 // pred_check_branch
        %551 = sbr.rel (%p549) target = $region52
      $region51: #{base_unet_forward.15} parent=47 // pred_region
        %p552 = scmp.lt.s32.totalorder %s20, 1
        %s553 = scalar_select %p552, %s20, 1
        %s554 = smul.addr %s553, 2
        %s555 = smul.addr %s554, 8
        %s556 = scalar_lea.vmem %s3, %s555
      $region52: #{base_unet_forward.15} parent=47 // pred_fallthru
        _
    $region48: #{base_unet_forward.15} parent=5 // pred_fallthru
      _
  $region6: #{base_unet_forward.15} parent=0 // loop_footer
    %s13 = sadd.s32 1, %s9
  $region7: #{base_unet_forward.15} parent=0 // loop_footer_branch
    %8 = sbr.rel target = $region3
  $region8: #{base_unet_forward.15} parent=0 // loop_exit
    _

// kernel: base_unet_forward.16
$region0: #{base_unet_forward.16}
  #allocation0 [shape = 'u32[]', space=smem, size = 0x4, offset = 0x4, fixed_abs, tag = 'smem constant byte address 0x4 - core index']
  #allocation1 [shape = 'u32[72,128]{1,0:T(1,128)}', space=vmem, size = 0x9000, scoped, tag = 'internal scratch']
  %s0 = inlined_call_operand.vmem [shape: bf16[2,4,144,1], index: 0, kind: input, shape index: {}]
  %s1 = inlined_call_operand.vmem [shape: bf16[4,16,144], index: 1, kind: input, shape index: {}]
  %s2 = inlined_call_operand.vmem [shape: f32[16,1], index: 2, kind: input, shape index: {}]
  %s3 = inlined_call_operand.vmem [shape: f32[2,4,16,1], index: 3, kind: output, shape index: {}]
  %s4 = sld [smem:[#allocation0]]
  $region45: #{base_unet_forward.16} parent=0
    _
  %s6 = ssub.s32 1, %s4
  %s7 = scalar_select 0, %s6, %s4
  loop: start=0, step=1, limit=4
  $region2: #{base_unet_forward.16} parent=0 // loop_pre_header
    _
  $region3: #{base_unet_forward.16} parent=0 // loop_header
    %s9 = sphi 0, %s13
    %p10 = scmp.ge.s32.totalorder %s9, 4
    %s19 = sphi 0, %s21
    %s22 = sphi 0, %s19
    %s23 = sphi 0, %s22
    %s39 = sphi 0, %s23
    %s43 = sphi 0, %s43
    %s45 = sphi 0, %s43
    %s46 = sphi 0, %s45
    %s60 = sphi 0, %s46
    %s64 = sphi 0, %s64
    %s66 = sphi 0, %s64
    %s67 = sphi 0, %s66
    %s81 = sphi 0, %s67
    %s87 = sphi 0, %s89
    %s90 = sphi 0, %s87
    %s91 = sphi 0, %s90
    %s107 = sphi 0, %s91
  $region4: #{base_unet_forward.16} parent=0 // loop_header_branch
    %12 = sbr.rel (%p10) target = $region8
  $region5: #{base_unet_forward.16} parent=0 // loop_body
    %s14 = ssub.s32 %s9, 1
    %s15 = ssub.s32 %s9, 2
    %s16 = sadd.s32 %s9, 1
    %s17 = ssub.s32 %s9, %s16
    %p18 = scmp.eq.s32.totalorder %s17, 0
    %s20 = sadd.s32 %s19, 1
    %s21 = scalar_select %p18, %s19, %s20
    %p24 = pneg %p18
    %p25 = scmp.eq.s32.totalorder %s9, 1
    %p26 = por %p24, %p25
    %p27 = scmp.ne.s32.totalorder %s19, %s22
    %p28 = scmp.eq.s32.totalorder %s9, 0
    %p29 = por %p27, %p28
    %p30 = scmp.ne.s32.totalorder %s19, %s22
    %p31 = scmp.eq.s32.totalorder %s14, 1
    %p32 = por %p30, %p31
    %p33 = scmp.ne.s32.totalorder %s22, %s23
    %p34 = scmp.eq.s32.totalorder %s14, 0
    %p35 = por %p33, %p34
    %p36 = scmp.ne.s32.totalorder %s22, %s23
    %p37 = scmp.eq.s32.totalorder %s15, 1
    %p38 = por %p36, %p37
    %p40 = scmp.ne.s32.totalorder %s23, %s39
    %p41 = scmp.eq.s32.totalorder %s15, 0
    %p42 = por %p40, %p41
    %s44 = sadd.s32 %s43, 1
    %p47 = scmp.eq.s32.totalorder %s9, 1
    %p48 = scmp.ne.s32.totalorder %s43, %s45
    %p49 = scmp.eq.s32.totalorder %s9, 0
    %p50 = por %p48, %p49
    %p51 = scmp.ne.s32.totalorder %s43, %s45
    %p52 = scmp.eq.s32.totalorder %s14, 1
    %p53 = por %p51, %p52
    %p54 = scmp.ne.s32.totalorder %s45, %s46
    %p55 = scmp.eq.s32.totalorder %s14, 0
    %p56 = por %p54, %p55
    %p57 = scmp.ne.s32.totalorder %s45, %s46
    %p58 = scmp.eq.s32.totalorder %s15, 1
    %p59 = por %p57, %p58
    %p61 = scmp.ne.s32.totalorder %s46, %s60
    %p62 = scmp.eq.s32.totalorder %s15, 0
    %p63 = por %p61, %p62
    %s65 = sadd.s32 %s64, 1
    %p68 = scmp.eq.s32.totalorder %s9, 1
    %p69 = scmp.ne.s32.totalorder %s64, %s66
    %p70 = scmp.eq.s32.totalorder %s9, 0
    %p71 = por %p69, %p70
    %p72 = scmp.ne.s32.totalorder %s64, %s66
    %p73 = scmp.eq.s32.totalorder %s14, 1
    %p74 = por %p72, %p73
    %p75 = scmp.ne.s32.totalorder %s66, %s67
    %p76 = scmp.eq.s32.totalorder %s14, 0
    %p77 = por %p75, %p76
    %p78 = scmp.ne.s32.totalorder %s66, %s67
    %p79 = scmp.eq.s32.totalorder %s15, 1
    %p80 = por %p78, %p79
    %p82 = scmp.ne.s32.totalorder %s67, %s81
    %p83 = scmp.eq.s32.totalorder %s15, 0
    %p84 = por %p82, %p83
    %s85 = ssub.s32 %s9, %s16
    %p86 = scmp.eq.s32.totalorder %s85, 0
    %s88 = sadd.s32 %s87, 1
    %s89 = scalar_select %p86, %s87, %s88
    %p92 = pneg %p86
    %p93 = scmp.eq.s32.totalorder %s9, 1
    %p94 = por %p92, %p93
    %p95 = scmp.ne.s32.totalorder %s87, %s90
    %p96 = scmp.eq.s32.totalorder %s9, 0
    %p97 = por %p95, %p96
    %p98 = scmp.ne.s32.totalorder %s87, %s90
    %p99 = scmp.eq.s32.totalorder %s14, 1
    %p100 = por %p98, %p99
    %p101 = scmp.ne.s32.totalorder %s90, %s91
    %p102 = scmp.eq.s32.totalorder %s14, 0
    %p103 = por %p101, %p102
    %p104 = scmp.ne.s32.totalorder %s90, %s91
    %p105 = scmp.eq.s32.totalorder %s15, 1
    %p106 = por %p104, %p105
    %p108 = scmp.ne.s32.totalorder %s91, %s107
    %p109 = scmp.eq.s32.totalorder %s15, 0
    %p110 = por %p108, %p109
    %p111 = scmp.le.s32.totalorder 1, %s9
    %p112 = scmp.lt.s32.totalorder %s9, 3
    %p113 = pnand %p111, %p112
    %p114 = pneg %p113
    // Predicated region
    $region9: #{base_unet_forward.16} parent=5 // pred_check
      _
    $region10: #{base_unet_forward.16} parent=5 // pred_check_branch
      %116 = sbr.rel (%p113) target = $region12
    $region11: #{base_unet_forward.16} parent=5 // pred_region
      %s117 = ssub.s32 %s9, 1
      // Predicated region
      $region13: #{base_unet_forward.16} parent=11 // pred_check
        %p118 = pneg %p56
      $region14: #{base_unet_forward.16} parent=11 // pred_check_branch
        %120 = sbr.rel (%p118) target = $region16
      $region15: #{base_unet_forward.16} parent=11 // pred_region
        _
      $region16: #{base_unet_forward.16} parent=11 // pred_fallthru
        _
      // Predicated region
      $region17: #{base_unet_forward.16} parent=11 // pred_check
        %p121 = pneg %p77
      $region18: #{base_unet_forward.16} parent=11 // pred_check_branch
        %123 = sbr.rel (%p121) target = $region20
      $region19: #{base_unet_forward.16} parent=11 // pred_region
        _
      $region20: #{base_unet_forward.16} parent=11 // pred_fallthru
        _
    $region12: #{base_unet_forward.16} parent=5 // pred_fallthru
      _
    %p124 = scmp.lt.s32.totalorder %s9, 2
    // Predicated region
    $region21: #{base_unet_forward.16} parent=5 // pred_check
      %p125 = pneg %p124
    $region22: #{base_unet_forward.16} parent=5 // pred_check_branch
      %127 = sbr.rel (%p125) target = $region24
    $region23: #{base_unet_forward.16} parent=5 // pred_region
      // Predicated region
      $region25: #{base_unet_forward.16} parent=23 // pred_check
        %p128 = pneg %p29
      $region26: #{base_unet_forward.16} parent=23 // pred_check_branch
        %130 = sbr.rel (%p128) target = $region28
      $region27: #{base_unet_forward.16} parent=23 // pred_region
        %p131 = scmp.lt.s32.totalorder %s9, 1
        %s132 = scalar_select %p131, %s9, 1
        %s133 = smul.addr %s132, 72
        %s134 = smul.addr %s133, 4
        %s135 = scalar_lea.vmem %s0, %s134
      $region28: #{base_unet_forward.16} parent=23 // pred_fallthru
        _
    $region24: #{base_unet_forward.16} parent=5 // pred_fallthru
      _
    %p136 = scmp.le.s32.totalorder 1, %s9
    %p137 = scmp.lt.s32.totalorder %s9, 3
    %p138 = pnand %p136, %p137
    %p139 = pneg %p138
    // Predicated region
    $region29: #{base_unet_forward.16} parent=5 // pred_check
      _
    $region30: #{base_unet_forward.16} parent=5 // pred_check_branch
      %141 = sbr.rel (%p138) target = $region32
    $region31: #{base_unet_forward.16} parent=5 // pred_region
      %s142 = ssub.s32 %s9, 1
      %p143 = scmp.lt.s32.totalorder %s14, 1
      %s144 = scalar_select %p143, %s14, 1
      %s145 = smul.addr %s144, 72
      %s146 = smul.addr %s145, 4
      %s147 = scalar_lea.vmem %s0, %s146
      %p148 = pneg %p35
      %p149 = pneg %p32
      %p150 = pneg %p56
      %p151 = pneg %p53
      %p152 = pneg %p77
      %p153 = pneg %p74
      %p154 = pneg %p103
      %p155 = pneg %p100
      %p156 = scmp.lt.s32.totalorder %s14, 1
      %s157 = scalar_select %p156, %s14, 1
      %s158 = smul.addr %s157, 8
      %s159 = smul.addr %s158, 8
      %s160 = scalar_lea.vmem %s3, %s159
      %p161 = scmp.lt.s32.totalorder %s14, 1
      %s162 = scalar_select %p161, %s14, 1
      %s163 = smul.addr %s162, 72
      %s164 = smul.addr %s163, 4
      %s165 = scalar_lea.vmem %s0, %s164
      %p166 = scmp.lt.s32.totalorder %s14, 1
      %s167 = scalar_select %p166, %s14, 1
      %s168 = smul.addr %s167, 8
      %s169 = smul.addr %s168, 8
      %s170 = scalar_lea.vmem %s3, %s169
      %v172 = vld [vmem:[%s1] sm:$0xff]
      %v173 = vld [vmem:[%s1 + $0x8] sm:$0xff]
      %v174 = vld [vmem:[%s165] sm:$0xf]
      %v175 = vld [vmem:[%s165 + $0x4] sm:$0xf]
      %v176 = vld [vmem:[%s165 + $0x8] sm:$0xf]
      %v177 = vld [vmem:[%s165 + $0xc] sm:$0xf]
      %v178 = vld [vmem:[%s165 + $0x10] sm:$0xf]
      %v179 = vld [vmem:[%s165 + $0x14] sm:$0xf]
      %v180 = vld [vmem:[%s165 + $0x18] sm:$0xf]
      %v181 = vld [vmem:[%s165 + $0x1c] sm:$0xf]
      %v182 = vld [vmem:[%s165 + $0x20] sm:$0xf]
      %v183 = vld [vmem:[%s165 + $0x24] sm:$0xf]
      %v184 = vld [vmem:[%s165 + $0x28] sm:$0xf]
      %v185 = vld [vmem:[%s165 + $0x2c] sm:$0xf]
      %v186 = vld [vmem:[%s165 + $0x30] sm:$0xf]
      %v187 = vld [vmem:[%s165 + $0x34] sm:$0xf]
      %v188 = vld [vmem:[%s165 + $0x38] sm:$0xf]
      %v189 = vld [vmem:[%s165 + $0x3c] sm:$0xf]
      %v190 = vld [vmem:[%s165 + $0x40] sm:$0xf]
      %v191 = vld [vmem:[%s165 + $0x44] sm:$0xf]
      %v192 = vld [vmem:[%s2] sm:$0xff]
      %v193 = vld [vmem:[%s2 + $0x8] sm:$0xff]
      %v196 = vunpack.c.l.b16 %v172
      %v197 = vunpack.c.h.b16 %v172
      %v198 = vunpack.c.l.b16 %v173
      %v199 = vunpack.c.h.b16 %v173
      %v200 = vpack.c.b16 %v198, %v196
      %v201 = vpack.c.b16 %v199, %v197
      %v221 = vunpack.c.l.b16 %v174
      %v222 = vunpack.c.l.b16 %v175
      %v223 = vunpack.c.l.b16 %v176
      %v224 = vunpack.c.l.b16 %v177
      %v225 = vunpack.c.l.b16 %v178
      %v226 = vunpack.c.l.b16 %v179
      %v227 = vunpack.c.l.b16 %v180
      %v228 = vunpack.c.l.b16 %v181
      %v229 = vunpack.c.l.b16 %v182
      %v230 = vunpack.c.l.b16 %v183
      %v231 = vunpack.c.l.b16 %v184
      %v232 = vunpack.c.l.b16 %v185
      %v233 = vunpack.c.l.b16 %v186
      %v234 = vunpack.c.l.b16 %v187
      %v235 = vunpack.c.l.b16 %v188
      %v236 = vunpack.c.l.b16 %v189
      %v237 = vunpack.c.l.b16 %v190
      %v238 = vunpack.c.l.b16 %v191
      %v239 = vpack.c.b16 %v222, %v221
      %v240 = vpack.c.b16 %v224, %v223
      %v241 = vpack.c.b16 %v226, %v225
      %v242 = vpack.c.b16 %v228, %v227
      %v243 = vpack.c.b16 %v230, %v229
      %v244 = vpack.c.b16 %v232, %v231
      %v245 = vpack.c.b16 %v234, %v233
      %v246 = vpack.c.b16 %v236, %v235
      %v247 = vpack.c.b16 %v238, %v237
      %vm257 = vcmask 130048
      %v259 = vsel %vm257, %v201, 0
      %261 = vmatpush.bf16.msra.mxu0 %v246
      %262 = vmatpush.bf16.msra.mxu0 %v245
      %263 = vmatpush.bf16.msra.mxu0 %v244
      %264 = vmatpush.bf16.msra.mxu0 %v243
      %265 = vmatpush.bf16.msra.mxu0 %v242
      %266 = vmatpush.bf16.msra.mxu0 %v241
      %267 = vmatpush.bf16.msra.mxu0 %v240
      %268 = vmatpush.bf16.msra.mxu0 %v239
      %269 = vmatmul.bf16.gmra.mxu0 %v200
      %v270 = vpop.f32.mrf.mxu0
      %v271 = vadd.f32 %v192, %v270
      %v272 = vpop.f32.mrf.mxu0
      %v273 = vadd.f32 %v193, %v272
      %274 = vdwg.mxu0
      %275 = vmatpush.bf16.msra.mxu0 0
      %276 = vmatpush.bf16.msra.mxu0 0
      %277 = vmatpush.bf16.msra.mxu0 0
      %278 = vmatpush.bf16.msra.mxu0 0
      %279 = vmatpush.bf16.msra.mxu0 0
      %280 = vmatpush.bf16.msra.mxu0 0
      %281 = vmatpush.bf16.msra.mxu0 0
      %282 = vmatpush.bf16.msra.mxu0 %v247
      %283 = vmatmul.bf16.gmra.mxu0 %v259
      %v284 = vpop.f32.mrf.mxu0
      %v285 = vadd.f32 %v271, %v284
      %v286 = vpop.f32.mrf.mxu0
      %v287 = vadd.f32 %v273, %v286
      %288 = vdwg.mxu0
      %vm289 = vcmp.ge.f32.partialorder %v285, 0.0
      %vm290 = vcmp.ge.f32.partialorder %v287, 0.0
      %v291 = vmul.f32 %v285, 0.01
      %v292 = vmul.f32 %v287, 0.01
      %v293 = vsel %vm289, %v285, %v291
      %v294 = vsel %vm290, %v287, %v292
      %v295 = vadd.f32 %v293, 0.0
      %v296 = vadd.f32 %v294, 0.0
      %s297 = scalar_lea.vmem %s1, 16
      %v298 = vld [vmem:[%s297] sm:$0xff]
      %v299 = vld [vmem:[%s297 + $0x8] sm:$0xff]
      %s300 = scalar_lea.vmem %s165, 72
      %v301 = vld [vmem:[%s300] sm:$0xf]
      %v302 = vld [vmem:[%s300 + $0x4] sm:$0xf]
      %v303 = vld [vmem:[%s300 + $0x8] sm:$0xf]
      %v304 = vld [vmem:[%s300 + $0xc] sm:$0xf]
      %v305 = vld [vmem:[%s300 + $0x10] sm:$0xf]
      %v306 = vld [vmem:[%s300 + $0x14] sm:$0xf]
      %v307 = vld [vmem:[%s300 + $0x18] sm:$0xf]
      %v308 = vld [vmem:[%s300 + $0x1c] sm:$0xf]
      %v309 = vld [vmem:[%s300 + $0x20] sm:$0xf]
      %v310 = vld [vmem:[%s300 + $0x24] sm:$0xf]
      %v311 = vld [vmem:[%s300 + $0x28] sm:$0xf]
      %v312 = vld [vmem:[%s300 + $0x2c] sm:$0xf]
      %v313 = vld [vmem:[%s300 + $0x30] sm:$0xf]
      %v314 = vld [vmem:[%s300 + $0x34] sm:$0xf]
      %v315 = vld [vmem:[%s300 + $0x38] sm:$0xf]
      %v316 = vld [vmem:[%s300 + $0x3c] sm:$0xf]
      %v317 = vld [vmem:[%s300 + $0x40] sm:$0xf]
      %v318 = vld [vmem:[%s300 + $0x44] sm:$0xf]
      %v321 = vunpack.c.l.b16 %v298
      %v322 = vunpack.c.h.b16 %v298
      %v323 = vunpack.c.l.b16 %v299
      %v324 = vunpack.c.h.b16 %v299
      %v325 = vpack.c.b16 %v323, %v321
      %v326 = vpack.c.b16 %v324, %v322
      %v346 = vunpack.c.l.b16 %v301
      %v347 = vunpack.c.l.b16 %v302
      %v348 = vunpack.c.l.b16 %v303
      %v349 = vunpack.c.l.b16 %v304
      %v350 = vunpack.c.l.b16 %v305
      %v351 = vunpack.c.l.b16 %v306
      %v352 = vunpack.c.l.b16 %v307
      %v353 = vunpack.c.l.b16 %v308
      %v354 = vunpack.c.l.b16 %v309
      %v355 = vunpack.c.l.b16 %v310
      %v356 = vunpack.c.l.b16 %v311
      %v357 = vunpack.c.l.b16 %v312
      %v358 = vunpack.c.l.b16 %v313
      %v359 = vunpack.c.l.b16 %v314
      %v360 = vunpack.c.l.b16 %v315
      %v361 = vunpack.c.l.b16 %v316
      %v362 = vunpack.c.l.b16 %v317
      %v363 = vunpack.c.l.b16 %v318
      %v364 = vpack.c.b16 %v347, %v346
      %v365 = vpack.c.b16 %v349, %v348
      %v366 = vpack.c.b16 %v351, %v350
      %v367 = vpack.c.b16 %v353, %v352
      %v368 = vpack.c.b16 %v355, %v354
      %v369 = vpack.c.b16 %v357, %v356
      %v370 = vpack.c.b16 %v359, %v358
      %v371 = vpack.c.b16 %v361, %v360
      %v372 = vpack.c.b16 %v363, %v362
      %v383 = vsel %vm257, %v326, 0
      %385 = vmatpush.bf16.msra.mxu0 %v371
      %386 = vmatpush.bf16.msra.mxu0 %v370
      %387 = vmatpush.bf16.msra.mxu0 %v369
      %388 = vmatpush.bf16.msra.mxu0 %v368
      %389 = vmatpush.bf16.msra.mxu0 %v367
      %390 = vmatpush.bf16.msra.mxu0 %v366
      %391 = vmatpush.bf16.msra.mxu0 %v365
      %392 = vmatpush.bf16.msra.mxu0 %v364
      %393 = vmatmul.bf16.gmra.mxu0 %v325
      %v394 = vpop.f32.mrf.mxu0
      %v395 = vadd.f32 %v192, %v394
      %v396 = vpop.f32.mrf.mxu0
      %v397 = vadd.f32 %v193, %v396
      %398 = vdwg.mxu0
      %399 = vmatpush.bf16.msra.mxu0 0
      %400 = vmatpush.bf16.msra.mxu0 0
      %401 = vmatpush.bf16.msra.mxu0 0
      %402 = vmatpush.bf16.msra.mxu0 0
      %403 = vmatpush.bf16.msra.mxu0 0
      %404 = vmatpush.bf16.msra.mxu0 0
      %405 = vmatpush.bf16.msra.mxu0 0
      %406 = vmatpush.bf16.msra.mxu0 %v372
      %407 = vmatmul.bf16.gmra.mxu0 %v383
      %v408 = vpop.f32.mrf.mxu0
      %v409 = vadd.f32 %v395, %v408
      %v410 = vpop.f32.mrf.mxu0
      %v411 = vadd.f32 %v397, %v410
      %412 = vdwg.mxu0
      %vm413 = vcmp.ge.f32.partialorder %v409, 0.0
      %vm414 = vcmp.ge.f32.partialorder %v411, 0.0
      %v415 = vmul.f32 %v409, 0.01
      %v416 = vmul.f32 %v411, 0.01
      %v417 = vsel %vm413, %v409, %v415
      %v418 = vsel %vm414, %v411, %v416
      %v419 = vadd.f32 %v417, 0.0
      %v420 = vadd.f32 %v418, 0.0
      %v421 = vadd.f32 %v295, %v419
      %v422 = vadd.f32 %v296, %v420
      %s423 = scalar_lea.vmem %s1, 32
      %v424 = vld [vmem:[%s423] sm:$0xff]
      %v425 = vld [vmem:[%s423 + $0x8] sm:$0xff]
      %s426 = scalar_lea.vmem %s165, 144
      %v427 = vld [vmem:[%s426] sm:$0xf]
      %v428 = vld [vmem:[%s426 + $0x4] sm:$0xf]
      %v429 = vld [vmem:[%s426 + $0x8] sm:$0xf]
      %v430 = vld [vmem:[%s426 + $0xc] sm:$0xf]
      %v431 = vld [vmem:[%s426 + $0x10] sm:$0xf]
      %v432 = vld [vmem:[%s426 + $0x14] sm:$0xf]
      %v433 = vld [vmem:[%s426 + $0x18] sm:$0xf]
      %v434 = vld [vmem:[%s426 + $0x1c] sm:$0xf]
      %v435 = vld [vmem:[%s426 + $0x20] sm:$0xf]
      %v436 = vld [vmem:[%s426 + $0x24] sm:$0xf]
      %v437 = vld [vmem:[%s426 + $0x28] sm:$0xf]
      %v438 = vld [vmem:[%s426 + $0x2c] sm:$0xf]
      %v439 = vld [vmem:[%s426 + $0x30] sm:$0xf]
      %v440 = vld [vmem:[%s426 + $0x34] sm:$0xf]
      %v441 = vld [vmem:[%s426 + $0x38] sm:$0xf]
      %v442 = vld [vmem:[%s426 + $0x3c] sm:$0xf]
      %v443 = vld [vmem:[%s426 + $0x40] sm:$0xf]
      %v444 = vld [vmem:[%s426 + $0x44] sm:$0xf]
      %v447 = vunpack.c.l.b16 %v424
      %v448 = vunpack.c.h.b16 %v424
      %v449 = vunpack.c.l.b16 %v425
      %v450 = vunpack.c.h.b16 %v425
      %v451 = vpack.c.b16 %v449, %v447
      %v452 = vpack.c.b16 %v450, %v448
      %v472 = vunpack.c.l.b16 %v427
      %v473 = vunpack.c.l.b16 %v428
      %v474 = vunpack.c.l.b16 %v429
      %v475 = vunpack.c.l.b16 %v430
      %v476 = vunpack.c.l.b16 %v431
      %v477 = vunpack.c.l.b16 %v432
      %v478 = vunpack.c.l.b16 %v433
      %v479 = vunpack.c.l.b16 %v434
      %v480 = vunpack.c.l.b16 %v435
      %v481 = vunpack.c.l.b16 %v436
      %v482 = vunpack.c.l.b16 %v437
      %v483 = vunpack.c.l.b16 %v438
      %v484 = vunpack.c.l.b16 %v439
      %v485 = vunpack.c.l.b16 %v440
      %v486 = vunpack.c.l.b16 %v441
      %v487 = vunpack.c.l.b16 %v442
      %v488 = vunpack.c.l.b16 %v443
      %v489 = vunpack.c.l.b16 %v444
      %v490 = vpack.c.b16 %v473, %v472
      %v491 = vpack.c.b16 %v475, %v474
      %v492 = vpack.c.b16 %v477, %v476
      %v493 = vpack.c.b16 %v479, %v478
      %v494 = vpack.c.b16 %v481, %v480
      %v495 = vpack.c.b16 %v483, %v482
      %v496 = vpack.c.b16 %v485, %v484
      %v497 = vpack.c.b16 %v487, %v486
      %v498 = vpack.c.b16 %v489, %v488
      %v509 = vsel %vm257, %v452, 0
      %511 = vmatpush.bf16.msra.mxu0 %v497
      %512 = vmatpush.bf16.msra.mxu0 %v496
      %513 = vmatpush.bf16.msra.mxu0 %v495
      %514 = vmatpush.bf16.msra.mxu0 %v494
      %515 = vmatpush.bf16.msra.mxu0 %v493
      %516 = vmatpush.bf16.msra.mxu0 %v492
      %517 = vmatpush.bf16.msra.mxu0 %v491
      %518 = vmatpush.bf16.msra.mxu0 %v490
      %519 = vmatmul.bf16.gmra.mxu0 %v451
      %v520 = vpop.f32.mrf.mxu0
      %v521 = vadd.f32 %v192, %v520
      %v522 = vpop.f32.mrf.mxu0
      %v523 = vadd.f32 %v193, %v522
      %524 = vdwg.mxu0
      %525 = vmatpush.bf16.msra.mxu0 0
      %526 = vmatpush.bf16.msra.mxu0 0
      %527 = vmatpush.bf16.msra.mxu0 0
      %528 = vmatpush.bf16.msra.mxu0 0
      %529 = vmatpush.bf16.msra.mxu0 0
      %530 = vmatpush.bf16.msra.mxu0 0
      %531 = vmatpush.bf16.msra.mxu0 0
      %532 = vmatpush.bf16.msra.mxu0 %v498
      %533 = vmatmul.bf16.gmra.mxu0 %v509
      %v534 = vpop.f32.mrf.mxu0
      %v535 = vadd.f32 %v521, %v534
      %v536 = vpop.f32.mrf.mxu0
      %v537 = vadd.f32 %v523, %v536
      %538 = vdwg.mxu0
      %vm539 = vcmp.ge.f32.partialorder %v535, 0.0
      %vm540 = vcmp.ge.f32.partialorder %v537, 0.0
      %v541 = vmul.f32 %v535, 0.01
      %v542 = vmul.f32 %v537, 0.01
      %v543 = vsel %vm539, %v535, %v541
      %v544 = vsel %vm540, %v537, %v542
      %v545 = vadd.f32 %v543, 0.0
      %v546 = vadd.f32 %v544, 0.0
      %v547 = vadd.f32 %v421, %v545
      %v548 = vadd.f32 %v422, %v546
      %s549 = scalar_lea.vmem %s1, 48
      %v550 = vld [vmem:[%s549] sm:$0xff]
      %v551 = vld [vmem:[%s549 + $0x8] sm:$0xff]
      %s552 = scalar_lea.vmem %s165, 216
      %v553 = vld [vmem:[%s552] sm:$0xf]
      %v554 = vld [vmem:[%s552 + $0x4] sm:$0xf]
      %v555 = vld [vmem:[%s552 + $0x8] sm:$0xf]
      %v556 = vld [vmem:[%s552 + $0xc] sm:$0xf]
      %v557 = vld [vmem:[%s552 + $0x10] sm:$0xf]
      %v558 = vld [vmem:[%s552 + $0x14] sm:$0xf]
      %v559 = vld [vmem:[%s552 + $0x18] sm:$0xf]
      %v560 = vld [vmem:[%s552 + $0x1c] sm:$0xf]
      %v561 = vld [vmem:[%s552 + $0x20] sm:$0xf]
      %v562 = vld [vmem:[%s552 + $0x24] sm:$0xf]
      %v563 = vld [vmem:[%s552 + $0x28] sm:$0xf]
      %v564 = vld [vmem:[%s552 + $0x2c] sm:$0xf]
      %v565 = vld [vmem:[%s552 + $0x30] sm:$0xf]
      %v566 = vld [vmem:[%s552 + $0x34] sm:$0xf]
      %v567 = vld [vmem:[%s552 + $0x38] sm:$0xf]
      %v568 = vld [vmem:[%s552 + $0x3c] sm:$0xf]
      %v569 = vld [vmem:[%s552 + $0x40] sm:$0xf]
      %v570 = vld [vmem:[%s552 + $0x44] sm:$0xf]
      %v573 = vunpack.c.l.b16 %v550
      %v574 = vunpack.c.h.b16 %v550
      %v575 = vunpack.c.l.b16 %v551
      %v576 = vunpack.c.h.b16 %v551
      %v577 = vpack.c.b16 %v575, %v573
      %v578 = vpack.c.b16 %v576, %v574
      %v598 = vunpack.c.l.b16 %v553
      %v599 = vunpack.c.l.b16 %v554
      %v600 = vunpack.c.l.b16 %v555
      %v601 = vunpack.c.l.b16 %v556
      %v602 = vunpack.c.l.b16 %v557
      %v603 = vunpack.c.l.b16 %v558
      %v604 = vunpack.c.l.b16 %v559
      %v605 = vunpack.c.l.b16 %v560
      %v606 = vunpack.c.l.b16 %v561
      %v607 = vunpack.c.l.b16 %v562
      %v608 = vunpack.c.l.b16 %v563
      %v609 = vunpack.c.l.b16 %v564
      %v610 = vunpack.c.l.b16 %v565
      %v611 = vunpack.c.l.b16 %v566
      %v612 = vunpack.c.l.b16 %v567
      %v613 = vunpack.c.l.b16 %v568
      %v614 = vunpack.c.l.b16 %v569
      %v615 = vunpack.c.l.b16 %v570
      %v616 = vpack.c.b16 %v599, %v598
      %v617 = vpack.c.b16 %v601, %v600
      %v618 = vpack.c.b16 %v603, %v602
      %v619 = vpack.c.b16 %v605, %v604
      %v620 = vpack.c.b16 %v607, %v606
      %v621 = vpack.c.b16 %v609, %v608
      %v622 = vpack.c.b16 %v611, %v610
      %v623 = vpack.c.b16 %v613, %v612
      %v624 = vpack.c.b16 %v615, %v614
      %v635 = vsel %vm257, %v578, 0
      %637 = vmatpush.bf16.msra.mxu0 %v623
      %638 = vmatpush.bf16.msra.mxu0 %v622
      %639 = vmatpush.bf16.msra.mxu0 %v621
      %640 = vmatpush.bf16.msra.mxu0 %v620
      %641 = vmatpush.bf16.msra.mxu0 %v619
      %642 = vmatpush.bf16.msra.mxu0 %v618
      %643 = vmatpush.bf16.msra.mxu0 %v617
      %644 = vmatpush.bf16.msra.mxu0 %v616
      %645 = vmatmul.bf16.gmra.mxu0 %v577
      %v646 = vpop.f32.mrf.mxu0
      %v647 = vadd.f32 %v192, %v646
      %v648 = vpop.f32.mrf.mxu0
      %v649 = vadd.f32 %v193, %v648
      %650 = vdwg.mxu0
      %651 = vmatpush.bf16.msra.mxu0 0
      %652 = vmatpush.bf16.msra.mxu0 0
      %653 = vmatpush.bf16.msra.mxu0 0
      %654 = vmatpush.bf16.msra.mxu0 0
      %655 = vmatpush.bf16.msra.mxu0 0
      %656 = vmatpush.bf16.msra.mxu0 0
      %657 = vmatpush.bf16.msra.mxu0 0
      %658 = vmatpush.bf16.msra.mxu0 %v624
      %659 = vmatmul.bf16.gmra.mxu0 %v635
      %v660 = vpop.f32.mrf.mxu0
      %v661 = vadd.f32 %v647, %v660
      %v662 = vpop.f32.mrf.mxu0
      %v663 = vadd.f32 %v649, %v662
      %664 = vdwg.mxu0
      %vm665 = vcmp.ge.f32.partialorder %v661, 0.0
      %vm666 = vcmp.ge.f32.partialorder %v663, 0.0
      %v667 = vmul.f32 %v661, 0.01
      %v668 = vmul.f32 %v663, 0.01
      %v669 = vsel %vm665, %v661, %v667
      %v670 = vsel %vm666, %v663, %v668
      %v671 = vadd.f32 %v669, 0.0
      %v672 = vadd.f32 %v670, 0.0
      %v673 = vadd.f32 %v547, %v671
      %v674 = vadd.f32 %v548, %v672
      %v675 = vrcp.pop 4.0
      %v676 = vmul.f32 4.0, %v675
      %v677 = vsub.f32 1.0, %v676
      %v678 = vmul.f32 %v675, %v677
      %v679 = vadd.f32 %v675, %v678
      %vm680 = vweird.f32 %v675
      %v681 = vsel %vm680, %v675, %v679
      %v682 = vmul.f32 %v673, %v681
      %v683 = vmul.f32 %v674, %v681
      %v684 = vsub.f32 %v293, %v682
      %v685 = vsub.f32 %v294, %v683
      %v686 = vmul.f32 %v684, %v684
      %v687 = vmul.f32 %v685, %v685
      %v688 = vadd.f32 %v686, 0.0
      %v689 = vadd.f32 %v687, 0.0
      %v690 = vsub.f32 %v417, %v682
      %v691 = vsub.f32 %v418, %v683
      %v692 = vmul.f32 %v690, %v690
      %v693 = vmul.f32 %v691, %v691
      %v694 = vadd.f32 %v692, 0.0
      %v695 = vadd.f32 %v693, 0.0
      %v696 = vadd.f32 %v688, %v694
      %v697 = vadd.f32 %v689, %v695
      %v698 = vsub.f32 %v543, %v682
      %v699 = vsub.f32 %v544, %v683
      %v700 = vmul.f32 %v698, %v698
      %v701 = vmul.f32 %v699, %v699
      %v702 = vadd.f32 %v700, 0.0
      %v703 = vadd.f32 %v701, 0.0
      %v704 = vadd.f32 %v696, %v702
      %v705 = vadd.f32 %v697, %v703
      %v706 = vsub.f32 %v669, %v682
      %v707 = vsub.f32 %v670, %v683
      %v708 = vmul.f32 %v706, %v706
      %v709 = vmul.f32 %v707, %v707
      %v710 = vadd.f32 %v708, 0.0
      %v711 = vadd.f32 %v709, 0.0
      %v712 = vadd.f32 %v704, %v710
      %v713 = vadd.f32 %v705, %v711
      %v714 = vmul.f32 %v712, %v681
      %v715 = vmul.f32 %v713, %v681
      %v716 = vadd.f32 %v714, 1e-05
      %v717 = vadd.f32 %v715, 1e-05
      %v718 = vrsqrt.pop %v716
      %v719 = vmul.f32 %v718, %v716
      %v720 = vmul.f32 %v719, %v718
      %v721 = vmul.f32 0.5, %v720
      %v722 = vsub.f32 1.5, %v721
      %v723 = vmul.f32 %v718, %v722
      %vm724 = vweird.f32 %v716
      %vm725 = vweird.f32 %v718
      %vm726 = vmor %vm724, %vm725
      %v727 = vsel %vm726, %v718, %v723
      %v728 = vrsqrt.pop %v717
      %v729 = vmul.f32 %v728, %v717
      %v730 = vmul.f32 %v729, %v728
      %v731 = vmul.f32 0.5, %v730
      %v732 = vsub.f32 1.5, %v731
      %v733 = vmul.f32 %v728, %v732
      %vm734 = vweird.f32 %v717
      %vm735 = vweird.f32 %v728
      %vm736 = vmor %vm734, %vm735
      %v737 = vsel %vm736, %v728, %v733
      %v738 = vmul.f32 %v684, %v727
      %v739 = vmul.f32 %v685, %v737
      %vm740 = vcmask 7168
      %741 = vst.msk [vmem:[%s170] sm:$0xff] %vm740, %v738
      %742 = vst.msk [vmem:[%s170 + $0x8] sm:$0xff] %vm740, %v739
      %v743 = vmul.f32 %v690, %v727
      %v744 = vmul.f32 %v691, %v737
      %s745 = scalar_lea.vmem %s170, 16
      %746 = vst.msk [vmem:[%s745] sm:$0xff] %vm740, %v743
      %747 = vst.msk [vmem:[%s745 + $0x8] sm:$0xff] %vm740, %v744
      %v748 = vmul.f32 %v698, %v727
      %v749 = vmul.f32 %v699, %v737
      %s750 = scalar_lea.vmem %s170, 32
      %751 = vst.msk [vmem:[%s750] sm:$0xff] %vm740, %v748
      %752 = vst.msk [vmem:[%s750 + $0x8] sm:$0xff] %vm740, %v749
      %v753 = vmul.f32 %v706, %v727
      %v754 = vmul.f32 %v707, %v737
      %s755 = scalar_lea.vmem %s170, 48
      %756 = vst.msk [vmem:[%s755] sm:$0xff] %vm740, %v753
      %757 = vst.msk [vmem:[%s755 + $0x8] sm:$0xff] %vm740, %v754
      %p758 = scmp.lt.s32.totalorder %s14, 1
      %s759 = scalar_select %p758, %s14, 1
      %s760 = smul.addr %s759, 8
      %s761 = smul.addr %s760, 8
      %s762 = scalar_lea.vmem %s3, %s761
      // Predicated region
      $region33: #{base_unet_forward.16} parent=31 // pred_check
        %p763 = pneg %p100
      $region34: #{base_unet_forward.16} parent=31 // pred_check_branch
        %765 = sbr.rel (%p763) target = $region36
      $region35: #{base_unet_forward.16} parent=31 // pred_region
        _
      $region36: #{base_unet_forward.16} parent=31 // pred_fallthru
        _
    $region32: #{base_unet_forward.16} parent=5 // pred_fallthru
      _
    %p766 = scmp.le.s32.totalorder 2, %s9
    // Predicated region
    $region37: #{base_unet_forward.16} parent=5 // pred_check
      %p767 = pneg %p766
    $region38: #{base_unet_forward.16} parent=5 // pred_check_branch
      %769 = sbr.rel (%p767) target = $region40
    $region39: #{base_unet_forward.16} parent=5 // pred_region
      %s770 = ssub.s32 %s9, 2
      // Predicated region
      $region41: #{base_unet_forward.16} parent=39 // pred_check
        %p771 = pneg %p106
      $region42: #{base_unet_forward.16} parent=39 // pred_check_branch
        %773 = sbr.rel (%p771) target = $region44
      $region43: #{base_unet_forward.16} parent=39 // pred_region
        %p774 = scmp.lt.s32.totalorder %s15, 1
        %s775 = scalar_select %p774, %s15, 1
        %s776 = smul.addr %s775, 8
        %s777 = smul.addr %s776, 8
        %s778 = scalar_lea.vmem %s3, %s777
      $region44: #{base_unet_forward.16} parent=39 // pred_fallthru
        _
    $region40: #{base_unet_forward.16} parent=5 // pred_fallthru
      _
  $region6: #{base_unet_forward.16} parent=0 // loop_footer
    %s13 = sadd.s32 1, %s9
  $region7: #{base_unet_forward.16} parent=0 // loop_footer_branch
    %8 = sbr.rel target = $region3
  $region8: #{base_unet_forward.16} parent=0 // loop_exit
    _

// kernel: base_unet_forward.17
$region0: #{base_unet_forward.17}
  #allocation0 [shape = 'u32[]', space=smem, size = 0x4, offset = 0x4, fixed_abs, tag = 'smem constant byte address 0x4 - core index']
  #allocation1 [shape = 'u32[72,128]{1,0:T(1,128)}', space=vmem, size = 0x9000, scoped, tag = 'internal scratch']
  %s0 = inlined_call_operand.vmem [shape: bf16[2,4,288,4], index: 0, kind: input, shape index: {}]
  %s1 = inlined_call_operand.vmem [shape: bf16[4,16,288], index: 1, kind: input, shape index: {}]
  %s2 = inlined_call_operand.vmem [shape: f32[16,1], index: 2, kind: input, shape index: {}]
  %s3 = inlined_call_operand.vmem [shape: f32[2,4,16,4], index: 3, kind: output, shape index: {}]
  %s4 = sld [smem:[#allocation0]]
  $region45: #{base_unet_forward.17} parent=0
    _
  %s6 = ssub.s32 1, %s4
  %s7 = scalar_select 0, %s6, %s4
  loop: start=0, step=1, limit=4
  $region2: #{base_unet_forward.17} parent=0 // loop_pre_header
    _
  $region3: #{base_unet_forward.17} parent=0 // loop_header
    %s9 = sphi 0, %s13
    %p10 = scmp.ge.s32.totalorder %s9, 4
    %s19 = sphi 0, %s21
    %s22 = sphi 0, %s19
    %s23 = sphi 0, %s22
    %s39 = sphi 0, %s23
    %s43 = sphi 0, %s43
    %s45 = sphi 0, %s43
    %s46 = sphi 0, %s45
    %s60 = sphi 0, %s46
    %s64 = sphi 0, %s64
    %s66 = sphi 0, %s64
    %s67 = sphi 0, %s66
    %s81 = sphi 0, %s67
    %s87 = sphi 0, %s89
    %s90 = sphi 0, %s87
    %s91 = sphi 0, %s90
    %s107 = sphi 0, %s91
  $region4: #{base_unet_forward.17} parent=0 // loop_header_branch
    %12 = sbr.rel (%p10) target = $region8
  $region5: #{base_unet_forward.17} parent=0 // loop_body
    %s14 = ssub.s32 %s9, 1
    %s15 = ssub.s32 %s9, 2
    %s16 = sadd.s32 %s9, 1
    %s17 = ssub.s32 %s9, %s16
    %p18 = scmp.eq.s32.totalorder %s17, 0
    %s20 = sadd.s32 %s19, 1
    %s21 = scalar_select %p18, %s19, %s20
    %p24 = pneg %p18
    %p25 = scmp.eq.s32.totalorder %s9, 1
    %p26 = por %p24, %p25
    %p27 = scmp.ne.s32.totalorder %s19, %s22
    %p28 = scmp.eq.s32.totalorder %s9, 0
    %p29 = por %p27, %p28
    %p30 = scmp.ne.s32.totalorder %s19, %s22
    %p31 = scmp.eq.s32.totalorder %s14, 1
    %p32 = por %p30, %p31
    %p33 = scmp.ne.s32.totalorder %s22, %s23
    %p34 = scmp.eq.s32.totalorder %s14, 0
    %p35 = por %p33, %p34
    %p36 = scmp.ne.s32.totalorder %s22, %s23
    %p37 = scmp.eq.s32.totalorder %s15, 1
    %p38 = por %p36, %p37
    %p40 = scmp.ne.s32.totalorder %s23, %s39
    %p41 = scmp.eq.s32.totalorder %s15, 0
    %p42 = por %p40, %p41
    %s44 = sadd.s32 %s43, 1
    %p47 = scmp.eq.s32.totalorder %s9, 1
    %p48 = scmp.ne.s32.totalorder %s43, %s45
    %p49 = scmp.eq.s32.totalorder %s9, 0
    %p50 = por %p48, %p49
    %p51 = scmp.ne.s32.totalorder %s43, %s45
    %p52 = scmp.eq.s32.totalorder %s14, 1
    %p53 = por %p51, %p52
    %p54 = scmp.ne.s32.totalorder %s45, %s46
    %p55 = scmp.eq.s32.totalorder %s14, 0
    %p56 = por %p54, %p55
    %p57 = scmp.ne.s32.totalorder %s45, %s46
    %p58 = scmp.eq.s32.totalorder %s15, 1
    %p59 = por %p57, %p58
    %p61 = scmp.ne.s32.totalorder %s46, %s60
    %p62 = scmp.eq.s32.totalorder %s15, 0
    %p63 = por %p61, %p62
    %s65 = sadd.s32 %s64, 1
    %p68 = scmp.eq.s32.totalorder %s9, 1
    %p69 = scmp.ne.s32.totalorder %s64, %s66
    %p70 = scmp.eq.s32.totalorder %s9, 0
    %p71 = por %p69, %p70
    %p72 = scmp.ne.s32.totalorder %s64, %s66
    %p73 = scmp.eq.s32.totalorder %s14, 1
    %p74 = por %p72, %p73
    %p75 = scmp.ne.s32.totalorder %s66, %s67
    %p76 = scmp.eq.s32.totalorder %s14, 0
    %p77 = por %p75, %p76
    %p78 = scmp.ne.s32.totalorder %s66, %s67
    %p79 = scmp.eq.s32.totalorder %s15, 1
    %p80 = por %p78, %p79
    %p82 = scmp.ne.s32.totalorder %s67, %s81
    %p83 = scmp.eq.s32.totalorder %s15, 0
    %p84 = por %p82, %p83
    %s85 = ssub.s32 %s9, %s16
    %p86 = scmp.eq.s32.totalorder %s85, 0
    %s88 = sadd.s32 %s87, 1
    %s89 = scalar_select %p86, %s87, %s88
    %p92 = pneg %p86
    %p93 = scmp.eq.s32.totalorder %s9, 1
    %p94 = por %p92, %p93
    %p95 = scmp.ne.s32.totalorder %s87, %s90
    %p96 = scmp.eq.s32.totalorder %s9, 0
    %p97 = por %p95, %p96
    %p98 = scmp.ne.s32.totalorder %s87, %s90
    %p99 = scmp.eq.s32.totalorder %s14, 1
    %p100 = por %p98, %p99
    %p101 = scmp.ne.s32.totalorder %s90, %s91
    %p102 = scmp.eq.s32.totalorder %s14, 0
    %p103 = por %p101, %p102
    %p104 = scmp.ne.s32.totalorder %s90, %s91
    %p105 = scmp.eq.s32.totalorder %s15, 1
    %p106 = por %p104, %p105
    %p108 = scmp.ne.s32.totalorder %s91, %s107
    %p109 = scmp.eq.s32.totalorder %s15, 0
    %p110 = por %p108, %p109
    %p111 = scmp.le.s32.totalorder 1, %s9
    %p112 = scmp.lt.s32.totalorder %s9, 3
    %p113 = pnand %p111, %p112
    %p114 = pneg %p113
    // Predicated region
    $region9: #{base_unet_forward.17} parent=5 // pred_check
      _
    $region10: #{base_unet_forward.17} parent=5 // pred_check_branch
      %116 = sbr.rel (%p113) target = $region12
    $region11: #{base_unet_forward.17} parent=5 // pred_region
      %s117 = ssub.s32 %s9, 1
      // Predicated region
      $region13: #{base_unet_forward.17} parent=11 // pred_check
        %p118 = pneg %p56
      $region14: #{base_unet_forward.17} parent=11 // pred_check_branch
        %120 = sbr.rel (%p118) target = $region16
      $region15: #{base_unet_forward.17} parent=11 // pred_region
        _
      $region16: #{base_unet_forward.17} parent=11 // pred_fallthru
        _
      // Predicated region
      $region17: #{base_unet_forward.17} parent=11 // pred_check
        %p121 = pneg %p77
      $region18: #{base_unet_forward.17} parent=11 // pred_check_branch
        %123 = sbr.rel (%p121) target = $region20
      $region19: #{base_unet_forward.17} parent=11 // pred_region
        _
      $region20: #{base_unet_forward.17} parent=11 // pred_fallthru
        _
    $region12: #{base_unet_forward.17} parent=5 // pred_fallthru
      _
    %p124 = scmp.lt.s32.totalorder %s9, 2
    // Predicated region
    $region21: #{base_unet_forward.17} parent=5 // pred_check
      %p125 = pneg %p124
    $region22: #{base_unet_forward.17} parent=5 // pred_check_branch
      %127 = sbr.rel (%p125) target = $region24
    $region23: #{base_unet_forward.17} parent=5 // pred_region
      // Predicated region
      $region25: #{base_unet_forward.17} parent=23 // pred_check
        %p128 = pneg %p29
      $region26: #{base_unet_forward.17} parent=23 // pred_check_branch
        %130 = sbr.rel (%p128) target = $region28
      $region27: #{base_unet_forward.17} parent=23 // pred_region
        %p131 = scmp.lt.s32.totalorder %s9, 1
        %s132 = scalar_select %p131, %s9, 1
        %s133 = smul.addr %s132, 144
        %s134 = smul.addr %s133, 4
        %s135 = scalar_lea.vmem %s0, %s134
      $region28: #{base_unet_forward.17} parent=23 // pred_fallthru
        _
    $region24: #{base_unet_forward.17} parent=5 // pred_fallthru
      _
    %p136 = scmp.le.s32.totalorder 1, %s9
    %p137 = scmp.lt.s32.totalorder %s9, 3
    %p138 = pnand %p136, %p137
    %p139 = pneg %p138
    // Predicated region
    $region29: #{base_unet_forward.17} parent=5 // pred_check
      _
    $region30: #{base_unet_forward.17} parent=5 // pred_check_branch
      %141 = sbr.rel (%p138) target = $region32
    $region31: #{base_unet_forward.17} parent=5 // pred_region
      %s142 = ssub.s32 %s9, 1
      %p143 = scmp.lt.s32.totalorder %s14, 1
      %s144 = scalar_select %p143, %s14, 1
      %s145 = smul.addr %s144, 144
      %s146 = smul.addr %s145, 4
      %s147 = scalar_lea.vmem %s0, %s146
      %p148 = pneg %p35
      %p149 = pneg %p32
      %p150 = pneg %p56
      %p151 = pneg %p53
      %p152 = pneg %p77
      %p153 = pneg %p74
      %p154 = pneg %p103
      %p155 = pneg %p100
      %p156 = scmp.lt.s32.totalorder %s14, 1
      %s157 = scalar_select %p156, %s14, 1
      %s158 = smul.addr %s157, 8
      %s159 = smul.addr %s158, 8
      %s160 = scalar_lea.vmem %s3, %s159
      %p161 = scmp.lt.s32.totalorder %s14, 1
      %s162 = scalar_select %p161, %s14, 1
      %s163 = smul.addr %s162, 144
      %s164 = smul.addr %s163, 4
      %s165 = scalar_lea.vmem %s0, %s164
      %p166 = scmp.lt.s32.totalorder %s14, 1
      %s167 = scalar_select %p166, %s14, 1
      %s168 = smul.addr %s167, 8
      %s169 = smul.addr %s168, 8
      %s170 = scalar_lea.vmem %s3, %s169
      %v172 = vld [vmem:[%s1] sm:$0xff]
      %v173 = vld [vmem:[%s1 + $0x8] sm:$0xf]
      %v174 = vld [vmem:[%s1 + $0xc] sm:$0xff]
      %v175 = vld [vmem:[%s1 + $0x14] sm:$0xf]
      %v176 = vld [vmem:[%s165] sm:$0xf]
      %v177 = vld [vmem:[%s165 + $0x4] sm:$0xf]
      %v178 = vld [vmem:[%s165 + $0x8] sm:$0xf]
      %v179 = vld [vmem:[%s165 + $0xc] sm:$0xf]
      %v180 = vld [vmem:[%s165 + $0x10] sm:$0xf]
      %v181 = vld [vmem:[%s165 + $0x14] sm:$0xf]
      %v182 = vld [vmem:[%s165 + $0x18] sm:$0xf]
      %v183 = vld [vmem:[%s165 + $0x1c] sm:$0xf]
      %v184 = vld [vmem:[%s165 + $0x20] sm:$0xf]
      %v185 = vld [vmem:[%s165 + $0x24] sm:$0xf]
      %v186 = vld [vmem:[%s165 + $0x28] sm:$0xf]
      %v187 = vld [vmem:[%s165 + $0x2c] sm:$0xf]
      %v188 = vld [vmem:[%s165 + $0x30] sm:$0xf]
      %v189 = vld [vmem:[%s165 + $0x34] sm:$0xf]
      %v190 = vld [vmem:[%s165 + $0x38] sm:$0xf]
      %v191 = vld [vmem:[%s165 + $0x3c] sm:$0xf]
      %v192 = vld [vmem:[%s165 + $0x40] sm:$0xf]
      %v193 = vld [vmem:[%s165 + $0x44] sm:$0xf]
      %v194 = vld [vmem:[%s165 + $0x48] sm:$0xf]
      %v195 = vld [vmem:[%s165 + $0x4c] sm:$0xf]
      %v196 = vld [vmem:[%s165 + $0x50] sm:$0xf]
      %v197 = vld [vmem:[%s165 + $0x54] sm:$0xf]
      %v198 = vld [vmem:[%s165 + $0x58] sm:$0xf]
      %v199 = vld [vmem:[%s165 + $0x5c] sm:$0xf]
      %v200 = vld [vmem:[%s165 + $0x60] sm:$0xf]
      %v201 = vld [vmem:[%s165 + $0x64] sm:$0xf]
      %v202 = vld [vmem:[%s165 + $0x68] sm:$0xf]
      %v203 = vld [vmem:[%s165 + $0x6c] sm:$0xf]
      %v204 = vld [vmem:[%s165 + $0x70] sm:$0xf]
      %v205 = vld [vmem:[%s165 + $0x74] sm:$0xf]
      %v206 = vld [vmem:[%s165 + $0x78] sm:$0xf]
      %v207 = vld [vmem:[%s165 + $0x7c] sm:$0xf]
      %v208 = vld [vmem:[%s165 + $0x80] sm:$0xf]
      %v209 = vld [vmem:[%s165 + $0x84] sm:$0xf]
      %v210 = vld [vmem:[%s165 + $0x88] sm:$0xf]
      %v211 = vld [vmem:[%s165 + $0x8c] sm:$0xf]
      %v212 = vld [vmem:[%s2] sm:$0xff]
      %v213 = vld [vmem:[%s2 + $0x8] sm:$0xff]
      %215 = vset.pattern.permute.xlu0 0
      %216 = vperm.xlu0 %215, %v212
      %v217 = vpop.permute.xlu0 %216
      %220 = vset.pattern.permute.xlu0 0
      %221 = vperm.xlu0 %220, %v213
      %v222 = vpop.permute.xlu0 %221
      %v228 = vunpack.c.l.b16 %v172
      %v229 = vunpack.c.h.b16 %v172
      %v230 = vunpack.c.l.b16 %v173
      %v231 = vunpack.c.l.b16 %v174
      %v232 = vunpack.c.h.b16 %v174
      %v233 = vunpack.c.l.b16 %v175
      %v234 = vpack.c.b16 %v231, %v228
      %v235 = vpack.c.b16 %v232, %v229
      %v236 = vpack.c.b16 %v233, %v230
      %v275 = vunpack.c.l.b16 %v176
      %v276 = vunpack.c.l.b16 %v177
      %v277 = vunpack.c.l.b16 %v178
      %v278 = vunpack.c.l.b16 %v179
      %v279 = vunpack.c.l.b16 %v180
      %v280 = vunpack.c.l.b16 %v181
      %v281 = vunpack.c.l.b16 %v182
      %v282 = vunpack.c.l.b16 %v183
      %v283 = vunpack.c.l.b16 %v184
      %v284 = vunpack.c.l.b16 %v185
      %v285 = vunpack.c.l.b16 %v186
      %v286 = vunpack.c.l.b16 %v187
      %v287 = vunpack.c.l.b16 %v188
      %v288 = vunpack.c.l.b16 %v189
      %v289 = vunpack.c.l.b16 %v190
      %v290 = vunpack.c.l.b16 %v191
      %v291 = vunpack.c.l.b16 %v192
      %v292 = vunpack.c.l.b16 %v193
      %v293 = vunpack.c.l.b16 %v194
      %v294 = vunpack.c.l.b16 %v195
      %v295 = vunpack.c.l.b16 %v196
      %v296 = vunpack.c.l.b16 %v197
      %v297 = vunpack.c.l.b16 %v198
      %v298 = vunpack.c.l.b16 %v199
      %v299 = vunpack.c.l.b16 %v200
      %v300 = vunpack.c.l.b16 %v201
      %v301 = vunpack.c.l.b16 %v202
      %v302 = vunpack.c.l.b16 %v203
      %v303 = vunpack.c.l.b16 %v204
      %v304 = vunpack.c.l.b16 %v205
      %v305 = vunpack.c.l.b16 %v206
      %v306 = vunpack.c.l.b16 %v207
      %v307 = vunpack.c.l.b16 %v208
      %v308 = vunpack.c.l.b16 %v209
      %v309 = vunpack.c.l.b16 %v210
      %v310 = vunpack.c.l.b16 %v211
      %v311 = vpack.c.b16 %v276, %v275
      %v312 = vpack.c.b16 %v278, %v277
      %v313 = vpack.c.b16 %v280, %v279
      %v314 = vpack.c.b16 %v282, %v281
      %v315 = vpack.c.b16 %v284, %v283
      %v316 = vpack.c.b16 %v286, %v285
      %v317 = vpack.c.b16 %v288, %v287
      %v318 = vpack.c.b16 %v290, %v289
      %v319 = vpack.c.b16 %v292, %v291
      %v320 = vpack.c.b16 %v294, %v293
      %v321 = vpack.c.b16 %v296, %v295
      %v322 = vpack.c.b16 %v298, %v297
      %v323 = vpack.c.b16 %v300, %v299
      %v324 = vpack.c.b16 %v302, %v301
      %v325 = vpack.c.b16 %v304, %v303
      %v326 = vpack.c.b16 %v306, %v305
      %v327 = vpack.c.b16 %v308, %v307
      %v328 = vpack.c.b16 %v310, %v309
      %vm347 = vcmask 261120
      %v349 = vsel %vm347, %v236, 0
      %351 = vmatpush.bf16.msra.mxu0 %v318
      %352 = vmatpush.bf16.msra.mxu0 %v317
      %353 = vmatpush.bf16.msra.mxu0 %v316
      %354 = vmatpush.bf16.msra.mxu0 %v315
      %355 = vmatpush.bf16.msra.mxu0 %v314
      %356 = vmatpush.bf16.msra.mxu0 %v313
      %357 = vmatpush.bf16.msra.mxu0 %v312
      %358 = vmatpush.bf16.msra.mxu0 %v311
      %359 = vmatmul.bf16.gmra.mxu0 %v234
      %v360 = vpop.f32.mrf.mxu0
      %v361 = vadd.f32 %v217, %v360
      %v362 = vpop.f32.mrf.mxu0
      %v363 = vadd.f32 %v222, %v362
      %364 = vdwg.mxu0
      %365 = vmatpush.bf16.msra.mxu0 %v326
      %366 = vmatpush.bf16.msra.mxu0 %v325
      %367 = vmatpush.bf16.msra.mxu0 %v324
      %368 = vmatpush.bf16.msra.mxu0 %v323
      %369 = vmatpush.bf16.msra.mxu0 %v322
      %370 = vmatpush.bf16.msra.mxu0 %v321
      %371 = vmatpush.bf16.msra.mxu0 %v320
      %372 = vmatpush.bf16.msra.mxu0 %v319
      %373 = vmatmul.bf16.gmra.mxu0 %v235
      %v374 = vpop.f32.mrf.mxu0
      %v375 = vadd.f32 %v361, %v374
      %v376 = vpop.f32.mrf.mxu0
      %v377 = vadd.f32 %v363, %v376
      %378 = vdwg.mxu0
      %379 = vmatpush.bf16.msra.mxu0 0
      %380 = vmatpush.bf16.msra.mxu0 0
      %381 = vmatpush.bf16.msra.mxu0 0
      %382 = vmatpush.bf16.msra.mxu0 0
      %383 = vmatpush.bf16.msra.mxu0 0
      %384 = vmatpush.bf16.msra.mxu0 0
      %385 = vmatpush.bf16.msra.mxu0 %v328
      %386 = vmatpush.bf16.msra.mxu0 %v327
      %387 = vmatmul.bf16.gmra.mxu0 %v349
      %v388 = vpop.f32.mrf.mxu0
      %v389 = vadd.f32 %v375, %v388
      %v390 = vpop.f32.mrf.mxu0
      %v391 = vadd.f32 %v377, %v390
      %392 = vdwg.mxu0
      %vm393 = vcmp.ge.f32.partialorder %v389, 0.0
      %vm394 = vcmp.ge.f32.partialorder %v391, 0.0
      %v395 = vmul.f32 %v389, 0.01
      %v396 = vmul.f32 %v391, 0.01
      %v397 = vsel %vm393, %v389, %v395
      %v398 = vsel %vm394, %v391, %v396
      %vm399 = vcmask 31744
      %v400 = vsel %vm399, %v397, 0.0
      %401 = vadd.xlane.f32.xlu0 %v400
      %v402 = vpop.xlane.xlu0 %401
      %v403 = vsel %vm399, %v398, 0.0
      %404 = vadd.xlane.f32.xlu0 %v403
      %v405 = vpop.xlane.xlu0 %404
      %s406 = scalar_lea.vmem %s1, 24
      %v407 = vld [vmem:[%s406] sm:$0xff]
      %v408 = vld [vmem:[%s406 + $0x8] sm:$0xf]
      %v409 = vld [vmem:[%s406 + $0xc] sm:$0xff]
      %v410 = vld [vmem:[%s406 + $0x14] sm:$0xf]
      %s411 = scalar_lea.vmem %s165, 144
      %v412 = vld [vmem:[%s411] sm:$0xf]
      %v413 = vld [vmem:[%s411 + $0x4] sm:$0xf]
      %v414 = vld [vmem:[%s411 + $0x8] sm:$0xf]
      %v415 = vld [vmem:[%s411 + $0xc] sm:$0xf]
      %v416 = vld [vmem:[%s411 + $0x10] sm:$0xf]
      %v417 = vld [vmem:[%s411 + $0x14] sm:$0xf]
      %v418 = vld [vmem:[%s411 + $0x18] sm:$0xf]
      %v419 = vld [vmem:[%s411 + $0x1c] sm:$0xf]
      %v420 = vld [vmem:[%s411 + $0x20] sm:$0xf]
      %v421 = vld [vmem:[%s411 + $0x24] sm:$0xf]
      %v422 = vld [vmem:[%s411 + $0x28] sm:$0xf]
      %v423 = vld [vmem:[%s411 + $0x2c] sm:$0xf]
      %v424 = vld [vmem:[%s411 + $0x30] sm:$0xf]
      %v425 = vld [vmem:[%s411 + $0x34] sm:$0xf]
      %v426 = vld [vmem:[%s411 + $0x38] sm:$0xf]
      %v427 = vld [vmem:[%s411 + $0x3c] sm:$0xf]
      %v428 = vld [vmem:[%s411 + $0x40] sm:$0xf]
      %v429 = vld [vmem:[%s411 + $0x44] sm:$0xf]
      %v430 = vld [vmem:[%s411 + $0x48] sm:$0xf]
      %v431 = vld [vmem:[%s411 + $0x4c] sm:$0xf]
      %v432 = vld [vmem:[%s411 + $0x50] sm:$0xf]
      %v433 = vld [vmem:[%s411 + $0x54] sm:$0xf]
      %v434 = vld [vmem:[%s411 + $0x58] sm:$0xf]
      %v435 = vld [vmem:[%s411 + $0x5c] sm:$0xf]
      %v436 = vld [vmem:[%s411 + $0x60] sm:$0xf]
      %v437 = vld [vmem:[%s411 + $0x64] sm:$0xf]
      %v438 = vld [vmem:[%s411 + $0x68] sm:$0xf]
      %v439 = vld [vmem:[%s411 + $0x6c] sm:$0xf]
      %v440 = vld [vmem:[%s411 + $0x70] sm:$0xf]
      %v441 = vld [vmem:[%s411 + $0x74] sm:$0xf]
      %v442 = vld [vmem:[%s411 + $0x78] sm:$0xf]
      %v443 = vld [vmem:[%s411 + $0x7c] sm:$0xf]
      %v444 = vld [vmem:[%s411 + $0x80] sm:$0xf]
      %v445 = vld [vmem:[%s411 + $0x84] sm:$0xf]
      %v446 = vld [vmem:[%s411 + $0x88] sm:$0xf]
      %v447 = vld [vmem:[%s411 + $0x8c] sm:$0xf]
      %v452 = vunpack.c.l.b16 %v407
      %v453 = vunpack.c.h.b16 %v407
      %v454 = vunpack.c.l.b16 %v408
      %v455 = vunpack.c.l.b16 %v409
      %v456 = vunpack.c.h.b16 %v409
      %v457 = vunpack.c.l.b16 %v410
      %v458 = vpack.c.b16 %v455, %v452
      %v459 = vpack.c.b16 %v456, %v453
      %v460 = vpack.c.b16 %v457, %v454
      %v499 = vunpack.c.l.b16 %v412
      %v500 = vunpack.c.l.b16 %v413
      %v501 = vunpack.c.l.b16 %v414
      %v502 = vunpack.c.l.b16 %v415
      %v503 = vunpack.c.l.b16 %v416
      %v504 = vunpack.c.l.b16 %v417
      %v505 = vunpack.c.l.b16 %v418
      %v506 = vunpack.c.l.b16 %v419
      %v507 = vunpack.c.l.b16 %v420
      %v508 = vunpack.c.l.b16 %v421
      %v509 = vunpack.c.l.b16 %v422
      %v510 = vunpack.c.l.b16 %v423
      %v511 = vunpack.c.l.b16 %v424
      %v512 = vunpack.c.l.b16 %v425
      %v513 = vunpack.c.l.b16 %v426
      %v514 = vunpack.c.l.b16 %v427
      %v515 = vunpack.c.l.b16 %v428
      %v516 = vunpack.c.l.b16 %v429
      %v517 = vunpack.c.l.b16 %v430
      %v518 = vunpack.c.l.b16 %v431
      %v519 = vunpack.c.l.b16 %v432
      %v520 = vunpack.c.l.b16 %v433
      %v521 = vunpack.c.l.b16 %v434
      %v522 = vunpack.c.l.b16 %v435
      %v523 = vunpack.c.l.b16 %v436
      %v524 = vunpack.c.l.b16 %v437
      %v525 = vunpack.c.l.b16 %v438
      %v526 = vunpack.c.l.b16 %v439
      %v527 = vunpack.c.l.b16 %v440
      %v528 = vunpack.c.l.b16 %v441
      %v529 = vunpack.c.l.b16 %v442
      %v530 = vunpack.c.l.b16 %v443
      %v531 = vunpack.c.l.b16 %v444
      %v532 = vunpack.c.l.b16 %v445
      %v533 = vunpack.c.l.b16 %v446
      %v534 = vunpack.c.l.b16 %v447
      %v535 = vpack.c.b16 %v500, %v499
      %v536 = vpack.c.b16 %v502, %v501
      %v537 = vpack.c.b16 %v504, %v503
      %v538 = vpack.c.b16 %v506, %v505
      %v539 = vpack.c.b16 %v508, %v507
      %v540 = vpack.c.b16 %v510, %v509
      %v541 = vpack.c.b16 %v512, %v511
      %v542 = vpack.c.b16 %v514, %v513
      %v543 = vpack.c.b16 %v516, %v515
      %v544 = vpack.c.b16 %v518, %v517
      %v545 = vpack.c.b16 %v520, %v519
      %v546 = vpack.c.b16 %v522, %v521
      %v547 = vpack.c.b16 %v524, %v523
      %v548 = vpack.c.b16 %v526, %v525
      %v549 = vpack.c.b16 %v528, %v527
      %v550 = vpack.c.b16 %v530, %v529
      %v551 = vpack.c.b16 %v532, %v531
      %v552 = vpack.c.b16 %v534, %v533
      %v572 = vsel %vm347, %v460, 0
      %574 = vmatpush.bf16.msra.mxu0 %v542
      %575 = vmatpush.bf16.msra.mxu0 %v541
      %576 = vmatpush.bf16.msra.mxu0 %v540
      %577 = vmatpush.bf16.msra.mxu0 %v539
      %578 = vmatpush.bf16.msra.mxu0 %v538
      %579 = vmatpush.bf16.msra.mxu0 %v537
      %580 = vmatpush.bf16.msra.mxu0 %v536
      %581 = vmatpush.bf16.msra.mxu0 %v535
      %582 = vmatmul.bf16.gmra.mxu0 %v458
      %v583 = vpop.f32.mrf.mxu0
      %v584 = vadd.f32 %v217, %v583
      %v585 = vpop.f32.mrf.mxu0
      %v586 = vadd.f32 %v222, %v585
      %587 = vdwg.mxu0
      %588 = vmatpush.bf16.msra.mxu0 %v550
      %589 = vmatpush.bf16.msra.mxu0 %v549
      %590 = vmatpush.bf16.msra.mxu0 %v548
      %591 = vmatpush.bf16.msra.mxu0 %v547
      %592 = vmatpush.bf16.msra.mxu0 %v546
      %593 = vmatpush.bf16.msra.mxu0 %v545
      %594 = vmatpush.bf16.msra.mxu0 %v544
      %595 = vmatpush.bf16.msra.mxu0 %v543
      %596 = vmatmul.bf16.gmra.mxu0 %v459
      %v597 = vpop.f32.mrf.mxu0
      %v598 = vadd.f32 %v584, %v597
      %v599 = vpop.f32.mrf.mxu0
      %v600 = vadd.f32 %v586, %v599
      %601 = vdwg.mxu0
      %602 = vmatpush.bf16.msra.mxu0 0
      %603 = vmatpush.bf16.msra.mxu0 0
      %604 = vmatpush.bf16.msra.mxu0 0
      %605 = vmatpush.bf16.msra.mxu0 0
      %606 = vmatpush.bf16.msra.mxu0 0
      %607 = vmatpush.bf16.msra.mxu0 0
      %608 = vmatpush.bf16.msra.mxu0 %v552
      %609 = vmatpush.bf16.msra.mxu0 %v551
      %610 = vmatmul.bf16.gmra.mxu0 %v572
      %v611 = vpop.f32.mrf.mxu0
      %v612 = vadd.f32 %v598, %v611
      %v613 = vpop.f32.mrf.mxu0
      %v614 = vadd.f32 %v600, %v613
      %615 = vdwg.mxu0
      %vm616 = vcmp.ge.f32.partialorder %v612, 0.0
      %vm617 = vcmp.ge.f32.partialorder %v614, 0.0
      %v618 = vmul.f32 %v612, 0.01
      %v619 = vmul.f32 %v614, 0.01
      %v620 = vsel %vm616, %v612, %v618
      %v621 = vsel %vm617, %v614, %v619
      %v622 = vsel %vm399, %v620, 0.0
      %623 = vadd.xlane.f32.xlu0 %v622
      %v624 = vpop.xlane.xlu0 %623
      %v625 = vsel %vm399, %v621, 0.0
      %626 = vadd.xlane.f32.xlu0 %v625
      %v627 = vpop.xlane.xlu0 %626
      %v628 = vadd.f32 %v402, %v624
      %v629 = vadd.f32 %v405, %v627
      %s630 = scalar_lea.vmem %s1, 48
      %v631 = vld [vmem:[%s630] sm:$0xff]
      %v632 = vld [vmem:[%s630 + $0x8] sm:$0xf]
      %v633 = vld [vmem:[%s630 + $0xc] sm:$0xff]
      %v634 = vld [vmem:[%s630 + $0x14] sm:$0xf]
      %s635 = scalar_lea.vmem %s165, 288
      %v636 = vld [vmem:[%s635] sm:$0xf]
      %v637 = vld [vmem:[%s635 + $0x4] sm:$0xf]
      %v638 = vld [vmem:[%s635 + $0x8] sm:$0xf]
      %v639 = vld [vmem:[%s635 + $0xc] sm:$0xf]
      %v640 = vld [vmem:[%s635 + $0x10] sm:$0xf]
      %v641 = vld [vmem:[%s635 + $0x14] sm:$0xf]
      %v642 = vld [vmem:[%s635 + $0x18] sm:$0xf]
      %v643 = vld [vmem:[%s635 + $0x1c] sm:$0xf]
      %v644 = vld [vmem:[%s635 + $0x20] sm:$0xf]
      %v645 = vld [vmem:[%s635 + $0x24] sm:$0xf]
      %v646 = vld [vmem:[%s635 + $0x28] sm:$0xf]
      %v647 = vld [vmem:[%s635 + $0x2c] sm:$0xf]
      %v648 = vld [vmem:[%s635 + $0x30] sm:$0xf]
      %v649 = vld [vmem:[%s635 + $0x34] sm:$0xf]
      %v650 = vld [vmem:[%s635 + $0x38] sm:$0xf]
      %v651 = vld [vmem:[%s635 + $0x3c] sm:$0xf]
      %v652 = vld [vmem:[%s635 + $0x40] sm:$0xf]
      %v653 = vld [vmem:[%s635 + $0x44] sm:$0xf]
      %v654 = vld [vmem:[%s635 + $0x48] sm:$0xf]
      %v655 = vld [vmem:[%s635 + $0x4c] sm:$0xf]
      %v656 = vld [vmem:[%s635 + $0x50] sm:$0xf]
      %v657 = vld [vmem:[%s635 + $0x54] sm:$0xf]
      %v658 = vld [vmem:[%s635 + $0x58] sm:$0xf]
      %v659 = vld [vmem:[%s635 + $0x5c] sm:$0xf]
      %v660 = vld [vmem:[%s635 + $0x60] sm:$0xf]
      %v661 = vld [vmem:[%s635 + $0x64] sm:$0xf]
      %v662 = vld [vmem:[%s635 + $0x68] sm:$0xf]
      %v663 = vld [vmem:[%s635 + $0x6c] sm:$0xf]
      %v664 = vld [vmem:[%s635 + $0x70] sm:$0xf]
      %v665 = vld [vmem:[%s635 + $0x74] sm:$0xf]
      %v666 = vld [vmem:[%s635 + $0x78] sm:$0xf]
      %v667 = vld [vmem:[%s635 + $0x7c] sm:$0xf]
      %v668 = vld [vmem:[%s635 + $0x80] sm:$0xf]
      %v669 = vld [vmem:[%s635 + $0x84] sm:$0xf]
      %v670 = vld [vmem:[%s635 + $0x88] sm:$0xf]
      %v671 = vld [vmem:[%s635 + $0x8c] sm:$0xf]
      %v676 = vunpack.c.l.b16 %v631
      %v677 = vunpack.c.h.b16 %v631
      %v678 = vunpack.c.l.b16 %v632
      %v679 = vunpack.c.l.b16 %v633
      %v680 = vunpack.c.h.b16 %v633
      %v681 = vunpack.c.l.b16 %v634
      %v682 = vpack.c.b16 %v679, %v676
      %v683 = vpack.c.b16 %v680, %v677
      %v684 = vpack.c.b16 %v681, %v678
      %v723 = vunpack.c.l.b16 %v636
      %v724 = vunpack.c.l.b16 %v637
      %v725 = vunpack.c.l.b16 %v638
      %v726 = vunpack.c.l.b16 %v639
      %v727 = vunpack.c.l.b16 %v640
      %v728 = vunpack.c.l.b16 %v641
      %v729 = vunpack.c.l.b16 %v642
      %v730 = vunpack.c.l.b16 %v643
      %v731 = vunpack.c.l.b16 %v644
      %v732 = vunpack.c.l.b16 %v645
      %v733 = vunpack.c.l.b16 %v646
      %v734 = vunpack.c.l.b16 %v647
      %v735 = vunpack.c.l.b16 %v648
      %v736 = vunpack.c.l.b16 %v649
      %v737 = vunpack.c.l.b16 %v650
      %v738 = vunpack.c.l.b16 %v651
      %v739 = vunpack.c.l.b16 %v652
      %v740 = vunpack.c.l.b16 %v653
      %v741 = vunpack.c.l.b16 %v654
      %v742 = vunpack.c.l.b16 %v655
      %v743 = vunpack.c.l.b16 %v656
      %v744 = vunpack.c.l.b16 %v657
      %v745 = vunpack.c.l.b16 %v658
      %v746 = vunpack.c.l.b16 %v659
      %v747 = vunpack.c.l.b16 %v660
      %v748 = vunpack.c.l.b16 %v661
      %v749 = vunpack.c.l.b16 %v662
      %v750 = vunpack.c.l.b16 %v663
      %v751 = vunpack.c.l.b16 %v664
      %v752 = vunpack.c.l.b16 %v665
      %v753 = vunpack.c.l.b16 %v666
      %v754 = vunpack.c.l.b16 %v667
      %v755 = vunpack.c.l.b16 %v668
      %v756 = vunpack.c.l.b16 %v669
      %v757 = vunpack.c.l.b16 %v670
      %v758 = vunpack.c.l.b16 %v671
      %v759 = vpack.c.b16 %v724, %v723
      %v760 = vpack.c.b16 %v726, %v725
      %v761 = vpack.c.b16 %v728, %v727
      %v762 = vpack.c.b16 %v730, %v729
      %v763 = vpack.c.b16 %v732, %v731
      %v764 = vpack.c.b16 %v734, %v733
      %v765 = vpack.c.b16 %v736, %v735
      %v766 = vpack.c.b16 %v738, %v737
      %v767 = vpack.c.b16 %v740, %v739
      %v768 = vpack.c.b16 %v742, %v741
      %v769 = vpack.c.b16 %v744, %v743
      %v770 = vpack.c.b16 %v746, %v745
      %v771 = vpack.c.b16 %v748, %v747
      %v772 = vpack.c.b16 %v750, %v749
      %v773 = vpack.c.b16 %v752, %v751
      %v774 = vpack.c.b16 %v754, %v753
      %v775 = vpack.c.b16 %v756, %v755
      %v776 = vpack.c.b16 %v758, %v757
      %v796 = vsel %vm347, %v684, 0
      %798 = vmatpush.bf16.msra.mxu0 %v766
      %799 = vmatpush.bf16.msra.mxu0 %v765
      %800 = vmatpush.bf16.msra.mxu0 %v764
      %801 = vmatpush.bf16.msra.mxu0 %v763
      %802 = vmatpush.bf16.msra.mxu0 %v762
      %803 = vmatpush.bf16.msra.mxu0 %v761
      %804 = vmatpush.bf16.msra.mxu0 %v760
      %805 = vmatpush.bf16.msra.mxu0 %v759
      %806 = vmatmul.bf16.gmra.mxu0 %v682
      %v807 = vpop.f32.mrf.mxu0
      %v808 = vadd.f32 %v217, %v807
      %v809 = vpop.f32.mrf.mxu0
      %v810 = vadd.f32 %v222, %v809
      %811 = vdwg.mxu0
      %812 = vmatpush.bf16.msra.mxu0 %v774
      %813 = vmatpush.bf16.msra.mxu0 %v773
      %814 = vmatpush.bf16.msra.mxu0 %v772
      %815 = vmatpush.bf16.msra.mxu0 %v771
      %816 = vmatpush.bf16.msra.mxu0 %v770
      %817 = vmatpush.bf16.msra.mxu0 %v769
      %818 = vmatpush.bf16.msra.mxu0 %v768
      %819 = vmatpush.bf16.msra.mxu0 %v767
      %820 = vmatmul.bf16.gmra.mxu0 %v683
      %v821 = vpop.f32.mrf.mxu0
      %v822 = vadd.f32 %v808, %v821
      %v823 = vpop.f32.mrf.mxu0
      %v824 = vadd.f32 %v810, %v823
      %825 = vdwg.mxu0
      %826 = vmatpush.bf16.msra.mxu0 0
      %827 = vmatpush.bf16.msra.mxu0 0
      %828 = vmatpush.bf16.msra.mxu0 0
      %829 = vmatpush.bf16.msra.mxu0 0
      %830 = vmatpush.bf16.msra.mxu0 0
      %831 = vmatpush.bf16.msra.mxu0 0
      %832 = vmatpush.bf16.msra.mxu0 %v776
      %833 = vmatpush.bf16.msra.mxu0 %v775
      %834 = vmatmul.bf16.gmra.mxu0 %v796
      %v835 = vpop.f32.mrf.mxu0
      %v836 = vadd.f32 %v822, %v835
      %v837 = vpop.f32.mrf.mxu0
      %v838 = vadd.f32 %v824, %v837
      %839 = vdwg.mxu0
      %vm840 = vcmp.ge.f32.partialorder %v836, 0.0
      %vm841 = vcmp.ge.f32.partialorder %v838, 0.0
      %v842 = vmul.f32 %v836, 0.01
      %v843 = vmul.f32 %v838, 0.01
      %v844 = vsel %vm840, %v836, %v842
      %v845 = vsel %vm841, %v838, %v843
      %v846 = vsel %vm399, %v844, 0.0
      %847 = vadd.xlane.f32.xlu0 %v846
      %v848 = vpop.xlane.xlu0 %847
      %v849 = vsel %vm399, %v845, 0.0
      %850 = vadd.xlane.f32.xlu0 %v849
      %v851 = vpop.xlane.xlu0 %850
      %v852 = vadd.f32 %v628, %v848
      %v853 = vadd.f32 %v629, %v851
      %s854 = scalar_lea.vmem %s1, 72
      %v855 = vld [vmem:[%s854] sm:$0xff]
      %v856 = vld [vmem:[%s854 + $0x8] sm:$0xf]
      %v857 = vld [vmem:[%s854 + $0xc] sm:$0xff]
      %v858 = vld [vmem:[%s854 + $0x14] sm:$0xf]
      %s859 = scalar_lea.vmem %s165, 432
      %v860 = vld [vmem:[%s859] sm:$0xf]
      %v861 = vld [vmem:[%s859 + $0x4] sm:$0xf]
      %v862 = vld [vmem:[%s859 + $0x8] sm:$0xf]
      %v863 = vld [vmem:[%s859 + $0xc] sm:$0xf]
      %v864 = vld [vmem:[%s859 + $0x10] sm:$0xf]
      %v865 = vld [vmem:[%s859 + $0x14] sm:$0xf]
      %v866 = vld [vmem:[%s859 + $0x18] sm:$0xf]
      %v867 = vld [vmem:[%s859 + $0x1c] sm:$0xf]
      %v868 = vld [vmem:[%s859 + $0x20] sm:$0xf]
      %v869 = vld [vmem:[%s859 + $0x24] sm:$0xf]
      %v870 = vld [vmem:[%s859 + $0x28] sm:$0xf]
      %v871 = vld [vmem:[%s859 + $0x2c] sm:$0xf]
      %v872 = vld [vmem:[%s859 + $0x30] sm:$0xf]
      %v873 = vld [vmem:[%s859 + $0x34] sm:$0xf]
      %v874 = vld [vmem:[%s859 + $0x38] sm:$0xf]
      %v875 = vld [vmem:[%s859 + $0x3c] sm:$0xf]
      %v876 = vld [vmem:[%s859 + $0x40] sm:$0xf]
      %v877 = vld [vmem:[%s859 + $0x44] sm:$0xf]
      %v878 = vld [vmem:[%s859 + $0x48] sm:$0xf]
      %v879 = vld [vmem:[%s859 + $0x4c] sm:$0xf]
      %v880 = vld [vmem:[%s859 + $0x50] sm:$0xf]
      %v881 = vld [vmem:[%s859 + $0x54] sm:$0xf]
      %v882 = vld [vmem:[%s859 + $0x58] sm:$0xf]
      %v883 = vld [vmem:[%s859 + $0x5c] sm:$0xf]
      %v884 = vld [vmem:[%s859 + $0x60] sm:$0xf]
      %v885 = vld [vmem:[%s859 + $0x64] sm:$0xf]
      %v886 = vld [vmem:[%s859 + $0x68] sm:$0xf]
      %v887 = vld [vmem:[%s859 + $0x6c] sm:$0xf]
      %v888 = vld [vmem:[%s859 + $0x70] sm:$0xf]
      %v889 = vld [vmem:[%s859 + $0x74] sm:$0xf]
      %v890 = vld [vmem:[%s859 + $0x78] sm:$0xf]
      %v891 = vld [vmem:[%s859 + $0x7c] sm:$0xf]
      %v892 = vld [vmem:[%s859 + $0x80] sm:$0xf]
      %v893 = vld [vmem:[%s859 + $0x84] sm:$0xf]
      %v894 = vld [vmem:[%s859 + $0x88] sm:$0xf]
      %v895 = vld [vmem:[%s859 + $0x8c] sm:$0xf]
      %v900 = vunpack.c.l.b16 %v855
      %v901 = vunpack.c.h.b16 %v855
      %v902 = vunpack.c.l.b16 %v856
      %v903 = vunpack.c.l.b16 %v857
      %v904 = vunpack.c.h.b16 %v857
      %v905 = vunpack.c.l.b16 %v858
      %v906 = vpack.c.b16 %v903, %v900
      %v907 = vpack.c.b16 %v904, %v901
      %v908 = vpack.c.b16 %v905, %v902
      %v947 = vunpack.c.l.b16 %v860
      %v948 = vunpack.c.l.b16 %v861
      %v949 = vunpack.c.l.b16 %v862
      %v950 = vunpack.c.l.b16 %v863
      %v951 = vunpack.c.l.b16 %v864
      %v952 = vunpack.c.l.b16 %v865
      %v953 = vunpack.c.l.b16 %v866
      %v954 = vunpack.c.l.b16 %v867
      %v955 = vunpack.c.l.b16 %v868
      %v956 = vunpack.c.l.b16 %v869
      %v957 = vunpack.c.l.b16 %v870
      %v958 = vunpack.c.l.b16 %v871
      %v959 = vunpack.c.l.b16 %v872
      %v960 = vunpack.c.l.b16 %v873
      %v961 = vunpack.c.l.b16 %v874
      %v962 = vunpack.c.l.b16 %v875
      %v963 = vunpack.c.l.b16 %v876
      %v964 = vunpack.c.l.b16 %v877
      %v965 = vunpack.c.l.b16 %v878
      %v966 = vunpack.c.l.b16 %v879
      %v967 = vunpack.c.l.b16 %v880
      %v968 = vunpack.c.l.b16 %v881
      %v969 = vunpack.c.l.b16 %v882
      %v970 = vunpack.c.l.b16 %v883
      %v971 = vunpack.c.l.b16 %v884
      %v972 = vunpack.c.l.b16 %v885
      %v973 = vunpack.c.l.b16 %v886
      %v974 = vunpack.c.l.b16 %v887
      %v975 = vunpack.c.l.b16 %v888
      %v976 = vunpack.c.l.b16 %v889
      %v977 = vunpack.c.l.b16 %v890
      %v978 = vunpack.c.l.b16 %v891
      %v979 = vunpack.c.l.b16 %v892
      %v980 = vunpack.c.l.b16 %v893
      %v981 = vunpack.c.l.b16 %v894
      %v982 = vunpack.c.l.b16 %v895
      %v983 = vpack.c.b16 %v948, %v947
      %v984 = vpack.c.b16 %v950, %v949
      %v985 = vpack.c.b16 %v952, %v951
      %v986 = vpack.c.b16 %v954, %v953
      %v987 = vpack.c.b16 %v956, %v955
      %v988 = vpack.c.b16 %v958, %v957
      %v989 = vpack.c.b16 %v960, %v959
      %v990 = vpack.c.b16 %v962, %v961
      %v991 = vpack.c.b16 %v964, %v963
      %v992 = vpack.c.b16 %v966, %v965
      %v993 = vpack.c.b16 %v968, %v967
      %v994 = vpack.c.b16 %v970, %v969
      %v995 = vpack.c.b16 %v972, %v971
      %v996 = vpack.c.b16 %v974, %v973
      %v997 = vpack.c.b16 %v976, %v975
      %v998 = vpack.c.b16 %v978, %v977
      %v999 = vpack.c.b16 %v980, %v979
      %v1000 = vpack.c.b16 %v982, %v981
      %v1020 = vsel %vm347, %v908, 0
      %1022 = vmatpush.bf16.msra.mxu0 %v990
      %1023 = vmatpush.bf16.msra.mxu0 %v989
      %1024 = vmatpush.bf16.msra.mxu0 %v988
      %1025 = vmatpush.bf16.msra.mxu0 %v987
      %1026 = vmatpush.bf16.msra.mxu0 %v986
      %1027 = vmatpush.bf16.msra.mxu0 %v985
      %1028 = vmatpush.bf16.msra.mxu0 %v984
      %1029 = vmatpush.bf16.msra.mxu0 %v983
      %1030 = vmatmul.bf16.gmra.mxu0 %v906
      %v1031 = vpop.f32.mrf.mxu0
      %v1032 = vadd.f32 %v217, %v1031
      %v1033 = vpop.f32.mrf.mxu0
      %v1034 = vadd.f32 %v222, %v1033
      %1035 = vdwg.mxu0
      %1036 = vmatpush.bf16.msra.mxu0 %v998
      %1037 = vmatpush.bf16.msra.mxu0 %v997
      %1038 = vmatpush.bf16.msra.mxu0 %v996
      %1039 = vmatpush.bf16.msra.mxu0 %v995
      %1040 = vmatpush.bf16.msra.mxu0 %v994
      %1041 = vmatpush.bf16.msra.mxu0 %v993
      %1042 = vmatpush.bf16.msra.mxu0 %v992
      %1043 = vmatpush.bf16.msra.mxu0 %v991
      %1044 = vmatmul.bf16.gmra.mxu0 %v907
      %v1045 = vpop.f32.mrf.mxu0
      %v1046 = vadd.f32 %v1032, %v1045
      %v1047 = vpop.f32.mrf.mxu0
      %v1048 = vadd.f32 %v1034, %v1047
      %1049 = vdwg.mxu0
      %1050 = vmatpush.bf16.msra.mxu0 0
      %1051 = vmatpush.bf16.msra.mxu0 0
      %1052 = vmatpush.bf16.msra.mxu0 0
      %1053 = vmatpush.bf16.msra.mxu0 0
      %1054 = vmatpush.bf16.msra.mxu0 0
      %1055 = vmatpush.bf16.msra.mxu0 0
      %1056 = vmatpush.bf16.msra.mxu0 %v1000
      %1057 = vmatpush.bf16.msra.mxu0 %v999
      %1058 = vmatmul.bf16.gmra.mxu0 %v1020
      %v1059 = vpop.f32.mrf.mxu0
      %v1060 = vadd.f32 %v1046, %v1059
      %v1061 = vpop.f32.mrf.mxu0
      %v1062 = vadd.f32 %v1048, %v1061
      %1063 = vdwg.mxu0
      %vm1064 = vcmp.ge.f32.partialorder %v1060, 0.0
      %vm1065 = vcmp.ge.f32.partialorder %v1062, 0.0
      %v1066 = vmul.f32 %v1060, 0.01
      %v1067 = vmul.f32 %v1062, 0.01
      %v1068 = vsel %vm1064, %v1060, %v1066
      %v1069 = vsel %vm1065, %v1062, %v1067
      %v1070 = vsel %vm399, %v1068, 0.0
      %1071 = vadd.xlane.f32.xlu0 %v1070
      %v1072 = vpop.xlane.xlu0 %1071
      %v1073 = vsel %vm399, %v1069, 0.0
      %1074 = vadd.xlane.f32.xlu0 %v1073
      %v1075 = vpop.xlane.xlu0 %1074
      %v1076 = vadd.f32 %v852, %v1072
      %v1077 = vadd.f32 %v853, %v1075
      %v1078 = vrcp.pop 16.0
      %v1079 = vmul.f32 16.0, %v1078
      %v1080 = vsub.f32 1.0, %v1079
      %v1081 = vmul.f32 %v1078, %v1080
      %v1082 = vadd.f32 %v1078, %v1081
      %vm1083 = vweird.f32 %v1078
      %v1084 = vsel %vm1083, %v1078, %v1082
      %v1085 = vmul.f32 %v1076, %v1084
      %v1086 = vmul.f32 %v1077, %v1084
      %v1087 = vsub.f32 %v397, %v1085
      %v1088 = vsub.f32 %v398, %v1086
      %v1089 = vmul.f32 %v1087, %v1087
      %v1090 = vmul.f32 %v1088, %v1088
      %v1091 = vsel %vm399, %v1089, 0.0
      %1092 = vadd.xlane.f32.xlu0 %v1091
      %v1093 = vpop.xlane.xlu0 %1092
      %v1094 = vsel %vm399, %v1090, 0.0
      %1095 = vadd.xlane.f32.xlu0 %v1094
      %v1096 = vpop.xlane.xlu0 %1095
      %v1097 = vsub.f32 %v620, %v1085
      %v1098 = vsub.f32 %v621, %v1086
      %v1099 = vmul.f32 %v1097, %v1097
      %v1100 = vmul.f32 %v1098, %v1098
      %v1101 = vsel %vm399, %v1099, 0.0
      %1102 = vadd.xlane.f32.xlu0 %v1101
      %v1103 = vpop.xlane.xlu0 %1102
      %v1104 = vsel %vm399, %v1100, 0.0
      %1105 = vadd.xlane.f32.xlu0 %v1104
      %v1106 = vpop.xlane.xlu0 %1105
      %v1107 = vadd.f32 %v1093, %v1103
      %v1108 = vadd.f32 %v1096, %v1106
      %v1109 = vsub.f32 %v844, %v1085
      %v1110 = vsub.f32 %v845, %v1086
      %v1111 = vmul.f32 %v1109, %v1109
      %v1112 = vmul.f32 %v1110, %v1110
      %v1113 = vsel %vm399, %v1111, 0.0
      %1114 = vadd.xlane.f32.xlu0 %v1113
      %v1115 = vpop.xlane.xlu0 %1114
      %v1116 = vsel %vm399, %v1112, 0.0
      %1117 = vadd.xlane.f32.xlu0 %v1116
      %v1118 = vpop.xlane.xlu0 %1117
      %v1119 = vadd.f32 %v1107, %v1115
      %v1120 = vadd.f32 %v1108, %v1118
      %v1121 = vsub.f32 %v1068, %v1085
      %v1122 = vsub.f32 %v1069, %v1086
      %v1123 = vmul.f32 %v1121, %v1121
      %v1124 = vmul.f32 %v1122, %v1122
      %v1125 = vsel %vm399, %v1123, 0.0
      %1126 = vadd.xlane.f32.xlu0 %v1125
      %v1127 = vpop.xlane.xlu0 %1126
      %v1128 = vsel %vm399, %v1124, 0.0
      %1129 = vadd.xlane.f32.xlu0 %v1128
      %v1130 = vpop.xlane.xlu0 %1129
      %v1131 = vadd.f32 %v1119, %v1127
      %v1132 = vadd.f32 %v1120, %v1130
      %v1133 = vmul.f32 %v1131, %v1084
      %v1134 = vmul.f32 %v1132, %v1084
      %v1135 = vadd.f32 %v1133, 1e-05
      %v1136 = vadd.f32 %v1134, 1e-05
      %v1137 = vrsqrt.pop %v1135
      %v1138 = vmul.f32 %v1137, %v1135
      %v1139 = vmul.f32 %v1138, %v1137
      %v1140 = vmul.f32 0.5, %v1139
      %v1141 = vsub.f32 1.5, %v1140
      %v1142 = vmul.f32 %v1137, %v1141
      %vm1143 = vweird.f32 %v1135
      %vm1144 = vweird.f32 %v1137
      %vm1145 = vmor %vm1143, %vm1144
      %v1146 = vsel %vm1145, %v1137, %v1142
      %v1147 = vrsqrt.pop %v1136
      %v1148 = vmul.f32 %v1147, %v1136
      %v1149 = vmul.f32 %v1148, %v1147
      %v1150 = vmul.f32 0.5, %v1149
      %v1151 = vsub.f32 1.5, %v1150
      %v1152 = vmul.f32 %v1147, %v1151
      %vm1153 = vweird.f32 %v1136
      %vm1154 = vweird.f32 %v1147
      %vm1155 = vmor %vm1153, %vm1154
      %v1156 = vsel %vm1155, %v1147, %v1152
      %v1157 = vmul.f32 %v1087, %v1146
      %v1158 = vmul.f32 %v1088, %v1156
      %1159 = vst.msk [vmem:[%s170] sm:$0xff] %vm399, %v1157
      %1160 = vst.msk [vmem:[%s170 + $0x8] sm:$0xff] %vm399, %v1158
      %v1161 = vmul.f32 %v1097, %v1146
      %v1162 = vmul.f32 %v1098, %v1156
      %s1163 = scalar_lea.vmem %s170, 16
      %1164 = vst.msk [vmem:[%s1163] sm:$0xff] %vm399, %v1161
      %1165 = vst.msk [vmem:[%s1163 + $0x8] sm:$0xff] %vm399, %v1162
      %v1166 = vmul.f32 %v1109, %v1146
      %v1167 = vmul.f32 %v1110, %v1156
      %s1168 = scalar_lea.vmem %s170, 32
      %1169 = vst.msk [vmem:[%s1168] sm:$0xff] %vm399, %v1166
      %1170 = vst.msk [vmem:[%s1168 + $0x8] sm:$0xff] %vm399, %v1167
      %v1171 = vmul.f32 %v1121, %v1146
      %v1172 = vmul.f32 %v1122, %v1156
      %s1173 = scalar_lea.vmem %s170, 48
      %1174 = vst.msk [vmem:[%s1173] sm:$0xff] %vm399, %v1171
      %1175 = vst.msk [vmem:[%s1173 + $0x8] sm:$0xff] %vm399, %v1172
      %p1176 = scmp.lt.s32.totalorder %s14, 1
      %s1177 = scalar_select %p1176, %s14, 1
      %s1178 = smul.addr %s1177, 8
      %s1179 = smul.addr %s1178, 8
      %s1180 = scalar_lea.vmem %s3, %s1179
      // Predicated region
      $region33: #{base_unet_forward.17} parent=31 // pred_check
        %p1181 = pneg %p100
      $region34: #{base_unet_forward.17} parent=31 // pred_check_branch
        %1183 = sbr.rel (%p1181) target = $region36
      $region35: #{base_unet_forward.17} parent=31 // pred_region
        _
      $region36: #{base_unet_forward.17} parent=31 // pred_fallthru
        _
    $region32: #{base_unet_forward.17} parent=5 // pred_fallthru
      _
    %p1184 = scmp.le.s32.totalorder 2, %s9
    // Predicated region
    $region37: #{base_unet_forward.17} parent=5 // pred_check
      %p1185 = pneg %p1184
    $region38: #{base_unet_forward.17} parent=5 // pred_check_branch
      %1187 = sbr.rel (%p1185) target = $region40
    $region39: #{base_unet_forward.17} parent=5 // pred_region
      %s1188 = ssub.s32 %s9, 2
      // Predicated region
      $region41: #{base_unet_forward.17} parent=39 // pred_check
        %p1189 = pneg %p106
      $region42: #{base_unet_forward.17} parent=39 // pred_check_branch
        %1191 = sbr.rel (%p1189) target = $region44
      $region43: #{base_unet_forward.17} parent=39 // pred_region
        %p1192 = scmp.lt.s32.totalorder %s15, 1
        %s1193 = scalar_select %p1192, %s15, 1
        %s1194 = smul.addr %s1193, 8
        %s1195 = smul.addr %s1194, 8
        %s1196 = scalar_lea.vmem %s3, %s1195
      $region44: #{base_unet_forward.17} parent=39 // pred_fallthru
        _
    $region40: #{base_unet_forward.17} parent=5 // pred_fallthru
      _
  $region6: #{base_unet_forward.17} parent=0 // loop_footer
    %s13 = sadd.s32 1, %s9
  $region7: #{base_unet_forward.17} parent=0 // loop_footer_branch
    %8 = sbr.rel target = $region3
  $region8: #{base_unet_forward.17} parent=0 // loop_exit
    _

// kernel: base_unet_forward.18
$region0: #{base_unet_forward.18}
  #allocation0 [shape = 'u32[]', space=smem, size = 0x4, offset = 0x4, fixed_abs, tag = 'smem constant byte address 0x4 - core index']
  #allocation1 [shape = 'u32[72,128]{1,0:T(1,128)}', space=vmem, size = 0x9000, scoped, tag = 'internal scratch']
  %s0 = inlined_call_operand.vmem [shape: bf16[2,4,288,16], index: 0, kind: input, shape index: {}]
  %s1 = inlined_call_operand.vmem [shape: bf16[4,16,288], index: 1, kind: input, shape index: {}]
  %s2 = inlined_call_operand.vmem [shape: f32[16,1], index: 2, kind: input, shape index: {}]
  %s3 = inlined_call_operand.vmem [shape: f32[2,4,16,16], index: 3, kind: output, shape index: {}]
  %s4 = sld [smem:[#allocation0]]
  $region45: #{base_unet_forward.18} parent=0
    _
  %s6 = ssub.s32 1, %s4
  %s7 = scalar_select 0, %s6, %s4
  loop: start=0, step=1, limit=4
  $region2: #{base_unet_forward.18} parent=0 // loop_pre_header
    _
  $region3: #{base_unet_forward.18} parent=0 // loop_header
    %s9 = sphi 0, %s13
    %p10 = scmp.ge.s32.totalorder %s9, 4
    %s19 = sphi 0, %s21
    %s22 = sphi 0, %s19
    %s23 = sphi 0, %s22
    %s39 = sphi 0, %s23
    %s43 = sphi 0, %s43
    %s45 = sphi 0, %s43
    %s46 = sphi 0, %s45
    %s60 = sphi 0, %s46
    %s64 = sphi 0, %s64
    %s66 = sphi 0, %s64
    %s67 = sphi 0, %s66
    %s81 = sphi 0, %s67
    %s87 = sphi 0, %s89
    %s90 = sphi 0, %s87
    %s91 = sphi 0, %s90
    %s107 = sphi 0, %s91
  $region4: #{base_unet_forward.18} parent=0 // loop_header_branch
    %12 = sbr.rel (%p10) target = $region8
  $region5: #{base_unet_forward.18} parent=0 // loop_body
    %s14 = ssub.s32 %s9, 1
    %s15 = ssub.s32 %s9, 2
    %s16 = sadd.s32 %s9, 1
    %s17 = ssub.s32 %s9, %s16
    %p18 = scmp.eq.s32.totalorder %s17, 0
    %s20 = sadd.s32 %s19, 1
    %s21 = scalar_select %p18, %s19, %s20
    %p24 = pneg %p18
    %p25 = scmp.eq.s32.totalorder %s9, 1
    %p26 = por %p24, %p25
    %p27 = scmp.ne.s32.totalorder %s19, %s22
    %p28 = scmp.eq.s32.totalorder %s9, 0
    %p29 = por %p27, %p28
    %p30 = scmp.ne.s32.totalorder %s19, %s22
    %p31 = scmp.eq.s32.totalorder %s14, 1
    %p32 = por %p30, %p31
    %p33 = scmp.ne.s32.totalorder %s22, %s23
    %p34 = scmp.eq.s32.totalorder %s14, 0
    %p35 = por %p33, %p34
    %p36 = scmp.ne.s32.totalorder %s22, %s23
    %p37 = scmp.eq.s32.totalorder %s15, 1
    %p38 = por %p36, %p37
    %p40 = scmp.ne.s32.totalorder %s23, %s39
    %p41 = scmp.eq.s32.totalorder %s15, 0
    %p42 = por %p40, %p41
    %s44 = sadd.s32 %s43, 1
    %p47 = scmp.eq.s32.totalorder %s9, 1
    %p48 = scmp.ne.s32.totalorder %s43, %s45
    %p49 = scmp.eq.s32.totalorder %s9, 0
    %p50 = por %p48, %p49
    %p51 = scmp.ne.s32.totalorder %s43, %s45
    %p52 = scmp.eq.s32.totalorder %s14, 1
    %p53 = por %p51, %p52
    %p54 = scmp.ne.s32.totalorder %s45, %s46
    %p55 = scmp.eq.s32.totalorder %s14, 0
    %p56 = por %p54, %p55
    %p57 = scmp.ne.s32.totalorder %s45, %s46
    %p58 = scmp.eq.s32.totalorder %s15, 1
    %p59 = por %p57, %p58
    %p61 = scmp.ne.s32.totalorder %s46, %s60
    %p62 = scmp.eq.s32.totalorder %s15, 0
    %p63 = por %p61, %p62
    %s65 = sadd.s32 %s64, 1
    %p68 = scmp.eq.s32.totalorder %s9, 1
    %p69 = scmp.ne.s32.totalorder %s64, %s66
    %p70 = scmp.eq.s32.totalorder %s9, 0
    %p71 = por %p69, %p70
    %p72 = scmp.ne.s32.totalorder %s64, %s66
    %p73 = scmp.eq.s32.totalorder %s14, 1
    %p74 = por %p72, %p73
    %p75 = scmp.ne.s32.totalorder %s66, %s67
    %p76 = scmp.eq.s32.totalorder %s14, 0
    %p77 = por %p75, %p76
    %p78 = scmp.ne.s32.totalorder %s66, %s67
    %p79 = scmp.eq.s32.totalorder %s15, 1
    %p80 = por %p78, %p79
    %p82 = scmp.ne.s32.totalorder %s67, %s81
    %p83 = scmp.eq.s32.totalorder %s15, 0
    %p84 = por %p82, %p83
    %s85 = ssub.s32 %s9, %s16
    %p86 = scmp.eq.s32.totalorder %s85, 0
    %s88 = sadd.s32 %s87, 1
    %s89 = scalar_select %p86, %s87, %s88
    %p92 = pneg %p86
    %p93 = scmp.eq.s32.totalorder %s9, 1
    %p94 = por %p92, %p93
    %p95 = scmp.ne.s32.totalorder %s87, %s90
    %p96 = scmp.eq.s32.totalorder %s9, 0
    %p97 = por %p95, %p96
    %p98 = scmp.ne.s32.totalorder %s87, %s90
    %p99 = scmp.eq.s32.totalorder %s14, 1
    %p100 = por %p98, %p99
    %p101 = scmp.ne.s32.totalorder %s90, %s91
    %p102 = scmp.eq.s32.totalorder %s14, 0
    %p103 = por %p101, %p102
    %p104 = scmp.ne.s32.totalorder %s90, %s91
    %p105 = scmp.eq.s32.totalorder %s15, 1
    %p106 = por %p104, %p105
    %p108 = scmp.ne.s32.totalorder %s91, %s107
    %p109 = scmp.eq.s32.totalorder %s15, 0
    %p110 = por %p108, %p109
    %p111 = scmp.le.s32.totalorder 1, %s9
    %p112 = scmp.lt.s32.totalorder %s9, 3
    %p113 = pnand %p111, %p112
    %p114 = pneg %p113
    // Predicated region
    $region9: #{base_unet_forward.18} parent=5 // pred_check
      _
    $region10: #{base_unet_forward.18} parent=5 // pred_check_branch
      %116 = sbr.rel (%p113) target = $region12
    $region11: #{base_unet_forward.18} parent=5 // pred_region
      %s117 = ssub.s32 %s9, 1
      // Predicated region
      $region13: #{base_unet_forward.18} parent=11 // pred_check
        %p118 = pneg %p56
      $region14: #{base_unet_forward.18} parent=11 // pred_check_branch
        %120 = sbr.rel (%p118) target = $region16
      $region15: #{base_unet_forward.18} parent=11 // pred_region
        _
      $region16: #{base_unet_forward.18} parent=11 // pred_fallthru
        _
      // Predicated region
      $region17: #{base_unet_forward.18} parent=11 // pred_check
        %p121 = pneg %p77
      $region18: #{base_unet_forward.18} parent=11 // pred_check_branch
        %123 = sbr.rel (%p121) target = $region20
      $region19: #{base_unet_forward.18} parent=11 // pred_region
        _
      $region20: #{base_unet_forward.18} parent=11 // pred_fallthru
        _
    $region12: #{base_unet_forward.18} parent=5 // pred_fallthru
      _
    %p124 = scmp.lt.s32.totalorder %s9, 2
    // Predicated region
    $region21: #{base_unet_forward.18} parent=5 // pred_check
      %p125 = pneg %p124
    $region22: #{base_unet_forward.18} parent=5 // pred_check_branch
      %127 = sbr.rel (%p125) target = $region24
    $region23: #{base_unet_forward.18} parent=5 // pred_region
      // Predicated region
      $region25: #{base_unet_forward.18} parent=23 // pred_check
        %p128 = pneg %p29
      $region26: #{base_unet_forward.18} parent=23 // pred_check_branch
        %130 = sbr.rel (%p128) target = $region28
      $region27: #{base_unet_forward.18} parent=23 // pred_region
        %p131 = scmp.lt.s32.totalorder %s9, 1
        %s132 = scalar_select %p131, %s9, 1
        %s133 = smul.addr %s132, 144
        %s134 = smul.addr %s133, 4
        %s135 = scalar_lea.vmem %s0, %s134
      $region28: #{base_unet_forward.18} parent=23 // pred_fallthru
        _
    $region24: #{base_unet_forward.18} parent=5 // pred_fallthru
      _
    %p136 = scmp.le.s32.totalorder 1, %s9
    %p137 = scmp.lt.s32.totalorder %s9, 3
    %p138 = pnand %p136, %p137
    %p139 = pneg %p138
    // Predicated region
    $region29: #{base_unet_forward.18} parent=5 // pred_check
      _
    $region30: #{base_unet_forward.18} parent=5 // pred_check_branch
      %141 = sbr.rel (%p138) target = $region32
    $region31: #{base_unet_forward.18} parent=5 // pred_region
      %s142 = ssub.s32 %s9, 1
      %p143 = scmp.lt.s32.totalorder %s14, 1
      %s144 = scalar_select %p143, %s14, 1
      %s145 = smul.addr %s144, 144
      %s146 = smul.addr %s145, 4
      %s147 = scalar_lea.vmem %s0, %s146
      %p148 = pneg %p35
      %p149 = pneg %p32
      %p150 = pneg %p56
      %p151 = pneg %p53
      %p152 = pneg %p77
      %p153 = pneg %p74
      %p154 = pneg %p103
      %p155 = pneg %p100
      %p156 = scmp.lt.s32.totalorder %s14, 1
      %s157 = scalar_select %p156, %s14, 1
      %s158 = smul.addr %s157, 8
      %s159 = smul.addr %s158, 8
      %s160 = scalar_lea.vmem %s3, %s159
      %p161 = scmp.lt.s32.totalorder %s14, 1
      %s162 = scalar_select %p161, %s14, 1
      %s163 = smul.addr %s162, 144
      %s164 = smul.addr %s163, 4
      %s165 = scalar_lea.vmem %s0, %s164
      %p166 = scmp.lt.s32.totalorder %s14, 1
      %s167 = scalar_select %p166, %s14, 1
      %s168 = smul.addr %s167, 8
      %s169 = smul.addr %s168, 8
      %s170 = scalar_lea.vmem %s3, %s169
      %v172 = vld [vmem:[%s1] sm:$0xff]
      %v173 = vld [vmem:[%s1 + $0x8] sm:$0xf]
      %v174 = vld [vmem:[%s1 + $0xc] sm:$0xff]
      %v175 = vld [vmem:[%s1 + $0x14] sm:$0xf]
      %v176 = vld [vmem:[%s165] sm:$0xf]
      %v177 = vld [vmem:[%s165 + $0x4] sm:$0xf]
      %v178 = vld [vmem:[%s165 + $0x8] sm:$0xf]
      %v179 = vld [vmem:[%s165 + $0xc] sm:$0xf]
      %v180 = vld [vmem:[%s165 + $0x10] sm:$0xf]
      %v181 = vld [vmem:[%s165 + $0x14] sm:$0xf]
      %v182 = vld [vmem:[%s165 + $0x18] sm:$0xf]
      %v183 = vld [vmem:[%s165 + $0x1c] sm:$0xf]
      %v184 = vld [vmem:[%s165 + $0x20] sm:$0xf]
      %v185 = vld [vmem:[%s165 + $0x24] sm:$0xf]
      %v186 = vld [vmem:[%s165 + $0x28] sm:$0xf]
      %v187 = vld [vmem:[%s165 + $0x2c] sm:$0xf]
      %v188 = vld [vmem:[%s165 + $0x30] sm:$0xf]
      %v189 = vld [vmem:[%s165 + $0x34] sm:$0xf]
      %v190 = vld [vmem:[%s165 + $0x38] sm:$0xf]
      %v191 = vld [vmem:[%s165 + $0x3c] sm:$0xf]
      %v192 = vld [vmem:[%s165 + $0x40] sm:$0xf]
      %v193 = vld [vmem:[%s165 + $0x44] sm:$0xf]
      %v194 = vld [vmem:[%s165 + $0x48] sm:$0xf]
      %v195 = vld [vmem:[%s165 + $0x4c] sm:$0xf]
      %v196 = vld [vmem:[%s165 + $0x50] sm:$0xf]
      %v197 = vld [vmem:[%s165 + $0x54] sm:$0xf]
      %v198 = vld [vmem:[%s165 + $0x58] sm:$0xf]
      %v199 = vld [vmem:[%s165 + $0x5c] sm:$0xf]
      %v200 = vld [vmem:[%s165 + $0x60] sm:$0xf]
      %v201 = vld [vmem:[%s165 + $0x64] sm:$0xf]
      %v202 = vld [vmem:[%s165 + $0x68] sm:$0xf]
      %v203 = vld [vmem:[%s165 + $0x6c] sm:$0xf]
      %v204 = vld [vmem:[%s165 + $0x70] sm:$0xf]
      %v205 = vld [vmem:[%s165 + $0x74] sm:$0xf]
      %v206 = vld [vmem:[%s165 + $0x78] sm:$0xf]
      %v207 = vld [vmem:[%s165 + $0x7c] sm:$0xf]
      %v208 = vld [vmem:[%s165 + $0x80] sm:$0xf]
      %v209 = vld [vmem:[%s165 + $0x84] sm:$0xf]
      %v210 = vld [vmem:[%s165 + $0x88] sm:$0xf]
      %v211 = vld [vmem:[%s165 + $0x8c] sm:$0xf]
      %v212 = vld [vmem:[%s2] sm:$0xff]
      %v213 = vld [vmem:[%s2 + $0x8] sm:$0xff]
      %215 = vset.pattern.permute.xlu0 0
      %216 = vperm.xlu0 %215, %v212
      %v217 = vpop.permute.xlu0 %216
      %220 = vset.pattern.permute.xlu0 0
      %221 = vperm.xlu0 %220, %v213
      %v222 = vpop.permute.xlu0 %221
      %v228 = vunpack.c.l.b16 %v172
      %v229 = vunpack.c.h.b16 %v172
      %v230 = vunpack.c.l.b16 %v173
      %v231 = vunpack.c.l.b16 %v174
      %v232 = vunpack.c.h.b16 %v174
      %v233 = vunpack.c.l.b16 %v175
      %v234 = vpack.c.b16 %v231, %v228
      %v235 = vpack.c.b16 %v232, %v229
      %v236 = vpack.c.b16 %v233, %v230
      %v275 = vunpack.c.l.b16 %v176
      %v276 = vunpack.c.l.b16 %v177
      %v277 = vunpack.c.l.b16 %v178
      %v278 = vunpack.c.l.b16 %v179
      %v279 = vunpack.c.l.b16 %v180
      %v280 = vunpack.c.l.b16 %v181
      %v281 = vunpack.c.l.b16 %v182
      %v282 = vunpack.c.l.b16 %v183
      %v283 = vunpack.c.l.b16 %v184
      %v284 = vunpack.c.l.b16 %v185
      %v285 = vunpack.c.l.b16 %v186
      %v286 = vunpack.c.l.b16 %v187
      %v287 = vunpack.c.l.b16 %v188
      %v288 = vunpack.c.l.b16 %v189
      %v289 = vunpack.c.l.b16 %v190
      %v290 = vunpack.c.l.b16 %v191
      %v291 = vunpack.c.l.b16 %v192
      %v292 = vunpack.c.l.b16 %v193
      %v293 = vunpack.c.l.b16 %v194
      %v294 = vunpack.c.l.b16 %v195
      %v295 = vunpack.c.l.b16 %v196
      %v296 = vunpack.c.l.b16 %v197
      %v297 = vunpack.c.l.b16 %v198
      %v298 = vunpack.c.l.b16 %v199
      %v299 = vunpack.c.l.b16 %v200
      %v300 = vunpack.c.l.b16 %v201
      %v301 = vunpack.c.l.b16 %v202
      %v302 = vunpack.c.l.b16 %v203
      %v303 = vunpack.c.l.b16 %v204
      %v304 = vunpack.c.l.b16 %v205
      %v305 = vunpack.c.l.b16 %v206
      %v306 = vunpack.c.l.b16 %v207
      %v307 = vunpack.c.l.b16 %v208
      %v308 = vunpack.c.l.b16 %v209
      %v309 = vunpack.c.l.b16 %v210
      %v310 = vunpack.c.l.b16 %v211
      %v311 = vpack.c.b16 %v276, %v275
      %v312 = vpack.c.b16 %v278, %v277
      %v313 = vpack.c.b16 %v280, %v279
      %v314 = vpack.c.b16 %v282, %v281
      %v315 = vpack.c.b16 %v284, %v283
      %v316 = vpack.c.b16 %v286, %v285
      %v317 = vpack.c.b16 %v288, %v287
      %v318 = vpack.c.b16 %v290, %v289
      %v319 = vpack.c.b16 %v292, %v291
      %v320 = vpack.c.b16 %v294, %v293
      %v321 = vpack.c.b16 %v296, %v295
      %v322 = vpack.c.b16 %v298, %v297
      %v323 = vpack.c.b16 %v300, %v299
      %v324 = vpack.c.b16 %v302, %v301
      %v325 = vpack.c.b16 %v304, %v303
      %v326 = vpack.c.b16 %v306, %v305
      %v327 = vpack.c.b16 %v308, %v307
      %v328 = vpack.c.b16 %v310, %v309
      %vm347 = vcmask 261120
      %v349 = vsel %vm347, %v236, 0
      %351 = vmatpush.bf16.msra.mxu0 %v318
      %352 = vmatpush.bf16.msra.mxu0 %v317
      %353 = vmatpush.bf16.msra.mxu0 %v316
      %354 = vmatpush.bf16.msra.mxu0 %v315
      %355 = vmatpush.bf16.msra.mxu0 %v314
      %356 = vmatpush.bf16.msra.mxu0 %v313
      %357 = vmatpush.bf16.msra.mxu0 %v312
      %358 = vmatpush.bf16.msra.mxu0 %v311
      %359 = vmatmul.bf16.gmra.mxu0 %v234
      %v360 = vpop.f32.mrf.mxu0
      %v361 = vadd.f32 %v217, %v360
      %v362 = vpop.f32.mrf.mxu0
      %v363 = vadd.f32 %v222, %v362
      %364 = vdwg.mxu0
      %365 = vmatpush.bf16.msra.mxu0 %v326
      %366 = vmatpush.bf16.msra.mxu0 %v325
      %367 = vmatpush.bf16.msra.mxu0 %v324
      %368 = vmatpush.bf16.msra.mxu0 %v323
      %369 = vmatpush.bf16.msra.mxu0 %v322
      %370 = vmatpush.bf16.msra.mxu0 %v321
      %371 = vmatpush.bf16.msra.mxu0 %v320
      %372 = vmatpush.bf16.msra.mxu0 %v319
      %373 = vmatmul.bf16.gmra.mxu0 %v235
      %v374 = vpop.f32.mrf.mxu0
      %v375 = vadd.f32 %v361, %v374
      %v376 = vpop.f32.mrf.mxu0
      %v377 = vadd.f32 %v363, %v376
      %378 = vdwg.mxu0
      %379 = vmatpush.bf16.msra.mxu0 0
      %380 = vmatpush.bf16.msra.mxu0 0
      %381 = vmatpush.bf16.msra.mxu0 0
      %382 = vmatpush.bf16.msra.mxu0 0
      %383 = vmatpush.bf16.msra.mxu0 0
      %384 = vmatpush.bf16.msra.mxu0 0
      %385 = vmatpush.bf16.msra.mxu0 %v328
      %386 = vmatpush.bf16.msra.mxu0 %v327
      %387 = vmatmul.bf16.gmra.mxu0 %v349
      %v388 = vpop.f32.mrf.mxu0
      %v389 = vadd.f32 %v375, %v388
      %v390 = vpop.f32.mrf.mxu0
      %v391 = vadd.f32 %v377, %v390
      %392 = vdwg.mxu0
      %vm393 = vcmp.ge.f32.partialorder %v389, 0.0
      %vm394 = vcmp.ge.f32.partialorder %v391, 0.0
      %v395 = vmul.f32 %v389, 0.01
      %v396 = vmul.f32 %v391, 0.01
      %v397 = vsel %vm393, %v389, %v395
      %v398 = vsel %vm394, %v391, %v396
      %vm399 = vcmask 130048
      %v400 = vsel %vm399, %v397, 0.0
      %401 = vadd.xlane.f32.xlu0 %v400
      %v402 = vpop.xlane.xlu0 %401
      %v403 = vsel %vm399, %v398, 0.0
      %404 = vadd.xlane.f32.xlu0 %v403
      %v405 = vpop.xlane.xlu0 %404
      %s406 = scalar_lea.vmem %s1, 24
      %v407 = vld [vmem:[%s406] sm:$0xff]
      %v408 = vld [vmem:[%s406 + $0x8] sm:$0xf]
      %v409 = vld [vmem:[%s406 + $0xc] sm:$0xff]
      %v410 = vld [vmem:[%s406 + $0x14] sm:$0xf]
      %s411 = scalar_lea.vmem %s165, 144
      %v412 = vld [vmem:[%s411] sm:$0xf]
      %v413 = vld [vmem:[%s411 + $0x4] sm:$0xf]
      %v414 = vld [vmem:[%s411 + $0x8] sm:$0xf]
      %v415 = vld [vmem:[%s411 + $0xc] sm:$0xf]
      %v416 = vld [vmem:[%s411 + $0x10] sm:$0xf]
      %v417 = vld [vmem:[%s411 + $0x14] sm:$0xf]
      %v418 = vld [vmem:[%s411 + $0x18] sm:$0xf]
      %v419 = vld [vmem:[%s411 + $0x1c] sm:$0xf]
      %v420 = vld [vmem:[%s411 + $0x20] sm:$0xf]
      %v421 = vld [vmem:[%s411 + $0x24] sm:$0xf]
      %v422 = vld [vmem:[%s411 + $0x28] sm:$0xf]
      %v423 = vld [vmem:[%s411 + $0x2c] sm:$0xf]
      %v424 = vld [vmem:[%s411 + $0x30] sm:$0xf]
      %v425 = vld [vmem:[%s411 + $0x34] sm:$0xf]
      %v426 = vld [vmem:[%s411 + $0x38] sm:$0xf]
      %v427 = vld [vmem:[%s411 + $0x3c] sm:$0xf]
      %v428 = vld [vmem:[%s411 + $0x40] sm:$0xf]
      %v429 = vld [vmem:[%s411 + $0x44] sm:$0xf]
      %v430 = vld [vmem:[%s411 + $0x48] sm:$0xf]
      %v431 = vld [vmem:[%s411 + $0x4c] sm:$0xf]
      %v432 = vld [vmem:[%s411 + $0x50] sm:$0xf]
      %v433 = vld [vmem:[%s411 + $0x54] sm:$0xf]
      %v434 = vld [vmem:[%s411 + $0x58] sm:$0xf]
      %v435 = vld [vmem:[%s411 + $0x5c] sm:$0xf]
      %v436 = vld [vmem:[%s411 + $0x60] sm:$0xf]
      %v437 = vld [vmem:[%s411 + $0x64] sm:$0xf]
      %v438 = vld [vmem:[%s411 + $0x68] sm:$0xf]
      %v439 = vld [vmem:[%s411 + $0x6c] sm:$0xf]
      %v440 = vld [vmem:[%s411 + $0x70] sm:$0xf]
      %v441 = vld [vmem:[%s411 + $0x74] sm:$0xf]
      %v442 = vld [vmem:[%s411 + $0x78] sm:$0xf]
      %v443 = vld [vmem:[%s411 + $0x7c] sm:$0xf]
      %v444 = vld [vmem:[%s411 + $0x80] sm:$0xf]
      %v445 = vld [vmem:[%s411 + $0x84] sm:$0xf]
      %v446 = vld [vmem:[%s411 + $0x88] sm:$0xf]
      %v447 = vld [vmem:[%s411 + $0x8c] sm:$0xf]
      %v452 = vunpack.c.l.b16 %v407
      %v453 = vunpack.c.h.b16 %v407
      %v454 = vunpack.c.l.b16 %v408
      %v455 = vunpack.c.l.b16 %v409
      %v456 = vunpack.c.h.b16 %v409
      %v457 = vunpack.c.l.b16 %v410
      %v458 = vpack.c.b16 %v455, %v452
      %v459 = vpack.c.b16 %v456, %v453
      %v460 = vpack.c.b16 %v457, %v454
      %v499 = vunpack.c.l.b16 %v412
      %v500 = vunpack.c.l.b16 %v413
      %v501 = vunpack.c.l.b16 %v414
      %v502 = vunpack.c.l.b16 %v415
      %v503 = vunpack.c.l.b16 %v416
      %v504 = vunpack.c.l.b16 %v417
      %v505 = vunpack.c.l.b16 %v418
      %v506 = vunpack.c.l.b16 %v419
      %v507 = vunpack.c.l.b16 %v420
      %v508 = vunpack.c.l.b16 %v421
      %v509 = vunpack.c.l.b16 %v422
      %v510 = vunpack.c.l.b16 %v423
      %v511 = vunpack.c.l.b16 %v424
      %v512 = vunpack.c.l.b16 %v425
      %v513 = vunpack.c.l.b16 %v426
      %v514 = vunpack.c.l.b16 %v427
      %v515 = vunpack.c.l.b16 %v428
      %v516 = vunpack.c.l.b16 %v429
      %v517 = vunpack.c.l.b16 %v430
      %v518 = vunpack.c.l.b16 %v431
      %v519 = vunpack.c.l.b16 %v432
      %v520 = vunpack.c.l.b16 %v433
      %v521 = vunpack.c.l.b16 %v434
      %v522 = vunpack.c.l.b16 %v435
      %v523 = vunpack.c.l.b16 %v436
      %v524 = vunpack.c.l.b16 %v437
      %v525 = vunpack.c.l.b16 %v438
      %v526 = vunpack.c.l.b16 %v439
      %v527 = vunpack.c.l.b16 %v440
      %v528 = vunpack.c.l.b16 %v441
      %v529 = vunpack.c.l.b16 %v442
      %v530 = vunpack.c.l.b16 %v443
      %v531 = vunpack.c.l.b16 %v444
      %v532 = vunpack.c.l.b16 %v445
      %v533 = vunpack.c.l.b16 %v446
      %v534 = vunpack.c.l.b16 %v447
      %v535 = vpack.c.b16 %v500, %v499
      %v536 = vpack.c.b16 %v502, %v501
      %v537 = vpack.c.b16 %v504, %v503
      %v538 = vpack.c.b16 %v506, %v505
      %v539 = vpack.c.b16 %v508, %v507
      %v540 = vpack.c.b16 %v510, %v509
      %v541 = vpack.c.b16 %v512, %v511
      %v542 = vpack.c.b16 %v514, %v513
      %v543 = vpack.c.b16 %v516, %v515
      %v544 = vpack.c.b16 %v518, %v517
      %v545 = vpack.c.b16 %v520, %v519
      %v546 = vpack.c.b16 %v522, %v521
      %v547 = vpack.c.b16 %v524, %v523
      %v548 = vpack.c.b16 %v526, %v525
      %v549 = vpack.c.b16 %v528, %v527
      %v550 = vpack.c.b16 %v530, %v529
      %v551 = vpack.c.b16 %v532, %v531
      %v552 = vpack.c.b16 %v534, %v533
      %v572 = vsel %vm347, %v460, 0
      %574 = vmatpush.bf16.msra.mxu0 %v542
      %575 = vmatpush.bf16.msra.mxu0 %v541
      %576 = vmatpush.bf16.msra.mxu0 %v540
      %577 = vmatpush.bf16.msra.mxu0 %v539
      %578 = vmatpush.bf16.msra.mxu0 %v538
      %579 = vmatpush.bf16.msra.mxu0 %v537
      %580 = vmatpush.bf16.msra.mxu0 %v536
      %581 = vmatpush.bf16.msra.mxu0 %v535
      %582 = vmatmul.bf16.gmra.mxu0 %v458
      %v583 = vpop.f32.mrf.mxu0
      %v584 = vadd.f32 %v217, %v583
      %v585 = vpop.f32.mrf.mxu0
      %v586 = vadd.f32 %v222, %v585
      %587 = vdwg.mxu0
      %588 = vmatpush.bf16.msra.mxu0 %v550
      %589 = vmatpush.bf16.msra.mxu0 %v549
      %590 = vmatpush.bf16.msra.mxu0 %v548
      %591 = vmatpush.bf16.msra.mxu0 %v547
      %592 = vmatpush.bf16.msra.mxu0 %v546
      %593 = vmatpush.bf16.msra.mxu0 %v545
      %594 = vmatpush.bf16.msra.mxu0 %v544
      %595 = vmatpush.bf16.msra.mxu0 %v543
      %596 = vmatmul.bf16.gmra.mxu0 %v459
      %v597 = vpop.f32.mrf.mxu0
      %v598 = vadd.f32 %v584, %v597
      %v599 = vpop.f32.mrf.mxu0
      %v600 = vadd.f32 %v586, %v599
      %601 = vdwg.mxu0
      %602 = vmatpush.bf16.msra.mxu0 0
      %603 = vmatpush.bf16.msra.mxu0 0
      %604 = vmatpush.bf16.msra.mxu0 0
      %605 = vmatpush.bf16.msra.mxu0 0
      %606 = vmatpush.bf16.msra.mxu0 0
      %607 = vmatpush.bf16.msra.mxu0 0
      %608 = vmatpush.bf16.msra.mxu0 %v552
      %609 = vmatpush.bf16.msra.mxu0 %v551
      %610 = vmatmul.bf16.gmra.mxu0 %v572
      %v611 = vpop.f32.mrf.mxu0
      %v612 = vadd.f32 %v598, %v611
      %v613 = vpop.f32.mrf.mxu0
      %v614 = vadd.f32 %v600, %v613
      %615 = vdwg.mxu0
      %vm616 = vcmp.ge.f32.partialorder %v612, 0.0
      %vm617 = vcmp.ge.f32.partialorder %v614, 0.0
      %v618 = vmul.f32 %v612, 0.01
      %v619 = vmul.f32 %v614, 0.01
      %v620 = vsel %vm616, %v612, %v618
      %v621 = vsel %vm617, %v614, %v619
      %v622 = vsel %vm399, %v620, 0.0
      %623 = vadd.xlane.f32.xlu0 %v622
      %v624 = vpop.xlane.xlu0 %623
      %v625 = vsel %vm399, %v621, 0.0
      %626 = vadd.xlane.f32.xlu0 %v625
      %v627 = vpop.xlane.xlu0 %626
      %v628 = vadd.f32 %v402, %v624
      %v629 = vadd.f32 %v405, %v627
      %s630 = scalar_lea.vmem %s1, 48
      %v631 = vld [vmem:[%s630] sm:$0xff]
      %v632 = vld [vmem:[%s630 + $0x8] sm:$0xf]
      %v633 = vld [vmem:[%s630 + $0xc] sm:$0xff]
      %v634 = vld [vmem:[%s630 + $0x14] sm:$0xf]
      %s635 = scalar_lea.vmem %s165, 288
      %v636 = vld [vmem:[%s635] sm:$0xf]
      %v637 = vld [vmem:[%s635 + $0x4] sm:$0xf]
      %v638 = vld [vmem:[%s635 + $0x8] sm:$0xf]
      %v639 = vld [vmem:[%s635 + $0xc] sm:$0xf]
      %v640 = vld [vmem:[%s635 + $0x10] sm:$0xf]
      %v641 = vld [vmem:[%s635 + $0x14] sm:$0xf]
      %v642 = vld [vmem:[%s635 + $0x18] sm:$0xf]
      %v643 = vld [vmem:[%s635 + $0x1c] sm:$0xf]
      %v644 = vld [vmem:[%s635 + $0x20] sm:$0xf]
      %v645 = vld [vmem:[%s635 + $0x24] sm:$0xf]
      %v646 = vld [vmem:[%s635 + $0x28] sm:$0xf]
      %v647 = vld [vmem:[%s635 + $0x2c] sm:$0xf]
      %v648 = vld [vmem:[%s635 + $0x30] sm:$0xf]
      %v649 = vld [vmem:[%s635 + $0x34] sm:$0xf]
      %v650 = vld [vmem:[%s635 + $0x38] sm:$0xf]
      %v651 = vld [vmem:[%s635 + $0x3c] sm:$0xf]
      %v652 = vld [vmem:[%s635 + $0x40] sm:$0xf]
      %v653 = vld [vmem:[%s635 + $0x44] sm:$0xf]
      %v654 = vld [vmem:[%s635 + $0x48] sm:$0xf]
      %v655 = vld [vmem:[%s635 + $0x4c] sm:$0xf]
      %v656 = vld [vmem:[%s635 + $0x50] sm:$0xf]
      %v657 = vld [vmem:[%s635 + $0x54] sm:$0xf]
      %v658 = vld [vmem:[%s635 + $0x58] sm:$0xf]
      %v659 = vld [vmem:[%s635 + $0x5c] sm:$0xf]
      %v660 = vld [vmem:[%s635 + $0x60] sm:$0xf]
      %v661 = vld [vmem:[%s635 + $0x64] sm:$0xf]
      %v662 = vld [vmem:[%s635 + $0x68] sm:$0xf]
      %v663 = vld [vmem:[%s635 + $0x6c] sm:$0xf]
      %v664 = vld [vmem:[%s635 + $0x70] sm:$0xf]
      %v665 = vld [vmem:[%s635 + $0x74] sm:$0xf]
      %v666 = vld [vmem:[%s635 + $0x78] sm:$0xf]
      %v667 = vld [vmem:[%s635 + $0x7c] sm:$0xf]
      %v668 = vld [vmem:[%s635 + $0x80] sm:$0xf]
      %v669 = vld [vmem:[%s635 + $0x84] sm:$0xf]
      %v670 = vld [vmem:[%s635 + $0x88] sm:$0xf]
      %v671 = vld [vmem:[%s635 + $0x8c] sm:$0xf]
      %v676 = vunpack.c.l.b16 %v631
      %v677 = vunpack.c.h.b16 %v631
      %v678 = vunpack.c.l.b16 %v632
      %v679 = vunpack.c.l.b16 %v633
      %v680 = vunpack.c.h.b16 %v633
      %v681 = vunpack.c.l.b16 %v634
      %v682 = vpack.c.b16 %v679, %v676
      %v683 = vpack.c.b16 %v680, %v677
      %v684 = vpack.c.b16 %v681, %v678
      %v723 = vunpack.c.l.b16 %v636
      %v724 = vunpack.c.l.b16 %v637
      %v725 = vunpack.c.l.b16 %v638
      %v726 = vunpack.c.l.b16 %v639
      %v727 = vunpack.c.l.b16 %v640
      %v728 = vunpack.c.l.b16 %v641
      %v729 = vunpack.c.l.b16 %v642
      %v730 = vunpack.c.l.b16 %v643
      %v731 = vunpack.c.l.b16 %v644
      %v732 = vunpack.c.l.b16 %v645
      %v733 = vunpack.c.l.b16 %v646
      %v734 = vunpack.c.l.b16 %v647
      %v735 = vunpack.c.l.b16 %v648
      %v736 = vunpack.c.l.b16 %v649
      %v737 = vunpack.c.l.b16 %v650
      %v738 = vunpack.c.l.b16 %v651
      %v739 = vunpack.c.l.b16 %v652
      %v740 = vunpack.c.l.b16 %v653
      %v741 = vunpack.c.l.b16 %v654
      %v742 = vunpack.c.l.b16 %v655
      %v743 = vunpack.c.l.b16 %v656
      %v744 = vunpack.c.l.b16 %v657
      %v745 = vunpack.c.l.b16 %v658
      %v746 = vunpack.c.l.b16 %v659
      %v747 = vunpack.c.l.b16 %v660
      %v748 = vunpack.c.l.b16 %v661
      %v749 = vunpack.c.l.b16 %v662
      %v750 = vunpack.c.l.b16 %v663
      %v751 = vunpack.c.l.b16 %v664
      %v752 = vunpack.c.l.b16 %v665
      %v753 = vunpack.c.l.b16 %v666
      %v754 = vunpack.c.l.b16 %v667
      %v755 = vunpack.c.l.b16 %v668
      %v756 = vunpack.c.l.b16 %v669
      %v757 = vunpack.c.l.b16 %v670
      %v758 = vunpack.c.l.b16 %v671
      %v759 = vpack.c.b16 %v724, %v723
      %v760 = vpack.c.b16 %v726, %v725
      %v761 = vpack.c.b16 %v728, %v727
      %v762 = vpack.c.b16 %v730, %v729
      %v763 = vpack.c.b16 %v732, %v731
      %v764 = vpack.c.b16 %v734, %v733
      %v765 = vpack.c.b16 %v736, %v735
      %v766 = vpack.c.b16 %v738, %v737
      %v767 = vpack.c.b16 %v740, %v739
      %v768 = vpack.c.b16 %v742, %v741
      %v769 = vpack.c.b16 %v744, %v743
      %v770 = vpack.c.b16 %v746, %v745
      %v771 = vpack.c.b16 %v748, %v747
      %v772 = vpack.c.b16 %v750, %v749
      %v773 = vpack.c.b16 %v752, %v751
      %v774 = vpack.c.b16 %v754, %v753
      %v775 = vpack.c.b16 %v756, %v755
      %v776 = vpack.c.b16 %v758, %v757
      %v796 = vsel %vm347, %v684, 0
      %798 = vmatpush.bf16.msra.mxu0 %v766
      %799 = vmatpush.bf16.msra.mxu0 %v765
      %800 = vmatpush.bf16.msra.mxu0 %v764
      %801 = vmatpush.bf16.msra.mxu0 %v763
      %802 = vmatpush.bf16.msra.mxu0 %v762
      %803 = vmatpush.bf16.msra.mxu0 %v761
      %804 = vmatpush.bf16.msra.mxu0 %v760
      %805 = vmatpush.bf16.msra.mxu0 %v759
      %806 = vmatmul.bf16.gmra.mxu0 %v682
      %v807 = vpop.f32.mrf.mxu0
      %v808 = vadd.f32 %v217, %v807
      %v809 = vpop.f32.mrf.mxu0
      %v810 = vadd.f32 %v222, %v809
      %811 = vdwg.mxu0
      %812 = vmatpush.bf16.msra.mxu0 %v774
      %813 = vmatpush.bf16.msra.mxu0 %v773
      %814 = vmatpush.bf16.msra.mxu0 %v772
      %815 = vmatpush.bf16.msra.mxu0 %v771
      %816 = vmatpush.bf16.msra.mxu0 %v770
      %817 = vmatpush.bf16.msra.mxu0 %v769
      %818 = vmatpush.bf16.msra.mxu0 %v768
      %819 = vmatpush.bf16.msra.mxu0 %v767
      %820 = vmatmul.bf16.gmra.mxu0 %v683
      %v821 = vpop.f32.mrf.mxu0
      %v822 = vadd.f32 %v808, %v821
      %v823 = vpop.f32.mrf.mxu0
      %v824 = vadd.f32 %v810, %v823
      %825 = vdwg.mxu0
      %826 = vmatpush.bf16.msra.mxu0 0
      %827 = vmatpush.bf16.msra.mxu0 0
      %828 = vmatpush.bf16.msra.mxu0 0
      %829 = vmatpush.bf16.msra.mxu0 0
      %830 = vmatpush.bf16.msra.mxu0 0
      %831 = vmatpush.bf16.msra.mxu0 0
      %832 = vmatpush.bf16.msra.mxu0 %v776
      %833 = vmatpush.bf16.msra.mxu0 %v775
      %834 = vmatmul.bf16.gmra.mxu0 %v796
      %v835 = vpop.f32.mrf.mxu0
      %v836 = vadd.f32 %v822, %v835
      %v837 = vpop.f32.mrf.mxu0
      %v838 = vadd.f32 %v824, %v837
      %839 = vdwg.mxu0
      %vm840 = vcmp.ge.f32.partialorder %v836, 0.0
      %vm841 = vcmp.ge.f32.partialorder %v838, 0.0
      %v842 = vmul.f32 %v836, 0.01
      %v843 = vmul.f32 %v838, 0.01
      %v844 = vsel %vm840, %v836, %v842
      %v845 = vsel %vm841, %v838, %v843
      %v846 = vsel %vm399, %v844, 0.0
      %847 = vadd.xlane.f32.xlu0 %v846
      %v848 = vpop.xlane.xlu0 %847
      %v849 = vsel %vm399, %v845, 0.0
      %850 = vadd.xlane.f32.xlu0 %v849
      %v851 = vpop.xlane.xlu0 %850
      %v852 = vadd.f32 %v628, %v848
      %v853 = vadd.f32 %v629, %v851
      %s854 = scalar_lea.vmem %s1, 72
      %v855 = vld [vmem:[%s854] sm:$0xff]
      %v856 = vld [vmem:[%s854 + $0x8] sm:$0xf]
      %v857 = vld [vmem:[%s854 + $0xc] sm:$0xff]
      %v858 = vld [vmem:[%s854 + $0x14] sm:$0xf]
      %s859 = scalar_lea.vmem %s165, 432
      %v860 = vld [vmem:[%s859] sm:$0xf]
      %v861 = vld [vmem:[%s859 + $0x4] sm:$0xf]
      %v862 = vld [vmem:[%s859 + $0x8] sm:$0xf]
      %v863 = vld [vmem:[%s859 + $0xc] sm:$0xf]
      %v864 = vld [vmem:[%s859 + $0x10] sm:$0xf]
      %v865 = vld [vmem:[%s859 + $0x14] sm:$0xf]
      %v866 = vld [vmem:[%s859 + $0x18] sm:$0xf]
      %v867 = vld [vmem:[%s859 + $0x1c] sm:$0xf]
      %v868 = vld [vmem:[%s859 + $0x20] sm:$0xf]
      %v869 = vld [vmem:[%s859 + $0x24] sm:$0xf]
      %v870 = vld [vmem:[%s859 + $0x28] sm:$0xf]
      %v871 = vld [vmem:[%s859 + $0x2c] sm:$0xf]
      %v872 = vld [vmem:[%s859 + $0x30] sm:$0xf]
      %v873 = vld [vmem:[%s859 + $0x34] sm:$0xf]
      %v874 = vld [vmem:[%s859 + $0x38] sm:$0xf]
      %v875 = vld [vmem:[%s859 + $0x3c] sm:$0xf]
      %v876 = vld [vmem:[%s859 + $0x40] sm:$0xf]
      %v877 = vld [vmem:[%s859 + $0x44] sm:$0xf]
      %v878 = vld [vmem:[%s859 + $0x48] sm:$0xf]
      %v879 = vld [vmem:[%s859 + $0x4c] sm:$0xf]
      %v880 = vld [vmem:[%s859 + $0x50] sm:$0xf]
      %v881 = vld [vmem:[%s859 + $0x54] sm:$0xf]
      %v882 = vld [vmem:[%s859 + $0x58] sm:$0xf]
      %v883 = vld [vmem:[%s859 + $0x5c] sm:$0xf]
      %v884 = vld [vmem:[%s859 + $0x60] sm:$0xf]
      %v885 = vld [vmem:[%s859 + $0x64] sm:$0xf]
      %v886 = vld [vmem:[%s859 + $0x68] sm:$0xf]
      %v887 = vld [vmem:[%s859 + $0x6c] sm:$0xf]
      %v888 = vld [vmem:[%s859 + $0x70] sm:$0xf]
      %v889 = vld [vmem:[%s859 + $0x74] sm:$0xf]
      %v890 = vld [vmem:[%s859 + $0x78] sm:$0xf]
      %v891 = vld [vmem:[%s859 + $0x7c] sm:$0xf]
      %v892 = vld [vmem:[%s859 + $0x80] sm:$0xf]
      %v893 = vld [vmem:[%s859 + $0x84] sm:$0xf]
      %v894 = vld [vmem:[%s859 + $0x88] sm:$0xf]
      %v895 = vld [vmem:[%s859 + $0x8c] sm:$0xf]
      %v900 = vunpack.c.l.b16 %v855
      %v901 = vunpack.c.h.b16 %v855
      %v902 = vunpack.c.l.b16 %v856
      %v903 = vunpack.c.l.b16 %v857
      %v904 = vunpack.c.h.b16 %v857
      %v905 = vunpack.c.l.b16 %v858
      %v906 = vpack.c.b16 %v903, %v900
      %v907 = vpack.c.b16 %v904, %v901
      %v908 = vpack.c.b16 %v905, %v902
      %v947 = vunpack.c.l.b16 %v860
      %v948 = vunpack.c.l.b16 %v861
      %v949 = vunpack.c.l.b16 %v862
      %v950 = vunpack.c.l.b16 %v863
      %v951 = vunpack.c.l.b16 %v864
      %v952 = vunpack.c.l.b16 %v865
      %v953 = vunpack.c.l.b16 %v866
      %v954 = vunpack.c.l.b16 %v867
      %v955 = vunpack.c.l.b16 %v868
      %v956 = vunpack.c.l.b16 %v869
      %v957 = vunpack.c.l.b16 %v870
      %v958 = vunpack.c.l.b16 %v871
      %v959 = vunpack.c.l.b16 %v872
      %v960 = vunpack.c.l.b16 %v873
      %v961 = vunpack.c.l.b16 %v874
      %v962 = vunpack.c.l.b16 %v875
      %v963 = vunpack.c.l.b16 %v876
      %v964 = vunpack.c.l.b16 %v877
      %v965 = vunpack.c.l.b16 %v878
      %v966 = vunpack.c.l.b16 %v879
      %v967 = vunpack.c.l.b16 %v880
      %v968 = vunpack.c.l.b16 %v881
      %v969 = vunpack.c.l.b16 %v882
      %v970 = vunpack.c.l.b16 %v883
      %v971 = vunpack.c.l.b16 %v884
      %v972 = vunpack.c.l.b16 %v885
      %v973 = vunpack.c.l.b16 %v886
      %v974 = vunpack.c.l.b16 %v887
      %v975 = vunpack.c.l.b16 %v888
      %v976 = vunpack.c.l.b16 %v889
      %v977 = vunpack.c.l.b16 %v890
      %v978 = vunpack.c.l.b16 %v891
      %v979 = vunpack.c.l.b16 %v892
      %v980 = vunpack.c.l.b16 %v893
      %v981 = vunpack.c.l.b16 %v894
      %v982 = vunpack.c.l.b16 %v895
      %v983 = vpack.c.b16 %v948, %v947
      %v984 = vpack.c.b16 %v950, %v949
      %v985 = vpack.c.b16 %v952, %v951
      %v986 = vpack.c.b16 %v954, %v953
      %v987 = vpack.c.b16 %v956, %v955
      %v988 = vpack.c.b16 %v958, %v957
      %v989 = vpack.c.b16 %v960, %v959
      %v990 = vpack.c.b16 %v962, %v961
      %v991 = vpack.c.b16 %v964, %v963
      %v992 = vpack.c.b16 %v966, %v965
      %v993 = vpack.c.b16 %v968, %v967
      %v994 = vpack.c.b16 %v970, %v969
      %v995 = vpack.c.b16 %v972, %v971
      %v996 = vpack.c.b16 %v974, %v973
      %v997 = vpack.c.b16 %v976, %v975
      %v998 = vpack.c.b16 %v978, %v977
      %v999 = vpack.c.b16 %v980, %v979
      %v1000 = vpack.c.b16 %v982, %v981
      %v1020 = vsel %vm347, %v908, 0
      %1022 = vmatpush.bf16.msra.mxu0 %v990
      %1023 = vmatpush.bf16.msra.mxu0 %v989
      %1024 = vmatpush.bf16.msra.mxu0 %v988
      %1025 = vmatpush.bf16.msra.mxu0 %v987
      %1026 = vmatpush.bf16.msra.mxu0 %v986
      %1027 = vmatpush.bf16.msra.mxu0 %v985
      %1028 = vmatpush.bf16.msra.mxu0 %v984
      %1029 = vmatpush.bf16.msra.mxu0 %v983
      %1030 = vmatmul.bf16.gmra.mxu0 %v906
      %v1031 = vpop.f32.mrf.mxu0
      %v1032 = vadd.f32 %v217, %v1031
      %v1033 = vpop.f32.mrf.mxu0
      %v1034 = vadd.f32 %v222, %v1033
      %1035 = vdwg.mxu0
      %1036 = vmatpush.bf16.msra.mxu0 %v998
      %1037 = vmatpush.bf16.msra.mxu0 %v997
      %1038 = vmatpush.bf16.msra.mxu0 %v996
      %1039 = vmatpush.bf16.msra.mxu0 %v995
      %1040 = vmatpush.bf16.msra.mxu0 %v994
      %1041 = vmatpush.bf16.msra.mxu0 %v993
      %1042 = vmatpush.bf16.msra.mxu0 %v992
      %1043 = vmatpush.bf16.msra.mxu0 %v991
      %1044 = vmatmul.bf16.gmra.mxu0 %v907
      %v1045 = vpop.f32.mrf.mxu0
      %v1046 = vadd.f32 %v1032, %v1045
      %v1047 = vpop.f32.mrf.mxu0
      %v1048 = vadd.f32 %v1034, %v1047
      %1049 = vdwg.mxu0
      %1050 = vmatpush.bf16.msra.mxu0 0
      %1051 = vmatpush.bf16.msra.mxu0 0
      %1052 = vmatpush.bf16.msra.mxu0 0
      %1053 = vmatpush.bf16.msra.mxu0 0
      %1054 = vmatpush.bf16.msra.mxu0 0
      %1055 = vmatpush.bf16.msra.mxu0 0
      %1056 = vmatpush.bf16.msra.mxu0 %v1000
      %1057 = vmatpush.bf16.msra.mxu0 %v999
      %1058 = vmatmul.bf16.gmra.mxu0 %v1020
      %v1059 = vpop.f32.mrf.mxu0
      %v1060 = vadd.f32 %v1046, %v1059
      %v1061 = vpop.f32.mrf.mxu0
      %v1062 = vadd.f32 %v1048, %v1061
      %1063 = vdwg.mxu0
      %vm1064 = vcmp.ge.f32.partialorder %v1060, 0.0
      %vm1065 = vcmp.ge.f32.partialorder %v1062, 0.0
      %v1066 = vmul.f32 %v1060, 0.01
      %v1067 = vmul.f32 %v1062, 0.01
      %v1068 = vsel %vm1064, %v1060, %v1066
      %v1069 = vsel %vm1065, %v1062, %v1067
      %v1070 = vsel %vm399, %v1068, 0.0
      %1071 = vadd.xlane.f32.xlu0 %v1070
      %v1072 = vpop.xlane.xlu0 %1071
      %v1073 = vsel %vm399, %v1069, 0.0
      %1074 = vadd.xlane.f32.xlu0 %v1073
      %v1075 = vpop.xlane.xlu0 %1074
      %v1076 = vadd.f32 %v852, %v1072
      %v1077 = vadd.f32 %v853, %v1075
      %v1078 = vrcp.pop 64.0
      %v1079 = vmul.f32 64.0, %v1078
      %v1080 = vsub.f32 1.0, %v1079
      %v1081 = vmul.f32 %v1078, %v1080
      %v1082 = vadd.f32 %v1078, %v1081
      %vm1083 = vweird.f32 %v1078
      %v1084 = vsel %vm1083, %v1078, %v1082
      %v1085 = vmul.f32 %v1076, %v1084
      %v1086 = vmul.f32 %v1077, %v1084
      %v1087 = vsub.f32 %v397, %v1085
      %v1088 = vsub.f32 %v398, %v1086
      %v1089 = vmul.f32 %v1087, %v1087
      %v1090 = vmul.f32 %v1088, %v1088
      %v1091 = vsel %vm399, %v1089, 0.0
      %1092 = vadd.xlane.f32.xlu0 %v1091
      %v1093 = vpop.xlane.xlu0 %1092
      %v1094 = vsel %vm399, %v1090, 0.0
      %1095 = vadd.xlane.f32.xlu0 %v1094
      %v1096 = vpop.xlane.xlu0 %1095
      %v1097 = vsub.f32 %v620, %v1085
      %v1098 = vsub.f32 %v621, %v1086
      %v1099 = vmul.f32 %v1097, %v1097
      %v1100 = vmul.f32 %v1098, %v1098
      %v1101 = vsel %vm399, %v1099, 0.0
      %1102 = vadd.xlane.f32.xlu0 %v1101
      %v1103 = vpop.xlane.xlu0 %1102
      %v1104 = vsel %vm399, %v1100, 0.0
      %1105 = vadd.xlane.f32.xlu0 %v1104
      %v1106 = vpop.xlane.xlu0 %1105
      %v1107 = vadd.f32 %v1093, %v1103
      %v1108 = vadd.f32 %v1096, %v1106
      %v1109 = vsub.f32 %v844, %v1085
      %v1110 = vsub.f32 %v845, %v1086
      %v1111 = vmul.f32 %v1109, %v1109
      %v1112 = vmul.f32 %v1110, %v1110
      %v1113 = vsel %vm399, %v1111, 0.0
      %1114 = vadd.xlane.f32.xlu0 %v1113
      %v1115 = vpop.xlane.xlu0 %1114
      %v1116 = vsel %vm399, %v1112, 0.0
      %1117 = vadd.xlane.f32.xlu0 %v1116
      %v1118 = vpop.xlane.xlu0 %1117
      %v1119 = vadd.f32 %v1107, %v1115
      %v1120 = vadd.f32 %v1108, %v1118
      %v1121 = vsub.f32 %v1068, %v1085
      %v1122 = vsub.f32 %v1069, %v1086
      %v1123 = vmul.f32 %v1121, %v1121
      %v1124 = vmul.f32 %v1122, %v1122
      %v1125 = vsel %vm399, %v1123, 0.0
      %1126 = vadd.xlane.f32.xlu0 %v1125
      %v1127 = vpop.xlane.xlu0 %1126
      %v1128 = vsel %vm399, %v1124, 0.0
      %1129 = vadd.xlane.f32.xlu0 %v1128
      %v1130 = vpop.xlane.xlu0 %1129
      %v1131 = vadd.f32 %v1119, %v1127
      %v1132 = vadd.f32 %v1120, %v1130
      %v1133 = vmul.f32 %v1131, %v1084
      %v1134 = vmul.f32 %v1132, %v1084
      %v1135 = vadd.f32 %v1133, 1e-05
      %v1136 = vadd.f32 %v1134, 1e-05
      %v1137 = vrsqrt.pop %v1135
      %v1138 = vmul.f32 %v1137, %v1135
      %v1139 = vmul.f32 %v1138, %v1137
      %v1140 = vmul.f32 0.5, %v1139
      %v1141 = vsub.f32 1.5, %v1140
      %v1142 = vmul.f32 %v1137, %v1141
      %vm1143 = vweird.f32 %v1135
      %vm1144 = vweird.f32 %v1137
      %vm1145 = vmor %vm1143, %vm1144
      %v1146 = vsel %vm1145, %v1137, %v1142
      %v1147 = vrsqrt.pop %v1136
      %v1148 = vmul.f32 %v1147, %v1136
      %v1149 = vmul.f32 %v1148, %v1147
      %v1150 = vmul.f32 0.5, %v1149
      %v1151 = vsub.f32 1.5, %v1150
      %v1152 = vmul.f32 %v1147, %v1151
      %vm1153 = vweird.f32 %v1136
      %vm1154 = vweird.f32 %v1147
      %vm1155 = vmor %vm1153, %vm1154
      %v1156 = vsel %vm1155, %v1147, %v1152
      %v1157 = vmul.f32 %v1087, %v1146
      %v1158 = vmul.f32 %v1088, %v1156
      %1159 = vst.msk [vmem:[%s170] sm:$0xff] %vm399, %v1157
      %1160 = vst.msk [vmem:[%s170 + $0x8] sm:$0xff] %vm399, %v1158
      %v1161 = vmul.f32 %v1097, %v1146
      %v1162 = vmul.f32 %v1098, %v1156
      %s1163 = scalar_lea.vmem %s170, 16
      %1164 = vst.msk [vmem:[%s1163] sm:$0xff] %vm399, %v1161
      %1165 = vst.msk [vmem:[%s1163 + $0x8] sm:$0xff] %vm399, %v1162
      %v1166 = vmul.f32 %v1109, %v1146
      %v1167 = vmul.f32 %v1110, %v1156
      %s1168 = scalar_lea.vmem %s170, 32
      %1169 = vst.msk [vmem:[%s1168] sm:$0xff] %vm399, %v1166
      %1170 = vst.msk [vmem:[%s1168 + $0x8] sm:$0xff] %vm399, %v1167
      %v1171 = vmul.f32 %v1121, %v1146
      %v1172 = vmul.f32 %v1122, %v1156
      %s1173 = scalar_lea.vmem %s170, 48
      %1174 = vst.msk [vmem:[%s1173] sm:$0xff] %vm399, %v1171
      %1175 = vst.msk [vmem:[%s1173 + $0x8] sm:$0xff] %vm399, %v1172
      %p1176 = scmp.lt.s32.totalorder %s14, 1
      %s1177 = scalar_select %p1176, %s14, 1
      %s1178 = smul.addr %s1177, 8
      %s1179 = smul.addr %s1178, 8
      %s1180 = scalar_lea.vmem %s3, %s1179
      // Predicated region
      $region33: #{base_unet_forward.18} parent=31 // pred_check
        %p1181 = pneg %p100
      $region34: #{base_unet_forward.18} parent=31 // pred_check_branch
        %1183 = sbr.rel (%p1181) target = $region36
      $region35: #{base_unet_forward.18} parent=31 // pred_region
        _
      $region36: #{base_unet_forward.18} parent=31 // pred_fallthru
        _
    $region32: #{base_unet_forward.18} parent=5 // pred_fallthru
      _
    %p1184 = scmp.le.s32.totalorder 2, %s9
    // Predicated region
    $region37: #{base_unet_forward.18} parent=5 // pred_check
      %p1185 = pneg %p1184
    $region38: #{base_unet_forward.18} parent=5 // pred_check_branch
      %1187 = sbr.rel (%p1185) target = $region40
    $region39: #{base_unet_forward.18} parent=5 // pred_region
      %s1188 = ssub.s32 %s9, 2
      // Predicated region
      $region41: #{base_unet_forward.18} parent=39 // pred_check
        %p1189 = pneg %p106
      $region42: #{base_unet_forward.18} parent=39 // pred_check_branch
        %1191 = sbr.rel (%p1189) target = $region44
      $region43: #{base_unet_forward.18} parent=39 // pred_region
        %p1192 = scmp.lt.s32.totalorder %s15, 1
        %s1193 = scalar_select %p1192, %s15, 1
        %s1194 = smul.addr %s1193, 8
        %s1195 = smul.addr %s1194, 8
        %s1196 = scalar_lea.vmem %s3, %s1195
      $region44: #{base_unet_forward.18} parent=39 // pred_fallthru
        _
    $region40: #{base_unet_forward.18} parent=5 // pred_fallthru
      _
  $region6: #{base_unet_forward.18} parent=0 // loop_footer
    %s13 = sadd.s32 1, %s9
  $region7: #{base_unet_forward.18} parent=0 // loop_footer_branch
    %8 = sbr.rel target = $region3
  $region8: #{base_unet_forward.18} parent=0 // loop_exit
    _

// kernel: base_unet_forward.19
$region0: #{base_unet_forward.19}
  #allocation0 [shape = 'u32[]', space=smem, size = 0x4, offset = 0x4, fixed_abs, tag = 'smem constant byte address 0x4 - core index']
  #allocation1 [shape = 'u32[72,128]{1,0:T(1,128)}', space=vmem, size = 0x9000, scoped, tag = 'internal scratch']
  %s0 = inlined_call_operand.vmem [shape: bf16[2,4,288,64], index: 0, kind: input, shape index: {}]
  %s1 = inlined_call_operand.vmem [shape: bf16[4,8,288], index: 1, kind: input, shape index: {}]
  %s2 = inlined_call_operand.vmem [shape: f32[8,1], index: 2, kind: input, shape index: {}]
  %s3 = inlined_call_operand.vmem [shape: f32[2,4,8,64], index: 3, kind: output, shape index: {}]
  %s4 = sld [smem:[#allocation0]]
  $region45: #{base_unet_forward.19} parent=0
    _
  %s6 = ssub.s32 1, %s4
  %s7 = scalar_select 0, %s6, %s4
  loop: start=0, step=1, limit=4
  $region2: #{base_unet_forward.19} parent=0 // loop_pre_header
    _
  $region3: #{base_unet_forward.19} parent=0 // loop_header
    %s9 = sphi 0, %s13
    %p10 = scmp.ge.s32.totalorder %s9, 4
    %s19 = sphi 0, %s21
    %s22 = sphi 0, %s19
    %s23 = sphi 0, %s22
    %s39 = sphi 0, %s23
    %s43 = sphi 0, %s43
    %s45 = sphi 0, %s43
    %s46 = sphi 0, %s45
    %s60 = sphi 0, %s46
    %s64 = sphi 0, %s64
    %s66 = sphi 0, %s64
    %s67 = sphi 0, %s66
    %s81 = sphi 0, %s67
    %s87 = sphi 0, %s89
    %s90 = sphi 0, %s87
    %s91 = sphi 0, %s90
    %s107 = sphi 0, %s91
  $region4: #{base_unet_forward.19} parent=0 // loop_header_branch
    %12 = sbr.rel (%p10) target = $region8
  $region5: #{base_unet_forward.19} parent=0 // loop_body
    %s14 = ssub.s32 %s9, 1
    %s15 = ssub.s32 %s9, 2
    %s16 = sadd.s32 %s9, 1
    %s17 = ssub.s32 %s9, %s16
    %p18 = scmp.eq.s32.totalorder %s17, 0
    %s20 = sadd.s32 %s19, 1
    %s21 = scalar_select %p18, %s19, %s20
    %p24 = pneg %p18
    %p25 = scmp.eq.s32.totalorder %s9, 1
    %p26 = por %p24, %p25
    %p27 = scmp.ne.s32.totalorder %s19, %s22
    %p28 = scmp.eq.s32.totalorder %s9, 0
    %p29 = por %p27, %p28
    %p30 = scmp.ne.s32.totalorder %s19, %s22
    %p31 = scmp.eq.s32.totalorder %s14, 1
    %p32 = por %p30, %p31
    %p33 = scmp.ne.s32.totalorder %s22, %s23
    %p34 = scmp.eq.s32.totalorder %s14, 0
    %p35 = por %p33, %p34
    %p36 = scmp.ne.s32.totalorder %s22, %s23
    %p37 = scmp.eq.s32.totalorder %s15, 1
    %p38 = por %p36, %p37
    %p40 = scmp.ne.s32.totalorder %s23, %s39
    %p41 = scmp.eq.s32.totalorder %s15, 0
    %p42 = por %p40, %p41
    %s44 = sadd.s32 %s43, 1
    %p47 = scmp.eq.s32.totalorder %s9, 1
    %p48 = scmp.ne.s32.totalorder %s43, %s45
    %p49 = scmp.eq.s32.totalorder %s9, 0
    %p50 = por %p48, %p49
    %p51 = scmp.ne.s32.totalorder %s43, %s45
    %p52 = scmp.eq.s32.totalorder %s14, 1
    %p53 = por %p51, %p52
    %p54 = scmp.ne.s32.totalorder %s45, %s46
    %p55 = scmp.eq.s32.totalorder %s14, 0
    %p56 = por %p54, %p55
    %p57 = scmp.ne.s32.totalorder %s45, %s46
    %p58 = scmp.eq.s32.totalorder %s15, 1
    %p59 = por %p57, %p58
    %p61 = scmp.ne.s32.totalorder %s46, %s60
    %p62 = scmp.eq.s32.totalorder %s15, 0
    %p63 = por %p61, %p62
    %s65 = sadd.s32 %s64, 1
    %p68 = scmp.eq.s32.totalorder %s9, 1
    %p69 = scmp.ne.s32.totalorder %s64, %s66
    %p70 = scmp.eq.s32.totalorder %s9, 0
    %p71 = por %p69, %p70
    %p72 = scmp.ne.s32.totalorder %s64, %s66
    %p73 = scmp.eq.s32.totalorder %s14, 1
    %p74 = por %p72, %p73
    %p75 = scmp.ne.s32.totalorder %s66, %s67
    %p76 = scmp.eq.s32.totalorder %s14, 0
    %p77 = por %p75, %p76
    %p78 = scmp.ne.s32.totalorder %s66, %s67
    %p79 = scmp.eq.s32.totalorder %s15, 1
    %p80 = por %p78, %p79
    %p82 = scmp.ne.s32.totalorder %s67, %s81
    %p83 = scmp.eq.s32.totalorder %s15, 0
    %p84 = por %p82, %p83
    %s85 = ssub.s32 %s9, %s16
    %p86 = scmp.eq.s32.totalorder %s85, 0
    %s88 = sadd.s32 %s87, 1
    %s89 = scalar_select %p86, %s87, %s88
    %p92 = pneg %p86
    %p93 = scmp.eq.s32.totalorder %s9, 1
    %p94 = por %p92, %p93
    %p95 = scmp.ne.s32.totalorder %s87, %s90
    %p96 = scmp.eq.s32.totalorder %s9, 0
    %p97 = por %p95, %p96
    %p98 = scmp.ne.s32.totalorder %s87, %s90
    %p99 = scmp.eq.s32.totalorder %s14, 1
    %p100 = por %p98, %p99
    %p101 = scmp.ne.s32.totalorder %s90, %s91
    %p102 = scmp.eq.s32.totalorder %s14, 0
    %p103 = por %p101, %p102
    %p104 = scmp.ne.s32.totalorder %s90, %s91
    %p105 = scmp.eq.s32.totalorder %s15, 1
    %p106 = por %p104, %p105
    %p108 = scmp.ne.s32.totalorder %s91, %s107
    %p109 = scmp.eq.s32.totalorder %s15, 0
    %p110 = por %p108, %p109
    %p111 = scmp.le.s32.totalorder 1, %s9
    %p112 = scmp.lt.s32.totalorder %s9, 3
    %p113 = pnand %p111, %p112
    %p114 = pneg %p113
    // Predicated region
    $region9: #{base_unet_forward.19} parent=5 // pred_check
      _
    $region10: #{base_unet_forward.19} parent=5 // pred_check_branch
      %116 = sbr.rel (%p113) target = $region12
    $region11: #{base_unet_forward.19} parent=5 // pred_region
      %s117 = ssub.s32 %s9, 1
      // Predicated region
      $region13: #{base_unet_forward.19} parent=11 // pred_check
        %p118 = pneg %p56
      $region14: #{base_unet_forward.19} parent=11 // pred_check_branch
        %120 = sbr.rel (%p118) target = $region16
      $region15: #{base_unet_forward.19} parent=11 // pred_region
        _
      $region16: #{base_unet_forward.19} parent=11 // pred_fallthru
        _
      // Predicated region
      $region17: #{base_unet_forward.19} parent=11 // pred_check
        %p121 = pneg %p77
      $region18: #{base_unet_forward.19} parent=11 // pred_check_branch
        %123 = sbr.rel (%p121) target = $region20
      $region19: #{base_unet_forward.19} parent=11 // pred_region
        _
      $region20: #{base_unet_forward.19} parent=11 // pred_fallthru
        _
    $region12: #{base_unet_forward.19} parent=5 // pred_fallthru
      _
    %p124 = scmp.lt.s32.totalorder %s9, 2
    // Predicated region
    $region21: #{base_unet_forward.19} parent=5 // pred_check
      %p125 = pneg %p124
    $region22: #{base_unet_forward.19} parent=5 // pred_check_branch
      %127 = sbr.rel (%p125) target = $region24
    $region23: #{base_unet_forward.19} parent=5 // pred_region
      // Predicated region
      $region25: #{base_unet_forward.19} parent=23 // pred_check
        %p128 = pneg %p29
      $region26: #{base_unet_forward.19} parent=23 // pred_check_branch
        %130 = sbr.rel (%p128) target = $region28
      $region27: #{base_unet_forward.19} parent=23 // pred_region
        %p131 = scmp.lt.s32.totalorder %s9, 1
        %s132 = scalar_select %p131, %s9, 1
        %s133 = smul.addr %s132, 144
        %s134 = smul.addr %s133, 4
        %s135 = scalar_lea.vmem %s0, %s134
      $region28: #{base_unet_forward.19} parent=23 // pred_fallthru
        _
    $region24: #{base_unet_forward.19} parent=5 // pred_fallthru
      _
    %p136 = scmp.le.s32.totalorder 1, %s9
    %p137 = scmp.lt.s32.totalorder %s9, 3
    %p138 = pnand %p136, %p137
    %p139 = pneg %p138
    // Predicated region
    $region29: #{base_unet_forward.19} parent=5 // pred_check
      _
    $region30: #{base_unet_forward.19} parent=5 // pred_check_branch
      %141 = sbr.rel (%p138) target = $region32
    $region31: #{base_unet_forward.19} parent=5 // pred_region
      %s142 = ssub.s32 %s9, 1
      %p143 = scmp.lt.s32.totalorder %s14, 1
      %s144 = scalar_select %p143, %s14, 1
      %s145 = smul.addr %s144, 144
      %s146 = smul.addr %s145, 4
      %s147 = scalar_lea.vmem %s0, %s146
      %p148 = pneg %p35
      %p149 = pneg %p32
      %p150 = pneg %p56
      %p151 = pneg %p53
      %p152 = pneg %p77
      %p153 = pneg %p74
      %p154 = pneg %p103
      %p155 = pneg %p100
      %p156 = scmp.lt.s32.totalorder %s14, 1
      %s157 = scalar_select %p156, %s14, 1
      %s158 = smul.addr %s157, 4
      %s159 = smul.addr %s158, 8
      %s160 = scalar_lea.vmem %s3, %s159
      %p161 = scmp.lt.s32.totalorder %s14, 1
      %s162 = scalar_select %p161, %s14, 1
      %s163 = smul.addr %s162, 144
      %s164 = smul.addr %s163, 4
      %s165 = scalar_lea.vmem %s0, %s164
      %p166 = scmp.lt.s32.totalorder %s14, 1
      %s167 = scalar_select %p166, %s14, 1
      %s168 = smul.addr %s167, 4
      %s169 = smul.addr %s168, 8
      %s170 = scalar_lea.vmem %s3, %s169
      %v172 = vld [vmem:[%s1] sm:$0xff]
      %v173 = vld [vmem:[%s1 + $0x8] sm:$0xf]
      %v174 = vld [vmem:[%s165] sm:$0xf]
      %v175 = vld [vmem:[%s165 + $0x4] sm:$0xf]
      %v176 = vld [vmem:[%s165 + $0x8] sm:$0xf]
      %v177 = vld [vmem:[%s165 + $0xc] sm:$0xf]
      %v178 = vld [vmem:[%s165 + $0x10] sm:$0xf]
      %v179 = vld [vmem:[%s165 + $0x14] sm:$0xf]
      %v180 = vld [vmem:[%s165 + $0x18] sm:$0xf]
      %v181 = vld [vmem:[%s165 + $0x1c] sm:$0xf]
      %v182 = vld [vmem:[%s165 + $0x20] sm:$0xf]
      %v183 = vld [vmem:[%s165 + $0x24] sm:$0xf]
      %v184 = vld [vmem:[%s165 + $0x28] sm:$0xf]
      %v185 = vld [vmem:[%s165 + $0x2c] sm:$0xf]
      %v186 = vld [vmem:[%s165 + $0x30] sm:$0xf]
      %v187 = vld [vmem:[%s165 + $0x34] sm:$0xf]
      %v188 = vld [vmem:[%s165 + $0x38] sm:$0xf]
      %v189 = vld [vmem:[%s165 + $0x3c] sm:$0xf]
      %v190 = vld [vmem:[%s165 + $0x40] sm:$0xf]
      %v191 = vld [vmem:[%s165 + $0x44] sm:$0xf]
      %v192 = vld [vmem:[%s165 + $0x48] sm:$0xf]
      %v193 = vld [vmem:[%s165 + $0x4c] sm:$0xf]
      %v194 = vld [vmem:[%s165 + $0x50] sm:$0xf]
      %v195 = vld [vmem:[%s165 + $0x54] sm:$0xf]
      %v196 = vld [vmem:[%s165 + $0x58] sm:$0xf]
      %v197 = vld [vmem:[%s165 + $0x5c] sm:$0xf]
      %v198 = vld [vmem:[%s165 + $0x60] sm:$0xf]
      %v199 = vld [vmem:[%s165 + $0x64] sm:$0xf]
      %v200 = vld [vmem:[%s165 + $0x68] sm:$0xf]
      %v201 = vld [vmem:[%s165 + $0x6c] sm:$0xf]
      %v202 = vld [vmem:[%s165 + $0x70] sm:$0xf]
      %v203 = vld [vmem:[%s165 + $0x74] sm:$0xf]
      %v204 = vld [vmem:[%s165 + $0x78] sm:$0xf]
      %v205 = vld [vmem:[%s165 + $0x7c] sm:$0xf]
      %v206 = vld [vmem:[%s165 + $0x80] sm:$0xf]
      %v207 = vld [vmem:[%s165 + $0x84] sm:$0xf]
      %v208 = vld [vmem:[%s165 + $0x88] sm:$0xf]
      %v209 = vld [vmem:[%s165 + $0x8c] sm:$0xf]
      %v210 = vld [vmem:[%s2] sm:$0xff]
      %212 = vset.pattern.permute.xlu0 0
      %213 = vperm.xlu0 %212, %v210
      %v214 = vpop.permute.xlu0 %213
      %v218 = vunpack.c.l.b16 %v172
      %v219 = vunpack.c.h.b16 %v172
      %v220 = vunpack.c.l.b16 %v173
      %v221 = vpack.c.b16 %v218, %v218
      %v222 = vpack.c.b16 %v219, %v219
      %v223 = vpack.c.b16 %v220, %v220
      %v262 = vunpack.c.l.b16 %v174
      %v263 = vunpack.c.l.b16 %v175
      %v264 = vunpack.c.l.b16 %v176
      %v265 = vunpack.c.l.b16 %v177
      %v266 = vunpack.c.l.b16 %v178
      %v267 = vunpack.c.l.b16 %v179
      %v268 = vunpack.c.l.b16 %v180
      %v269 = vunpack.c.l.b16 %v181
      %v270 = vunpack.c.l.b16 %v182
      %v271 = vunpack.c.l.b16 %v183
      %v272 = vunpack.c.l.b16 %v184
      %v273 = vunpack.c.l.b16 %v185
      %v274 = vunpack.c.l.b16 %v186
      %v275 = vunpack.c.l.b16 %v187
      %v276 = vunpack.c.l.b16 %v188
      %v277 = vunpack.c.l.b16 %v189
      %v278 = vunpack.c.l.b16 %v190
      %v279 = vunpack.c.l.b16 %v191
      %v280 = vunpack.c.l.b16 %v192
      %v281 = vunpack.c.l.b16 %v193
      %v282 = vunpack.c.l.b16 %v194
      %v283 = vunpack.c.l.b16 %v195
      %v284 = vunpack.c.l.b16 %v196
      %v285 = vunpack.c.l.b16 %v197
      %v286 = vunpack.c.l.b16 %v198
      %v287 = vunpack.c.l.b16 %v199
      %v288 = vunpack.c.l.b16 %v200
      %v289 = vunpack.c.l.b16 %v201
      %v290 = vunpack.c.l.b16 %v202
      %v291 = vunpack.c.l.b16 %v203
      %v292 = vunpack.c.l.b16 %v204
      %v293 = vunpack.c.l.b16 %v205
      %v294 = vunpack.c.l.b16 %v206
      %v295 = vunpack.c.l.b16 %v207
      %v296 = vunpack.c.l.b16 %v208
      %v297 = vunpack.c.l.b16 %v209
      %v298 = vpack.c.b16 %v263, %v262
      %v299 = vpack.c.b16 %v265, %v264
      %v300 = vpack.c.b16 %v267, %v266
      %v301 = vpack.c.b16 %v269, %v268
      %v302 = vpack.c.b16 %v271, %v270
      %v303 = vpack.c.b16 %v273, %v272
      %v304 = vpack.c.b16 %v275, %v274
      %v305 = vpack.c.b16 %v277, %v276
      %v306 = vpack.c.b16 %v279, %v278
      %v307 = vpack.c.b16 %v281, %v280
      %v308 = vpack.c.b16 %v283, %v282
      %v309 = vpack.c.b16 %v285, %v284
      %v310 = vpack.c.b16 %v287, %v286
      %v311 = vpack.c.b16 %v289, %v288
      %v312 = vpack.c.b16 %v291, %v290
      %v313 = vpack.c.b16 %v293, %v292
      %v314 = vpack.c.b16 %v295, %v294
      %v315 = vpack.c.b16 %v297, %v296
      %vm334 = vcmask 261120
      %v336 = vsel %vm334, %v223, 0
      %338 = vmatpush.bf16.msra.mxu0 %v305
      %339 = vmatpush.bf16.msra.mxu0 %v304
      %340 = vmatpush.bf16.msra.mxu0 %v303
      %341 = vmatpush.bf16.msra.mxu0 %v302
      %342 = vmatpush.bf16.msra.mxu0 %v301
      %343 = vmatpush.bf16.msra.mxu0 %v300
      %344 = vmatpush.bf16.msra.mxu0 %v299
      %345 = vmatpush.bf16.msra.mxu0 %v298
      %346 = vmatmul.bf16.gmra.mxu0 %v221
      %v347 = vpop.f32.mrf.mxu0
      %v348 = vadd.f32 %v214, %v347
      %v349 = vpop.f32.mrf.mxu0
      %350 = vdwg.mxu0
      %351 = vmatpush.bf16.msra.mxu0 %v313
      %352 = vmatpush.bf16.msra.mxu0 %v312
      %353 = vmatpush.bf16.msra.mxu0 %v311
      %354 = vmatpush.bf16.msra.mxu0 %v310
      %355 = vmatpush.bf16.msra.mxu0 %v309
      %356 = vmatpush.bf16.msra.mxu0 %v308
      %357 = vmatpush.bf16.msra.mxu0 %v307
      %358 = vmatpush.bf16.msra.mxu0 %v306
      %359 = vmatmul.bf16.gmra.mxu0 %v222
      %v360 = vpop.f32.mrf.mxu0
      %v361 = vadd.f32 %v348, %v360
      %v362 = vpop.f32.mrf.mxu0
      %363 = vdwg.mxu0
      %364 = vmatpush.bf16.msra.mxu0 0
      %365 = vmatpush.bf16.msra.mxu0 0
      %366 = vmatpush.bf16.msra.mxu0 0
      %367 = vmatpush.bf16.msra.mxu0 0
      %368 = vmatpush.bf16.msra.mxu0 0
      %369 = vmatpush.bf16.msra.mxu0 0
      %370 = vmatpush.bf16.msra.mxu0 %v315
      %371 = vmatpush.bf16.msra.mxu0 %v314
      %372 = vmatmul.bf16.gmra.mxu0 %v336
      %v373 = vpop.f32.mrf.mxu0
      %v374 = vadd.f32 %v361, %v373
      %v375 = vpop.f32.mrf.mxu0
      %376 = vdwg.mxu0
      %vm377 = vcmp.ge.f32.partialorder %v374, 0.0
      %v378 = vmul.f32 %v374, 0.01
      %v379 = vsel %vm377, %v374, %v378
      %vm380 = vcmask 523264
      %v381 = vsel %vm380, %v379, 0.0
      %382 = vadd.xlane.f32.xlu0 %v381
      %v383 = vpop.xlane.xlu0 %382
      %s384 = scalar_lea.vmem %s1, 12
      %v385 = vld [vmem:[%s384] sm:$0xff]
      %v386 = vld [vmem:[%s384 + $0x8] sm:$0xf]
      %s387 = scalar_lea.vmem %s165, 144
      %v388 = vld [vmem:[%s387] sm:$0xf]
      %v389 = vld [vmem:[%s387 + $0x4] sm:$0xf]
      %v390 = vld [vmem:[%s387 + $0x8] sm:$0xf]
      %v391 = vld [vmem:[%s387 + $0xc] sm:$0xf]
      %v392 = vld [vmem:[%s387 + $0x10] sm:$0xf]
      %v393 = vld [vmem:[%s387 + $0x14] sm:$0xf]
      %v394 = vld [vmem:[%s387 + $0x18] sm:$0xf]
      %v395 = vld [vmem:[%s387 + $0x1c] sm:$0xf]
      %v396 = vld [vmem:[%s387 + $0x20] sm:$0xf]
      %v397 = vld [vmem:[%s387 + $0x24] sm:$0xf]
      %v398 = vld [vmem:[%s387 + $0x28] sm:$0xf]
      %v399 = vld [vmem:[%s387 + $0x2c] sm:$0xf]
      %v400 = vld [vmem:[%s387 + $0x30] sm:$0xf]
      %v401 = vld [vmem:[%s387 + $0x34] sm:$0xf]
      %v402 = vld [vmem:[%s387 + $0x38] sm:$0xf]
      %v403 = vld [vmem:[%s387 + $0x3c] sm:$0xf]
      %v404 = vld [vmem:[%s387 + $0x40] sm:$0xf]
      %v405 = vld [vmem:[%s387 + $0x44] sm:$0xf]
      %v406 = vld [vmem:[%s387 + $0x48] sm:$0xf]
      %v407 = vld [vmem:[%s387 + $0x4c] sm:$0xf]
      %v408 = vld [vmem:[%s387 + $0x50] sm:$0xf]
      %v409 = vld [vmem:[%s387 + $0x54] sm:$0xf]
      %v410 = vld [vmem:[%s387 + $0x58] sm:$0xf]
      %v411 = vld [vmem:[%s387 + $0x5c] sm:$0xf]
      %v412 = vld [vmem:[%s387 + $0x60] sm:$0xf]
      %v413 = vld [vmem:[%s387 + $0x64] sm:$0xf]
      %v414 = vld [vmem:[%s387 + $0x68] sm:$0xf]
      %v415 = vld [vmem:[%s387 + $0x6c] sm:$0xf]
      %v416 = vld [vmem:[%s387 + $0x70] sm:$0xf]
      %v417 = vld [vmem:[%s387 + $0x74] sm:$0xf]
      %v418 = vld [vmem:[%s387 + $0x78] sm:$0xf]
      %v419 = vld [vmem:[%s387 + $0x7c] sm:$0xf]
      %v420 = vld [vmem:[%s387 + $0x80] sm:$0xf]
      %v421 = vld [vmem:[%s387 + $0x84] sm:$0xf]
      %v422 = vld [vmem:[%s387 + $0x88] sm:$0xf]
      %v423 = vld [vmem:[%s387 + $0x8c] sm:$0xf]
      %v426 = vunpack.c.l.b16 %v385
      %v427 = vunpack.c.h.b16 %v385
      %v428 = vunpack.c.l.b16 %v386
      %v429 = vpack.c.b16 %v426, %v426
      %v430 = vpack.c.b16 %v427, %v427
      %v431 = vpack.c.b16 %v428, %v428
      %v470 = vunpack.c.l.b16 %v388
      %v471 = vunpack.c.l.b16 %v389
      %v472 = vunpack.c.l.b16 %v390
      %v473 = vunpack.c.l.b16 %v391
      %v474 = vunpack.c.l.b16 %v392
      %v475 = vunpack.c.l.b16 %v393
      %v476 = vunpack.c.l.b16 %v394
      %v477 = vunpack.c.l.b16 %v395
      %v478 = vunpack.c.l.b16 %v396
      %v479 = vunpack.c.l.b16 %v397
      %v480 = vunpack.c.l.b16 %v398
      %v481 = vunpack.c.l.b16 %v399
      %v482 = vunpack.c.l.b16 %v400
      %v483 = vunpack.c.l.b16 %v401
      %v484 = vunpack.c.l.b16 %v402
      %v485 = vunpack.c.l.b16 %v403
      %v486 = vunpack.c.l.b16 %v404
      %v487 = vunpack.c.l.b16 %v405
      %v488 = vunpack.c.l.b16 %v406
      %v489 = vunpack.c.l.b16 %v407
      %v490 = vunpack.c.l.b16 %v408
      %v491 = vunpack.c.l.b16 %v409
      %v492 = vunpack.c.l.b16 %v410
      %v493 = vunpack.c.l.b16 %v411
      %v494 = vunpack.c.l.b16 %v412
      %v495 = vunpack.c.l.b16 %v413
      %v496 = vunpack.c.l.b16 %v414
      %v497 = vunpack.c.l.b16 %v415
      %v498 = vunpack.c.l.b16 %v416
      %v499 = vunpack.c.l.b16 %v417
      %v500 = vunpack.c.l.b16 %v418
      %v501 = vunpack.c.l.b16 %v419
      %v502 = vunpack.c.l.b16 %v420
      %v503 = vunpack.c.l.b16 %v421
      %v504 = vunpack.c.l.b16 %v422
      %v505 = vunpack.c.l.b16 %v423
      %v506 = vpack.c.b16 %v471, %v470
      %v507 = vpack.c.b16 %v473, %v472
      %v508 = vpack.c.b16 %v475, %v474
      %v509 = vpack.c.b16 %v477, %v476
      %v510 = vpack.c.b16 %v479, %v478
      %v511 = vpack.c.b16 %v481, %v480
      %v512 = vpack.c.b16 %v483, %v482
      %v513 = vpack.c.b16 %v485, %v484
      %v514 = vpack.c.b16 %v487, %v486
      %v515 = vpack.c.b16 %v489, %v488
      %v516 = vpack.c.b16 %v491, %v490
      %v517 = vpack.c.b16 %v493, %v492
      %v518 = vpack.c.b16 %v495, %v494
      %v519 = vpack.c.b16 %v497, %v496
      %v520 = vpack.c.b16 %v499, %v498
      %v521 = vpack.c.b16 %v501, %v500
      %v522 = vpack.c.b16 %v503, %v502
      %v523 = vpack.c.b16 %v505, %v504
      %v543 = vsel %vm334, %v431, 0
      %545 = vmatpush.bf16.msra.mxu0 %v513
      %546 = vmatpush.bf16.msra.mxu0 %v512
      %547 = vmatpush.bf16.msra.mxu0 %v511
      %548 = vmatpush.bf16.msra.mxu0 %v510
      %549 = vmatpush.bf16.msra.mxu0 %v509
      %550 = vmatpush.bf16.msra.mxu0 %v508
      %551 = vmatpush.bf16.msra.mxu0 %v507
      %552 = vmatpush.bf16.msra.mxu0 %v506
      %553 = vmatmul.bf16.gmra.mxu0 %v429
      %v554 = vpop.f32.mrf.mxu0
      %v555 = vadd.f32 %v214, %v554
      %v556 = vpop.f32.mrf.mxu0
      %557 = vdwg.mxu0
      %558 = vmatpush.bf16.msra.mxu0 %v521
      %559 = vmatpush.bf16.msra.mxu0 %v520
      %560 = vmatpush.bf16.msra.mxu0 %v519
      %561 = vmatpush.bf16.msra.mxu0 %v518
      %562 = vmatpush.bf16.msra.mxu0 %v517
      %563 = vmatpush.bf16.msra.mxu0 %v516
      %564 = vmatpush.bf16.msra.mxu0 %v515
      %565 = vmatpush.bf16.msra.mxu0 %v514
      %566 = vmatmul.bf16.gmra.mxu0 %v430
      %v567 = vpop.f32.mrf.mxu0
      %v568 = vadd.f32 %v555, %v567
      %v569 = vpop.f32.mrf.mxu0
      %570 = vdwg.mxu0
      %571 = vmatpush.bf16.msra.mxu0 0
      %572 = vmatpush.bf16.msra.mxu0 0
      %573 = vmatpush.bf16.msra.mxu0 0
      %574 = vmatpush.bf16.msra.mxu0 0
      %575 = vmatpush.bf16.msra.mxu0 0
      %576 = vmatpush.bf16.msra.mxu0 0
      %577 = vmatpush.bf16.msra.mxu0 %v523
      %578 = vmatpush.bf16.msra.mxu0 %v522
      %579 = vmatmul.bf16.gmra.mxu0 %v543
      %v580 = vpop.f32.mrf.mxu0
      %v581 = vadd.f32 %v568, %v580
      %v582 = vpop.f32.mrf.mxu0
      %583 = vdwg.mxu0
      %vm584 = vcmp.ge.f32.partialorder %v581, 0.0
      %v585 = vmul.f32 %v581, 0.01
      %v586 = vsel %vm584, %v581, %v585
      %v587 = vsel %vm380, %v586, 0.0
      %588 = vadd.xlane.f32.xlu0 %v587
      %v589 = vpop.xlane.xlu0 %588
      %v590 = vadd.f32 %v383, %v589
      %s591 = scalar_lea.vmem %s1, 24
      %v592 = vld [vmem:[%s591] sm:$0xff]
      %v593 = vld [vmem:[%s591 + $0x8] sm:$0xf]
      %s594 = scalar_lea.vmem %s165, 288
      %v595 = vld [vmem:[%s594] sm:$0xf]
      %v596 = vld [vmem:[%s594 + $0x4] sm:$0xf]
      %v597 = vld [vmem:[%s594 + $0x8] sm:$0xf]
      %v598 = vld [vmem:[%s594 + $0xc] sm:$0xf]
      %v599 = vld [vmem:[%s594 + $0x10] sm:$0xf]
      %v600 = vld [vmem:[%s594 + $0x14] sm:$0xf]
      %v601 = vld [vmem:[%s594 + $0x18] sm:$0xf]
      %v602 = vld [vmem:[%s594 + $0x1c] sm:$0xf]
      %v603 = vld [vmem:[%s594 + $0x20] sm:$0xf]
      %v604 = vld [vmem:[%s594 + $0x24] sm:$0xf]
      %v605 = vld [vmem:[%s594 + $0x28] sm:$0xf]
      %v606 = vld [vmem:[%s594 + $0x2c] sm:$0xf]
      %v607 = vld [vmem:[%s594 + $0x30] sm:$0xf]
      %v608 = vld [vmem:[%s594 + $0x34] sm:$0xf]
      %v609 = vld [vmem:[%s594 + $0x38] sm:$0xf]
      %v610 = vld [vmem:[%s594 + $0x3c] sm:$0xf]
      %v611 = vld [vmem:[%s594 + $0x40] sm:$0xf]
      %v612 = vld [vmem:[%s594 + $0x44] sm:$0xf]
      %v613 = vld [vmem:[%s594 + $0x48] sm:$0xf]
      %v614 = vld [vmem:[%s594 + $0x4c] sm:$0xf]
      %v615 = vld [vmem:[%s594 + $0x50] sm:$0xf]
      %v616 = vld [vmem:[%s594 + $0x54] sm:$0xf]
      %v617 = vld [vmem:[%s594 + $0x58] sm:$0xf]
      %v618 = vld [vmem:[%s594 + $0x5c] sm:$0xf]
      %v619 = vld [vmem:[%s594 + $0x60] sm:$0xf]
      %v620 = vld [vmem:[%s594 + $0x64] sm:$0xf]
      %v621 = vld [vmem:[%s594 + $0x68] sm:$0xf]
      %v622 = vld [vmem:[%s594 + $0x6c] sm:$0xf]
      %v623 = vld [vmem:[%s594 + $0x70] sm:$0xf]
      %v624 = vld [vmem:[%s594 + $0x74] sm:$0xf]
      %v625 = vld [vmem:[%s594 + $0x78] sm:$0xf]
      %v626 = vld [vmem:[%s594 + $0x7c] sm:$0xf]
      %v627 = vld [vmem:[%s594 + $0x80] sm:$0xf]
      %v628 = vld [vmem:[%s594 + $0x84] sm:$0xf]
      %v629 = vld [vmem:[%s594 + $0x88] sm:$0xf]
      %v630 = vld [vmem:[%s594 + $0x8c] sm:$0xf]
      %v633 = vunpack.c.l.b16 %v592
      %v634 = vunpack.c.h.b16 %v592
      %v635 = vunpack.c.l.b16 %v593
      %v636 = vpack.c.b16 %v633, %v633
      %v637 = vpack.c.b16 %v634, %v634
      %v638 = vpack.c.b16 %v635, %v635
      %v677 = vunpack.c.l.b16 %v595
      %v678 = vunpack.c.l.b16 %v596
      %v679 = vunpack.c.l.b16 %v597
      %v680 = vunpack.c.l.b16 %v598
      %v681 = vunpack.c.l.b16 %v599
      %v682 = vunpack.c.l.b16 %v600
      %v683 = vunpack.c.l.b16 %v601
      %v684 = vunpack.c.l.b16 %v602
      %v685 = vunpack.c.l.b16 %v603
      %v686 = vunpack.c.l.b16 %v604
      %v687 = vunpack.c.l.b16 %v605
      %v688 = vunpack.c.l.b16 %v606
      %v689 = vunpack.c.l.b16 %v607
      %v690 = vunpack.c.l.b16 %v608
      %v691 = vunpack.c.l.b16 %v609
      %v692 = vunpack.c.l.b16 %v610
      %v693 = vunpack.c.l.b16 %v611
      %v694 = vunpack.c.l.b16 %v612
      %v695 = vunpack.c.l.b16 %v613
      %v696 = vunpack.c.l.b16 %v614
      %v697 = vunpack.c.l.b16 %v615
      %v698 = vunpack.c.l.b16 %v616
      %v699 = vunpack.c.l.b16 %v617
      %v700 = vunpack.c.l.b16 %v618
      %v701 = vunpack.c.l.b16 %v619
      %v702 = vunpack.c.l.b16 %v620
      %v703 = vunpack.c.l.b16 %v621
      %v704 = vunpack.c.l.b16 %v622
      %v705 = vunpack.c.l.b16 %v623
      %v706 = vunpack.c.l.b16 %v624
      %v707 = vunpack.c.l.b16 %v625
      %v708 = vunpack.c.l.b16 %v626
      %v709 = vunpack.c.l.b16 %v627
      %v710 = vunpack.c.l.b16 %v628
      %v711 = vunpack.c.l.b16 %v629
      %v712 = vunpack.c.l.b16 %v630
      %v713 = vpack.c.b16 %v678, %v677
      %v714 = vpack.c.b16 %v680, %v679
      %v715 = vpack.c.b16 %v682, %v681
      %v716 = vpack.c.b16 %v684, %v683
      %v717 = vpack.c.b16 %v686, %v685
      %v718 = vpack.c.b16 %v688, %v687
      %v719 = vpack.c.b16 %v690, %v689
      %v720 = vpack.c.b16 %v692, %v691
      %v721 = vpack.c.b16 %v694, %v693
      %v722 = vpack.c.b16 %v696, %v695
      %v723 = vpack.c.b16 %v698, %v697
      %v724 = vpack.c.b16 %v700, %v699
      %v725 = vpack.c.b16 %v702, %v701
      %v726 = vpack.c.b16 %v704, %v703
      %v727 = vpack.c.b16 %v706, %v705
      %v728 = vpack.c.b16 %v708, %v707
      %v729 = vpack.c.b16 %v710, %v709
      %v730 = vpack.c.b16 %v712, %v711
      %v750 = vsel %vm334, %v638, 0
      %752 = vmatpush.bf16.msra.mxu0 %v720
      %753 = vmatpush.bf16.msra.mxu0 %v719
      %754 = vmatpush.bf16.msra.mxu0 %v718
      %755 = vmatpush.bf16.msra.mxu0 %v717
      %756 = vmatpush.bf16.msra.mxu0 %v716
      %757 = vmatpush.bf16.msra.mxu0 %v715
      %758 = vmatpush.bf16.msra.mxu0 %v714
      %759 = vmatpush.bf16.msra.mxu0 %v713
      %760 = vmatmul.bf16.gmra.mxu0 %v636
      %v761 = vpop.f32.mrf.mxu0
      %v762 = vadd.f32 %v214, %v761
      %v763 = vpop.f32.mrf.mxu0
      %764 = vdwg.mxu0
      %765 = vmatpush.bf16.msra.mxu0 %v728
      %766 = vmatpush.bf16.msra.mxu0 %v727
      %767 = vmatpush.bf16.msra.mxu0 %v726
      %768 = vmatpush.bf16.msra.mxu0 %v725
      %769 = vmatpush.bf16.msra.mxu0 %v724
      %770 = vmatpush.bf16.msra.mxu0 %v723
      %771 = vmatpush.bf16.msra.mxu0 %v722
      %772 = vmatpush.bf16.msra.mxu0 %v721
      %773 = vmatmul.bf16.gmra.mxu0 %v637
      %v774 = vpop.f32.mrf.mxu0
      %v775 = vadd.f32 %v762, %v774
      %v776 = vpop.f32.mrf.mxu0
      %777 = vdwg.mxu0
      %778 = vmatpush.bf16.msra.mxu0 0
      %779 = vmatpush.bf16.msra.mxu0 0
      %780 = vmatpush.bf16.msra.mxu0 0
      %781 = vmatpush.bf16.msra.mxu0 0
      %782 = vmatpush.bf16.msra.mxu0 0
      %783 = vmatpush.bf16.msra.mxu0 0
      %784 = vmatpush.bf16.msra.mxu0 %v730
      %785 = vmatpush.bf16.msra.mxu0 %v729
      %786 = vmatmul.bf16.gmra.mxu0 %v750
      %v787 = vpop.f32.mrf.mxu0
      %v788 = vadd.f32 %v775, %v787
      %v789 = vpop.f32.mrf.mxu0
      %790 = vdwg.mxu0
      %vm791 = vcmp.ge.f32.partialorder %v788, 0.0
      %v792 = vmul.f32 %v788, 0.01
      %v793 = vsel %vm791, %v788, %v792
      %v794 = vsel %vm380, %v793, 0.0
      %795 = vadd.xlane.f32.xlu0 %v794
      %v796 = vpop.xlane.xlu0 %795
      %v797 = vadd.f32 %v590, %v796
      %s798 = scalar_lea.vmem %s1, 36
      %v799 = vld [vmem:[%s798] sm:$0xff]
      %v800 = vld [vmem:[%s798 + $0x8] sm:$0xf]
      %s801 = scalar_lea.vmem %s165, 432
      %v802 = vld [vmem:[%s801] sm:$0xf]
      %v803 = vld [vmem:[%s801 + $0x4] sm:$0xf]
      %v804 = vld [vmem:[%s801 + $0x8] sm:$0xf]
      %v805 = vld [vmem:[%s801 + $0xc] sm:$0xf]
      %v806 = vld [vmem:[%s801 + $0x10] sm:$0xf]
      %v807 = vld [vmem:[%s801 + $0x14] sm:$0xf]
      %v808 = vld [vmem:[%s801 + $0x18] sm:$0xf]
      %v809 = vld [vmem:[%s801 + $0x1c] sm:$0xf]
      %v810 = vld [vmem:[%s801 + $0x20] sm:$0xf]
      %v811 = vld [vmem:[%s801 + $0x24] sm:$0xf]
      %v812 = vld [vmem:[%s801 + $0x28] sm:$0xf]
      %v813 = vld [vmem:[%s801 + $0x2c] sm:$0xf]
      %v814 = vld [vmem:[%s801 + $0x30] sm:$0xf]
      %v815 = vld [vmem:[%s801 + $0x34] sm:$0xf]
      %v816 = vld [vmem:[%s801 + $0x38] sm:$0xf]
      %v817 = vld [vmem:[%s801 + $0x3c] sm:$0xf]
      %v818 = vld [vmem:[%s801 + $0x40] sm:$0xf]
      %v819 = vld [vmem:[%s801 + $0x44] sm:$0xf]
      %v820 = vld [vmem:[%s801 + $0x48] sm:$0xf]
      %v821 = vld [vmem:[%s801 + $0x4c] sm:$0xf]
      %v822 = vld [vmem:[%s801 + $0x50] sm:$0xf]
      %v823 = vld [vmem:[%s801 + $0x54] sm:$0xf]
      %v824 = vld [vmem:[%s801 + $0x58] sm:$0xf]
      %v825 = vld [vmem:[%s801 + $0x5c] sm:$0xf]
      %v826 = vld [vmem:[%s801 + $0x60] sm:$0xf]
      %v827 = vld [vmem:[%s801 + $0x64] sm:$0xf]
      %v828 = vld [vmem:[%s801 + $0x68] sm:$0xf]
      %v829 = vld [vmem:[%s801 + $0x6c] sm:$0xf]
      %v830 = vld [vmem:[%s801 + $0x70] sm:$0xf]
      %v831 = vld [vmem:[%s801 + $0x74] sm:$0xf]
      %v832 = vld [vmem:[%s801 + $0x78] sm:$0xf]
      %v833 = vld [vmem:[%s801 + $0x7c] sm:$0xf]
      %v834 = vld [vmem:[%s801 + $0x80] sm:$0xf]
      %v835 = vld [vmem:[%s801 + $0x84] sm:$0xf]
      %v836 = vld [vmem:[%s801 + $0x88] sm:$0xf]
      %v837 = vld [vmem:[%s801 + $0x8c] sm:$0xf]
      %v840 = vunpack.c.l.b16 %v799
      %v841 = vunpack.c.h.b16 %v799
      %v842 = vunpack.c.l.b16 %v800
      %v843 = vpack.c.b16 %v840, %v840
      %v844 = vpack.c.b16 %v841, %v841
      %v845 = vpack.c.b16 %v842, %v842
      %v884 = vunpack.c.l.b16 %v802
      %v885 = vunpack.c.l.b16 %v803
      %v886 = vunpack.c.l.b16 %v804
      %v887 = vunpack.c.l.b16 %v805
      %v888 = vunpack.c.l.b16 %v806
      %v889 = vunpack.c.l.b16 %v807
      %v890 = vunpack.c.l.b16 %v808
      %v891 = vunpack.c.l.b16 %v809
      %v892 = vunpack.c.l.b16 %v810
      %v893 = vunpack.c.l.b16 %v811
      %v894 = vunpack.c.l.b16 %v812
      %v895 = vunpack.c.l.b16 %v813
      %v896 = vunpack.c.l.b16 %v814
      %v897 = vunpack.c.l.b16 %v815
      %v898 = vunpack.c.l.b16 %v816
      %v899 = vunpack.c.l.b16 %v817
      %v900 = vunpack.c.l.b16 %v818
      %v901 = vunpack.c.l.b16 %v819
      %v902 = vunpack.c.l.b16 %v820
      %v903 = vunpack.c.l.b16 %v821
      %v904 = vunpack.c.l.b16 %v822
      %v905 = vunpack.c.l.b16 %v823
      %v906 = vunpack.c.l.b16 %v824
      %v907 = vunpack.c.l.b16 %v825
      %v908 = vunpack.c.l.b16 %v826
      %v909 = vunpack.c.l.b16 %v827
      %v910 = vunpack.c.l.b16 %v828
      %v911 = vunpack.c.l.b16 %v829
      %v912 = vunpack.c.l.b16 %v830
      %v913 = vunpack.c.l.b16 %v831
      %v914 = vunpack.c.l.b16 %v832
      %v915 = vunpack.c.l.b16 %v833
      %v916 = vunpack.c.l.b16 %v834
      %v917 = vunpack.c.l.b16 %v835
      %v918 = vunpack.c.l.b16 %v836
      %v919 = vunpack.c.l.b16 %v837
      %v920 = vpack.c.b16 %v885, %v884
      %v921 = vpack.c.b16 %v887, %v886
      %v922 = vpack.c.b16 %v889, %v888
      %v923 = vpack.c.b16 %v891, %v890
      %v924 = vpack.c.b16 %v893, %v892
      %v925 = vpack.c.b16 %v895, %v894
      %v926 = vpack.c.b16 %v897, %v896
      %v927 = vpack.c.b16 %v899, %v898
      %v928 = vpack.c.b16 %v901, %v900
      %v929 = vpack.c.b16 %v903, %v902
      %v930 = vpack.c.b16 %v905, %v904
      %v931 = vpack.c.b16 %v907, %v906
      %v932 = vpack.c.b16 %v909, %v908
      %v933 = vpack.c.b16 %v911, %v910
      %v934 = vpack.c.b16 %v913, %v912
      %v935 = vpack.c.b16 %v915, %v914
      %v936 = vpack.c.b16 %v917, %v916
      %v937 = vpack.c.b16 %v919, %v918
      %v957 = vsel %vm334, %v845, 0
      %959 = vmatpush.bf16.msra.mxu0 %v927
      %960 = vmatpush.bf16.msra.mxu0 %v926
      %961 = vmatpush.bf16.msra.mxu0 %v925
      %962 = vmatpush.bf16.msra.mxu0 %v924
      %963 = vmatpush.bf16.msra.mxu0 %v923
      %964 = vmatpush.bf16.msra.mxu0 %v922
      %965 = vmatpush.bf16.msra.mxu0 %v921
      %966 = vmatpush.bf16.msra.mxu0 %v920
      %967 = vmatmul.bf16.gmra.mxu0 %v843
      %v968 = vpop.f32.mrf.mxu0
      %v969 = vadd.f32 %v214, %v968
      %v970 = vpop.f32.mrf.mxu0
      %971 = vdwg.mxu0
      %972 = vmatpush.bf16.msra.mxu0 %v935
      %973 = vmatpush.bf16.msra.mxu0 %v934
      %974 = vmatpush.bf16.msra.mxu0 %v933
      %975 = vmatpush.bf16.msra.mxu0 %v932
      %976 = vmatpush.bf16.msra.mxu0 %v931
      %977 = vmatpush.bf16.msra.mxu0 %v930
      %978 = vmatpush.bf16.msra.mxu0 %v929
      %979 = vmatpush.bf16.msra.mxu0 %v928
      %980 = vmatmul.bf16.gmra.mxu0 %v844
      %v981 = vpop.f32.mrf.mxu0
      %v982 = vadd.f32 %v969, %v981
      %v983 = vpop.f32.mrf.mxu0
      %984 = vdwg.mxu0
      %985 = vmatpush.bf16.msra.mxu0 0
      %986 = vmatpush.bf16.msra.mxu0 0
      %987 = vmatpush.bf16.msra.mxu0 0
      %988 = vmatpush.bf16.msra.mxu0 0
      %989 = vmatpush.bf16.msra.mxu0 0
      %990 = vmatpush.bf16.msra.mxu0 0
      %991 = vmatpush.bf16.msra.mxu0 %v937
      %992 = vmatpush.bf16.msra.mxu0 %v936
      %993 = vmatmul.bf16.gmra.mxu0 %v957
      %v994 = vpop.f32.mrf.mxu0
      %v995 = vadd.f32 %v982, %v994
      %v996 = vpop.f32.mrf.mxu0
      %997 = vdwg.mxu0
      %vm998 = vcmp.ge.f32.partialorder %v995, 0.0
      %v999 = vmul.f32 %v995, 0.01
      %v1000 = vsel %vm998, %v995, %v999
      %v1001 = vsel %vm380, %v1000, 0.0
      %1002 = vadd.xlane.f32.xlu0 %v1001
      %v1003 = vpop.xlane.xlu0 %1002
      %v1004 = vadd.f32 %v797, %v1003
      %v1005 = vrcp.pop 256.0
      %v1006 = vmul.f32 256.0, %v1005
      %v1007 = vsub.f32 1.0, %v1006
      %v1008 = vmul.f32 %v1005, %v1007
      %v1009 = vadd.f32 %v1005, %v1008
      %vm1010 = vweird.f32 %v1005
      %v1011 = vsel %vm1010, %v1005, %v1009
      %v1012 = vmul.f32 %v1004, %v1011
      %v1013 = vsub.f32 %v379, %v1012
      %v1014 = vmul.f32 %v1013, %v1013
      %v1015 = vsel %vm380, %v1014, 0.0
      %1016 = vadd.xlane.f32.xlu0 %v1015
      %v1017 = vpop.xlane.xlu0 %1016
      %v1018 = vsub.f32 %v586, %v1012
      %v1019 = vmul.f32 %v1018, %v1018
      %v1020 = vsel %vm380, %v1019, 0.0
      %1021 = vadd.xlane.f32.xlu0 %v1020
      %v1022 = vpop.xlane.xlu0 %1021
      %v1023 = vadd.f32 %v1017, %v1022
      %v1024 = vsub.f32 %v793, %v1012
      %v1025 = vmul.f32 %v1024, %v1024
      %v1026 = vsel %vm380, %v1025, 0.0
      %1027 = vadd.xlane.f32.xlu0 %v1026
      %v1028 = vpop.xlane.xlu0 %1027
      %v1029 = vadd.f32 %v1023, %v1028
      %v1030 = vsub.f32 %v1000, %v1012
      %v1031 = vmul.f32 %v1030, %v1030
      %v1032 = vsel %vm380, %v1031, 0.0
      %1033 = vadd.xlane.f32.xlu0 %v1032
      %v1034 = vpop.xlane.xlu0 %1033
      %v1035 = vadd.f32 %v1029, %v1034
      %v1036 = vmul.f32 %v1035, %v1011
      %v1037 = vadd.f32 %v1036, 1e-05
      %v1038 = vrsqrt.pop %v1037
      %v1039 = vmul.f32 %v1038, %v1037
      %v1040 = vmul.f32 %v1039, %v1038
      %v1041 = vmul.f32 0.5, %v1040
      %v1042 = vsub.f32 1.5, %v1041
      %v1043 = vmul.f32 %v1038, %v1042
      %vm1044 = vweird.f32 %v1037
      %vm1045 = vweird.f32 %v1038
      %vm1046 = vmor %vm1044, %vm1045
      %v1047 = vsel %vm1046, %v1038, %v1043
      %v1048 = vmul.f32 %v1013, %v1047
      %1049 = vst.msk [vmem:[%s170] sm:$0xff] %vm380, %v1048
      %v1050 = vmul.f32 %v1018, %v1047
      %s1051 = scalar_lea.vmem %s170, 8
      %1052 = vst.msk [vmem:[%s1051] sm:$0xff] %vm380, %v1050
      %v1053 = vmul.f32 %v1024, %v1047
      %s1054 = scalar_lea.vmem %s170, 16
      %1055 = vst.msk [vmem:[%s1054] sm:$0xff] %vm380, %v1053
      %v1056 = vmul.f32 %v1030, %v1047
      %s1057 = scalar_lea.vmem %s170, 24
      %1058 = vst.msk [vmem:[%s1057] sm:$0xff] %vm380, %v1056
      %p1059 = scmp.lt.s32.totalorder %s14, 1
      %s1060 = scalar_select %p1059, %s14, 1
      %s1061 = smul.addr %s1060, 4
      %s1062 = smul.addr %s1061, 8
      %s1063 = scalar_lea.vmem %s3, %s1062
      // Predicated region
      $region33: #{base_unet_forward.19} parent=31 // pred_check
        %p1064 = pneg %p100
      $region34: #{base_unet_forward.19} parent=31 // pred_check_branch
        %1066 = sbr.rel (%p1064) target = $region36
      $region35: #{base_unet_forward.19} parent=31 // pred_region
        _
      $region36: #{base_unet_forward.19} parent=31 // pred_fallthru
        _
    $region32: #{base_unet_forward.19} parent=5 // pred_fallthru
      _
    %p1067 = scmp.le.s32.totalorder 2, %s9
    // Predicated region
    $region37: #{base_unet_forward.19} parent=5 // pred_check
      %p1068 = pneg %p1067
    $region38: #{base_unet_forward.19} parent=5 // pred_check_branch
      %1070 = sbr.rel (%p1068) target = $region40
    $region39: #{base_unet_forward.19} parent=5 // pred_region
      %s1071 = ssub.s32 %s9, 2
      // Predicated region
      $region41: #{base_unet_forward.19} parent=39 // pred_check
        %p1072 = pneg %p106
      $region42: #{base_unet_forward.19} parent=39 // pred_check_branch
        %1074 = sbr.rel (%p1072) target = $region44
      $region43: #{base_unet_forward.19} parent=39 // pred_region
        %p1075 = scmp.lt.s32.totalorder %s15, 1
        %s1076 = scalar_select %p1075, %s15, 1
        %s1077 = smul.addr %s1076, 4
        %s1078 = smul.addr %s1077, 8
        %s1079 = scalar_lea.vmem %s3, %s1078
      $region44: #{base_unet_forward.19} parent=39 // pred_fallthru
        _
    $region40: #{base_unet_forward.19} parent=5 // pred_fallthru
      _
  $region6: #{base_unet_forward.19} parent=0 // loop_footer
    %s13 = sadd.s32 1, %s9
  $region7: #{base_unet_forward.19} parent=0 // loop_footer_branch
    %8 = sbr.rel target = $region3
  $region8: #{base_unet_forward.19} parent=0 // loop_exit
    _

// kernel: base_unet_forward.20
$region0: #{base_unet_forward.20}
  #allocation0 [shape = 'u32[]', space=smem, size = 0x4, offset = 0x4, fixed_abs, tag = 'smem constant byte address 0x4 - core index']
  #allocation1 [shape = 'u32[72,128]{1,0:T(1,128)}', space=vmem, size = 0x9000, scoped, tag = 'internal scratch']
  %s0 = inlined_call_operand.vmem [shape: bf16[2,4,216,256], index: 0, kind: input, shape index: {}]
  %s1 = inlined_call_operand.vmem [shape: bf16[4,14,216], index: 1, kind: input, shape index: {}]
  %s2 = inlined_call_operand.vmem [shape: f32[14,1], index: 2, kind: input, shape index: {}]
  %s3 = inlined_call_operand.vmem [shape: f32[2,4,14,256], index: 3, kind: output, shape index: {}]
  %s4 = sld [smem:[#allocation0]]
  $region45: #{base_unet_forward.20} parent=0
    _
  %s6 = ssub.s32 1, %s4
  %s7 = scalar_select 0, %s6, %s4
  loop: start=0, step=1, limit=4
  $region2: #{base_unet_forward.20} parent=0 // loop_pre_header
    _
  $region3: #{base_unet_forward.20} parent=0 // loop_header
    %s9 = sphi 0, %s13
    %p10 = scmp.ge.s32.totalorder %s9, 4
    %s19 = sphi 0, %s21
    %s22 = sphi 0, %s19
    %s23 = sphi 0, %s22
    %s39 = sphi 0, %s23
    %s43 = sphi 0, %s43
    %s45 = sphi 0, %s43
    %s46 = sphi 0, %s45
    %s60 = sphi 0, %s46
    %s64 = sphi 0, %s64
    %s66 = sphi 0, %s64
    %s67 = sphi 0, %s66
    %s81 = sphi 0, %s67
    %s87 = sphi 0, %s89
    %s90 = sphi 0, %s87
    %s91 = sphi 0, %s90
    %s107 = sphi 0, %s91
  $region4: #{base_unet_forward.20} parent=0 // loop_header_branch
    %12 = sbr.rel (%p10) target = $region8
  $region5: #{base_unet_forward.20} parent=0 // loop_body
    %s14 = ssub.s32 %s9, 1
    %s15 = ssub.s32 %s9, 2
    %s16 = sadd.s32 %s9, 1
    %s17 = ssub.s32 %s9, %s16
    %p18 = scmp.eq.s32.totalorder %s17, 0
    %s20 = sadd.s32 %s19, 1
    %s21 = scalar_select %p18, %s19, %s20
    %p24 = pneg %p18
    %p25 = scmp.eq.s32.totalorder %s9, 1
    %p26 = por %p24, %p25
    %p27 = scmp.ne.s32.totalorder %s19, %s22
    %p28 = scmp.eq.s32.totalorder %s9, 0
    %p29 = por %p27, %p28
    %p30 = scmp.ne.s32.totalorder %s19, %s22
    %p31 = scmp.eq.s32.totalorder %s14, 1
    %p32 = por %p30, %p31
    %p33 = scmp.ne.s32.totalorder %s22, %s23
    %p34 = scmp.eq.s32.totalorder %s14, 0
    %p35 = por %p33, %p34
    %p36 = scmp.ne.s32.totalorder %s22, %s23
    %p37 = scmp.eq.s32.totalorder %s15, 1
    %p38 = por %p36, %p37
    %p40 = scmp.ne.s32.totalorder %s23, %s39
    %p41 = scmp.eq.s32.totalorder %s15, 0
    %p42 = por %p40, %p41
    %s44 = sadd.s32 %s43, 1
    %p47 = scmp.eq.s32.totalorder %s9, 1
    %p48 = scmp.ne.s32.totalorder %s43, %s45
    %p49 = scmp.eq.s32.totalorder %s9, 0
    %p50 = por %p48, %p49
    %p51 = scmp.ne.s32.totalorder %s43, %s45
    %p52 = scmp.eq.s32.totalorder %s14, 1
    %p53 = por %p51, %p52
    %p54 = scmp.ne.s32.totalorder %s45, %s46
    %p55 = scmp.eq.s32.totalorder %s14, 0
    %p56 = por %p54, %p55
    %p57 = scmp.ne.s32.totalorder %s45, %s46
    %p58 = scmp.eq.s32.totalorder %s15, 1
    %p59 = por %p57, %p58
    %p61 = scmp.ne.s32.totalorder %s46, %s60
    %p62 = scmp.eq.s32.totalorder %s15, 0
    %p63 = por %p61, %p62
    %s65 = sadd.s32 %s64, 1
    %p68 = scmp.eq.s32.totalorder %s9, 1
    %p69 = scmp.ne.s32.totalorder %s64, %s66
    %p70 = scmp.eq.s32.totalorder %s9, 0
    %p71 = por %p69, %p70
    %p72 = scmp.ne.s32.totalorder %s64, %s66
    %p73 = scmp.eq.s32.totalorder %s14, 1
    %p74 = por %p72, %p73
    %p75 = scmp.ne.s32.totalorder %s66, %s67
    %p76 = scmp.eq.s32.totalorder %s14, 0
    %p77 = por %p75, %p76
    %p78 = scmp.ne.s32.totalorder %s66, %s67
    %p79 = scmp.eq.s32.totalorder %s15, 1
    %p80 = por %p78, %p79
    %p82 = scmp.ne.s32.totalorder %s67, %s81
    %p83 = scmp.eq.s32.totalorder %s15, 0
    %p84 = por %p82, %p83
    %s85 = ssub.s32 %s9, %s16
    %p86 = scmp.eq.s32.totalorder %s85, 0
    %s88 = sadd.s32 %s87, 1
    %s89 = scalar_select %p86, %s87, %s88
    %p92 = pneg %p86
    %p93 = scmp.eq.s32.totalorder %s9, 1
    %p94 = por %p92, %p93
    %p95 = scmp.ne.s32.totalorder %s87, %s90
    %p96 = scmp.eq.s32.totalorder %s9, 0
    %p97 = por %p95, %p96
    %p98 = scmp.ne.s32.totalorder %s87, %s90
    %p99 = scmp.eq.s32.totalorder %s14, 1
    %p100 = por %p98, %p99
    %p101 = scmp.ne.s32.totalorder %s90, %s91
    %p102 = scmp.eq.s32.totalorder %s14, 0
    %p103 = por %p101, %p102
    %p104 = scmp.ne.s32.totalorder %s90, %s91
    %p105 = scmp.eq.s32.totalorder %s15, 1
    %p106 = por %p104, %p105
    %p108 = scmp.ne.s32.totalorder %s91, %s107
    %p109 = scmp.eq.s32.totalorder %s15, 0
    %p110 = por %p108, %p109
    %p111 = scmp.le.s32.totalorder 1, %s9
    %p112 = scmp.lt.s32.totalorder %s9, 3
    %p113 = pnand %p111, %p112
    %p114 = pneg %p113
    // Predicated region
    $region9: #{base_unet_forward.20} parent=5 // pred_check
      _
    $region10: #{base_unet_forward.20} parent=5 // pred_check_branch
      %116 = sbr.rel (%p113) target = $region12
    $region11: #{base_unet_forward.20} parent=5 // pred_region
      %s117 = ssub.s32 %s9, 1
      // Predicated region
      $region13: #{base_unet_forward.20} parent=11 // pred_check
        %p118 = pneg %p56
      $region14: #{base_unet_forward.20} parent=11 // pred_check_branch
        %120 = sbr.rel (%p118) target = $region16
      $region15: #{base_unet_forward.20} parent=11 // pred_region
        _
      $region16: #{base_unet_forward.20} parent=11 // pred_fallthru
        _
      // Predicated region
      $region17: #{base_unet_forward.20} parent=11 // pred_check
        %p121 = pneg %p77
      $region18: #{base_unet_forward.20} parent=11 // pred_check_branch
        %123 = sbr.rel (%p121) target = $region20
      $region19: #{base_unet_forward.20} parent=11 // pred_region
        _
      $region20: #{base_unet_forward.20} parent=11 // pred_fallthru
        _
    $region12: #{base_unet_forward.20} parent=5 // pred_fallthru
      _
    %p124 = scmp.lt.s32.totalorder %s9, 2
    // Predicated region
    $region21: #{base_unet_forward.20} parent=5 // pred_check
      %p125 = pneg %p124
    $region22: #{base_unet_forward.20} parent=5 // pred_check_branch
      %127 = sbr.rel (%p125) target = $region24
    $region23: #{base_unet_forward.20} parent=5 // pred_region
      // Predicated region
      $region25: #{base_unet_forward.20} parent=23 // pred_check
        %p128 = pneg %p29
      $region26: #{base_unet_forward.20} parent=23 // pred_check_branch
        %130 = sbr.rel (%p128) target = $region28
      $region27: #{base_unet_forward.20} parent=23 // pred_region
        %p131 = scmp.lt.s32.totalorder %s9, 1
        %s132 = scalar_select %p131, %s9, 1
        %s133 = smul.addr %s132, 216
        %s134 = smul.addr %s133, 4
        %s135 = scalar_lea.vmem %s0, %s134
      $region28: #{base_unet_forward.20} parent=23 // pred_fallthru
        _
    $region24: #{base_unet_forward.20} parent=5 // pred_fallthru
      _
    %p136 = scmp.le.s32.totalorder 1, %s9
    %p137 = scmp.lt.s32.totalorder %s9, 3
    %p138 = pnand %p136, %p137
    %p139 = pneg %p138
    // Predicated region
    $region29: #{base_unet_forward.20} parent=5 // pred_check
      _
    $region30: #{base_unet_forward.20} parent=5 // pred_check_branch
      %141 = sbr.rel (%p138) target = $region32
    $region31: #{base_unet_forward.20} parent=5 // pred_region
      %s142 = ssub.s32 %s9, 1
      %p143 = scmp.lt.s32.totalorder %s14, 1
      %s144 = scalar_select %p143, %s14, 1
      %s145 = smul.addr %s144, 216
      %s146 = smul.addr %s145, 4
      %s147 = scalar_lea.vmem %s0, %s146
      %p148 = pneg %p35
      %p149 = pneg %p32
      %p150 = pneg %p56
      %p151 = pneg %p53
      %p152 = pneg %p77
      %p153 = pneg %p74
      %p154 = pneg %p103
      %p155 = pneg %p100
      %p156 = scmp.lt.s32.totalorder %s14, 1
      %s157 = scalar_select %p156, %s14, 1
      %s158 = smul.addr %s157, 16
      %s159 = smul.addr %s158, 8
      %s160 = scalar_lea.vmem %s3, %s159
      %p161 = scmp.lt.s32.totalorder %s14, 1
      %s162 = scalar_select %p161, %s14, 1
      %s163 = smul.addr %s162, 216
      %s164 = smul.addr %s163, 4
      %s165 = scalar_lea.vmem %s0, %s164
      %p166 = scmp.lt.s32.totalorder %s14, 1
      %s167 = scalar_select %p166, %s14, 1
      %s168 = smul.addr %s167, 16
      %s169 = smul.addr %s168, 8
      %s170 = scalar_lea.vmem %s3, %s169
      %v172 = vld [vmem:[%s1] sm:$0xff]
      %v173 = vld [vmem:[%s1 + $0x8] sm:$0x77]
      %v174 = vld [vmem:[%s165] sm:$0xff]
      %v175 = vld [vmem:[%s165 + $0x8] sm:$0xff]
      %v176 = vld [vmem:[%s165 + $0x10] sm:$0xff]
      %v177 = vld [vmem:[%s165 + $0x18] sm:$0xff]
      %v178 = vld [vmem:[%s165 + $0x20] sm:$0xff]
      %v179 = vld [vmem:[%s165 + $0x28] sm:$0xff]
      %v180 = vld [vmem:[%s165 + $0x30] sm:$0xff]
      %v181 = vld [vmem:[%s165 + $0x38] sm:$0xff]
      %v182 = vld [vmem:[%s165 + $0x40] sm:$0xff]
      %v183 = vld [vmem:[%s165 + $0x48] sm:$0xff]
      %v184 = vld [vmem:[%s165 + $0x50] sm:$0xff]
      %v185 = vld [vmem:[%s165 + $0x58] sm:$0xff]
      %v186 = vld [vmem:[%s165 + $0x60] sm:$0xff]
      %v187 = vld [vmem:[%s165 + $0x68] sm:$0xff]
      %v188 = vld [vmem:[%s165 + $0x70] sm:$0xff]
      %v189 = vld [vmem:[%s165 + $0x78] sm:$0xff]
      %v190 = vld [vmem:[%s165 + $0x80] sm:$0xff]
      %v191 = vld [vmem:[%s165 + $0x88] sm:$0xff]
      %v192 = vld [vmem:[%s165 + $0x90] sm:$0xff]
      %v193 = vld [vmem:[%s165 + $0x98] sm:$0xff]
      %v194 = vld [vmem:[%s165 + $0xa0] sm:$0xff]
      %v195 = vld [vmem:[%s165 + $0xa8] sm:$0xff]
      %v196 = vld [vmem:[%s165 + $0xb0] sm:$0xff]
      %v197 = vld [vmem:[%s165 + $0xb8] sm:$0xff]
      %v198 = vld [vmem:[%s165 + $0xc0] sm:$0xff]
      %v199 = vld [vmem:[%s165 + $0xc8] sm:$0xff]
      %v200 = vld [vmem:[%s165 + $0xd0] sm:$0xff]
      %v201 = vld [vmem:[%s2] sm:$0xff]
      %v202 = vld [vmem:[%s2 + $0x8] sm:$0x3f]
      %204 = vset.pattern.permute.xlu0 0
      %205 = vperm.xlu0 %204, %v201
      %v206 = vpop.permute.xlu0 %205
      %209 = vset.pattern.permute.xlu0 0
      %210 = vperm.xlu0 %209, %v202
      %v211 = vpop.permute.xlu0 %210
      %v215 = vunpack.c.l.b16 %v172
      %v216 = vunpack.c.h.b16 %v172
      %v217 = vunpack.c.l.b16 %v173
      %v218 = vunpack.c.h.b16 %v173
      %v219 = vpack.c.b16 %v217, %v215
      %v220 = vpack.c.b16 %v218, %v216
      %v249 = vunpack.c.l.b16 %v174
      %v250 = vunpack.c.h.b16 %v174
      %v251 = vunpack.c.l.b16 %v175
      %v252 = vunpack.c.h.b16 %v175
      %v253 = vunpack.c.l.b16 %v176
      %v254 = vunpack.c.h.b16 %v176
      %v255 = vunpack.c.l.b16 %v177
      %v256 = vunpack.c.h.b16 %v177
      %v257 = vunpack.c.l.b16 %v178
      %v258 = vunpack.c.h.b16 %v178
      %v259 = vunpack.c.l.b16 %v179
      %v260 = vunpack.c.h.b16 %v179
      %v261 = vunpack.c.l.b16 %v180
      %v262 = vunpack.c.h.b16 %v180
      %v263 = vunpack.c.l.b16 %v181
      %v264 = vunpack.c.h.b16 %v181
      %v265 = vunpack.c.l.b16 %v182
      %v266 = vunpack.c.h.b16 %v182
      %v267 = vunpack.c.l.b16 %v183
      %v268 = vunpack.c.h.b16 %v183
      %v269 = vunpack.c.l.b16 %v184
      %v270 = vunpack.c.h.b16 %v184
      %v271 = vunpack.c.l.b16 %v185
      %v272 = vunpack.c.h.b16 %v185
      %v273 = vunpack.c.l.b16 %v186
      %v274 = vunpack.c.h.b16 %v186
      %v275 = vunpack.c.l.b16 %v187
      %v276 = vunpack.c.h.b16 %v187
      %v277 = vunpack.c.l.b16 %v188
      %v278 = vunpack.c.h.b16 %v188
      %v279 = vunpack.c.l.b16 %v189
      %v280 = vunpack.c.h.b16 %v189
      %v281 = vunpack.c.l.b16 %v190
      %v282 = vunpack.c.h.b16 %v190
      %v283 = vunpack.c.l.b16 %v191
      %v284 = vunpack.c.h.b16 %v191
      %v285 = vunpack.c.l.b16 %v192
      %v286 = vunpack.c.h.b16 %v192
      %v287 = vunpack.c.l.b16 %v193
      %v288 = vunpack.c.h.b16 %v193
      %v289 = vunpack.c.l.b16 %v194
      %v290 = vunpack.c.h.b16 %v194
      %v291 = vunpack.c.l.b16 %v195
      %v292 = vunpack.c.h.b16 %v195
      %v293 = vunpack.c.l.b16 %v196
      %v294 = vunpack.c.h.b16 %v196
      %v295 = vunpack.c.l.b16 %v197
      %v296 = vunpack.c.h.b16 %v197
      %v297 = vunpack.c.l.b16 %v198
      %v298 = vunpack.c.h.b16 %v198
      %v299 = vunpack.c.l.b16 %v199
      %v300 = vunpack.c.h.b16 %v199
      %v301 = vunpack.c.l.b16 %v200
      %v302 = vunpack.c.h.b16 %v200
      %v303 = vpack.c.b16 %v251, %v249
      %v304 = vpack.c.b16 %v252, %v250
      %v305 = vpack.c.b16 %v255, %v253
      %v306 = vpack.c.b16 %v256, %v254
      %v307 = vpack.c.b16 %v259, %v257
      %v308 = vpack.c.b16 %v260, %v258
      %v309 = vpack.c.b16 %v263, %v261
      %v310 = vpack.c.b16 %v264, %v262
      %v311 = vpack.c.b16 %v267, %v265
      %v312 = vpack.c.b16 %v268, %v266
      %v313 = vpack.c.b16 %v271, %v269
      %v314 = vpack.c.b16 %v272, %v270
      %v315 = vpack.c.b16 %v275, %v273
      %v316 = vpack.c.b16 %v276, %v274
      %v317 = vpack.c.b16 %v279, %v277
      %v318 = vpack.c.b16 %v280, %v278
      %v319 = vpack.c.b16 %v283, %v281
      %v320 = vpack.c.b16 %v284, %v282
      %v321 = vpack.c.b16 %v287, %v285
      %v322 = vpack.c.b16 %v288, %v286
      %v323 = vpack.c.b16 %v291, %v289
      %v324 = vpack.c.b16 %v292, %v290
      %v325 = vpack.c.b16 %v295, %v293
      %v326 = vpack.c.b16 %v296, %v294
      %v327 = vpack.c.b16 %v299, %v297
      %v328 = vpack.c.b16 %v300, %v298
      %v329 = vpack.c.b16 %v301, %v301
      %v330 = vpack.c.b16 %v302, %v302
      %vm357 = vcmask 719872
      %v359 = vsel %vm357, %v220, 0
      %vm361 = vcmask 1043456
      %v363 = vsel %vm361, %v329, 0
      %v366 = vsel %vm361, %v330, 0
      %368 = vmatpush.bf16.msra.mxu0 %v317
      %369 = vmatpush.bf16.msra.mxu0 %v315
      %370 = vmatpush.bf16.msra.mxu0 %v313
      %371 = vmatpush.bf16.msra.mxu0 %v311
      %372 = vmatpush.bf16.msra.mxu0 %v309
      %373 = vmatpush.bf16.msra.mxu0 %v307
      %374 = vmatpush.bf16.msra.mxu0 %v305
      %375 = vmatpush.bf16.msra.mxu0 %v303
      %376 = vmatmul.bf16.gmra.mxu0 %v219
      %v377 = vpop.f32.mrf.mxu0
      %v378 = vadd.f32 %v206, %v377
      %v379 = vpop.f32.mrf.mxu0
      %v380 = vadd.f32 %v211, %v379
      %381 = vdwg.mxu0
      %382 = vmatpush.bf16.msra.mxu0 0
      %383 = vmatpush.bf16.msra.mxu0 0
      %384 = vmatpush.bf16.msra.mxu0 %v363
      %385 = vmatpush.bf16.msra.mxu0 %v327
      %386 = vmatpush.bf16.msra.mxu0 %v325
      %387 = vmatpush.bf16.msra.mxu0 %v323
      %388 = vmatpush.bf16.msra.mxu0 %v321
      %389 = vmatpush.bf16.msra.mxu0 %v319
      %390 = vmatmul.bf16.gmra.mxu0 %v359
      %v391 = vpop.f32.mrf.mxu0
      %v392 = vadd.f32 %v378, %v391
      %v393 = vpop.f32.mrf.mxu0
      %v394 = vadd.f32 %v380, %v393
      %395 = vdwg.mxu0
      %396 = vmatpush.bf16.msra.mxu0 %v318
      %397 = vmatpush.bf16.msra.mxu0 %v316
      %398 = vmatpush.bf16.msra.mxu0 %v314
      %399 = vmatpush.bf16.msra.mxu0 %v312
      %400 = vmatpush.bf16.msra.mxu0 %v310
      %401 = vmatpush.bf16.msra.mxu0 %v308
      %402 = vmatpush.bf16.msra.mxu0 %v306
      %403 = vmatpush.bf16.msra.mxu0 %v304
      %404 = vmatmul.bf16.gmra.mxu0 %v219
      %v405 = vpop.f32.mrf.mxu0
      %v406 = vadd.f32 %v206, %v405
      %v407 = vpop.f32.mrf.mxu0
      %v408 = vadd.f32 %v211, %v407
      %409 = vdwg.mxu0
      %410 = vmatpush.bf16.msra.mxu0 0
      %411 = vmatpush.bf16.msra.mxu0 0
      %412 = vmatpush.bf16.msra.mxu0 %v366
      %413 = vmatpush.bf16.msra.mxu0 %v328
      %414 = vmatpush.bf16.msra.mxu0 %v326
      %415 = vmatpush.bf16.msra.mxu0 %v324
      %416 = vmatpush.bf16.msra.mxu0 %v322
      %417 = vmatpush.bf16.msra.mxu0 %v320
      %418 = vmatmul.bf16.gmra.mxu0 %v359
      %v419 = vpop.f32.mrf.mxu0
      %v420 = vadd.f32 %v406, %v419
      %v421 = vpop.f32.mrf.mxu0
      %v422 = vadd.f32 %v408, %v421
      %423 = vdwg.mxu0
      %vm424 = vcmp.ge.f32.partialorder %v392, 0.0
      %vm425 = vcmp.ge.f32.partialorder %v420, 0.0
      %vm426 = vcmp.ge.f32.partialorder %v394, 0.0
      %vm427 = vcmp.ge.f32.partialorder %v422, 0.0
      %v428 = vmul.f32 %v392, 0.01
      %v429 = vmul.f32 %v420, 0.01
      %v430 = vmul.f32 %v394, 0.01
      %v431 = vmul.f32 %v422, 0.01
      %v432 = vsel %vm424, %v392, %v428
      %v433 = vsel %vm425, %v420, %v429
      %v434 = vsel %vm426, %v394, %v430
      %v435 = vsel %vm427, %v422, %v431
      %v436 = vadd.f32 %v432, %v433
      %437 = vadd.xlane.f32.xlu0 %v436
      %v438 = vpop.xlane.xlu0 %437
      %vm439 = vcmask 1045504
      %v440 = vsel %vm439, %v434, 0.0
      %v441 = vsel %vm439, %v435, 0.0
      %v442 = vadd.f32 %v440, %v441
      %443 = vadd.xlane.f32.xlu0 %v442
      %v444 = vpop.xlane.xlu0 %443
      %s445 = scalar_lea.vmem %s1, 16
      %v446 = vld [vmem:[%s445] sm:$0xff]
      %v447 = vld [vmem:[%s445 + $0x8] sm:$0x77]
      %s448 = scalar_lea.vmem %s165, 216
      %v449 = vld [vmem:[%s448] sm:$0xff]
      %v450 = vld [vmem:[%s448 + $0x8] sm:$0xff]
      %v451 = vld [vmem:[%s448 + $0x10] sm:$0xff]
      %v452 = vld [vmem:[%s448 + $0x18] sm:$0xff]
      %v453 = vld [vmem:[%s448 + $0x20] sm:$0xff]
      %v454 = vld [vmem:[%s448 + $0x28] sm:$0xff]
      %v455 = vld [vmem:[%s448 + $0x30] sm:$0xff]
      %v456 = vld [vmem:[%s448 + $0x38] sm:$0xff]
      %v457 = vld [vmem:[%s448 + $0x40] sm:$0xff]
      %v458 = vld [vmem:[%s448 + $0x48] sm:$0xff]
      %v459 = vld [vmem:[%s448 + $0x50] sm:$0xff]
      %v460 = vld [vmem:[%s448 + $0x58] sm:$0xff]
      %v461 = vld [vmem:[%s448 + $0x60] sm:$0xff]
      %v462 = vld [vmem:[%s448 + $0x68] sm:$0xff]
      %v463 = vld [vmem:[%s448 + $0x70] sm:$0xff]
      %v464 = vld [vmem:[%s448 + $0x78] sm:$0xff]
      %v465 = vld [vmem:[%s448 + $0x80] sm:$0xff]
      %v466 = vld [vmem:[%s448 + $0x88] sm:$0xff]
      %v467 = vld [vmem:[%s448 + $0x90] sm:$0xff]
      %v468 = vld [vmem:[%s448 + $0x98] sm:$0xff]
      %v469 = vld [vmem:[%s448 + $0xa0] sm:$0xff]
      %v470 = vld [vmem:[%s448 + $0xa8] sm:$0xff]
      %v471 = vld [vmem:[%s448 + $0xb0] sm:$0xff]
      %v472 = vld [vmem:[%s448 + $0xb8] sm:$0xff]
      %v473 = vld [vmem:[%s448 + $0xc0] sm:$0xff]
      %v474 = vld [vmem:[%s448 + $0xc8] sm:$0xff]
      %v475 = vld [vmem:[%s448 + $0xd0] sm:$0xff]
      %v478 = vunpack.c.l.b16 %v446
      %v479 = vunpack.c.h.b16 %v446
      %v480 = vunpack.c.l.b16 %v447
      %v481 = vunpack.c.h.b16 %v447
      %v482 = vpack.c.b16 %v480, %v478
      %v483 = vpack.c.b16 %v481, %v479
      %v512 = vunpack.c.l.b16 %v449
      %v513 = vunpack.c.h.b16 %v449
      %v514 = vunpack.c.l.b16 %v450
      %v515 = vunpack.c.h.b16 %v450
      %v516 = vunpack.c.l.b16 %v451
      %v517 = vunpack.c.h.b16 %v451
      %v518 = vunpack.c.l.b16 %v452
      %v519 = vunpack.c.h.b16 %v452
      %v520 = vunpack.c.l.b16 %v453
      %v521 = vunpack.c.h.b16 %v453
      %v522 = vunpack.c.l.b16 %v454
      %v523 = vunpack.c.h.b16 %v454
      %v524 = vunpack.c.l.b16 %v455
      %v525 = vunpack.c.h.b16 %v455
      %v526 = vunpack.c.l.b16 %v456
      %v527 = vunpack.c.h.b16 %v456
      %v528 = vunpack.c.l.b16 %v457
      %v529 = vunpack.c.h.b16 %v457
      %v530 = vunpack.c.l.b16 %v458
      %v531 = vunpack.c.h.b16 %v458
      %v532 = vunpack.c.l.b16 %v459
      %v533 = vunpack.c.h.b16 %v459
      %v534 = vunpack.c.l.b16 %v460
      %v535 = vunpack.c.h.b16 %v460
      %v536 = vunpack.c.l.b16 %v461
      %v537 = vunpack.c.h.b16 %v461
      %v538 = vunpack.c.l.b16 %v462
      %v539 = vunpack.c.h.b16 %v462
      %v540 = vunpack.c.l.b16 %v463
      %v541 = vunpack.c.h.b16 %v463
      %v542 = vunpack.c.l.b16 %v464
      %v543 = vunpack.c.h.b16 %v464
      %v544 = vunpack.c.l.b16 %v465
      %v545 = vunpack.c.h.b16 %v465
      %v546 = vunpack.c.l.b16 %v466
      %v547 = vunpack.c.h.b16 %v466
      %v548 = vunpack.c.l.b16 %v467
      %v549 = vunpack.c.h.b16 %v467
      %v550 = vunpack.c.l.b16 %v468
      %v551 = vunpack.c.h.b16 %v468
      %v552 = vunpack.c.l.b16 %v469
      %v553 = vunpack.c.h.b16 %v469
      %v554 = vunpack.c.l.b16 %v470
      %v555 = vunpack.c.h.b16 %v470
      %v556 = vunpack.c.l.b16 %v471
      %v557 = vunpack.c.h.b16 %v471
      %v558 = vunpack.c.l.b16 %v472
      %v559 = vunpack.c.h.b16 %v472
      %v560 = vunpack.c.l.b16 %v473
      %v561 = vunpack.c.h.b16 %v473
      %v562 = vunpack.c.l.b16 %v474
      %v563 = vunpack.c.h.b16 %v474
      %v564 = vunpack.c.l.b16 %v475
      %v565 = vunpack.c.h.b16 %v475
      %v566 = vpack.c.b16 %v514, %v512
      %v567 = vpack.c.b16 %v515, %v513
      %v568 = vpack.c.b16 %v518, %v516
      %v569 = vpack.c.b16 %v519, %v517
      %v570 = vpack.c.b16 %v522, %v520
      %v571 = vpack.c.b16 %v523, %v521
      %v572 = vpack.c.b16 %v526, %v524
      %v573 = vpack.c.b16 %v527, %v525
      %v574 = vpack.c.b16 %v530, %v528
      %v575 = vpack.c.b16 %v531, %v529
      %v576 = vpack.c.b16 %v534, %v532
      %v577 = vpack.c.b16 %v535, %v533
      %v578 = vpack.c.b16 %v538, %v536
      %v579 = vpack.c.b16 %v539, %v537
      %v580 = vpack.c.b16 %v542, %v540
      %v581 = vpack.c.b16 %v543, %v541
      %v582 = vpack.c.b16 %v546, %v544
      %v583 = vpack.c.b16 %v547, %v545
      %v584 = vpack.c.b16 %v550, %v548
      %v585 = vpack.c.b16 %v551, %v549
      %v586 = vpack.c.b16 %v554, %v552
      %v587 = vpack.c.b16 %v555, %v553
      %v588 = vpack.c.b16 %v558, %v556
      %v589 = vpack.c.b16 %v559, %v557
      %v590 = vpack.c.b16 %v562, %v560
      %v591 = vpack.c.b16 %v563, %v561
      %v592 = vpack.c.b16 %v564, %v564
      %v593 = vpack.c.b16 %v565, %v565
      %v621 = vsel %vm357, %v483, 0
      %v624 = vsel %vm361, %v592, 0
      %v627 = vsel %vm361, %v593, 0
      %629 = vmatpush.bf16.msra.mxu0 %v580
      %630 = vmatpush.bf16.msra.mxu0 %v578
      %631 = vmatpush.bf16.msra.mxu0 %v576
      %632 = vmatpush.bf16.msra.mxu0 %v574
      %633 = vmatpush.bf16.msra.mxu0 %v572
      %634 = vmatpush.bf16.msra.mxu0 %v570
      %635 = vmatpush.bf16.msra.mxu0 %v568
      %636 = vmatpush.bf16.msra.mxu0 %v566
      %637 = vmatmul.bf16.gmra.mxu0 %v482
      %v638 = vpop.f32.mrf.mxu0
      %v639 = vadd.f32 %v206, %v638
      %v640 = vpop.f32.mrf.mxu0
      %v641 = vadd.f32 %v211, %v640
      %642 = vdwg.mxu0
      %643 = vmatpush.bf16.msra.mxu0 0
      %644 = vmatpush.bf16.msra.mxu0 0
      %645 = vmatpush.bf16.msra.mxu0 %v624
      %646 = vmatpush.bf16.msra.mxu0 %v590
      %647 = vmatpush.bf16.msra.mxu0 %v588
      %648 = vmatpush.bf16.msra.mxu0 %v586
      %649 = vmatpush.bf16.msra.mxu0 %v584
      %650 = vmatpush.bf16.msra.mxu0 %v582
      %651 = vmatmul.bf16.gmra.mxu0 %v621
      %v652 = vpop.f32.mrf.mxu0
      %v653 = vadd.f32 %v639, %v652
      %v654 = vpop.f32.mrf.mxu0
      %v655 = vadd.f32 %v641, %v654
      %656 = vdwg.mxu0
      %657 = vmatpush.bf16.msra.mxu0 %v581
      %658 = vmatpush.bf16.msra.mxu0 %v579
      %659 = vmatpush.bf16.msra.mxu0 %v577
      %660 = vmatpush.bf16.msra.mxu0 %v575
      %661 = vmatpush.bf16.msra.mxu0 %v573
      %662 = vmatpush.bf16.msra.mxu0 %v571
      %663 = vmatpush.bf16.msra.mxu0 %v569
      %664 = vmatpush.bf16.msra.mxu0 %v567
      %665 = vmatmul.bf16.gmra.mxu0 %v482
      %v666 = vpop.f32.mrf.mxu0
      %v667 = vadd.f32 %v206, %v666
      %v668 = vpop.f32.mrf.mxu0
      %v669 = vadd.f32 %v211, %v668
      %670 = vdwg.mxu0
      %671 = vmatpush.bf16.msra.mxu0 0
      %672 = vmatpush.bf16.msra.mxu0 0
      %673 = vmatpush.bf16.msra.mxu0 %v627
      %674 = vmatpush.bf16.msra.mxu0 %v591
      %675 = vmatpush.bf16.msra.mxu0 %v589
      %676 = vmatpush.bf16.msra.mxu0 %v587
      %677 = vmatpush.bf16.msra.mxu0 %v585
      %678 = vmatpush.bf16.msra.mxu0 %v583
      %679 = vmatmul.bf16.gmra.mxu0 %v621
      %v680 = vpop.f32.mrf.mxu0
      %v681 = vadd.f32 %v667, %v680
      %v682 = vpop.f32.mrf.mxu0
      %v683 = vadd.f32 %v669, %v682
      %684 = vdwg.mxu0
      %vm685 = vcmp.ge.f32.partialorder %v653, 0.0
      %vm686 = vcmp.ge.f32.partialorder %v681, 0.0
      %vm687 = vcmp.ge.f32.partialorder %v655, 0.0
      %vm688 = vcmp.ge.f32.partialorder %v683, 0.0
      %v689 = vmul.f32 %v653, 0.01
      %v690 = vmul.f32 %v681, 0.01
      %v691 = vmul.f32 %v655, 0.01
      %v692 = vmul.f32 %v683, 0.01
      %v693 = vsel %vm685, %v653, %v689
      %v694 = vsel %vm686, %v681, %v690
      %v695 = vsel %vm687, %v655, %v691
      %v696 = vsel %vm688, %v683, %v692
      %v697 = vadd.f32 %v693, %v694
      %698 = vadd.xlane.f32.xlu0 %v697
      %v699 = vpop.xlane.xlu0 %698
      %v700 = vsel %vm439, %v695, 0.0
      %v701 = vsel %vm439, %v696, 0.0
      %v702 = vadd.f32 %v700, %v701
      %703 = vadd.xlane.f32.xlu0 %v702
      %v704 = vpop.xlane.xlu0 %703
      %v705 = vadd.f32 %v438, %v699
      %v706 = vadd.f32 %v444, %v704
      %s707 = scalar_lea.vmem %s1, 32
      %v708 = vld [vmem:[%s707] sm:$0xff]
      %v709 = vld [vmem:[%s707 + $0x8] sm:$0x77]
      %s710 = scalar_lea.vmem %s165, 432
      %v711 = vld [vmem:[%s710] sm:$0xff]
      %v712 = vld [vmem:[%s710 + $0x8] sm:$0xff]
      %v713 = vld [vmem:[%s710 + $0x10] sm:$0xff]
      %v714 = vld [vmem:[%s710 + $0x18] sm:$0xff]
      %v715 = vld [vmem:[%s710 + $0x20] sm:$0xff]
      %v716 = vld [vmem:[%s710 + $0x28] sm:$0xff]
      %v717 = vld [vmem:[%s710 + $0x30] sm:$0xff]
      %v718 = vld [vmem:[%s710 + $0x38] sm:$0xff]
      %v719 = vld [vmem:[%s710 + $0x40] sm:$0xff]
      %v720 = vld [vmem:[%s710 + $0x48] sm:$0xff]
      %v721 = vld [vmem:[%s710 + $0x50] sm:$0xff]
      %v722 = vld [vmem:[%s710 + $0x58] sm:$0xff]
      %v723 = vld [vmem:[%s710 + $0x60] sm:$0xff]
      %v724 = vld [vmem:[%s710 + $0x68] sm:$0xff]
      %v725 = vld [vmem:[%s710 + $0x70] sm:$0xff]
      %v726 = vld [vmem:[%s710 + $0x78] sm:$0xff]
      %v727 = vld [vmem:[%s710 + $0x80] sm:$0xff]
      %v728 = vld [vmem:[%s710 + $0x88] sm:$0xff]
      %v729 = vld [vmem:[%s710 + $0x90] sm:$0xff]
      %v730 = vld [vmem:[%s710 + $0x98] sm:$0xff]
      %v731 = vld [vmem:[%s710 + $0xa0] sm:$0xff]
      %v732 = vld [vmem:[%s710 + $0xa8] sm:$0xff]
      %v733 = vld [vmem:[%s710 + $0xb0] sm:$0xff]
      %v734 = vld [vmem:[%s710 + $0xb8] sm:$0xff]
      %v735 = vld [vmem:[%s710 + $0xc0] sm:$0xff]
      %v736 = vld [vmem:[%s710 + $0xc8] sm:$0xff]
      %v737 = vld [vmem:[%s710 + $0xd0] sm:$0xff]
      %v740 = vunpack.c.l.b16 %v708
      %v741 = vunpack.c.h.b16 %v708
      %v742 = vunpack.c.l.b16 %v709
      %v743 = vunpack.c.h.b16 %v709
      %v744 = vpack.c.b16 %v742, %v740
      %v745 = vpack.c.b16 %v743, %v741
      %v774 = vunpack.c.l.b16 %v711
      %v775 = vunpack.c.h.b16 %v711
      %v776 = vunpack.c.l.b16 %v712
      %v777 = vunpack.c.h.b16 %v712
      %v778 = vunpack.c.l.b16 %v713
      %v779 = vunpack.c.h.b16 %v713
      %v780 = vunpack.c.l.b16 %v714
      %v781 = vunpack.c.h.b16 %v714
      %v782 = vunpack.c.l.b16 %v715
      %v783 = vunpack.c.h.b16 %v715
      %v784 = vunpack.c.l.b16 %v716
      %v785 = vunpack.c.h.b16 %v716
      %v786 = vunpack.c.l.b16 %v717
      %v787 = vunpack.c.h.b16 %v717
      %v788 = vunpack.c.l.b16 %v718
      %v789 = vunpack.c.h.b16 %v718
      %v790 = vunpack.c.l.b16 %v719
      %v791 = vunpack.c.h.b16 %v719
      %v792 = vunpack.c.l.b16 %v720
      %v793 = vunpack.c.h.b16 %v720
      %v794 = vunpack.c.l.b16 %v721
      %v795 = vunpack.c.h.b16 %v721
      %v796 = vunpack.c.l.b16 %v722
      %v797 = vunpack.c.h.b16 %v722
      %v798 = vunpack.c.l.b16 %v723
      %v799 = vunpack.c.h.b16 %v723
      %v800 = vunpack.c.l.b16 %v724
      %v801 = vunpack.c.h.b16 %v724
      %v802 = vunpack.c.l.b16 %v725
      %v803 = vunpack.c.h.b16 %v725
      %v804 = vunpack.c.l.b16 %v726
      %v805 = vunpack.c.h.b16 %v726
      %v806 = vunpack.c.l.b16 %v727
      %v807 = vunpack.c.h.b16 %v727
      %v808 = vunpack.c.l.b16 %v728
      %v809 = vunpack.c.h.b16 %v728
      %v810 = vunpack.c.l.b16 %v729
      %v811 = vunpack.c.h.b16 %v729
      %v812 = vunpack.c.l.b16 %v730
      %v813 = vunpack.c.h.b16 %v730
      %v814 = vunpack.c.l.b16 %v731
      %v815 = vunpack.c.h.b16 %v731
      %v816 = vunpack.c.l.b16 %v732
      %v817 = vunpack.c.h.b16 %v732
      %v818 = vunpack.c.l.b16 %v733
      %v819 = vunpack.c.h.b16 %v733
      %v820 = vunpack.c.l.b16 %v734
      %v821 = vunpack.c.h.b16 %v734
      %v822 = vunpack.c.l.b16 %v735
      %v823 = vunpack.c.h.b16 %v735
      %v824 = vunpack.c.l.b16 %v736
      %v825 = vunpack.c.h.b16 %v736
      %v826 = vunpack.c.l.b16 %v737
      %v827 = vunpack.c.h.b16 %v737
      %v828 = vpack.c.b16 %v776, %v774
      %v829 = vpack.c.b16 %v777, %v775
      %v830 = vpack.c.b16 %v780, %v778
      %v831 = vpack.c.b16 %v781, %v779
      %v832 = vpack.c.b16 %v784, %v782
      %v833 = vpack.c.b16 %v785, %v783
      %v834 = vpack.c.b16 %v788, %v786
      %v835 = vpack.c.b16 %v789, %v787
      %v836 = vpack.c.b16 %v792, %v790
      %v837 = vpack.c.b16 %v793, %v791
      %v838 = vpack.c.b16 %v796, %v794
      %v839 = vpack.c.b16 %v797, %v795
      %v840 = vpack.c.b16 %v800, %v798
      %v841 = vpack.c.b16 %v801, %v799
      %v842 = vpack.c.b16 %v804, %v802
      %v843 = vpack.c.b16 %v805, %v803
      %v844 = vpack.c.b16 %v808, %v806
      %v845 = vpack.c.b16 %v809, %v807
      %v846 = vpack.c.b16 %v812, %v810
      %v847 = vpack.c.b16 %v813, %v811
      %v848 = vpack.c.b16 %v816, %v814
      %v849 = vpack.c.b16 %v817, %v815
      %v850 = vpack.c.b16 %v820, %v818
      %v851 = vpack.c.b16 %v821, %v819
      %v852 = vpack.c.b16 %v824, %v822
      %v853 = vpack.c.b16 %v825, %v823
      %v854 = vpack.c.b16 %v826, %v826
      %v855 = vpack.c.b16 %v827, %v827
      %v883 = vsel %vm357, %v745, 0
      %v886 = vsel %vm361, %v854, 0
      %v889 = vsel %vm361, %v855, 0
      %891 = vmatpush.bf16.msra.mxu0 %v842
      %892 = vmatpush.bf16.msra.mxu0 %v840
      %893 = vmatpush.bf16.msra.mxu0 %v838
      %894 = vmatpush.bf16.msra.mxu0 %v836
      %895 = vmatpush.bf16.msra.mxu0 %v834
      %896 = vmatpush.bf16.msra.mxu0 %v832
      %897 = vmatpush.bf16.msra.mxu0 %v830
      %898 = vmatpush.bf16.msra.mxu0 %v828
      %899 = vmatmul.bf16.gmra.mxu0 %v744
      %v900 = vpop.f32.mrf.mxu0
      %v901 = vadd.f32 %v206, %v900
      %v902 = vpop.f32.mrf.mxu0
      %v903 = vadd.f32 %v211, %v902
      %904 = vdwg.mxu0
      %905 = vmatpush.bf16.msra.mxu0 0
      %906 = vmatpush.bf16.msra.mxu0 0
      %907 = vmatpush.bf16.msra.mxu0 %v886
      %908 = vmatpush.bf16.msra.mxu0 %v852
      %909 = vmatpush.bf16.msra.mxu0 %v850
      %910 = vmatpush.bf16.msra.mxu0 %v848
      %911 = vmatpush.bf16.msra.mxu0 %v846
      %912 = vmatpush.bf16.msra.mxu0 %v844
      %913 = vmatmul.bf16.gmra.mxu0 %v883
      %v914 = vpop.f32.mrf.mxu0
      %v915 = vadd.f32 %v901, %v914
      %v916 = vpop.f32.mrf.mxu0
      %v917 = vadd.f32 %v903, %v916
      %918 = vdwg.mxu0
      %919 = vmatpush.bf16.msra.mxu0 %v843
      %920 = vmatpush.bf16.msra.mxu0 %v841
      %921 = vmatpush.bf16.msra.mxu0 %v839
      %922 = vmatpush.bf16.msra.mxu0 %v837
      %923 = vmatpush.bf16.msra.mxu0 %v835
      %924 = vmatpush.bf16.msra.mxu0 %v833
      %925 = vmatpush.bf16.msra.mxu0 %v831
      %926 = vmatpush.bf16.msra.mxu0 %v829
      %927 = vmatmul.bf16.gmra.mxu0 %v744
      %v928 = vpop.f32.mrf.mxu0
      %v929 = vadd.f32 %v206, %v928
      %v930 = vpop.f32.mrf.mxu0
      %v931 = vadd.f32 %v211, %v930
      %932 = vdwg.mxu0
      %933 = vmatpush.bf16.msra.mxu0 0
      %934 = vmatpush.bf16.msra.mxu0 0
      %935 = vmatpush.bf16.msra.mxu0 %v889
      %936 = vmatpush.bf16.msra.mxu0 %v853
      %937 = vmatpush.bf16.msra.mxu0 %v851
      %938 = vmatpush.bf16.msra.mxu0 %v849
      %939 = vmatpush.bf16.msra.mxu0 %v847
      %940 = vmatpush.bf16.msra.mxu0 %v845
      %941 = vmatmul.bf16.gmra.mxu0 %v883
      %v942 = vpop.f32.mrf.mxu0
      %v943 = vadd.f32 %v929, %v942
      %v944 = vpop.f32.mrf.mxu0
      %v945 = vadd.f32 %v931, %v944
      %946 = vdwg.mxu0
      %vm947 = vcmp.ge.f32.partialorder %v915, 0.0
      %vm948 = vcmp.ge.f32.partialorder %v943, 0.0
      %vm949 = vcmp.ge.f32.partialorder %v917, 0.0
      %vm950 = vcmp.ge.f32.partialorder %v945, 0.0
      %v951 = vmul.f32 %v915, 0.01
      %v952 = vmul.f32 %v943, 0.01
      %v953 = vmul.f32 %v917, 0.01
      %v954 = vmul.f32 %v945, 0.01
      %v955 = vsel %vm947, %v915, %v951
      %v956 = vsel %vm948, %v943, %v952
      %v957 = vsel %vm949, %v917, %v953
      %v958 = vsel %vm950, %v945, %v954
      %v959 = vadd.f32 %v955, %v956
      %960 = vadd.xlane.f32.xlu0 %v959
      %v961 = vpop.xlane.xlu0 %960
      %v962 = vsel %vm439, %v957, 0.0
      %v963 = vsel %vm439, %v958, 0.0
      %v964 = vadd.f32 %v962, %v963
      %965 = vadd.xlane.f32.xlu0 %v964
      %v966 = vpop.xlane.xlu0 %965
      %v967 = vadd.f32 %v705, %v961
      %v968 = vadd.f32 %v706, %v966
      %s969 = scalar_lea.vmem %s1, 48
      %v970 = vld [vmem:[%s969] sm:$0xff]
      %v971 = vld [vmem:[%s969 + $0x8] sm:$0x77]
      %s972 = scalar_lea.vmem %s165, 648
      %v973 = vld [vmem:[%s972] sm:$0xff]
      %v974 = vld [vmem:[%s972 + $0x8] sm:$0xff]
      %v975 = vld [vmem:[%s972 + $0x10] sm:$0xff]
      %v976 = vld [vmem:[%s972 + $0x18] sm:$0xff]
      %v977 = vld [vmem:[%s972 + $0x20] sm:$0xff]
      %v978 = vld [vmem:[%s972 + $0x28] sm:$0xff]
      %v979 = vld [vmem:[%s972 + $0x30] sm:$0xff]
      %v980 = vld [vmem:[%s972 + $0x38] sm:$0xff]
      %v981 = vld [vmem:[%s972 + $0x40] sm:$0xff]
      %v982 = vld [vmem:[%s972 + $0x48] sm:$0xff]
      %v983 = vld [vmem:[%s972 + $0x50] sm:$0xff]
      %v984 = vld [vmem:[%s972 + $0x58] sm:$0xff]
      %v985 = vld [vmem:[%s972 + $0x60] sm:$0xff]
      %v986 = vld [vmem:[%s972 + $0x68] sm:$0xff]
      %v987 = vld [vmem:[%s972 + $0x70] sm:$0xff]
      %v988 = vld [vmem:[%s972 + $0x78] sm:$0xff]
      %v989 = vld [vmem:[%s972 + $0x80] sm:$0xff]
      %v990 = vld [vmem:[%s972 + $0x88] sm:$0xff]
      %v991 = vld [vmem:[%s972 + $0x90] sm:$0xff]
      %v992 = vld [vmem:[%s972 + $0x98] sm:$0xff]
      %v993 = vld [vmem:[%s972 + $0xa0] sm:$0xff]
      %v994 = vld [vmem:[%s972 + $0xa8] sm:$0xff]
      %v995 = vld [vmem:[%s972 + $0xb0] sm:$0xff]
      %v996 = vld [vmem:[%s972 + $0xb8] sm:$0xff]
      %v997 = vld [vmem:[%s972 + $0xc0] sm:$0xff]
      %v998 = vld [vmem:[%s972 + $0xc8] sm:$0xff]
      %v999 = vld [vmem:[%s972 + $0xd0] sm:$0xff]
      %v1002 = vunpack.c.l.b16 %v970
      %v1003 = vunpack.c.h.b16 %v970
      %v1004 = vunpack.c.l.b16 %v971
      %v1005 = vunpack.c.h.b16 %v971
      %v1006 = vpack.c.b16 %v1004, %v1002
      %v1007 = vpack.c.b16 %v1005, %v1003
      %v1036 = vunpack.c.l.b16 %v973
      %v1037 = vunpack.c.h.b16 %v973
      %v1038 = vunpack.c.l.b16 %v974
      %v1039 = vunpack.c.h.b16 %v974
      %v1040 = vunpack.c.l.b16 %v975
      %v1041 = vunpack.c.h.b16 %v975
      %v1042 = vunpack.c.l.b16 %v976
      %v1043 = vunpack.c.h.b16 %v976
      %v1044 = vunpack.c.l.b16 %v977
      %v1045 = vunpack.c.h.b16 %v977
      %v1046 = vunpack.c.l.b16 %v978
      %v1047 = vunpack.c.h.b16 %v978
      %v1048 = vunpack.c.l.b16 %v979
      %v1049 = vunpack.c.h.b16 %v979
      %v1050 = vunpack.c.l.b16 %v980
      %v1051 = vunpack.c.h.b16 %v980
      %v1052 = vunpack.c.l.b16 %v981
      %v1053 = vunpack.c.h.b16 %v981
      %v1054 = vunpack.c.l.b16 %v982
      %v1055 = vunpack.c.h.b16 %v982
      %v1056 = vunpack.c.l.b16 %v983
      %v1057 = vunpack.c.h.b16 %v983
      %v1058 = vunpack.c.l.b16 %v984
      %v1059 = vunpack.c.h.b16 %v984
      %v1060 = vunpack.c.l.b16 %v985
      %v1061 = vunpack.c.h.b16 %v985
      %v1062 = vunpack.c.l.b16 %v986
      %v1063 = vunpack.c.h.b16 %v986
      %v1064 = vunpack.c.l.b16 %v987
      %v1065 = vunpack.c.h.b16 %v987
      %v1066 = vunpack.c.l.b16 %v988
      %v1067 = vunpack.c.h.b16 %v988
      %v1068 = vunpack.c.l.b16 %v989
      %v1069 = vunpack.c.h.b16 %v989
      %v1070 = vunpack.c.l.b16 %v990
      %v1071 = vunpack.c.h.b16 %v990
      %v1072 = vunpack.c.l.b16 %v991
      %v1073 = vunpack.c.h.b16 %v991
      %v1074 = vunpack.c.l.b16 %v992
      %v1075 = vunpack.c.h.b16 %v992
      %v1076 = vunpack.c.l.b16 %v993
      %v1077 = vunpack.c.h.b16 %v993
      %v1078 = vunpack.c.l.b16 %v994
      %v1079 = vunpack.c.h.b16 %v994
      %v1080 = vunpack.c.l.b16 %v995
      %v1081 = vunpack.c.h.b16 %v995
      %v1082 = vunpack.c.l.b16 %v996
      %v1083 = vunpack.c.h.b16 %v996
      %v1084 = vunpack.c.l.b16 %v997
      %v1085 = vunpack.c.h.b16 %v997
      %v1086 = vunpack.c.l.b16 %v998
      %v1087 = vunpack.c.h.b16 %v998
      %v1088 = vunpack.c.l.b16 %v999
      %v1089 = vunpack.c.h.b16 %v999
      %v1090 = vpack.c.b16 %v1038, %v1036
      %v1091 = vpack.c.b16 %v1039, %v1037
      %v1092 = vpack.c.b16 %v1042, %v1040
      %v1093 = vpack.c.b16 %v1043, %v1041
      %v1094 = vpack.c.b16 %v1046, %v1044
      %v1095 = vpack.c.b16 %v1047, %v1045
      %v1096 = vpack.c.b16 %v1050, %v1048
      %v1097 = vpack.c.b16 %v1051, %v1049
      %v1098 = vpack.c.b16 %v1054, %v1052
      %v1099 = vpack.c.b16 %v1055, %v1053
      %v1100 = vpack.c.b16 %v1058, %v1056
      %v1101 = vpack.c.b16 %v1059, %v1057
      %v1102 = vpack.c.b16 %v1062, %v1060
      %v1103 = vpack.c.b16 %v1063, %v1061
      %v1104 = vpack.c.b16 %v1066, %v1064
      %v1105 = vpack.c.b16 %v1067, %v1065
      %v1106 = vpack.c.b16 %v1070, %v1068
      %v1107 = vpack.c.b16 %v1071, %v1069
      %v1108 = vpack.c.b16 %v1074, %v1072
      %v1109 = vpack.c.b16 %v1075, %v1073
      %v1110 = vpack.c.b16 %v1078, %v1076
      %v1111 = vpack.c.b16 %v1079, %v1077
      %v1112 = vpack.c.b16 %v1082, %v1080
      %v1113 = vpack.c.b16 %v1083, %v1081
      %v1114 = vpack.c.b16 %v1086, %v1084
      %v1115 = vpack.c.b16 %v1087, %v1085
      %v1116 = vpack.c.b16 %v1088, %v1088
      %v1117 = vpack.c.b16 %v1089, %v1089
      %v1145 = vsel %vm357, %v1007, 0
      %v1148 = vsel %vm361, %v1116, 0
      %v1151 = vsel %vm361, %v1117, 0
      %1153 = vmatpush.bf16.msra.mxu0 %v1104
      %1154 = vmatpush.bf16.msra.mxu0 %v1102
      %1155 = vmatpush.bf16.msra.mxu0 %v1100
      %1156 = vmatpush.bf16.msra.mxu0 %v1098
      %1157 = vmatpush.bf16.msra.mxu0 %v1096
      %1158 = vmatpush.bf16.msra.mxu0 %v1094
      %1159 = vmatpush.bf16.msra.mxu0 %v1092
      %1160 = vmatpush.bf16.msra.mxu0 %v1090
      %1161 = vmatmul.bf16.gmra.mxu0 %v1006
      %v1162 = vpop.f32.mrf.mxu0
      %v1163 = vadd.f32 %v206, %v1162
      %v1164 = vpop.f32.mrf.mxu0
      %v1165 = vadd.f32 %v211, %v1164
      %1166 = vdwg.mxu0
      %1167 = vmatpush.bf16.msra.mxu0 0
      %1168 = vmatpush.bf16.msra.mxu0 0
      %1169 = vmatpush.bf16.msra.mxu0 %v1148
      %1170 = vmatpush.bf16.msra.mxu0 %v1114
      %1171 = vmatpush.bf16.msra.mxu0 %v1112
      %1172 = vmatpush.bf16.msra.mxu0 %v1110
      %1173 = vmatpush.bf16.msra.mxu0 %v1108
      %1174 = vmatpush.bf16.msra.mxu0 %v1106
      %1175 = vmatmul.bf16.gmra.mxu0 %v1145
      %v1176 = vpop.f32.mrf.mxu0
      %v1177 = vadd.f32 %v1163, %v1176
      %v1178 = vpop.f32.mrf.mxu0
      %v1179 = vadd.f32 %v1165, %v1178
      %1180 = vdwg.mxu0
      %1181 = vmatpush.bf16.msra.mxu0 %v1105
      %1182 = vmatpush.bf16.msra.mxu0 %v1103
      %1183 = vmatpush.bf16.msra.mxu0 %v1101
      %1184 = vmatpush.bf16.msra.mxu0 %v1099
      %1185 = vmatpush.bf16.msra.mxu0 %v1097
      %1186 = vmatpush.bf16.msra.mxu0 %v1095
      %1187 = vmatpush.bf16.msra.mxu0 %v1093
      %1188 = vmatpush.bf16.msra.mxu0 %v1091
      %1189 = vmatmul.bf16.gmra.mxu0 %v1006
      %v1190 = vpop.f32.mrf.mxu0
      %v1191 = vadd.f32 %v206, %v1190
      %v1192 = vpop.f32.mrf.mxu0
      %v1193 = vadd.f32 %v211, %v1192
      %1194 = vdwg.mxu0
      %1195 = vmatpush.bf16.msra.mxu0 0
      %1196 = vmatpush.bf16.msra.mxu0 0
      %1197 = vmatpush.bf16.msra.mxu0 %v1151
      %1198 = vmatpush.bf16.msra.mxu0 %v1115
      %1199 = vmatpush.bf16.msra.mxu0 %v1113
      %1200 = vmatpush.bf16.msra.mxu0 %v1111
      %1201 = vmatpush.bf16.msra.mxu0 %v1109
      %1202 = vmatpush.bf16.msra.mxu0 %v1107
      %1203 = vmatmul.bf16.gmra.mxu0 %v1145
      %v1204 = vpop.f32.mrf.mxu0
      %v1205 = vadd.f32 %v1191, %v1204
      %v1206 = vpop.f32.mrf.mxu0
      %v1207 = vadd.f32 %v1193, %v1206
      %1208 = vdwg.mxu0
      %vm1209 = vcmp.ge.f32.partialorder %v1177, 0.0
      %vm1210 = vcmp.ge.f32.partialorder %v1205, 0.0
      %vm1211 = vcmp.ge.f32.partialorder %v1179, 0.0
      %vm1212 = vcmp.ge.f32.partialorder %v1207, 0.0
      %v1213 = vmul.f32 %v1177, 0.01
      %v1214 = vmul.f32 %v1205, 0.01
      %v1215 = vmul.f32 %v1179, 0.01
      %v1216 = vmul.f32 %v1207, 0.01
      %v1217 = vsel %vm1209, %v1177, %v1213
      %v1218 = vsel %vm1210, %v1205, %v1214
      %v1219 = vsel %vm1211, %v1179, %v1215
      %v1220 = vsel %vm1212, %v1207, %v1216
      %v1221 = vadd.f32 %v1217, %v1218
      %1222 = vadd.xlane.f32.xlu0 %v1221
      %v1223 = vpop.xlane.xlu0 %1222
      %v1224 = vsel %vm439, %v1219, 0.0
      %v1225 = vsel %vm439, %v1220, 0.0
      %v1226 = vadd.f32 %v1224, %v1225
      %1227 = vadd.xlane.f32.xlu0 %v1226
      %v1228 = vpop.xlane.xlu0 %1227
      %v1229 = vadd.f32 %v967, %v1223
      %v1230 = vadd.f32 %v968, %v1228
      %v1231 = vrcp.pop 1024.0
      %v1232 = vmul.f32 1024.0, %v1231
      %v1233 = vsub.f32 1.0, %v1232
      %v1234 = vmul.f32 %v1231, %v1233
      %v1235 = vadd.f32 %v1231, %v1234
      %vm1236 = vweird.f32 %v1231
      %v1237 = vsel %vm1236, %v1231, %v1235
      %v1238 = vmul.f32 %v1229, %v1237
      %v1239 = vmul.f32 %v1230, %v1237
      %v1240 = vsub.f32 %v432, %v1238
      %v1241 = vsub.f32 %v433, %v1238
      %v1242 = vsub.f32 %v434, %v1239
      %v1243 = vsub.f32 %v435, %v1239
      %v1244 = vmul.f32 %v1240, %v1240
      %v1245 = vmul.f32 %v1241, %v1241
      %v1246 = vmul.f32 %v1242, %v1242
      %v1247 = vmul.f32 %v1243, %v1243
      %v1248 = vadd.f32 %v1244, %v1245
      %1249 = vadd.xlane.f32.xlu0 %v1248
      %v1250 = vpop.xlane.xlu0 %1249
      %v1251 = vsel %vm439, %v1246, 0.0
      %v1252 = vsel %vm439, %v1247, 0.0
      %v1253 = vadd.f32 %v1251, %v1252
      %1254 = vadd.xlane.f32.xlu0 %v1253
      %v1255 = vpop.xlane.xlu0 %1254
      %v1256 = vsub.f32 %v693, %v1238
      %v1257 = vsub.f32 %v694, %v1238
      %v1258 = vsub.f32 %v695, %v1239
      %v1259 = vsub.f32 %v696, %v1239
      %v1260 = vmul.f32 %v1256, %v1256
      %v1261 = vmul.f32 %v1257, %v1257
      %v1262 = vmul.f32 %v1258, %v1258
      %v1263 = vmul.f32 %v1259, %v1259
      %v1264 = vadd.f32 %v1260, %v1261
      %1265 = vadd.xlane.f32.xlu0 %v1264
      %v1266 = vpop.xlane.xlu0 %1265
      %v1267 = vsel %vm439, %v1262, 0.0
      %v1268 = vsel %vm439, %v1263, 0.0
      %v1269 = vadd.f32 %v1267, %v1268
      %1270 = vadd.xlane.f32.xlu0 %v1269
      %v1271 = vpop.xlane.xlu0 %1270
      %v1272 = vadd.f32 %v1250, %v1266
      %v1273 = vadd.f32 %v1255, %v1271
      %v1274 = vsub.f32 %v955, %v1238
      %v1275 = vsub.f32 %v956, %v1238
      %v1276 = vsub.f32 %v957, %v1239
      %v1277 = vsub.f32 %v958, %v1239
      %v1278 = vmul.f32 %v1274, %v1274
      %v1279 = vmul.f32 %v1275, %v1275
      %v1280 = vmul.f32 %v1276, %v1276
      %v1281 = vmul.f32 %v1277, %v1277
      %v1282 = vadd.f32 %v1278, %v1279
      %1283 = vadd.xlane.f32.xlu0 %v1282
      %v1284 = vpop.xlane.xlu0 %1283
      %v1285 = vsel %vm439, %v1280, 0.0
      %v1286 = vsel %vm439, %v1281, 0.0
      %v1287 = vadd.f32 %v1285, %v1286
      %1288 = vadd.xlane.f32.xlu0 %v1287
      %v1289 = vpop.xlane.xlu0 %1288
      %v1290 = vadd.f32 %v1272, %v1284
      %v1291 = vadd.f32 %v1273, %v1289
      %v1292 = vsub.f32 %v1217, %v1238
      %v1293 = vsub.f32 %v1218, %v1238
      %v1294 = vsub.f32 %v1219, %v1239
      %v1295 = vsub.f32 %v1220, %v1239
      %v1296 = vmul.f32 %v1292, %v1292
      %v1297 = vmul.f32 %v1293, %v1293
      %v1298 = vmul.f32 %v1294, %v1294
      %v1299 = vmul.f32 %v1295, %v1295
      %v1300 = vadd.f32 %v1296, %v1297
      %1301 = vadd.xlane.f32.xlu0 %v1300
      %v1302 = vpop.xlane.xlu0 %1301
      %v1303 = vsel %vm439, %v1298, 0.0
      %v1304 = vsel %vm439, %v1299, 0.0
      %v1305 = vadd.f32 %v1303, %v1304
      %1306 = vadd.xlane.f32.xlu0 %v1305
      %v1307 = vpop.xlane.xlu0 %1306
      %v1308 = vadd.f32 %v1290, %v1302
      %v1309 = vadd.f32 %v1291, %v1307
      %v1310 = vmul.f32 %v1308, %v1237
      %v1311 = vmul.f32 %v1309, %v1237
      %v1312 = vadd.f32 %v1310, 1e-05
      %v1313 = vadd.f32 %v1311, 1e-05
      %v1314 = vrsqrt.pop %v1312
      %v1315 = vmul.f32 %v1314, %v1312
      %v1316 = vmul.f32 %v1315, %v1314
      %v1317 = vmul.f32 0.5, %v1316
      %v1318 = vsub.f32 1.5, %v1317
      %v1319 = vmul.f32 %v1314, %v1318
      %vm1320 = vweird.f32 %v1312
      %vm1321 = vweird.f32 %v1314
      %vm1322 = vmor %vm1320, %vm1321
      %v1323 = vsel %vm1322, %v1314, %v1319
      %v1324 = vrsqrt.pop %v1313
      %v1325 = vmul.f32 %v1324, %v1313
      %v1326 = vmul.f32 %v1325, %v1324
      %v1327 = vmul.f32 0.5, %v1326
      %v1328 = vsub.f32 1.5, %v1327
      %v1329 = vmul.f32 %v1324, %v1328
      %vm1330 = vweird.f32 %v1313
      %vm1331 = vweird.f32 %v1324
      %vm1332 = vmor %vm1330, %vm1331
      %v1333 = vsel %vm1332, %v1324, %v1329
      %v1334 = vmul.f32 %v1240, %v1323
      %v1335 = vmul.f32 %v1241, %v1323
      %v1336 = vmul.f32 %v1242, %v1333
      %v1337 = vmul.f32 %v1243, %v1333
      %1338 = vst [vmem:[%s170] sm:$0xff] %v1334
      %1339 = vst [vmem:[%s170 + $0x8] sm:$0xff] %v1335
      %1340 = vst [vmem:[%s170 + $0x10] sm:$0x3f] %v1336
      %1341 = vst [vmem:[%s170 + $0x18] sm:$0x3f] %v1337
      %v1342 = vmul.f32 %v1256, %v1323
      %v1343 = vmul.f32 %v1257, %v1323
      %v1344 = vmul.f32 %v1258, %v1333
      %v1345 = vmul.f32 %v1259, %v1333
      %s1346 = scalar_lea.vmem %s170, 32
      %1347 = vst [vmem:[%s1346] sm:$0xff] %v1342
      %1348 = vst [vmem:[%s1346 + $0x8] sm:$0xff] %v1343
      %1349 = vst [vmem:[%s1346 + $0x10] sm:$0x3f] %v1344
      %1350 = vst [vmem:[%s1346 + $0x18] sm:$0x3f] %v1345
      %v1351 = vmul.f32 %v1274, %v1323
      %v1352 = vmul.f32 %v1275, %v1323
      %v1353 = vmul.f32 %v1276, %v1333
      %v1354 = vmul.f32 %v1277, %v1333
      %s1355 = scalar_lea.vmem %s170, 64
      %1356 = vst [vmem:[%s1355] sm:$0xff] %v1351
      %1357 = vst [vmem:[%s1355 + $0x8] sm:$0xff] %v1352
      %1358 = vst [vmem:[%s1355 + $0x10] sm:$0x3f] %v1353
      %1359 = vst [vmem:[%s1355 + $0x18] sm:$0x3f] %v1354
      %v1360 = vmul.f32 %v1292, %v1323
      %v1361 = vmul.f32 %v1293, %v1323
      %v1362 = vmul.f32 %v1294, %v1333
      %v1363 = vmul.f32 %v1295, %v1333
      %s1364 = scalar_lea.vmem %s170, 96
      %1365 = vst [vmem:[%s1364] sm:$0xff] %v1360
      %1366 = vst [vmem:[%s1364 + $0x8] sm:$0xff] %v1361
      %1367 = vst [vmem:[%s1364 + $0x10] sm:$0x3f] %v1362
      %1368 = vst [vmem:[%s1364 + $0x18] sm:$0x3f] %v1363
      %p1369 = scmp.lt.s32.totalorder %s14, 1
      %s1370 = scalar_select %p1369, %s14, 1
      %s1371 = smul.addr %s1370, 16
      %s1372 = smul.addr %s1371, 8
      %s1373 = scalar_lea.vmem %s3, %s1372
      // Predicated region
      $region33: #{base_unet_forward.20} parent=31 // pred_check
        %p1374 = pneg %p100
      $region34: #{base_unet_forward.20} parent=31 // pred_check_branch
        %1376 = sbr.rel (%p1374) target = $region36
      $region35: #{base_unet_forward.20} parent=31 // pred_region
        _
      $region36: #{base_unet_forward.20} parent=31 // pred_fallthru
        _
    $region32: #{base_unet_forward.20} parent=5 // pred_fallthru
      _
    %p1377 = scmp.le.s32.totalorder 2, %s9
    // Predicated region
    $region37: #{base_unet_forward.20} parent=5 // pred_check
      %p1378 = pneg %p1377
    $region38: #{base_unet_forward.20} parent=5 // pred_check_branch
      %1380 = sbr.rel (%p1378) target = $region40
    $region39: #{base_unet_forward.20} parent=5 // pred_region
      %s1381 = ssub.s32 %s9, 2
      // Predicated region
      $region41: #{base_unet_forward.20} parent=39 // pred_check
        %p1382 = pneg %p106
      $region42: #{base_unet_forward.20} parent=39 // pred_check_branch
        %1384 = sbr.rel (%p1382) target = $region44
      $region43: #{base_unet_forward.20} parent=39 // pred_region
        %p1385 = scmp.lt.s32.totalorder %s15, 1
        %s1386 = scalar_select %p1385, %s15, 1
        %s1387 = smul.addr %s1386, 16
        %s1388 = smul.addr %s1387, 8
        %s1389 = scalar_lea.vmem %s3, %s1388
      $region44: #{base_unet_forward.20} parent=39 // pred_fallthru
        _
    $region40: #{base_unet_forward.20} parent=5 // pred_fallthru
      _
  $region6: #{base_unet_forward.20} parent=0 // loop_footer
    %s13 = sadd.s32 1, %s9
  $region7: #{base_unet_forward.20} parent=0 // loop_footer_branch
    %8 = sbr.rel target = $region3
  $region8: #{base_unet_forward.20} parent=0 // loop_exit
    _

// kernel: base_unet_forward.21
$region0: #{base_unet_forward.21}
  #allocation0 [shape = 'u32[]', space=smem, size = 0x4, offset = 0x4, fixed_abs, tag = 'smem constant byte address 0x4 - core index']
  #allocation1 [shape = 'u32[72,128]{1,0:T(1,128)}', space=vmem, size = 0x9000, scoped, tag = 'internal scratch']
  %s0 = inlined_call_operand.vmem [shape: f32[2,2,7168], index: 0, kind: input, shape index: {}]
  %s1 = inlined_call_operand.vmem [shape: f32[14,2], index: 1, kind: input, shape index: {}]
  %s2 = inlined_call_operand.vmem [shape: f32[14,1], index: 2, kind: input, shape index: {}]
  %s3 = inlined_call_operand.vmem [shape: f32[21,14], index: 3, kind: input, shape index: {}]
  %s4 = inlined_call_operand.vmem [shape: f32[21,1], index: 4, kind: input, shape index: {}]
  %s5 = inlined_call_operand.vmem [shape: f32[2,21,7168], index: 5, kind: output, shape index: {}]
  %s6 = sld [smem:[#allocation0]]
  $region72: #{base_unet_forward.21} parent=0
    _
  %s8 = ssub.s32 1, %s6
  %s9 = scalar_select 0, %s8, %s6
  $region1: #{base_unet_forward.21} parent=0
    #allocation2 [shape = 'u8[196608]{0}', space=vmem, size = 0x30000, scoped, tag = 'output window, operand 0']
    loop: start=0, step=1, limit=16
    $region2: #{base_unet_forward.21} parent=1 // loop_pre_header
      _
    $region3: #{base_unet_forward.21} parent=1 // loop_header
      %s11 = sphi 0, %s15
      %p12 = scmp.ge.s32.totalorder %s11, 16
      %s18 = sphi 0, %s30
      %s19 = sphi 0, %s26
      %s20 = sphi 0, %s18
      %s21 = sphi 0, %s19
      %s22 = sphi 0, %s20
      %s23 = sphi 0, %s21
      %s35 = sphi 0, %s37
      %s38 = sphi 0, %s35
      %s39 = sphi 0, %s38
      %s55 = sphi 0, %s39
      %s59 = sphi 0, %s59
      %s61 = sphi 0, %s59
      %s62 = sphi 0, %s61
      %s76 = sphi 0, %s62
      %s80 = sphi 0, %s80
      %s82 = sphi 0, %s80
      %s83 = sphi 0, %s82
      %s97 = sphi 0, %s83
      %s101 = sphi 0, %s101
      %s103 = sphi 0, %s101
      %s104 = sphi 0, %s103
      %s118 = sphi 0, %s104
      %s122 = sphi 0, %s122
      %s124 = sphi 0, %s122
      %s125 = sphi 0, %s124
      %s139 = sphi 0, %s125
      %s147 = sphi 0, %s149
      %s150 = sphi 0, %s147
      %s151 = sphi 0, %s150
      %s167 = sphi 0, %s151
    $region4: #{base_unet_forward.21} parent=1 // loop_header_branch
      %14 = sbr.rel (%p12) target = $region8
    $region5: #{base_unet_forward.21} parent=1 // loop_body
      %s16 = ssub.s32 %s11, 1
      %s17 = ssub.s32 %s11, 2
      %s24 = sadd.s32 1, %s19
      %p25 = scmp.ge.s32.totalorder %s24, 7
      %s26 = scalar_select %p25, 0, %s24
      %s27 = sadd.s32 1, %s18
      %s28 = scalar_select %p25, %s27, %s18
      %p29 = scmp.ge.s32.totalorder %s28, 2
      %s30 = scalar_select %p29, 0, %s28
      %s31 = ssub.s32 %s18, %s30
      %s32 = ssub.s32 %s19, %s26
      %s33 = sor.u32 %s31, %s32
      %p34 = scmp.eq.s32.totalorder %s33, 0
      %s36 = sadd.s32 %s35, 1
      %s37 = scalar_select %p34, %s35, %s36
      %p40 = pneg %p34
      %p41 = scmp.eq.s32.totalorder %s11, 13
      %p42 = por %p40, %p41
      %p43 = scmp.ne.s32.totalorder %s35, %s38
      %p44 = scmp.eq.s32.totalorder %s11, 0
      %p45 = por %p43, %p44
      %p46 = scmp.ne.s32.totalorder %s35, %s38
      %p47 = scmp.eq.s32.totalorder %s16, 13
      %p48 = por %p46, %p47
      %p49 = scmp.ne.s32.totalorder %s38, %s39
      %p50 = scmp.eq.s32.totalorder %s16, 0
      %p51 = por %p49, %p50
      %p52 = scmp.ne.s32.totalorder %s38, %s39
      %p53 = scmp.eq.s32.totalorder %s17, 13
      %p54 = por %p52, %p53
      %p56 = scmp.ne.s32.totalorder %s39, %s55
      %p57 = scmp.eq.s32.totalorder %s17, 0
      %p58 = por %p56, %p57
      %s60 = sadd.s32 %s59, 1
      %p63 = scmp.eq.s32.totalorder %s11, 13
      %p64 = scmp.ne.s32.totalorder %s59, %s61
      %p65 = scmp.eq.s32.totalorder %s11, 0
      %p66 = por %p64, %p65
      %p67 = scmp.ne.s32.totalorder %s59, %s61
      %p68 = scmp.eq.s32.totalorder %s16, 13
      %p69 = por %p67, %p68
      %p70 = scmp.ne.s32.totalorder %s61, %s62
      %p71 = scmp.eq.s32.totalorder %s16, 0
      %p72 = por %p70, %p71
      %p73 = scmp.ne.s32.totalorder %s61, %s62
      %p74 = scmp.eq.s32.totalorder %s17, 13
      %p75 = por %p73, %p74
      %p77 = scmp.ne.s32.totalorder %s62, %s76
      %p78 = scmp.eq.s32.totalorder %s17, 0
      %p79 = por %p77, %p78
      %s81 = sadd.s32 %s80, 1
      %p84 = scmp.eq.s32.totalorder %s11, 13
      %p85 = scmp.ne.s32.totalorder %s80, %s82
      %p86 = scmp.eq.s32.totalorder %s11, 0
      %p87 = por %p85, %p86
      %p88 = scmp.ne.s32.totalorder %s80, %s82
      %p89 = scmp.eq.s32.totalorder %s16, 13
      %p90 = por %p88, %p89
      %p91 = scmp.ne.s32.totalorder %s82, %s83
      %p92 = scmp.eq.s32.totalorder %s16, 0
      %p93 = por %p91, %p92
      %p94 = scmp.ne.s32.totalorder %s82, %s83
      %p95 = scmp.eq.s32.totalorder %s17, 13
      %p96 = por %p94, %p95
      %p98 = scmp.ne.s32.totalorder %s83, %s97
      %p99 = scmp.eq.s32.totalorder %s17, 0
      %p100 = por %p98, %p99
      %s102 = sadd.s32 %s101, 1
      %p105 = scmp.eq.s32.totalorder %s11, 13
      %p106 = scmp.ne.s32.totalorder %s101, %s103
      %p107 = scmp.eq.s32.totalorder %s11, 0
      %p108 = por %p106, %p107
      %p109 = scmp.ne.s32.totalorder %s101, %s103
      %p110 = scmp.eq.s32.totalorder %s16, 13
      %p111 = por %p109, %p110
      %p112 = scmp.ne.s32.totalorder %s103, %s104
      %p113 = scmp.eq.s32.totalorder %s16, 0
      %p114 = por %p112, %p113
      %p115 = scmp.ne.s32.totalorder %s103, %s104
      %p116 = scmp.eq.s32.totalorder %s17, 13
      %p117 = por %p115, %p116
      %p119 = scmp.ne.s32.totalorder %s104, %s118
      %p120 = scmp.eq.s32.totalorder %s17, 0
      %p121 = por %p119, %p120
      %s123 = sadd.s32 %s122, 1
      %p126 = scmp.eq.s32.totalorder %s11, 13
      %p127 = scmp.ne.s32.totalorder %s122, %s124
      %p128 = scmp.eq.s32.totalorder %s11, 0
      %p129 = por %p127, %p128
      %p130 = scmp.ne.s32.totalorder %s122, %s124
      %p131 = scmp.eq.s32.totalorder %s16, 13
      %p132 = por %p130, %p131
      %p133 = scmp.ne.s32.totalorder %s124, %s125
      %p134 = scmp.eq.s32.totalorder %s16, 0
      %p135 = por %p133, %p134
      %p136 = scmp.ne.s32.totalorder %s124, %s125
      %p137 = scmp.eq.s32.totalorder %s17, 13
      %p138 = por %p136, %p137
      %p140 = scmp.ne.s32.totalorder %s125, %s139
      %p141 = scmp.eq.s32.totalorder %s17, 0
      %p142 = por %p140, %p141
      %s143 = ssub.s32 %s18, %s30
      %s144 = ssub.s32 %s19, %s26
      %s145 = sor.u32 %s143, %s144
      %p146 = scmp.eq.s32.totalorder %s145, 0
      %s148 = sadd.s32 %s147, 1
      %s149 = scalar_select %p146, %s147, %s148
      %p152 = pneg %p146
      %p153 = scmp.eq.s32.totalorder %s11, 13
      %p154 = por %p152, %p153
      %p155 = scmp.ne.s32.totalorder %s147, %s150
      %p156 = scmp.eq.s32.totalorder %s11, 0
      %p157 = por %p155, %p156
      %p158 = scmp.ne.s32.totalorder %s147, %s150
      %p159 = scmp.eq.s32.totalorder %s16, 13
      %p160 = por %p158, %p159
      %p161 = scmp.ne.s32.totalorder %s150, %s151
      %p162 = scmp.eq.s32.totalorder %s16, 0
      %p163 = por %p161, %p162
      %p164 = scmp.ne.s32.totalorder %s150, %s151
      %p165 = scmp.eq.s32.totalorder %s17, 13
      %p166 = por %p164, %p165
      %p168 = scmp.ne.s32.totalorder %s151, %s167
      %p169 = scmp.eq.s32.totalorder %s17, 0
      %p170 = por %p168, %p169
      %p171 = scmp.le.s32.totalorder 1, %s11
      %p172 = scmp.lt.s32.totalorder %s11, 15
      %p173 = pnand %p171, %p172
      %p174 = pneg %p173
      // Predicated region
      $region9: #{base_unet_forward.21} parent=5 // pred_check
        _
      $region10: #{base_unet_forward.21} parent=5 // pred_check_branch
        %176 = sbr.rel (%p173) target = $region12
      $region11: #{base_unet_forward.21} parent=5 // pred_region
        %s177 = ssub.s32 %s11, 1
        // Predicated region
        $region13: #{base_unet_forward.21} parent=11 // pred_check
          %p178 = pneg %p72
        $region14: #{base_unet_forward.21} parent=11 // pred_check_branch
          %180 = sbr.rel (%p178) target = $region16
        $region15: #{base_unet_forward.21} parent=11 // pred_region
          _
        $region16: #{base_unet_forward.21} parent=11 // pred_fallthru
          _
        // Predicated region
        $region17: #{base_unet_forward.21} parent=11 // pred_check
          %p181 = pneg %p93
        $region18: #{base_unet_forward.21} parent=11 // pred_check_branch
          %183 = sbr.rel (%p181) target = $region20
        $region19: #{base_unet_forward.21} parent=11 // pred_region
          _
        $region20: #{base_unet_forward.21} parent=11 // pred_fallthru
          _
        // Predicated region
        $region21: #{base_unet_forward.21} parent=11 // pred_check
          %p184 = pneg %p114
        $region22: #{base_unet_forward.21} parent=11 // pred_check_branch
          %186 = sbr.rel (%p184) target = $region24
        $region23: #{base_unet_forward.21} parent=11 // pred_region
          _
        $region24: #{base_unet_forward.21} parent=11 // pred_fallthru
          _
        // Predicated region
        $region25: #{base_unet_forward.21} parent=11 // pred_check
          %p187 = pneg %p135
        $region26: #{base_unet_forward.21} parent=11 // pred_check_branch
          %189 = sbr.rel (%p187) target = $region28
        $region27: #{base_unet_forward.21} parent=11 // pred_region
          _
        $region28: #{base_unet_forward.21} parent=11 // pred_fallthru
          _
      $region12: #{base_unet_forward.21} parent=5 // pred_fallthru
        _
      %p190 = scmp.lt.s32.totalorder %s11, 14
      // Predicated region
      $region29: #{base_unet_forward.21} parent=5 // pred_check
        %p191 = pneg %p190
      $region30: #{base_unet_forward.21} parent=5 // pred_check_branch
        %193 = sbr.rel (%p191) target = $region32
      $region31: #{base_unet_forward.21} parent=5 // pred_region
        // Predicated region
        $region33: #{base_unet_forward.21} parent=31 // pred_check
          %p194 = pneg %p45
        $region34: #{base_unet_forward.21} parent=31 // pred_check_branch
          %196 = sbr.rel (%p194) target = $region36
        $region35: #{base_unet_forward.21} parent=31 // pred_region
          %s197 = smul.u32 8, %s19
          %p198 = scmp.lt.s32.totalorder %s18, 1
          %s199 = scalar_select %p198, %s18, 1
          %p200 = scmp.lt.s32.totalorder %s197, 55
          %s201 = scalar_select %p200, %s197, 55
          %s202 = smul.addr %s199, 56
          %s203 = sadd.s32 %s201, %s202
          %s204 = smul.addr %s203, 2
          %s205 = scalar_lea.vmem %s0, %s204
          %s206 = smul.u32 8, %s19
        $region36: #{base_unet_forward.21} parent=31 // pred_fallthru
          _
      $region32: #{base_unet_forward.21} parent=5 // pred_fallthru
        _
      %p207 = scmp.le.s32.totalorder 1, %s11
      %p208 = scmp.lt.s32.totalorder %s11, 15
      %p209 = pnand %p207, %p208
      %p210 = pneg %p209
      // Predicated region
      $region37: #{base_unet_forward.21} parent=5 // pred_check
        _
      $region38: #{base_unet_forward.21} parent=5 // pred_check_branch
        %212 = sbr.rel (%p209) target = $region40
      $region39: #{base_unet_forward.21} parent=5 // pred_region
        %s213 = ssub.s32 %s11, 1
        %s214 = smul.u32 8, %s21
        %p215 = scmp.lt.s32.totalorder %s20, 1
        %s216 = scalar_select %p215, %s20, 1
        %p217 = scmp.lt.s32.totalorder %s214, 55
        %s218 = scalar_select %p217, %s214, 55
        %s219 = smul.addr %s216, 56
        %s220 = sadd.s32 %s218, %s219
        %s221 = smul.addr %s220, 2
        %s222 = scalar_lea.vmem %s0, %s221
        %p223 = pneg %p51
        %p224 = pneg %p48
        %p225 = pneg %p72
        %p226 = pneg %p69
        %p227 = pneg %p93
        %p228 = pneg %p90
        %p229 = pneg %p114
        %p230 = pneg %p111
        %p231 = pneg %p135
        %p232 = pneg %p132
        %p233 = pneg %p163
        %p234 = pneg %p160
        %s235 = sand.u32 %s150, 1
        %s236 = sand.u32 %s150, 1
        %s237 = smul.addr %s236, 192
        %s238 = scalar_lea.vmem [#allocation2], %s237
        %s239 = smul.u32 8, %s21
        %p240 = scmp.lt.s32.totalorder %s20, 1
        %s241 = scalar_select %p240, %s20, 1
        %p242 = scmp.lt.s32.totalorder %s239, 55
        %s243 = scalar_select %p242, %s239, 55
        %s244 = smul.addr %s241, 56
        %s245 = sadd.s32 %s243, %s244
        %s246 = smul.addr %s245, 2
        %s247 = scalar_lea.vmem %s0, %s246
        %s248 = smul.u32 8, %s21
        %s249 = smul.u32 8, %s21
        %v250 = vld [vmem:[%s247] sm:$0xff]
        %v251 = vld [vmem:[%s247 + $0x8] sm:$0xff]
        %v252 = vld [vmem:[%s1] sm:$0xff]
        %v253 = vld [vmem:[%s1 + $0x8] sm:$0x3f]
        %255 = vset.pattern.permute.xlu0 0
        %256 = vperm.xlu0 %255, %v252
        %v257 = vpop.permute.xlu0 %256
        %260 = vset.pattern.permute.xlu0 0
        %261 = vperm.xlu0 %260, %v253
        %v262 = vpop.permute.xlu0 %261
        %v266 = vperm.slane %v250, 0
        %v267 = vperm.slane %v250, 2
        %v268 = vperm.slane %v250, 4
        %v269 = vperm.slane %v250, 6
        %v270 = vperm.slane %v251, 0
        %v271 = vperm.slane %v251, 2
        %v272 = vperm.slane %v251, 4
        %v273 = vperm.slane %v251, 6
        %v282 = vperm.slane %v266, 0
        %v283 = vperm.slane %v267, 0
        %v284 = vperm.slane %v268, 0
        %v285 = vperm.slane %v269, 0
        %v286 = vperm.slane %v270, 0
        %v287 = vperm.slane %v271, 0
        %v288 = vperm.slane %v272, 0
        %v289 = vperm.slane %v273, 0
        %v290 = vmul.f32 %v257, %v282
        %v291 = vmul.f32 %v257, %v283
        %v292 = vmul.f32 %v257, %v284
        %v293 = vmul.f32 %v257, %v285
        %v294 = vmul.f32 %v257, %v286
        %v295 = vmul.f32 %v257, %v287
        %v296 = vmul.f32 %v257, %v288
        %v297 = vmul.f32 %v257, %v289
        %v298 = vmul.f32 %v262, %v282
        %v299 = vmul.f32 %v262, %v283
        %v300 = vmul.f32 %v262, %v284
        %v301 = vmul.f32 %v262, %v285
        %v302 = vmul.f32 %v262, %v286
        %v303 = vmul.f32 %v262, %v287
        %v304 = vmul.f32 %v262, %v288
        %v305 = vmul.f32 %v262, %v289
        %306 = vset.pattern.permute.xlu0 1
        %307 = vperm.xlu0 %306, %v252
        %v308 = vpop.permute.xlu0 %307
        %310 = vset.pattern.permute.xlu0 1
        %311 = vperm.xlu0 %310, %v253
        %v312 = vpop.permute.xlu0 %311
        %v314 = vperm.slane %v250, 1
        %v315 = vperm.slane %v250, 3
        %v316 = vperm.slane %v250, 5
        %v317 = vperm.slane %v250, 7
        %v318 = vperm.slane %v251, 1
        %v319 = vperm.slane %v251, 3
        %v320 = vperm.slane %v251, 5
        %v321 = vperm.slane %v251, 7
        %v330 = vperm.slane %v314, 1
        %v331 = vperm.slane %v315, 1
        %v332 = vperm.slane %v316, 1
        %v333 = vperm.slane %v317, 1
        %v334 = vperm.slane %v318, 1
        %v335 = vperm.slane %v319, 1
        %v336 = vperm.slane %v320, 1
        %v337 = vperm.slane %v321, 1
        %v338 = vmul.f32 %v308, %v330
        %v339 = vmul.f32 %v308, %v331
        %v340 = vmul.f32 %v308, %v332
        %v341 = vmul.f32 %v308, %v333
        %v342 = vmul.f32 %v308, %v334
        %v343 = vmul.f32 %v308, %v335
        %v344 = vmul.f32 %v308, %v336
        %v345 = vmul.f32 %v308, %v337
        %v346 = vmul.f32 %v312, %v330
        %v347 = vmul.f32 %v312, %v331
        %v348 = vmul.f32 %v312, %v332
        %v349 = vmul.f32 %v312, %v333
        %v350 = vmul.f32 %v312, %v334
        %v351 = vmul.f32 %v312, %v335
        %v352 = vmul.f32 %v312, %v336
        %v353 = vmul.f32 %v312, %v337
        %v354 = vadd.f32 %v290, %v338
        %v355 = vadd.f32 %v291, %v339
        %v356 = vadd.f32 %v292, %v340
        %v357 = vadd.f32 %v293, %v341
        %v358 = vadd.f32 %v294, %v342
        %v359 = vadd.f32 %v295, %v343
        %v360 = vadd.f32 %v296, %v344
        %v361 = vadd.f32 %v297, %v345
        %v362 = vadd.f32 %v298, %v346
        %v363 = vadd.f32 %v299, %v347
        %v364 = vadd.f32 %v300, %v348
        %v365 = vadd.f32 %v301, %v349
        %v366 = vadd.f32 %v302, %v350
        %v367 = vadd.f32 %v303, %v351
        %v368 = vadd.f32 %v304, %v352
        %v369 = vadd.f32 %v305, %v353
        %v370 = vld [vmem:[%s2] sm:$0xff]
        %v371 = vld [vmem:[%s2 + $0x8] sm:$0x3f]
        %373 = vset.pattern.permute.xlu0 0
        %374 = vperm.xlu0 %373, %v370
        %v375 = vpop.permute.xlu0 %374
        %378 = vset.pattern.permute.xlu0 0
        %379 = vperm.xlu0 %378, %v371
        %v380 = vpop.permute.xlu0 %379
        %v382 = vadd.f32 %v354, %v375
        %v383 = vadd.f32 %v355, %v375
        %v384 = vadd.f32 %v356, %v375
        %v385 = vadd.f32 %v357, %v375
        %v386 = vadd.f32 %v358, %v375
        %v387 = vadd.f32 %v359, %v375
        %v388 = vadd.f32 %v360, %v375
        %v389 = vadd.f32 %v361, %v375
        %v390 = vadd.f32 %v362, %v380
        %v391 = vadd.f32 %v363, %v380
        %v392 = vadd.f32 %v364, %v380
        %v393 = vadd.f32 %v365, %v380
        %v394 = vadd.f32 %v366, %v380
        %v395 = vadd.f32 %v367, %v380
        %v396 = vadd.f32 %v368, %v380
        %v397 = vadd.f32 %v369, %v380
        %v398 = vmax.f32 %v382, 0.0
        %v399 = vmax.f32 %v383, 0.0
        %v400 = vmax.f32 %v384, 0.0
        %v401 = vmax.f32 %v385, 0.0
        %v402 = vmax.f32 %v386, 0.0
        %v403 = vmax.f32 %v387, 0.0
        %v404 = vmax.f32 %v388, 0.0
        %v405 = vmax.f32 %v389, 0.0
        %v406 = vmax.f32 %v390, 0.0
        %v407 = vmax.f32 %v391, 0.0
        %v408 = vmax.f32 %v392, 0.0
        %v409 = vmax.f32 %v393, 0.0
        %v410 = vmax.f32 %v394, 0.0
        %v411 = vmax.f32 %v395, 0.0
        %v412 = vmax.f32 %v396, 0.0
        %v413 = vmax.f32 %v397, 0.0
        %v414 = vld [vmem:[%s3] sm:$0xff]
        %v415 = vld [vmem:[%s3 + $0x8] sm:$0xff]
        %v416 = vld [vmem:[%s3 + $0x10] sm:$0x1f]
        %v417 = vld [vmem:[%s4] sm:$0xff]
        %v418 = vld [vmem:[%s4 + $0x8] sm:$0xff]
        %v419 = vld [vmem:[%s4 + $0x10] sm:$0x1f]
        %421 = vset.pattern.permute.xlu0 0
        %422 = vperm.xlu0 %421, %v417
        %v423 = vpop.permute.xlu0 %422
        %426 = vset.pattern.permute.xlu0 0
        %427 = vperm.xlu0 %426, %v418
        %v428 = vpop.permute.xlu0 %427
        %431 = vset.pattern.permute.xlu0 0
        %432 = vperm.xlu0 %431, %v419
        %v433 = vpop.permute.xlu0 %432
        %vm435 = vcmask 113664
        %v437 = vsel %vm435, %v414, 0
        %v440 = vsel %vm435, %v415, 0
        %v443 = vsel %vm435, %v416, 0
        %vm445 = vcmask 1045504
        %v447 = vsel %vm445, %v406, 0
        %v450 = vsel %vm445, %v407, 0
        %v453 = vsel %vm445, %v408, 0
        %v456 = vsel %vm445, %v409, 0
        %v459 = vsel %vm445, %v410, 0
        %v462 = vsel %vm445, %v411, 0
        %v465 = vsel %vm445, %v412, 0
        %v468 = vsel %vm445, %v413, 0
        %470 = vmatpush.msra.mxu0 0.0
        %471 = vmatpush.msra.mxu0 0.0
        %472 = vmatpush.msra.mxu0 0.0
        %473 = vmatpush.msra.mxu0 0.0
        %474 = vmatpush.msra.mxu0 0.0
        %475 = vmatpush.msra.mxu0 0.0
        %476 = vmatpush.msra.mxu0 0.0
        %477 = vmatpush.msra.mxu0 0.0
        %478 = vmatpush.msra.mxu0 0.0
        %479 = vmatpush.msra.mxu0 0.0
        %480 = vmatpush.msra.mxu0 0.0
        %481 = vmatpush.msra.mxu0 0.0
        %482 = vmatpush.msra.mxu0 0.0
        %483 = vmatpush.msra.mxu0 0.0
        %484 = vmatpush.msra.mxu0 %v447
        %485 = vmatpush.msra.mxu0 %v398
        %486 = vmatmul.f32.gmra.mxu0 %v437
        %v487 = vpop.f32.mrf.mxu0
        %v488 = vadd.f32 %v423, %v487
        %489 = vmatmul.f32.gmra.mxu0 %v440
        %v490 = vpop.f32.mrf.mxu0
        %v491 = vadd.f32 %v428, %v490
        %492 = vmatmul.f32.gmra.mxu0 %v443
        %v493 = vpop.f32.mrf.mxu0
        %v494 = vadd.f32 %v433, %v493
        %495 = vdwg.mxu0
        %496 = vmatpush.msra.mxu0 0.0
        %497 = vmatpush.msra.mxu0 0.0
        %498 = vmatpush.msra.mxu0 0.0
        %499 = vmatpush.msra.mxu0 0.0
        %500 = vmatpush.msra.mxu0 0.0
        %501 = vmatpush.msra.mxu0 0.0
        %502 = vmatpush.msra.mxu0 0.0
        %503 = vmatpush.msra.mxu0 0.0
        %504 = vmatpush.msra.mxu0 0.0
        %505 = vmatpush.msra.mxu0 0.0
        %506 = vmatpush.msra.mxu0 0.0
        %507 = vmatpush.msra.mxu0 0.0
        %508 = vmatpush.msra.mxu0 0.0
        %509 = vmatpush.msra.mxu0 0.0
        %510 = vmatpush.msra.mxu0 %v450
        %511 = vmatpush.msra.mxu0 %v399
        %512 = vmatmul.f32.gmra.mxu0 %v437
        %v513 = vpop.f32.mrf.mxu0
        %v514 = vadd.f32 %v423, %v513
        %515 = vmatmul.f32.gmra.mxu0 %v440
        %v516 = vpop.f32.mrf.mxu0
        %v517 = vadd.f32 %v428, %v516
        %518 = vmatmul.f32.gmra.mxu0 %v443
        %v519 = vpop.f32.mrf.mxu0
        %v520 = vadd.f32 %v433, %v519
        %521 = vdwg.mxu0
        %522 = vmatpush.msra.mxu0 0.0
        %523 = vmatpush.msra.mxu0 0.0
        %524 = vmatpush.msra.mxu0 0.0
        %525 = vmatpush.msra.mxu0 0.0
        %526 = vmatpush.msra.mxu0 0.0
        %527 = vmatpush.msra.mxu0 0.0
        %528 = vmatpush.msra.mxu0 0.0
        %529 = vmatpush.msra.mxu0 0.0
        %530 = vmatpush.msra.mxu0 0.0
        %531 = vmatpush.msra.mxu0 0.0
        %532 = vmatpush.msra.mxu0 0.0
        %533 = vmatpush.msra.mxu0 0.0
        %534 = vmatpush.msra.mxu0 0.0
        %535 = vmatpush.msra.mxu0 0.0
        %536 = vmatpush.msra.mxu0 %v453
        %537 = vmatpush.msra.mxu0 %v400
        %538 = vmatmul.f32.gmra.mxu0 %v437
        %v539 = vpop.f32.mrf.mxu0
        %v540 = vadd.f32 %v423, %v539
        %541 = vmatmul.f32.gmra.mxu0 %v440
        %v542 = vpop.f32.mrf.mxu0
        %v543 = vadd.f32 %v428, %v542
        %544 = vmatmul.f32.gmra.mxu0 %v443
        %v545 = vpop.f32.mrf.mxu0
        %v546 = vadd.f32 %v433, %v545
        %547 = vdwg.mxu0
        %548 = vmatpush.msra.mxu0 0.0
        %549 = vmatpush.msra.mxu0 0.0
        %550 = vmatpush.msra.mxu0 0.0
        %551 = vmatpush.msra.mxu0 0.0
        %552 = vmatpush.msra.mxu0 0.0
        %553 = vmatpush.msra.mxu0 0.0
        %554 = vmatpush.msra.mxu0 0.0
        %555 = vmatpush.msra.mxu0 0.0
        %556 = vmatpush.msra.mxu0 0.0
        %557 = vmatpush.msra.mxu0 0.0
        %558 = vmatpush.msra.mxu0 0.0
        %559 = vmatpush.msra.mxu0 0.0
        %560 = vmatpush.msra.mxu0 0.0
        %561 = vmatpush.msra.mxu0 0.0
        %562 = vmatpush.msra.mxu0 %v456
        %563 = vmatpush.msra.mxu0 %v401
        %564 = vmatmul.f32.gmra.mxu0 %v437
        %v565 = vpop.f32.mrf.mxu0
        %v566 = vadd.f32 %v423, %v565
        %567 = vmatmul.f32.gmra.mxu0 %v440
        %v568 = vpop.f32.mrf.mxu0
        %v569 = vadd.f32 %v428, %v568
        %570 = vmatmul.f32.gmra.mxu0 %v443
        %v571 = vpop.f32.mrf.mxu0
        %v572 = vadd.f32 %v433, %v571
        %573 = vdwg.mxu0
        %574 = vmatpush.msra.mxu0 0.0
        %575 = vmatpush.msra.mxu0 0.0
        %576 = vmatpush.msra.mxu0 0.0
        %577 = vmatpush.msra.mxu0 0.0
        %578 = vmatpush.msra.mxu0 0.0
        %579 = vmatpush.msra.mxu0 0.0
        %580 = vmatpush.msra.mxu0 0.0
        %581 = vmatpush.msra.mxu0 0.0
        %582 = vmatpush.msra.mxu0 0.0
        %583 = vmatpush.msra.mxu0 0.0
        %584 = vmatpush.msra.mxu0 0.0
        %585 = vmatpush.msra.mxu0 0.0
        %586 = vmatpush.msra.mxu0 0.0
        %587 = vmatpush.msra.mxu0 0.0
        %588 = vmatpush.msra.mxu0 %v459
        %589 = vmatpush.msra.mxu0 %v402
        %590 = vmatmul.f32.gmra.mxu0 %v437
        %v591 = vpop.f32.mrf.mxu0
        %v592 = vadd.f32 %v423, %v591
        %593 = vmatmul.f32.gmra.mxu0 %v440
        %v594 = vpop.f32.mrf.mxu0
        %v595 = vadd.f32 %v428, %v594
        %596 = vmatmul.f32.gmra.mxu0 %v443
        %v597 = vpop.f32.mrf.mxu0
        %v598 = vadd.f32 %v433, %v597
        %599 = vdwg.mxu0
        %600 = vmatpush.msra.mxu0 0.0
        %601 = vmatpush.msra.mxu0 0.0
        %602 = vmatpush.msra.mxu0 0.0
        %603 = vmatpush.msra.mxu0 0.0
        %604 = vmatpush.msra.mxu0 0.0
        %605 = vmatpush.msra.mxu0 0.0
        %606 = vmatpush.msra.mxu0 0.0
        %607 = vmatpush.msra.mxu0 0.0
        %608 = vmatpush.msra.mxu0 0.0
        %609 = vmatpush.msra.mxu0 0.0
        %610 = vmatpush.msra.mxu0 0.0
        %611 = vmatpush.msra.mxu0 0.0
        %612 = vmatpush.msra.mxu0 0.0
        %613 = vmatpush.msra.mxu0 0.0
        %614 = vmatpush.msra.mxu0 %v462
        %615 = vmatpush.msra.mxu0 %v403
        %616 = vmatmul.f32.gmra.mxu0 %v437
        %v617 = vpop.f32.mrf.mxu0
        %v618 = vadd.f32 %v423, %v617
        %619 = vmatmul.f32.gmra.mxu0 %v440
        %v620 = vpop.f32.mrf.mxu0
        %v621 = vadd.f32 %v428, %v620
        %622 = vmatmul.f32.gmra.mxu0 %v443
        %v623 = vpop.f32.mrf.mxu0
        %v624 = vadd.f32 %v433, %v623
        %625 = vdwg.mxu0
        %626 = vmatpush.msra.mxu0 0.0
        %627 = vmatpush.msra.mxu0 0.0
        %628 = vmatpush.msra.mxu0 0.0
        %629 = vmatpush.msra.mxu0 0.0
        %630 = vmatpush.msra.mxu0 0.0
        %631 = vmatpush.msra.mxu0 0.0
        %632 = vmatpush.msra.mxu0 0.0
        %633 = vmatpush.msra.mxu0 0.0
        %634 = vmatpush.msra.mxu0 0.0
        %635 = vmatpush.msra.mxu0 0.0
        %636 = vmatpush.msra.mxu0 0.0
        %637 = vmatpush.msra.mxu0 0.0
        %638 = vmatpush.msra.mxu0 0.0
        %639 = vmatpush.msra.mxu0 0.0
        %640 = vmatpush.msra.mxu0 %v465
        %641 = vmatpush.msra.mxu0 %v404
        %642 = vmatmul.f32.gmra.mxu0 %v437
        %v643 = vpop.f32.mrf.mxu0
        %v644 = vadd.f32 %v423, %v643
        %645 = vmatmul.f32.gmra.mxu0 %v440
        %v646 = vpop.f32.mrf.mxu0
        %v647 = vadd.f32 %v428, %v646
        %648 = vmatmul.f32.gmra.mxu0 %v443
        %v649 = vpop.f32.mrf.mxu0
        %v650 = vadd.f32 %v433, %v649
        %651 = vdwg.mxu0
        %652 = vmatpush.msra.mxu0 0.0
        %653 = vmatpush.msra.mxu0 0.0
        %654 = vmatpush.msra.mxu0 0.0
        %655 = vmatpush.msra.mxu0 0.0
        %656 = vmatpush.msra.mxu0 0.0
        %657 = vmatpush.msra.mxu0 0.0
        %658 = vmatpush.msra.mxu0 0.0
        %659 = vmatpush.msra.mxu0 0.0
        %660 = vmatpush.msra.mxu0 0.0
        %661 = vmatpush.msra.mxu0 0.0
        %662 = vmatpush.msra.mxu0 0.0
        %663 = vmatpush.msra.mxu0 0.0
        %664 = vmatpush.msra.mxu0 0.0
        %665 = vmatpush.msra.mxu0 0.0
        %666 = vmatpush.msra.mxu0 %v468
        %667 = vmatpush.msra.mxu0 %v405
        %668 = vmatmul.f32.gmra.mxu0 %v437
        %v669 = vpop.f32.mrf.mxu0
        %v670 = vadd.f32 %v423, %v669
        %671 = vmatmul.f32.gmra.mxu0 %v440
        %v672 = vpop.f32.mrf.mxu0
        %v673 = vadd.f32 %v428, %v672
        %674 = vmatmul.f32.gmra.mxu0 %v443
        %v675 = vpop.f32.mrf.mxu0
        %v676 = vadd.f32 %v433, %v675
        %677 = vdwg.mxu0
        %678 = vst [vmem:[%s238] sm:$0xff] %v488
        %679 = vst [vmem:[%s238 + $0x8] sm:$0xff] %v514
        %680 = vst [vmem:[%s238 + $0x10] sm:$0xff] %v540
        %681 = vst [vmem:[%s238 + $0x18] sm:$0xff] %v566
        %682 = vst [vmem:[%s238 + $0x20] sm:$0xff] %v592
        %683 = vst [vmem:[%s238 + $0x28] sm:$0xff] %v618
        %684 = vst [vmem:[%s238 + $0x30] sm:$0xff] %v644
        %685 = vst [vmem:[%s238 + $0x38] sm:$0xff] %v670
        %686 = vst [vmem:[%s238 + $0x40] sm:$0xff] %v491
        %687 = vst [vmem:[%s238 + $0x48] sm:$0xff] %v517
        %688 = vst [vmem:[%s238 + $0x50] sm:$0xff] %v543
        %689 = vst [vmem:[%s238 + $0x58] sm:$0xff] %v569
        %690 = vst [vmem:[%s238 + $0x60] sm:$0xff] %v595
        %691 = vst [vmem:[%s238 + $0x68] sm:$0xff] %v621
        %692 = vst [vmem:[%s238 + $0x70] sm:$0xff] %v647
        %693 = vst [vmem:[%s238 + $0x78] sm:$0xff] %v673
        %694 = vst [vmem:[%s238 + $0x80] sm:$0x1f] %v494
        %695 = vst [vmem:[%s238 + $0x88] sm:$0x1f] %v520
        %696 = vst [vmem:[%s238 + $0x90] sm:$0x1f] %v546
        %697 = vst [vmem:[%s238 + $0x98] sm:$0x1f] %v572
        %698 = vst [vmem:[%s238 + $0xa0] sm:$0x1f] %v598
        %699 = vst [vmem:[%s238 + $0xa8] sm:$0x1f] %v624
        %700 = vst [vmem:[%s238 + $0xb0] sm:$0x1f] %v650
        %701 = vst [vmem:[%s238 + $0xb8] sm:$0x1f] %v676
        %s702 = sand.u32 %s150, 1
        %s703 = sand.u32 %s150, 1
        %s704 = smul.addr %s703, 192
        %s705 = scalar_lea.vmem [#allocation2], %s704
        // Predicated region
        $region41: #{base_unet_forward.21} parent=39 // pred_check
          %p706 = pneg %p160
        $region42: #{base_unet_forward.21} parent=39 // pred_check_branch
          %708 = sbr.rel (%p706) target = $region44
        $region43: #{base_unet_forward.21} parent=39 // pred_region
          %s709 = smul.u32 8, %s21
          %s710 = smul.addr %s20, 168
          %s711 = sadd.s32 %s709, %s710
          %s712 = smul.addr %s711, 8
          %s713 = scalar_lea.vmem %s5, %s712
          // Predicated region
          $region45: #{base_unet_forward.21} parent=43 // pred_check
            _
          $region46: #{base_unet_forward.21} parent=43 // pred_check_branch
            %715 = sbr.rel (0) target = $region48
          $region47: #{base_unet_forward.21} parent=43 // pred_region
            // Predicated region
            $region49: #{base_unet_forward.21} parent=47 // pred_check
              _
            $region50: #{base_unet_forward.21} parent=47 // pred_check_branch
              %717 = sbr.rel (0) target = $region52
            $region51: #{base_unet_forward.21} parent=47 // pred_region
              loop: start=0, step=1, limit=1
              $region53: #{base_unet_forward.21} parent=51 // loop_pre_header
                _
              $region54: #{base_unet_forward.21} parent=51 // loop_header
                %s719 = sphi 0, %s723
                %p720 = scmp.ge.s32.totalorder %s719, 1
                %s724 = sphi %s705, %s705
                %s725 = sphi %s713, %s713
              $region55: #{base_unet_forward.21} parent=51 // loop_header_branch
                %722 = sbr.rel (%p720) target = $region59
              $region56: #{base_unet_forward.21} parent=51 // loop_body
                %v726 = vld [vmem:[%s724] sm:$0xff]
                %727 = vst [vmem:[%s725] sm:$0xff] %v726
                %v728 = vld [vmem:[%s724 + $0x8] sm:$0xff]
                %729 = vst [vmem:[%s725 + $0x8] sm:$0xff] %v728
                %v730 = vld [vmem:[%s724 + $0x10] sm:$0xff]
                %731 = vst [vmem:[%s725 + $0x10] sm:$0xff] %v730
                %v732 = vld [vmem:[%s724 + $0x18] sm:$0xff]
                %733 = vst [vmem:[%s725 + $0x18] sm:$0xff] %v732
                %v734 = vld [vmem:[%s724 + $0x20] sm:$0xff]
                %735 = vst [vmem:[%s725 + $0x20] sm:$0xff] %v734
                %v736 = vld [vmem:[%s724 + $0x28] sm:$0xff]
                %737 = vst [vmem:[%s725 + $0x28] sm:$0xff] %v736
                %v738 = vld [vmem:[%s724 + $0x30] sm:$0xff]
                %739 = vst [vmem:[%s725 + $0x30] sm:$0xff] %v738
                %v740 = vld [vmem:[%s724 + $0x38] sm:$0xff]
                %741 = vst [vmem:[%s725 + $0x38] sm:$0xff] %v740
                %v742 = vld [vmem:[%s724 + $0x40] sm:$0xff]
                %743 = vst [vmem:[%s725 + $0x1c0] sm:$0xff] %v742
                %v744 = vld [vmem:[%s724 + $0x48] sm:$0xff]
                %745 = vst [vmem:[%s725 + $0x1c8] sm:$0xff] %v744
                %v746 = vld [vmem:[%s724 + $0x50] sm:$0xff]
                %747 = vst [vmem:[%s725 + $0x1d0] sm:$0xff] %v746
                %v748 = vld [vmem:[%s724 + $0x58] sm:$0xff]
                %749 = vst [vmem:[%s725 + $0x1d8] sm:$0xff] %v748
                %v750 = vld [vmem:[%s724 + $0x60] sm:$0xff]
                %751 = vst [vmem:[%s725 + $0x1e0] sm:$0xff] %v750
                %v752 = vld [vmem:[%s724 + $0x68] sm:$0xff]
                %753 = vst [vmem:[%s725 + $0x1e8] sm:$0xff] %v752
                %v754 = vld [vmem:[%s724 + $0x70] sm:$0xff]
                %755 = vst [vmem:[%s725 + $0x1f0] sm:$0xff] %v754
                %v756 = vld [vmem:[%s724 + $0x78] sm:$0xff]
                %757 = vst [vmem:[%s725 + $0x1f8] sm:$0xff] %v756
                %v758 = vld [vmem:[%s724 + $0x80] sm:$0xff]
                %759 = vst [vmem:[%s725 + $0x380] sm:$0xff] %v758
                %v760 = vld [vmem:[%s724 + $0x88] sm:$0xff]
                %761 = vst [vmem:[%s725 + $0x388] sm:$0xff] %v760
                %v762 = vld [vmem:[%s724 + $0x90] sm:$0xff]
                %763 = vst [vmem:[%s725 + $0x390] sm:$0xff] %v762
                %v764 = vld [vmem:[%s724 + $0x98] sm:$0xff]
                %765 = vst [vmem:[%s725 + $0x398] sm:$0xff] %v764
                %v766 = vld [vmem:[%s724 + $0xa0] sm:$0xff]
                %767 = vst [vmem:[%s725 + $0x3a0] sm:$0xff] %v766
                %v768 = vld [vmem:[%s724 + $0xa8] sm:$0xff]
                %769 = vst [vmem:[%s725 + $0x3a8] sm:$0xff] %v768
                %v770 = vld [vmem:[%s724 + $0xb0] sm:$0xff]
                %771 = vst [vmem:[%s725 + $0x3b0] sm:$0xff] %v770
                %v772 = vld [vmem:[%s724 + $0xb8] sm:$0xff]
                %773 = vst [vmem:[%s725 + $0x3b8] sm:$0xff] %v772
              $region57: #{base_unet_forward.21} parent=51 // loop_footer
                %s723 = sadd.s32 1, %s719
              $region58: #{base_unet_forward.21} parent=51 // loop_footer_branch
                %718 = sbr.rel target = $region54
              $region59: #{base_unet_forward.21} parent=51 // loop_exit
                _
            $region52: #{base_unet_forward.21} parent=47 // pred_fallthru
              _
            // Predicated region
            $region60: #{base_unet_forward.21} parent=47 // pred_check
              _
            $region61: #{base_unet_forward.21} parent=47 // pred_check_branch
              %775 = sbr.rel target = $region63
            $region62: #{base_unet_forward.21} parent=47 // pred_region
              _
            $region63: #{base_unet_forward.21} parent=47 // pred_fallthru
              _
          $region48: #{base_unet_forward.21} parent=43 // pred_fallthru
            _
          %776 = vnop
        $region44: #{base_unet_forward.21} parent=39 // pred_fallthru
          _
      $region40: #{base_unet_forward.21} parent=5 // pred_fallthru
        _
      %p777 = scmp.le.s32.totalorder 2, %s11
      // Predicated region
      $region64: #{base_unet_forward.21} parent=5 // pred_check
        %p778 = pneg %p777
      $region65: #{base_unet_forward.21} parent=5 // pred_check_branch
        %780 = sbr.rel (%p778) target = $region67
      $region66: #{base_unet_forward.21} parent=5 // pred_region
        %s781 = ssub.s32 %s11, 2
        // Predicated region
        $region68: #{base_unet_forward.21} parent=66 // pred_check
          %p782 = pneg %p166
        $region69: #{base_unet_forward.21} parent=66 // pred_check_branch
          %784 = sbr.rel (%p782) target = $region71
        $region70: #{base_unet_forward.21} parent=66 // pred_region
          %s785 = sand.u32 %s151, 1
          %s786 = sand.u32 %s151, 1
          %s787 = smul.addr %s786, 192
          %s788 = scalar_lea.vmem [#allocation2], %s787
        $region71: #{base_unet_forward.21} parent=66 // pred_fallthru
          _
      $region67: #{base_unet_forward.21} parent=5 // pred_fallthru
        _
    $region6: #{base_unet_forward.21} parent=1 // loop_footer
      %s15 = sadd.s32 1, %s11
    $region7: #{base_unet_forward.21} parent=1 // loop_footer_branch
      %10 = sbr.rel target = $region3
    $region8: #{base_unet_forward.21} parent=1 // loop_exit
      _

</llo_original>
